<compile_context>
chip_gen: v7x
topology: tpu7x:2x2x1
jax: 0.10.0
libtpu: 0.0.40
codegen_flags: <defaults>
</compile_context>

<pallas_src>
import jax
import jax.numpy as jnp
from jax.experimental import pallas as pl
from jax.experimental.pallas import tpu as pltpu

D_MODEL = 512      # d_model / units
FFN = 2048         # FC hidden units[0]
LN_EPS = 1e-5      # nn.LayerNorm default eps


def _round_up(n, m):
    return ((n + m - 1) // m) * m


def fc_layer_kernel(x_ref, w1_ref, b1_ref, w2_ref, b2_ref, lnw_ref, lnb_ref,
                    out_ref):
    """Fused FC block: Linear -> ReLU -> Linear -> residual -> LayerNorm."""
    x = x_ref[...].astype(jnp.float32)                    # (tm, D) f32

    # Linear(512 -> 2048) + ReLU.  bf16 operands feed the MXU, f32 accumulate.
    h1 = jnp.dot(x.astype(jnp.bfloat16), w1_ref[...],
                 preferred_element_type=jnp.float32) + b1_ref[...]
    # Keep the wide (tm, FFN) intermediate in bf16: halves the VMEM scratch /
    # spill traffic into the second matmul; identical rounding point to the
    # previous version (cast happened at the second dot anyway).
    h1 = jnp.maximum(h1, 0.0).astype(jnp.bfloat16)        # (tm, FFN) bf16

    # Linear(2048 -> 512), f32 accumulate.
    h2 = jnp.dot(h1, w2_ref[...],
                 preferred_element_type=jnp.float32) + b2_ref[...]

    # Residual + LayerNorm in f32; cast only at the final store.
    y = h2 + x
    mu = jnp.mean(y, axis=-1, keepdims=True)
    var = jnp.mean((y - mu) ** 2, axis=-1, keepdims=True)
    out = (y - mu) * jax.lax.rsqrt(var + LN_EPS) * lnw_ref[...] + lnb_ref[...]
    out_ref[...] = out.astype(out_ref.dtype)


def decoder_layer_pallas(x, params, *, block_m=512, out_dtype=None):
    """x: (B, S, D_MODEL) -> (B, S, D_MODEL)."""
    B, S, D = x.shape
    assert D == D_MODEL
    out_dtype = x.dtype if out_dtype is None else out_dtype

    M = B * S
    x2 = x.reshape(M, D)

    # Row-block sizing:
    #   * lane axis stays the full 512 (lane-dense output stores),
    #   * tm is a multiple of 8 (sublane tiling),
    #   * for M > 16 rows force >= 2 grid steps so the "parallel" grid axis
    #     can shard across v7x's 2 TensorCores (harmless on v5e/v6e).
    tm = min(block_m, _round_up(M, 8))
    if M > 16:
        tm = min(tm, _round_up(pl.cdiv(M, 2), 8))
    m_pad = _round_up(M, tm)
    if m_pad != M:
        x2 = jnp.pad(x2, ((0, m_pad - M), (0, 0)))
    grid = (m_pad // tm,)

    def fixed(shape):
        nd = len(shape)
        return pl.BlockSpec(shape, lambda i, _nd=nd: (0,) * _nd)

    in_specs = [
        pl.BlockSpec((tm, D), lambda i: (i, 0)),    # x row block
        fixed(params['w1'].shape),                  # (D, FFN)   bf16
        fixed(params['b1'].shape),                  # (1, FFN)   f32
        fixed(params['w2'].shape),                  # (FFN, D)   bf16
        fixed(params['b2'].shape),                  # (1, D)     f32
        fixed(params['lnw'].shape),                 # (1, D)     f32
        fixed(params['lnb'].shape),                 # (1, D)     f32
    ]

    out = pl.pallas_call(
        fc_layer_kernel,
        out_shape=jax.ShapeDtypeStruct((m_pad, D), out_dtype),
        grid_spec=pltpu.PrefetchScalarGridSpec(
            num_scalar_prefetch=0,
            grid=grid,
            in_specs=in_specs,
            out_specs=pl.BlockSpec((tm, D), lambda i: (i, 0)),
        ),
        compiler_params=pltpu.CompilerParams(
            dimension_semantics=("parallel",),      # row blocks are independent
            vmem_limit_bytes=32 << 20,              # <= v7x's 64 MiB physical VMEM
        ),
    )(x2, params['w1'], params['b1'], params['w2'], params['b2'],
      params['lnw'], params['lnb'])

    if m_pad != M:
        out = out[:M]
    return out.reshape(B, S, D)


def init_params(key):
    k1, k2 = jax.random.split(key)
    w1_f32 = jax.random.normal(k1, (D_MODEL, FFN), jnp.float32) * 0.02
    w2_f32 = jax.random.normal(k2, (FFN, D_MODEL), jnp.float32) * 0.02
    params = dict(
        # weights stored bf16 (halves HBM/VMEM traffic); biases / LN stay f32
        w1=w1_f32.astype(jnp.bfloat16),
        b1=jnp.zeros((1, FFN), jnp.float32),
        w2=w2_f32.astype(jnp.bfloat16),
        b2=jnp.zeros((1, D_MODEL), jnp.float32),
        lnw=jnp.ones((1, D_MODEL), jnp.float32),
        lnb=jnp.zeros((1, D_MODEL), jnp.float32),
    )
    # f32 copies kept OUTSIDE params (reference check only, never fed to kernel).
    ref_weights = dict(w1=w1_f32, w2=w2_f32)
    return params, ref_weights


def decoder_layer_ref(x, params, ref_weights):
    """Pure-JAX f32 reference of DecoderLayer.forward (FC block)."""
    h1 = jnp.maximum(jnp.einsum('bsd,df->bsf', x, ref_weights['w1'])
                     + params['b1'][0], 0.0)
    h2 = jnp.einsum('bsf,fd->bsd', h1, ref_weights['w2']) + params['b2'][0]
    y = h2 + x
    mu = jnp.mean(y, axis=-1, keepdims=True)
    var = jnp.mean((y - mu) ** 2, axis=-1, keepdims=True)
    return ((y - mu) * jax.lax.rsqrt(var + LN_EPS) * params['lnw'][0]
            + params['lnb'][0])


if __name__ == "__main__":
    key = jax.random.PRNGKey(0)
    k_x, k_p = jax.random.split(key)

    params, ref_weights = init_params(k_p)

    # Small canonical shape consistent with the module.
    B, S = 2, 8
    enc_outputs = jax.random.normal(k_x, (B, S, D_MODEL), jnp.float32)

    out = decoder_layer_pallas(enc_outputs, params)
    out = jax.block_until_ready(out)

    assert out.shape == (B, S, D_MODEL)
    assert out.dtype == enc_outputs.dtype
    assert bool(jnp.all(jnp.isfinite(out)))

    # Loose numerical sanity check against an f32 reference (bf16 matmul error).
    ref = decoder_layer_ref(enc_outputs, params, ref_weights)
    max_diff = float(jnp.max(jnp.abs(out - ref)))
    assert max_diff < 0.25, f"max |diff| = {max_diff}"

    # Exercise the padded, multi-block path (M=34 rows -> tm=24, grid=(2,),
    # 14 zero-padded rows) to verify the robustness fix.
    B2, S2 = 2, 17
    x_odd = jax.random.normal(k_x, (B2, S2, D_MODEL), jnp.float32)
    out_odd = jax.block_until_ready(decoder_layer_pallas(x_odd, params))
    ref_odd = decoder_layer_ref(x_odd, params, ref_weights)
    assert out_odd.shape == (B2, S2, D_MODEL)
    assert bool(jnp.all(jnp.isfinite(out_odd)))
    max_diff2 = float(jnp.max(jnp.abs(out_odd - ref_odd)))
    assert max_diff2 < 0.25, f"max |diff| (odd shape) = {max_diff2}"

    print("KERNEL_OK")
</pallas_src>

<mosaic_0001>
module attributes {stable_mosaic.version = 11 : i64} {
  func.func @fc_layer_kernel(%arg0: i32, %arg1: memref<16x512xf32, #tpu.memory_space<vmem>>, %arg2: memref<512x2048xbf16, #tpu.memory_space<vmem>>, %arg3: memref<1x2048xf32, #tpu.memory_space<vmem>>, %arg4: memref<2048x512xbf16, #tpu.memory_space<vmem>>, %arg5: memref<1x512xf32, #tpu.memory_space<vmem>>, %arg6: memref<1x512xf32, #tpu.memory_space<vmem>>, %arg7: memref<1x512xf32, #tpu.memory_space<vmem>>, %arg8: memref<16x512xf32, #tpu.memory_space<vmem>>) attributes {dimension_semantics = [#tpu.dimension_semantics<parallel>], iteration_bounds = array<i64: 1>, scalar_prefetch = 0 : i64, scratch_operands = 0 : i64, tpu.core_type = #tpu.core_type<tc>, window_params = [{transform_indices = @transform_0, window_bounds = array<i64: 16, 512>}, {pipeline_mode = #tpu.pipeline_mode<synchronous>, transform_indices = @transform_1, window_bounds = array<i64: 512, 2048>}, {pipeline_mode = #tpu.pipeline_mode<synchronous>, transform_indices = @transform_2, window_bounds = array<i64: 1, 2048>}, {pipeline_mode = #tpu.pipeline_mode<synchronous>, transform_indices = @transform_3, window_bounds = array<i64: 2048, 512>}, {pipeline_mode = #tpu.pipeline_mode<synchronous>, transform_indices = @transform_4, window_bounds = array<i64: 1, 512>}, {pipeline_mode = #tpu.pipeline_mode<synchronous>, transform_indices = @transform_5, window_bounds = array<i64: 1, 512>}, {pipeline_mode = #tpu.pipeline_mode<synchronous>, transform_indices = @transform_6, window_bounds = array<i64: 1, 512>}, {transform_indices = @transform_7, window_bounds = array<i64: 16, 512>}]} {
    %c0 = arith.constant 0 : index
    %c0_0 = arith.constant 0 : index
    %0 = vector.load %arg1[%c0, %c0_0] : memref<16x512xf32, #tpu.memory_space<vmem>>, vector<16x512xf32>
    %1 = arith.truncf %0 : vector<16x512xf32> to vector<16x512xbf16>
    %c0_1 = arith.constant 0 : index
    %c0_2 = arith.constant 0 : index
    %2 = vector.load %arg2[%c0_1, %c0_2] : memref<512x2048xbf16, #tpu.memory_space<vmem>>, vector<512x2048xbf16>
    %cst = arith.constant dense<0.000000e+00> : vector<16x2048xf32>
    %3 = tpu.matmul %1, %2, %cst {dimension_numbers = #tpu.dot_dimension_numbers<[1], [0], [0], [1], [0, 0, 1, 1], [], []>} : vector<16x512xbf16>, vector<512x2048xbf16>, vector<16x2048xf32> -> vector<16x2048xf32>
    %c0_3 = arith.constant 0 : index
    %c0_4 = arith.constant 0 : index
    %4 = vector.load %arg3[%c0_3, %c0_4] : memref<1x2048xf32, #tpu.memory_space<vmem>>, vector<1x2048xf32>
    %5 = vector.broadcast %4 : vector<1x2048xf32> to vector<16x2048xf32>
    %6 = arith.addf %3, %5 : vector<16x2048xf32>
    %cst_5 = arith.constant 0.000000e+00 : f32
    %7 = vector.broadcast %cst_5 : f32 to vector<16x2048xf32>
    %8 = arith.maximumf %6, %7 : vector<16x2048xf32>
    %9 = arith.truncf %8 : vector<16x2048xf32> to vector<16x2048xbf16>
    %c0_6 = arith.constant 0 : index
    %c0_7 = arith.constant 0 : index
    %10 = vector.load %arg4[%c0_6, %c0_7] : memref<2048x512xbf16, #tpu.memory_space<vmem>>, vector<2048x512xbf16>
    %cst_8 = arith.constant dense<0.000000e+00> : vector<16x512xf32>
    %11 = tpu.matmul %9, %10, %cst_8 {dimension_numbers = #tpu.dot_dimension_numbers<[1], [0], [0], [1], [0, 0, 1, 1], [], []>} : vector<16x2048xbf16>, vector<2048x512xbf16>, vector<16x512xf32> -> vector<16x512xf32>
    %c0_9 = arith.constant 0 : index
    %c0_10 = arith.constant 0 : index
    %12 = vector.load %arg5[%c0_9, %c0_10] : memref<1x512xf32, #tpu.memory_space<vmem>>, vector<1x512xf32>
    %13 = vector.broadcast %12 : vector<1x512xf32> to vector<16x512xf32>
    %14 = arith.addf %11, %13 : vector<16x512xf32>
    %15 = arith.addf %14, %0 : vector<16x512xf32>
    %cst_11 = arith.constant dense<0.000000e+00> : vector<16xf32>
    %16 = vector.multi_reduction <add>, %15, %cst_11 [1] : vector<16x512xf32> to vector<16xf32>
    %17 = vector.shape_cast %16 : vector<16xf32> to vector<16x1xf32>
    %cst_12 = arith.constant 5.120000e+02 : f32
    %18 = vector.broadcast %cst_12 : f32 to vector<16x1xf32>
    %19 = arith.divf %17, %18 : vector<16x1xf32>
    %20 = vector.broadcast %19 : vector<16x1xf32> to vector<16x512xf32>
    %21 = arith.subf %15, %20 : vector<16x512xf32>
    %22 = arith.mulf %21, %21 : vector<16x512xf32>
    %cst_13 = arith.constant dense<0.000000e+00> : vector<16xf32>
    %23 = vector.multi_reduction <add>, %22, %cst_13 [1] : vector<16x512xf32> to vector<16xf32>
    %24 = vector.shape_cast %23 : vector<16xf32> to vector<16x1xf32>
    %cst_14 = arith.constant 5.120000e+02 : f32
    %25 = vector.broadcast %cst_14 : f32 to vector<16x1xf32>
    %26 = arith.divf %24, %25 : vector<16x1xf32>
    %27 = vector.broadcast %19 : vector<16x1xf32> to vector<16x512xf32>
    %28 = arith.subf %15, %27 : vector<16x512xf32>
    %cst_15 = arith.constant 9.99999974E-6 : f32
    %29 = vector.broadcast %cst_15 : f32 to vector<16x1xf32>
    %30 = arith.addf %26, %29 : vector<16x1xf32>
    %31 = math.rsqrt %30 : vector<16x1xf32>
    %32 = vector.broadcast %31 : vector<16x1xf32> to vector<16x512xf32>
    %33 = arith.mulf %28, %32 : vector<16x512xf32>
    %c0_16 = arith.constant 0 : index
    %c0_17 = arith.constant 0 : index
    %34 = vector.load %arg6[%c0_16, %c0_17] : memref<1x512xf32, #tpu.memory_space<vmem>>, vector<1x512xf32>
    %35 = vector.broadcast %34 : vector<1x512xf32> to vector<16x512xf32>
    %36 = arith.mulf %33, %35 : vector<16x512xf32>
    %c0_18 = arith.constant 0 : index
    %c0_19 = arith.constant 0 : index
    %37 = vector.load %arg7[%c0_18, %c0_19] : memref<1x512xf32, #tpu.memory_space<vmem>>, vector<1x512xf32>
    %38 = vector.broadcast %37 : vector<1x512xf32> to vector<16x512xf32>
    %39 = arith.addf %36, %38 : vector<16x512xf32>
    %c0_20 = arith.constant 0 : index
    %c0_21 = arith.constant 0 : index
    %40 = vector.load %arg8[%c0_20, %c0_21] : memref<16x512xf32, #tpu.memory_space<vmem>>, vector<16x512xf32>
    tpu.vector_store %arg8[%c0_20, %c0_21], %39 {strides = array<i32>} : memref<16x512xf32, #tpu.memory_space<vmem>>, vector<16x512xf32>,
    return
  }
  func.func @transform_0(%arg0: i32) -> (i32, i32) {
    %c0_i32 = arith.constant 0 : i32
    %c0_i32_0 = arith.constant 0 : i32
    return %arg0, %c0_i32 : i32, i32
  }
  func.func @transform_1(%arg0: i32) -> (i32, i32) {
    %c0_i32 = arith.constant 0 : i32
    %c0_i32_0 = arith.constant 0 : i32
    %c0_i32_1 = arith.constant 0 : i32
    return %c0_i32, %c0_i32_0 : i32, i32
  }
  func.func @transform_2(%arg0: i32) -> (i32, i32) {
    %c0_i32 = arith.constant 0 : i32
    %c0_i32_0 = arith.constant 0 : i32
    %c0_i32_1 = arith.constant 0 : i32
    return %c0_i32, %c0_i32_0 : i32, i32
  }
  func.func @transform_3(%arg0: i32) -> (i32, i32) {
    %c0_i32 = arith.constant 0 : i32
    %c0_i32_0 = arith.constant 0 : i32
    %c0_i32_1 = arith.constant 0 : i32
    return %c0_i32, %c0_i32_0 : i32, i32
  }
  func.func @transform_4(%arg0: i32) -> (i32, i32) {
    %c0_i32 = arith.constant 0 : i32
    %c0_i32_0 = arith.constant 0 : i32
    %c0_i32_1 = arith.constant 0 : i32
    return %c0_i32, %c0_i32_0 : i32, i32
  }
  func.func @transform_5(%arg0: i32) -> (i32, i32) {
    %c0_i32 = arith.constant 0 : i32
    %c0_i32_0 = arith.constant 0 : i32
    %c0_i32_1 = arith.constant 0 : i32
    return %c0_i32, %c0_i32_0 : i32, i32
  }
  func.func @transform_6(%arg0: i32) -> (i32, i32) {
    %c0_i32 = arith.constant 0 : i32
    %c0_i32_0 = arith.constant 0 : i32
    %c0_i32_1 = arith.constant 0 : i32
    return %c0_i32, %c0_i32_0 : i32, i32
  }
  func.func @transform_7(%arg0: i32) -> (i32, i32) {
    %c0_i32 = arith.constant 0 : i32
    %c0_i32_0 = arith.constant 0 : i32
    return %arg0, %c0_i32 : i32, i32
  }
}

</mosaic_0001>

<llo_original>
// kernel: tpu_custom_call.1
$region0: #{tpu_custom_call.1}
  #allocation0 [shape = 'u32[]', space=smem, size = 0x4, offset = 0x4, fixed_abs, tag = 'smem constant byte address 0x4 - core index']
  #allocation1 [shape = 'u32[144,128]{1,0:T(1,128)}', space=vmem, size = 0x12000, scoped, tag = 'internal scratch']
  %s0 = inlined_call_operand.hbm [shape: f32[16,512], index: 0, kind: input, shape index: {}]
  %s1 = inlined_call_operand.hbm [shape: bf16[512,2048], index: 1, kind: input, shape index: {}]
  %s2 = inlined_call_operand.hbm [shape: f32[1,2048], index: 2, kind: input, shape index: {}]
  %s3 = inlined_call_operand.hbm [shape: bf16[2048,512], index: 3, kind: input, shape index: {}]
  %s4 = inlined_call_operand.hbm [shape: f32[1,512], index: 4, kind: input, shape index: {}]
  %s5 = inlined_call_operand.hbm [shape: f32[1,512], index: 5, kind: input, shape index: {}]
  %s6 = inlined_call_operand.hbm [shape: f32[1,512], index: 6, kind: input, shape index: {}]
  %s7 = inlined_call_operand.hbm [shape: f32[16,512], index: 7, kind: output, shape index: {}]
  %s8 = sld [smem:[#allocation0]]
  $region66: #{tpu_custom_call.1} parent=0
    _
  %s10 = ssub.s32 1, %s8
  %s11 = scalar_select 0, %s10, %s8
  $region1: #{tpu_custom_call.1} parent=0
    #allocation2 [shape = 'u8[32768]{0}', space=vmem, size = 0x8000, scoped, tag = 'input window, operand 0, single buffered']
    #allocation3 [shape = 's32[1]{0}', space=sflag, size = 0x4, scoped, tag = 'scoped memory for tpu_custom_call.1']
    #allocation4 [shape = 's32[1]{0}', space=sflag, size = 0x4, scoped, tag = 'scoped memory for tpu_custom_call.1']
    #allocation5 [shape = 'u8[2097152]{0}', space=vmem, size = 0x200000, scoped, tag = 'input window, operand 1, single buffered']
    #allocation6 [shape = 's32[1]{0}', space=sflag, size = 0x4, scoped, tag = 'scoped memory for tpu_custom_call.1']
    #allocation7 [shape = 'u8[8192]{0}', space=vmem, size = 0x2000, scoped, tag = 'input window, operand 2, single buffered']
    #allocation8 [shape = 'u8[2097152]{0}', space=vmem, size = 0x200000, scoped, tag = 'input window, operand 3, single buffered']
    #allocation9 [shape = 's32[1]{0}', space=sflag, size = 0x4, scoped, tag = 'scoped memory for tpu_custom_call.1']
    #allocation10 [shape = 'u8[2048]{0}', space=vmem, size = 0x800, scoped, tag = 'input window, operand 4, single buffered']
    #allocation11 [shape = 'u8[2048]{0}', space=vmem, size = 0x800, scoped, tag = 'input window, operand 5, single buffered']
    #allocation12 [shape = 's32[1]{0}', space=sflag, size = 0x4, scoped, tag = 'scoped memory for tpu_custom_call.1']
    #allocation13 [shape = 'u8[2048]{0}', space=vmem, size = 0x800, scoped, tag = 'input window, operand 6, single buffered']
    #allocation14 [shape = 'u8[32768]{0}', space=vmem, size = 0x8000, scoped, tag = 'output window, operand 0, single buffered']
    %12 = vsyncpa [#allocation3], 0
    %13 = vsyncpa [#allocation6], 0
    %14 = vsyncpa [#allocation9], 0
    %15 = vsyncpa [#allocation12], 0
    %16 = vsyncpa [#allocation4], 0
    // Predicated region
    $region2: #{tpu_custom_call.1} parent=1 // pred_check
      _
    $region3: #{tpu_custom_call.1} parent=1 // pred_check_branch
      %18 = sbr.rel (0) target = $region5
    $region4: #{tpu_custom_call.1} parent=1 // pred_region
      %s20 = ssub.s32 1024, 1024
      %21 = vsyncadd [#allocation3], %s20
      %s22 = sshll.u32 [#allocation2], 4
      %s23 = int_to_ptr.vmem [resolvable:$true] %s22
      %28 = dma.hbm_to_vmem [thread:$0]  %s0, 1024, %s23, [#allocation3], 512, 512, 32
    $region5: #{tpu_custom_call.1} parent=1 // pred_fallthru
      _
    // Predicated region
    $region6: #{tpu_custom_call.1} parent=1 // pred_check
      _
    $region7: #{tpu_custom_call.1} parent=1 // pred_check_branch
      %30 = sbr.rel (0) target = $region9
    $region8: #{tpu_custom_call.1} parent=1 // pred_region
      %s32 = ssub.s32 65536, 65536
      %33 = vsyncadd [#allocation6], %s32
      %s34 = sshll.u32 [#allocation5], 4
      %s35 = int_to_ptr.vmem [resolvable:$true] %s34
      %40 = dma.hbm_to_vmem [thread:$0]  %s1, 65536, %s35, [#allocation6], 1024, 1024, 64
    $region9: #{tpu_custom_call.1} parent=1 // pred_fallthru
      _
    // Predicated region
    $region10: #{tpu_custom_call.1} parent=1 // pred_check
      _
    $region11: #{tpu_custom_call.1} parent=1 // pred_check_branch
      %42 = sbr.rel (0) target = $region13
    $region12: #{tpu_custom_call.1} parent=1 // pred_region
      %s44 = ssub.s32 256, 256
      %45 = vsyncadd [#allocation6], %s44
      %s47 = sshll.u32 [#allocation7], 4
      %s48 = int_to_ptr.vmem [resolvable:$true] %s47
      %50 = dma.hbm_to_vmem [thread:$0]  %s2, 256, %s48, [#allocation6]
    $region13: #{tpu_custom_call.1} parent=1 // pred_fallthru
      _
    // Predicated region
    $region14: #{tpu_custom_call.1} parent=1 // pred_check
      _
    $region15: #{tpu_custom_call.1} parent=1 // pred_check_branch
      %52 = sbr.rel (0) target = $region17
    $region16: #{tpu_custom_call.1} parent=1 // pred_region
      %s54 = ssub.s32 65536, 65536
      %55 = vsyncadd [#allocation9], %s54
      %s56 = sshll.u32 [#allocation8], 4
      %s57 = int_to_ptr.vmem [resolvable:$true] %s56
      %62 = dma.hbm_to_vmem [thread:$0]  %s3, 65536, %s57, [#allocation9], 256, 256, 16
    $region17: #{tpu_custom_call.1} parent=1 // pred_fallthru
      _
    // Predicated region
    $region18: #{tpu_custom_call.1} parent=1 // pred_check
      _
    $region19: #{tpu_custom_call.1} parent=1 // pred_check_branch
      %64 = sbr.rel (0) target = $region21
    $region20: #{tpu_custom_call.1} parent=1 // pred_region
      %s66 = ssub.s32 64, 64
      %67 = vsyncadd [#allocation9], %s66
      %s69 = sshll.u32 [#allocation10], 4
      %s70 = int_to_ptr.vmem [resolvable:$true] %s69
      %72 = dma.hbm_to_vmem [thread:$0]  %s4, 64, %s70, [#allocation9]
    $region21: #{tpu_custom_call.1} parent=1 // pred_fallthru
      _
    // Predicated region
    $region22: #{tpu_custom_call.1} parent=1 // pred_check
      _
    $region23: #{tpu_custom_call.1} parent=1 // pred_check_branch
      %74 = sbr.rel (0) target = $region25
    $region24: #{tpu_custom_call.1} parent=1 // pred_region
      %s76 = ssub.s32 64, 64
      %77 = vsyncadd [#allocation12], %s76
      %s79 = sshll.u32 [#allocation11], 4
      %s80 = int_to_ptr.vmem [resolvable:$true] %s79
      %82 = dma.hbm_to_vmem [thread:$0]  %s5, 64, %s80, [#allocation12]
    $region25: #{tpu_custom_call.1} parent=1 // pred_fallthru
      _
    // Predicated region
    $region26: #{tpu_custom_call.1} parent=1 // pred_check
      _
    $region27: #{tpu_custom_call.1} parent=1 // pred_check_branch
      %84 = sbr.rel (0) target = $region29
    $region28: #{tpu_custom_call.1} parent=1 // pred_region
      %s86 = ssub.s32 64, 64
      %87 = vsyncadd [#allocation12], %s86
      %s89 = sshll.u32 [#allocation13], 4
      %s90 = int_to_ptr.vmem [resolvable:$true] %s89
      %92 = dma.hbm_to_vmem [thread:$0]  %s6, 64, %s90, [#allocation12]
    $region29: #{tpu_custom_call.1} parent=1 // pred_fallthru
      _
    // Predicated region
    $region30: #{tpu_custom_call.1} parent=1 // pred_check
      _
    $region31: #{tpu_custom_call.1} parent=1 // pred_check_branch
      %94 = sbr.rel (0) target = $region33
    $region32: #{tpu_custom_call.1} parent=1 // pred_region
      %95 = dma.done [#allocation3], 1024
    $region33: #{tpu_custom_call.1} parent=1 // pred_fallthru
      _
    // Predicated region
    $region34: #{tpu_custom_call.1} parent=1 // pred_check
      _
    $region35: #{tpu_custom_call.1} parent=1 // pred_check_branch
      %97 = sbr.rel (0) target = $region37
    $region36: #{tpu_custom_call.1} parent=1 // pred_region
      %98 = dma.done [#allocation6], 65536
    $region37: #{tpu_custom_call.1} parent=1 // pred_fallthru
      _
    // Predicated region
    $region38: #{tpu_custom_call.1} parent=1 // pred_check
      _
    $region39: #{tpu_custom_call.1} parent=1 // pred_check_branch
      %100 = sbr.rel (0) target = $region41
    $region40: #{tpu_custom_call.1} parent=1 // pred_region
      %101 = dma.done [#allocation6], 256
    $region41: #{tpu_custom_call.1} parent=1 // pred_fallthru
      _
    // Predicated region
    $region42: #{tpu_custom_call.1} parent=1 // pred_check
      _
    $region43: #{tpu_custom_call.1} parent=1 // pred_check_branch
      %103 = sbr.rel (0) target = $region45
    $region44: #{tpu_custom_call.1} parent=1 // pred_region
      %104 = dma.done [#allocation9], 65536
    $region45: #{tpu_custom_call.1} parent=1 // pred_fallthru
      _
    // Predicated region
    $region46: #{tpu_custom_call.1} parent=1 // pred_check
      _
    $region47: #{tpu_custom_call.1} parent=1 // pred_check_branch
      %106 = sbr.rel (0) target = $region49
    $region48: #{tpu_custom_call.1} parent=1 // pred_region
      %107 = dma.done [#allocation9], 64
    $region49: #{tpu_custom_call.1} parent=1 // pred_fallthru
      _
    // Predicated region
    $region50: #{tpu_custom_call.1} parent=1 // pred_check
      _
    $region51: #{tpu_custom_call.1} parent=1 // pred_check_branch
      %109 = sbr.rel (0) target = $region53
    $region52: #{tpu_custom_call.1} parent=1 // pred_region
      %110 = dma.done [#allocation12], 64
    $region53: #{tpu_custom_call.1} parent=1 // pred_fallthru
      _
    // Predicated region
    $region54: #{tpu_custom_call.1} parent=1 // pred_check
      _
    $region55: #{tpu_custom_call.1} parent=1 // pred_check_branch
      %112 = sbr.rel (0) target = $region57
    $region56: #{tpu_custom_call.1} parent=1 // pred_region
      %113 = dma.done [#allocation12], 64
    $region57: #{tpu_custom_call.1} parent=1 // pred_fallthru
      _
    %v114 = vld [vmem:[#allocation2] sm:$0xff]
    %v115 = vld [vmem:[#allocation2 + $0x8] sm:$0xff]
    %v116 = vld [vmem:[#allocation2 + $0x10] sm:$0xff]
    %v117 = vld [vmem:[#allocation2 + $0x18] sm:$0xff]
    %v118 = vld [vmem:[#allocation2 + $0x20] sm:$0xff]
    %v119 = vld [vmem:[#allocation2 + $0x28] sm:$0xff]
    %v120 = vld [vmem:[#allocation2 + $0x30] sm:$0xff]
    %v121 = vld [vmem:[#allocation2 + $0x38] sm:$0xff]
    %v122 = vpack.c.bf16 %v118, %v114
    %v123 = vpack.c.bf16 %v119, %v115
    %v124 = vpack.c.bf16 %v120, %v116
    %v125 = vpack.c.bf16 %v121, %v117
    %v126 = vld [vmem:[#allocation5] sm:$0xff]
    %v127 = vld [vmem:[#allocation5 + $0x8] sm:$0xff]
    %v128 = vld [vmem:[#allocation5 + $0x10] sm:$0xff]
    %v129 = vld [vmem:[#allocation5 + $0x18] sm:$0xff]
    %v130 = vld [vmem:[#allocation5 + $0x20] sm:$0xff]
    %v131 = vld [vmem:[#allocation5 + $0x28] sm:$0xff]
    %v132 = vld [vmem:[#allocation5 + $0x30] sm:$0xff]
    %v133 = vld [vmem:[#allocation5 + $0x38] sm:$0xff]
    %v134 = vld [vmem:[#allocation5 + $0x40] sm:$0xff]
    %v135 = vld [vmem:[#allocation5 + $0x48] sm:$0xff]
    %v136 = vld [vmem:[#allocation5 + $0x50] sm:$0xff]
    %v137 = vld [vmem:[#allocation5 + $0x58] sm:$0xff]
    %v138 = vld [vmem:[#allocation5 + $0x60] sm:$0xff]
    %v139 = vld [vmem:[#allocation5 + $0x68] sm:$0xff]
    %v140 = vld [vmem:[#allocation5 + $0x70] sm:$0xff]
    %v141 = vld [vmem:[#allocation5 + $0x78] sm:$0xff]
    %v142 = vld [vmem:[#allocation5 + $0x80] sm:$0xff]
    %v143 = vld [vmem:[#allocation5 + $0x88] sm:$0xff]
    %v144 = vld [vmem:[#allocation5 + $0x90] sm:$0xff]
    %v145 = vld [vmem:[#allocation5 + $0x98] sm:$0xff]
    %v146 = vld [vmem:[#allocation5 + $0xa0] sm:$0xff]
    %v147 = vld [vmem:[#allocation5 + $0xa8] sm:$0xff]
    %v148 = vld [vmem:[#allocation5 + $0xb0] sm:$0xff]
    %v149 = vld [vmem:[#allocation5 + $0xb8] sm:$0xff]
    %v150 = vld [vmem:[#allocation5 + $0xc0] sm:$0xff]
    %v151 = vld [vmem:[#allocation5 + $0xc8] sm:$0xff]
    %v152 = vld [vmem:[#allocation5 + $0xd0] sm:$0xff]
    %v153 = vld [vmem:[#allocation5 + $0xd8] sm:$0xff]
    %v154 = vld [vmem:[#allocation5 + $0xe0] sm:$0xff]
    %v155 = vld [vmem:[#allocation5 + $0xe8] sm:$0xff]
    %v156 = vld [vmem:[#allocation5 + $0xf0] sm:$0xff]
    %v157 = vld [vmem:[#allocation5 + $0xf8] sm:$0xff]
    %v158 = vld [vmem:[#allocation5 + $0x100] sm:$0xff]
    %v159 = vld [vmem:[#allocation5 + $0x108] sm:$0xff]
    %v160 = vld [vmem:[#allocation5 + $0x110] sm:$0xff]
    %v161 = vld [vmem:[#allocation5 + $0x118] sm:$0xff]
    %v162 = vld [vmem:[#allocation5 + $0x120] sm:$0xff]
    %v163 = vld [vmem:[#allocation5 + $0x128] sm:$0xff]
    %v164 = vld [vmem:[#allocation5 + $0x130] sm:$0xff]
    %v165 = vld [vmem:[#allocation5 + $0x138] sm:$0xff]
    %v166 = vld [vmem:[#allocation5 + $0x140] sm:$0xff]
    %v167 = vld [vmem:[#allocation5 + $0x148] sm:$0xff]
    %v168 = vld [vmem:[#allocation5 + $0x150] sm:$0xff]
    %v169 = vld [vmem:[#allocation5 + $0x158] sm:$0xff]
    %v170 = vld [vmem:[#allocation5 + $0x160] sm:$0xff]
    %v171 = vld [vmem:[#allocation5 + $0x168] sm:$0xff]
    %v172 = vld [vmem:[#allocation5 + $0x170] sm:$0xff]
    %v173 = vld [vmem:[#allocation5 + $0x178] sm:$0xff]
    %v174 = vld [vmem:[#allocation5 + $0x180] sm:$0xff]
    %v175 = vld [vmem:[#allocation5 + $0x188] sm:$0xff]
    %v176 = vld [vmem:[#allocation5 + $0x190] sm:$0xff]
    %v177 = vld [vmem:[#allocation5 + $0x198] sm:$0xff]
    %v178 = vld [vmem:[#allocation5 + $0x1a0] sm:$0xff]
    %v179 = vld [vmem:[#allocation5 + $0x1a8] sm:$0xff]
    %v180 = vld [vmem:[#allocation5 + $0x1b0] sm:$0xff]
    %v181 = vld [vmem:[#allocation5 + $0x1b8] sm:$0xff]
    %v182 = vld [vmem:[#allocation5 + $0x1c0] sm:$0xff]
    %v183 = vld [vmem:[#allocation5 + $0x1c8] sm:$0xff]
    %v184 = vld [vmem:[#allocation5 + $0x1d0] sm:$0xff]
    %v185 = vld [vmem:[#allocation5 + $0x1d8] sm:$0xff]
    %v186 = vld [vmem:[#allocation5 + $0x1e0] sm:$0xff]
    %v187 = vld [vmem:[#allocation5 + $0x1e8] sm:$0xff]
    %v188 = vld [vmem:[#allocation5 + $0x1f0] sm:$0xff]
    %v189 = vld [vmem:[#allocation5 + $0x1f8] sm:$0xff]
    %v190 = vld [vmem:[#allocation5 + $0x200] sm:$0xff]
    %v191 = vld [vmem:[#allocation5 + $0x208] sm:$0xff]
    %v192 = vld [vmem:[#allocation5 + $0x210] sm:$0xff]
    %v193 = vld [vmem:[#allocation5 + $0x218] sm:$0xff]
    %v194 = vld [vmem:[#allocation5 + $0x220] sm:$0xff]
    %v195 = vld [vmem:[#allocation5 + $0x228] sm:$0xff]
    %v196 = vld [vmem:[#allocation5 + $0x230] sm:$0xff]
    %v197 = vld [vmem:[#allocation5 + $0x238] sm:$0xff]
    %v198 = vld [vmem:[#allocation5 + $0x240] sm:$0xff]
    %v199 = vld [vmem:[#allocation5 + $0x248] sm:$0xff]
    %v200 = vld [vmem:[#allocation5 + $0x250] sm:$0xff]
    %v201 = vld [vmem:[#allocation5 + $0x258] sm:$0xff]
    %v202 = vld [vmem:[#allocation5 + $0x260] sm:$0xff]
    %v203 = vld [vmem:[#allocation5 + $0x268] sm:$0xff]
    %v204 = vld [vmem:[#allocation5 + $0x270] sm:$0xff]
    %v205 = vld [vmem:[#allocation5 + $0x278] sm:$0xff]
    %v206 = vld [vmem:[#allocation5 + $0x280] sm:$0xff]
    %v207 = vld [vmem:[#allocation5 + $0x288] sm:$0xff]
    %v208 = vld [vmem:[#allocation5 + $0x290] sm:$0xff]
    %v209 = vld [vmem:[#allocation5 + $0x298] sm:$0xff]
    %v210 = vld [vmem:[#allocation5 + $0x2a0] sm:$0xff]
    %v211 = vld [vmem:[#allocation5 + $0x2a8] sm:$0xff]
    %v212 = vld [vmem:[#allocation5 + $0x2b0] sm:$0xff]
    %v213 = vld [vmem:[#allocation5 + $0x2b8] sm:$0xff]
    %v214 = vld [vmem:[#allocation5 + $0x2c0] sm:$0xff]
    %v215 = vld [vmem:[#allocation5 + $0x2c8] sm:$0xff]
    %v216 = vld [vmem:[#allocation5 + $0x2d0] sm:$0xff]
    %v217 = vld [vmem:[#allocation5 + $0x2d8] sm:$0xff]
    %v218 = vld [vmem:[#allocation5 + $0x2e0] sm:$0xff]
    %v219 = vld [vmem:[#allocation5 + $0x2e8] sm:$0xff]
    %v220 = vld [vmem:[#allocation5 + $0x2f0] sm:$0xff]
    %v221 = vld [vmem:[#allocation5 + $0x2f8] sm:$0xff]
    %v222 = vld [vmem:[#allocation5 + $0x300] sm:$0xff]
    %v223 = vld [vmem:[#allocation5 + $0x308] sm:$0xff]
    %v224 = vld [vmem:[#allocation5 + $0x310] sm:$0xff]
    %v225 = vld [vmem:[#allocation5 + $0x318] sm:$0xff]
    %v226 = vld [vmem:[#allocation5 + $0x320] sm:$0xff]
    %v227 = vld [vmem:[#allocation5 + $0x328] sm:$0xff]
    %v228 = vld [vmem:[#allocation5 + $0x330] sm:$0xff]
    %v229 = vld [vmem:[#allocation5 + $0x338] sm:$0xff]
    %v230 = vld [vmem:[#allocation5 + $0x340] sm:$0xff]
    %v231 = vld [vmem:[#allocation5 + $0x348] sm:$0xff]
    %v232 = vld [vmem:[#allocation5 + $0x350] sm:$0xff]
    %v233 = vld [vmem:[#allocation5 + $0x358] sm:$0xff]
    %v234 = vld [vmem:[#allocation5 + $0x360] sm:$0xff]
    %v235 = vld [vmem:[#allocation5 + $0x368] sm:$0xff]
    %v236 = vld [vmem:[#allocation5 + $0x370] sm:$0xff]
    %v237 = vld [vmem:[#allocation5 + $0x378] sm:$0xff]
    %v238 = vld [vmem:[#allocation5 + $0x380] sm:$0xff]
    %v239 = vld [vmem:[#allocation5 + $0x388] sm:$0xff]
    %v240 = vld [vmem:[#allocation5 + $0x390] sm:$0xff]
    %v241 = vld [vmem:[#allocation5 + $0x398] sm:$0xff]
    %v242 = vld [vmem:[#allocation5 + $0x3a0] sm:$0xff]
    %v243 = vld [vmem:[#allocation5 + $0x3a8] sm:$0xff]
    %v244 = vld [vmem:[#allocation5 + $0x3b0] sm:$0xff]
    %v245 = vld [vmem:[#allocation5 + $0x3b8] sm:$0xff]
    %v246 = vld [vmem:[#allocation5 + $0x3c0] sm:$0xff]
    %v247 = vld [vmem:[#allocation5 + $0x3c8] sm:$0xff]
    %v248 = vld [vmem:[#allocation5 + $0x3d0] sm:$0xff]
    %v249 = vld [vmem:[#allocation5 + $0x3d8] sm:$0xff]
    %v250 = vld [vmem:[#allocation5 + $0x3e0] sm:$0xff]
    %v251 = vld [vmem:[#allocation5 + $0x3e8] sm:$0xff]
    %v252 = vld [vmem:[#allocation5 + $0x3f0] sm:$0xff]
    %v253 = vld [vmem:[#allocation5 + $0x3f8] sm:$0xff]
    %v254 = vld [vmem:[#allocation5 + $0x400] sm:$0xff]
    %v255 = vld [vmem:[#allocation5 + $0x408] sm:$0xff]
    %v256 = vld [vmem:[#allocation5 + $0x410] sm:$0xff]
    %v257 = vld [vmem:[#allocation5 + $0x418] sm:$0xff]
    %v258 = vld [vmem:[#allocation5 + $0x420] sm:$0xff]
    %v259 = vld [vmem:[#allocation5 + $0x428] sm:$0xff]
    %v260 = vld [vmem:[#allocation5 + $0x430] sm:$0xff]
    %v261 = vld [vmem:[#allocation5 + $0x438] sm:$0xff]
    %v262 = vld [vmem:[#allocation5 + $0x440] sm:$0xff]
    %v263 = vld [vmem:[#allocation5 + $0x448] sm:$0xff]
    %v264 = vld [vmem:[#allocation5 + $0x450] sm:$0xff]
    %v265 = vld [vmem:[#allocation5 + $0x458] sm:$0xff]
    %v266 = vld [vmem:[#allocation5 + $0x460] sm:$0xff]
    %v267 = vld [vmem:[#allocation5 + $0x468] sm:$0xff]
    %v268 = vld [vmem:[#allocation5 + $0x470] sm:$0xff]
    %v269 = vld [vmem:[#allocation5 + $0x478] sm:$0xff]
    %v270 = vld [vmem:[#allocation5 + $0x480] sm:$0xff]
    %v271 = vld [vmem:[#allocation5 + $0x488] sm:$0xff]
    %v272 = vld [vmem:[#allocation5 + $0x490] sm:$0xff]
    %v273 = vld [vmem:[#allocation5 + $0x498] sm:$0xff]
    %v274 = vld [vmem:[#allocation5 + $0x4a0] sm:$0xff]
    %v275 = vld [vmem:[#allocation5 + $0x4a8] sm:$0xff]
    %v276 = vld [vmem:[#allocation5 + $0x4b0] sm:$0xff]
    %v277 = vld [vmem:[#allocation5 + $0x4b8] sm:$0xff]
    %v278 = vld [vmem:[#allocation5 + $0x4c0] sm:$0xff]
    %v279 = vld [vmem:[#allocation5 + $0x4c8] sm:$0xff]
    %v280 = vld [vmem:[#allocation5 + $0x4d0] sm:$0xff]
    %v281 = vld [vmem:[#allocation5 + $0x4d8] sm:$0xff]
    %v282 = vld [vmem:[#allocation5 + $0x4e0] sm:$0xff]
    %v283 = vld [vmem:[#allocation5 + $0x4e8] sm:$0xff]
    %v284 = vld [vmem:[#allocation5 + $0x4f0] sm:$0xff]
    %v285 = vld [vmem:[#allocation5 + $0x4f8] sm:$0xff]
    %v286 = vld [vmem:[#allocation5 + $0x500] sm:$0xff]
    %v287 = vld [vmem:[#allocation5 + $0x508] sm:$0xff]
    %v288 = vld [vmem:[#allocation5 + $0x510] sm:$0xff]
    %v289 = vld [vmem:[#allocation5 + $0x518] sm:$0xff]
    %v290 = vld [vmem:[#allocation5 + $0x520] sm:$0xff]
    %v291 = vld [vmem:[#allocation5 + $0x528] sm:$0xff]
    %v292 = vld [vmem:[#allocation5 + $0x530] sm:$0xff]
    %v293 = vld [vmem:[#allocation5 + $0x538] sm:$0xff]
    %v294 = vld [vmem:[#allocation5 + $0x540] sm:$0xff]
    %v295 = vld [vmem:[#allocation5 + $0x548] sm:$0xff]
    %v296 = vld [vmem:[#allocation5 + $0x550] sm:$0xff]
    %v297 = vld [vmem:[#allocation5 + $0x558] sm:$0xff]
    %v298 = vld [vmem:[#allocation5 + $0x560] sm:$0xff]
    %v299 = vld [vmem:[#allocation5 + $0x568] sm:$0xff]
    %v300 = vld [vmem:[#allocation5 + $0x570] sm:$0xff]
    %v301 = vld [vmem:[#allocation5 + $0x578] sm:$0xff]
    %v302 = vld [vmem:[#allocation5 + $0x580] sm:$0xff]
    %v303 = vld [vmem:[#allocation5 + $0x588] sm:$0xff]
    %v304 = vld [vmem:[#allocation5 + $0x590] sm:$0xff]
    %v305 = vld [vmem:[#allocation5 + $0x598] sm:$0xff]
    %v306 = vld [vmem:[#allocation5 + $0x5a0] sm:$0xff]
    %v307 = vld [vmem:[#allocation5 + $0x5a8] sm:$0xff]
    %v308 = vld [vmem:[#allocation5 + $0x5b0] sm:$0xff]
    %v309 = vld [vmem:[#allocation5 + $0x5b8] sm:$0xff]
    %v310 = vld [vmem:[#allocation5 + $0x5c0] sm:$0xff]
    %v311 = vld [vmem:[#allocation5 + $0x5c8] sm:$0xff]
    %v312 = vld [vmem:[#allocation5 + $0x5d0] sm:$0xff]
    %v313 = vld [vmem:[#allocation5 + $0x5d8] sm:$0xff]
    %v314 = vld [vmem:[#allocation5 + $0x5e0] sm:$0xff]
    %v315 = vld [vmem:[#allocation5 + $0x5e8] sm:$0xff]
    %v316 = vld [vmem:[#allocation5 + $0x5f0] sm:$0xff]
    %v317 = vld [vmem:[#allocation5 + $0x5f8] sm:$0xff]
    %v318 = vld [vmem:[#allocation5 + $0x600] sm:$0xff]
    %v319 = vld [vmem:[#allocation5 + $0x608] sm:$0xff]
    %v320 = vld [vmem:[#allocation5 + $0x610] sm:$0xff]
    %v321 = vld [vmem:[#allocation5 + $0x618] sm:$0xff]
    %v322 = vld [vmem:[#allocation5 + $0x620] sm:$0xff]
    %v323 = vld [vmem:[#allocation5 + $0x628] sm:$0xff]
    %v324 = vld [vmem:[#allocation5 + $0x630] sm:$0xff]
    %v325 = vld [vmem:[#allocation5 + $0x638] sm:$0xff]
    %v326 = vld [vmem:[#allocation5 + $0x640] sm:$0xff]
    %v327 = vld [vmem:[#allocation5 + $0x648] sm:$0xff]
    %v328 = vld [vmem:[#allocation5 + $0x650] sm:$0xff]
    %v329 = vld [vmem:[#allocation5 + $0x658] sm:$0xff]
    %v330 = vld [vmem:[#allocation5 + $0x660] sm:$0xff]
    %v331 = vld [vmem:[#allocation5 + $0x668] sm:$0xff]
    %v332 = vld [vmem:[#allocation5 + $0x670] sm:$0xff]
    %v333 = vld [vmem:[#allocation5 + $0x678] sm:$0xff]
    %v334 = vld [vmem:[#allocation5 + $0x680] sm:$0xff]
    %v335 = vld [vmem:[#allocation5 + $0x688] sm:$0xff]
    %v336 = vld [vmem:[#allocation5 + $0x690] sm:$0xff]
    %v337 = vld [vmem:[#allocation5 + $0x698] sm:$0xff]
    %v338 = vld [vmem:[#allocation5 + $0x6a0] sm:$0xff]
    %v339 = vld [vmem:[#allocation5 + $0x6a8] sm:$0xff]
    %v340 = vld [vmem:[#allocation5 + $0x6b0] sm:$0xff]
    %v341 = vld [vmem:[#allocation5 + $0x6b8] sm:$0xff]
    %v342 = vld [vmem:[#allocation5 + $0x6c0] sm:$0xff]
    %v343 = vld [vmem:[#allocation5 + $0x6c8] sm:$0xff]
    %v344 = vld [vmem:[#allocation5 + $0x6d0] sm:$0xff]
    %v345 = vld [vmem:[#allocation5 + $0x6d8] sm:$0xff]
    %v346 = vld [vmem:[#allocation5 + $0x6e0] sm:$0xff]
    %v347 = vld [vmem:[#allocation5 + $0x6e8] sm:$0xff]
    %v348 = vld [vmem:[#allocation5 + $0x6f0] sm:$0xff]
    %v349 = vld [vmem:[#allocation5 + $0x6f8] sm:$0xff]
    %v350 = vld [vmem:[#allocation5 + $0x700] sm:$0xff]
    %v351 = vld [vmem:[#allocation5 + $0x708] sm:$0xff]
    %v352 = vld [vmem:[#allocation5 + $0x710] sm:$0xff]
    %v353 = vld [vmem:[#allocation5 + $0x718] sm:$0xff]
    %v354 = vld [vmem:[#allocation5 + $0x720] sm:$0xff]
    %v355 = vld [vmem:[#allocation5 + $0x728] sm:$0xff]
    %v356 = vld [vmem:[#allocation5 + $0x730] sm:$0xff]
    %v357 = vld [vmem:[#allocation5 + $0x738] sm:$0xff]
    %v358 = vld [vmem:[#allocation5 + $0x740] sm:$0xff]
    %v359 = vld [vmem:[#allocation5 + $0x748] sm:$0xff]
    %v360 = vld [vmem:[#allocation5 + $0x750] sm:$0xff]
    %v361 = vld [vmem:[#allocation5 + $0x758] sm:$0xff]
    %v362 = vld [vmem:[#allocation5 + $0x760] sm:$0xff]
    %v363 = vld [vmem:[#allocation5 + $0x768] sm:$0xff]
    %v364 = vld [vmem:[#allocation5 + $0x770] sm:$0xff]
    %v365 = vld [vmem:[#allocation5 + $0x778] sm:$0xff]
    %v366 = vld [vmem:[#allocation5 + $0x780] sm:$0xff]
    %v367 = vld [vmem:[#allocation5 + $0x788] sm:$0xff]
    %v368 = vld [vmem:[#allocation5 + $0x790] sm:$0xff]
    %v369 = vld [vmem:[#allocation5 + $0x798] sm:$0xff]
    %v370 = vld [vmem:[#allocation5 + $0x7a0] sm:$0xff]
    %v371 = vld [vmem:[#allocation5 + $0x7a8] sm:$0xff]
    %v372 = vld [vmem:[#allocation5 + $0x7b0] sm:$0xff]
    %v373 = vld [vmem:[#allocation5 + $0x7b8] sm:$0xff]
    %v374 = vld [vmem:[#allocation5 + $0x7c0] sm:$0xff]
    %v375 = vld [vmem:[#allocation5 + $0x7c8] sm:$0xff]
    %v376 = vld [vmem:[#allocation5 + $0x7d0] sm:$0xff]
    %v377 = vld [vmem:[#allocation5 + $0x7d8] sm:$0xff]
    %v378 = vld [vmem:[#allocation5 + $0x7e0] sm:$0xff]
    %v379 = vld [vmem:[#allocation5 + $0x7e8] sm:$0xff]
    %v380 = vld [vmem:[#allocation5 + $0x7f0] sm:$0xff]
    %v381 = vld [vmem:[#allocation5 + $0x7f8] sm:$0xff]
    %v382 = vld [vmem:[#allocation5 + $0x800] sm:$0xff]
    %v383 = vld [vmem:[#allocation5 + $0x808] sm:$0xff]
    %v384 = vld [vmem:[#allocation5 + $0x810] sm:$0xff]
    %v385 = vld [vmem:[#allocation5 + $0x818] sm:$0xff]
    %v386 = vld [vmem:[#allocation5 + $0x820] sm:$0xff]
    %v387 = vld [vmem:[#allocation5 + $0x828] sm:$0xff]
    %v388 = vld [vmem:[#allocation5 + $0x830] sm:$0xff]
    %v389 = vld [vmem:[#allocation5 + $0x838] sm:$0xff]
    %v390 = vld [vmem:[#allocation5 + $0x840] sm:$0xff]
    %v391 = vld [vmem:[#allocation5 + $0x848] sm:$0xff]
    %v392 = vld [vmem:[#allocation5 + $0x850] sm:$0xff]
    %v393 = vld [vmem:[#allocation5 + $0x858] sm:$0xff]
    %v394 = vld [vmem:[#allocation5 + $0x860] sm:$0xff]
    %v395 = vld [vmem:[#allocation5 + $0x868] sm:$0xff]
    %v396 = vld [vmem:[#allocation5 + $0x870] sm:$0xff]
    %v397 = vld [vmem:[#allocation5 + $0x878] sm:$0xff]
    %v398 = vld [vmem:[#allocation5 + $0x880] sm:$0xff]
    %v399 = vld [vmem:[#allocation5 + $0x888] sm:$0xff]
    %v400 = vld [vmem:[#allocation5 + $0x890] sm:$0xff]
    %v401 = vld [vmem:[#allocation5 + $0x898] sm:$0xff]
    %v402 = vld [vmem:[#allocation5 + $0x8a0] sm:$0xff]
    %v403 = vld [vmem:[#allocation5 + $0x8a8] sm:$0xff]
    %v404 = vld [vmem:[#allocation5 + $0x8b0] sm:$0xff]
    %v405 = vld [vmem:[#allocation5 + $0x8b8] sm:$0xff]
    %v406 = vld [vmem:[#allocation5 + $0x8c0] sm:$0xff]
    %v407 = vld [vmem:[#allocation5 + $0x8c8] sm:$0xff]
    %v408 = vld [vmem:[#allocation5 + $0x8d0] sm:$0xff]
    %v409 = vld [vmem:[#allocation5 + $0x8d8] sm:$0xff]
    %v410 = vld [vmem:[#allocation5 + $0x8e0] sm:$0xff]
    %v411 = vld [vmem:[#allocation5 + $0x8e8] sm:$0xff]
    %v412 = vld [vmem:[#allocation5 + $0x8f0] sm:$0xff]
    %v413 = vld [vmem:[#allocation5 + $0x8f8] sm:$0xff]
    %v414 = vld [vmem:[#allocation5 + $0x900] sm:$0xff]
    %v415 = vld [vmem:[#allocation5 + $0x908] sm:$0xff]
    %v416 = vld [vmem:[#allocation5 + $0x910] sm:$0xff]
    %v417 = vld [vmem:[#allocation5 + $0x918] sm:$0xff]
    %v418 = vld [vmem:[#allocation5 + $0x920] sm:$0xff]
    %v419 = vld [vmem:[#allocation5 + $0x928] sm:$0xff]
    %v420 = vld [vmem:[#allocation5 + $0x930] sm:$0xff]
    %v421 = vld [vmem:[#allocation5 + $0x938] sm:$0xff]
    %v422 = vld [vmem:[#allocation5 + $0x940] sm:$0xff]
    %v423 = vld [vmem:[#allocation5 + $0x948] sm:$0xff]
    %v424 = vld [vmem:[#allocation5 + $0x950] sm:$0xff]
    %v425 = vld [vmem:[#allocation5 + $0x958] sm:$0xff]
    %v426 = vld [vmem:[#allocation5 + $0x960] sm:$0xff]
    %v427 = vld [vmem:[#allocation5 + $0x968] sm:$0xff]
    %v428 = vld [vmem:[#allocation5 + $0x970] sm:$0xff]
    %v429 = vld [vmem:[#allocation5 + $0x978] sm:$0xff]
    %v430 = vld [vmem:[#allocation5 + $0x980] sm:$0xff]
    %v431 = vld [vmem:[#allocation5 + $0x988] sm:$0xff]
    %v432 = vld [vmem:[#allocation5 + $0x990] sm:$0xff]
    %v433 = vld [vmem:[#allocation5 + $0x998] sm:$0xff]
    %v434 = vld [vmem:[#allocation5 + $0x9a0] sm:$0xff]
    %v435 = vld [vmem:[#allocation5 + $0x9a8] sm:$0xff]
    %v436 = vld [vmem:[#allocation5 + $0x9b0] sm:$0xff]
    %v437 = vld [vmem:[#allocation5 + $0x9b8] sm:$0xff]
    %v438 = vld [vmem:[#allocation5 + $0x9c0] sm:$0xff]
    %v439 = vld [vmem:[#allocation5 + $0x9c8] sm:$0xff]
    %v440 = vld [vmem:[#allocation5 + $0x9d0] sm:$0xff]
    %v441 = vld [vmem:[#allocation5 + $0x9d8] sm:$0xff]
    %v442 = vld [vmem:[#allocation5 + $0x9e0] sm:$0xff]
    %v443 = vld [vmem:[#allocation5 + $0x9e8] sm:$0xff]
    %v444 = vld [vmem:[#allocation5 + $0x9f0] sm:$0xff]
    %v445 = vld [vmem:[#allocation5 + $0x9f8] sm:$0xff]
    %v446 = vld [vmem:[#allocation5 + $0xa00] sm:$0xff]
    %v447 = vld [vmem:[#allocation5 + $0xa08] sm:$0xff]
    %v448 = vld [vmem:[#allocation5 + $0xa10] sm:$0xff]
    %v449 = vld [vmem:[#allocation5 + $0xa18] sm:$0xff]
    %v450 = vld [vmem:[#allocation5 + $0xa20] sm:$0xff]
    %v451 = vld [vmem:[#allocation5 + $0xa28] sm:$0xff]
    %v452 = vld [vmem:[#allocation5 + $0xa30] sm:$0xff]
    %v453 = vld [vmem:[#allocation5 + $0xa38] sm:$0xff]
    %v454 = vld [vmem:[#allocation5 + $0xa40] sm:$0xff]
    %v455 = vld [vmem:[#allocation5 + $0xa48] sm:$0xff]
    %v456 = vld [vmem:[#allocation5 + $0xa50] sm:$0xff]
    %v457 = vld [vmem:[#allocation5 + $0xa58] sm:$0xff]
    %v458 = vld [vmem:[#allocation5 + $0xa60] sm:$0xff]
    %v459 = vld [vmem:[#allocation5 + $0xa68] sm:$0xff]
    %v460 = vld [vmem:[#allocation5 + $0xa70] sm:$0xff]
    %v461 = vld [vmem:[#allocation5 + $0xa78] sm:$0xff]
    %v462 = vld [vmem:[#allocation5 + $0xa80] sm:$0xff]
    %v463 = vld [vmem:[#allocation5 + $0xa88] sm:$0xff]
    %v464 = vld [vmem:[#allocation5 + $0xa90] sm:$0xff]
    %v465 = vld [vmem:[#allocation5 + $0xa98] sm:$0xff]
    %v466 = vld [vmem:[#allocation5 + $0xaa0] sm:$0xff]
    %v467 = vld [vmem:[#allocation5 + $0xaa8] sm:$0xff]
    %v468 = vld [vmem:[#allocation5 + $0xab0] sm:$0xff]
    %v469 = vld [vmem:[#allocation5 + $0xab8] sm:$0xff]
    %v470 = vld [vmem:[#allocation5 + $0xac0] sm:$0xff]
    %v471 = vld [vmem:[#allocation5 + $0xac8] sm:$0xff]
    %v472 = vld [vmem:[#allocation5 + $0xad0] sm:$0xff]
    %v473 = vld [vmem:[#allocation5 + $0xad8] sm:$0xff]
    %v474 = vld [vmem:[#allocation5 + $0xae0] sm:$0xff]
    %v475 = vld [vmem:[#allocation5 + $0xae8] sm:$0xff]
    %v476 = vld [vmem:[#allocation5 + $0xaf0] sm:$0xff]
    %v477 = vld [vmem:[#allocation5 + $0xaf8] sm:$0xff]
    %v478 = vld [vmem:[#allocation5 + $0xb00] sm:$0xff]
    %v479 = vld [vmem:[#allocation5 + $0xb08] sm:$0xff]
    %v480 = vld [vmem:[#allocation5 + $0xb10] sm:$0xff]
    %v481 = vld [vmem:[#allocation5 + $0xb18] sm:$0xff]
    %v482 = vld [vmem:[#allocation5 + $0xb20] sm:$0xff]
    %v483 = vld [vmem:[#allocation5 + $0xb28] sm:$0xff]
    %v484 = vld [vmem:[#allocation5 + $0xb30] sm:$0xff]
    %v485 = vld [vmem:[#allocation5 + $0xb38] sm:$0xff]
    %v486 = vld [vmem:[#allocation5 + $0xb40] sm:$0xff]
    %v487 = vld [vmem:[#allocation5 + $0xb48] sm:$0xff]
    %v488 = vld [vmem:[#allocation5 + $0xb50] sm:$0xff]
    %v489 = vld [vmem:[#allocation5 + $0xb58] sm:$0xff]
    %v490 = vld [vmem:[#allocation5 + $0xb60] sm:$0xff]
    %v491 = vld [vmem:[#allocation5 + $0xb68] sm:$0xff]
    %v492 = vld [vmem:[#allocation5 + $0xb70] sm:$0xff]
    %v493 = vld [vmem:[#allocation5 + $0xb78] sm:$0xff]
    %v494 = vld [vmem:[#allocation5 + $0xb80] sm:$0xff]
    %v495 = vld [vmem:[#allocation5 + $0xb88] sm:$0xff]
    %v496 = vld [vmem:[#allocation5 + $0xb90] sm:$0xff]
    %v497 = vld [vmem:[#allocation5 + $0xb98] sm:$0xff]
    %v498 = vld [vmem:[#allocation5 + $0xba0] sm:$0xff]
    %v499 = vld [vmem:[#allocation5 + $0xba8] sm:$0xff]
    %v500 = vld [vmem:[#allocation5 + $0xbb0] sm:$0xff]
    %v501 = vld [vmem:[#allocation5 + $0xbb8] sm:$0xff]
    %v502 = vld [vmem:[#allocation5 + $0xbc0] sm:$0xff]
    %v503 = vld [vmem:[#allocation5 + $0xbc8] sm:$0xff]
    %v504 = vld [vmem:[#allocation5 + $0xbd0] sm:$0xff]
    %v505 = vld [vmem:[#allocation5 + $0xbd8] sm:$0xff]
    %v506 = vld [vmem:[#allocation5 + $0xbe0] sm:$0xff]
    %v507 = vld [vmem:[#allocation5 + $0xbe8] sm:$0xff]
    %v508 = vld [vmem:[#allocation5 + $0xbf0] sm:$0xff]
    %v509 = vld [vmem:[#allocation5 + $0xbf8] sm:$0xff]
    %v510 = vld [vmem:[#allocation5 + $0xc00] sm:$0xff]
    %v511 = vld [vmem:[#allocation5 + $0xc08] sm:$0xff]
    %v512 = vld [vmem:[#allocation5 + $0xc10] sm:$0xff]
    %v513 = vld [vmem:[#allocation5 + $0xc18] sm:$0xff]
    %v514 = vld [vmem:[#allocation5 + $0xc20] sm:$0xff]
    %v515 = vld [vmem:[#allocation5 + $0xc28] sm:$0xff]
    %v516 = vld [vmem:[#allocation5 + $0xc30] sm:$0xff]
    %v517 = vld [vmem:[#allocation5 + $0xc38] sm:$0xff]
    %v518 = vld [vmem:[#allocation5 + $0xc40] sm:$0xff]
    %v519 = vld [vmem:[#allocation5 + $0xc48] sm:$0xff]
    %v520 = vld [vmem:[#allocation5 + $0xc50] sm:$0xff]
    %v521 = vld [vmem:[#allocation5 + $0xc58] sm:$0xff]
    %v522 = vld [vmem:[#allocation5 + $0xc60] sm:$0xff]
    %v523 = vld [vmem:[#allocation5 + $0xc68] sm:$0xff]
    %v524 = vld [vmem:[#allocation5 + $0xc70] sm:$0xff]
    %v525 = vld [vmem:[#allocation5 + $0xc78] sm:$0xff]
    %v526 = vld [vmem:[#allocation5 + $0xc80] sm:$0xff]
    %v527 = vld [vmem:[#allocation5 + $0xc88] sm:$0xff]
    %v528 = vld [vmem:[#allocation5 + $0xc90] sm:$0xff]
    %v529 = vld [vmem:[#allocation5 + $0xc98] sm:$0xff]
    %v530 = vld [vmem:[#allocation5 + $0xca0] sm:$0xff]
    %v531 = vld [vmem:[#allocation5 + $0xca8] sm:$0xff]
    %v532 = vld [vmem:[#allocation5 + $0xcb0] sm:$0xff]
    %v533 = vld [vmem:[#allocation5 + $0xcb8] sm:$0xff]
    %v534 = vld [vmem:[#allocation5 + $0xcc0] sm:$0xff]
    %v535 = vld [vmem:[#allocation5 + $0xcc8] sm:$0xff]
    %v536 = vld [vmem:[#allocation5 + $0xcd0] sm:$0xff]
    %v537 = vld [vmem:[#allocation5 + $0xcd8] sm:$0xff]
    %v538 = vld [vmem:[#allocation5 + $0xce0] sm:$0xff]
    %v539 = vld [vmem:[#allocation5 + $0xce8] sm:$0xff]
    %v540 = vld [vmem:[#allocation5 + $0xcf0] sm:$0xff]
    %v541 = vld [vmem:[#allocation5 + $0xcf8] sm:$0xff]
    %v542 = vld [vmem:[#allocation5 + $0xd00] sm:$0xff]
    %v543 = vld [vmem:[#allocation5 + $0xd08] sm:$0xff]
    %v544 = vld [vmem:[#allocation5 + $0xd10] sm:$0xff]
    %v545 = vld [vmem:[#allocation5 + $0xd18] sm:$0xff]
    %v546 = vld [vmem:[#allocation5 + $0xd20] sm:$0xff]
    %v547 = vld [vmem:[#allocation5 + $0xd28] sm:$0xff]
    %v548 = vld [vmem:[#allocation5 + $0xd30] sm:$0xff]
    %v549 = vld [vmem:[#allocation5 + $0xd38] sm:$0xff]
    %v550 = vld [vmem:[#allocation5 + $0xd40] sm:$0xff]
    %v551 = vld [vmem:[#allocation5 + $0xd48] sm:$0xff]
    %v552 = vld [vmem:[#allocation5 + $0xd50] sm:$0xff]
    %v553 = vld [vmem:[#allocation5 + $0xd58] sm:$0xff]
    %v554 = vld [vmem:[#allocation5 + $0xd60] sm:$0xff]
    %v555 = vld [vmem:[#allocation5 + $0xd68] sm:$0xff]
    %v556 = vld [vmem:[#allocation5 + $0xd70] sm:$0xff]
    %v557 = vld [vmem:[#allocation5 + $0xd78] sm:$0xff]
    %v558 = vld [vmem:[#allocation5 + $0xd80] sm:$0xff]
    %v559 = vld [vmem:[#allocation5 + $0xd88] sm:$0xff]
    %v560 = vld [vmem:[#allocation5 + $0xd90] sm:$0xff]
    %v561 = vld [vmem:[#allocation5 + $0xd98] sm:$0xff]
    %v562 = vld [vmem:[#allocation5 + $0xda0] sm:$0xff]
    %v563 = vld [vmem:[#allocation5 + $0xda8] sm:$0xff]
    %v564 = vld [vmem:[#allocation5 + $0xdb0] sm:$0xff]
    %v565 = vld [vmem:[#allocation5 + $0xdb8] sm:$0xff]
    %v566 = vld [vmem:[#allocation5 + $0xdc0] sm:$0xff]
    %v567 = vld [vmem:[#allocation5 + $0xdc8] sm:$0xff]
    %v568 = vld [vmem:[#allocation5 + $0xdd0] sm:$0xff]
    %v569 = vld [vmem:[#allocation5 + $0xdd8] sm:$0xff]
    %v570 = vld [vmem:[#allocation5 + $0xde0] sm:$0xff]
    %v571 = vld [vmem:[#allocation5 + $0xde8] sm:$0xff]
    %v572 = vld [vmem:[#allocation5 + $0xdf0] sm:$0xff]
    %v573 = vld [vmem:[#allocation5 + $0xdf8] sm:$0xff]
    %v574 = vld [vmem:[#allocation5 + $0xe00] sm:$0xff]
    %v575 = vld [vmem:[#allocation5 + $0xe08] sm:$0xff]
    %v576 = vld [vmem:[#allocation5 + $0xe10] sm:$0xff]
    %v577 = vld [vmem:[#allocation5 + $0xe18] sm:$0xff]
    %v578 = vld [vmem:[#allocation5 + $0xe20] sm:$0xff]
    %v579 = vld [vmem:[#allocation5 + $0xe28] sm:$0xff]
    %v580 = vld [vmem:[#allocation5 + $0xe30] sm:$0xff]
    %v581 = vld [vmem:[#allocation5 + $0xe38] sm:$0xff]
    %v582 = vld [vmem:[#allocation5 + $0xe40] sm:$0xff]
    %v583 = vld [vmem:[#allocation5 + $0xe48] sm:$0xff]
    %v584 = vld [vmem:[#allocation5 + $0xe50] sm:$0xff]
    %v585 = vld [vmem:[#allocation5 + $0xe58] sm:$0xff]
    %v586 = vld [vmem:[#allocation5 + $0xe60] sm:$0xff]
    %v587 = vld [vmem:[#allocation5 + $0xe68] sm:$0xff]
    %v588 = vld [vmem:[#allocation5 + $0xe70] sm:$0xff]
    %v589 = vld [vmem:[#allocation5 + $0xe78] sm:$0xff]
    %v590 = vld [vmem:[#allocation5 + $0xe80] sm:$0xff]
    %v591 = vld [vmem:[#allocation5 + $0xe88] sm:$0xff]
    %v592 = vld [vmem:[#allocation5 + $0xe90] sm:$0xff]
    %v593 = vld [vmem:[#allocation5 + $0xe98] sm:$0xff]
    %v594 = vld [vmem:[#allocation5 + $0xea0] sm:$0xff]
    %v595 = vld [vmem:[#allocation5 + $0xea8] sm:$0xff]
    %v596 = vld [vmem:[#allocation5 + $0xeb0] sm:$0xff]
    %v597 = vld [vmem:[#allocation5 + $0xeb8] sm:$0xff]
    %v598 = vld [vmem:[#allocation5 + $0xec0] sm:$0xff]
    %v599 = vld [vmem:[#allocation5 + $0xec8] sm:$0xff]
    %v600 = vld [vmem:[#allocation5 + $0xed0] sm:$0xff]
    %v601 = vld [vmem:[#allocation5 + $0xed8] sm:$0xff]
    %v602 = vld [vmem:[#allocation5 + $0xee0] sm:$0xff]
    %v603 = vld [vmem:[#allocation5 + $0xee8] sm:$0xff]
    %v604 = vld [vmem:[#allocation5 + $0xef0] sm:$0xff]
    %v605 = vld [vmem:[#allocation5 + $0xef8] sm:$0xff]
    %v606 = vld [vmem:[#allocation5 + $0xf00] sm:$0xff]
    %v607 = vld [vmem:[#allocation5 + $0xf08] sm:$0xff]
    %v608 = vld [vmem:[#allocation5 + $0xf10] sm:$0xff]
    %v609 = vld [vmem:[#allocation5 + $0xf18] sm:$0xff]
    %v610 = vld [vmem:[#allocation5 + $0xf20] sm:$0xff]
    %v611 = vld [vmem:[#allocation5 + $0xf28] sm:$0xff]
    %v612 = vld [vmem:[#allocation5 + $0xf30] sm:$0xff]
    %v613 = vld [vmem:[#allocation5 + $0xf38] sm:$0xff]
    %v614 = vld [vmem:[#allocation5 + $0xf40] sm:$0xff]
    %v615 = vld [vmem:[#allocation5 + $0xf48] sm:$0xff]
    %v616 = vld [vmem:[#allocation5 + $0xf50] sm:$0xff]
    %v617 = vld [vmem:[#allocation5 + $0xf58] sm:$0xff]
    %v618 = vld [vmem:[#allocation5 + $0xf60] sm:$0xff]
    %v619 = vld [vmem:[#allocation5 + $0xf68] sm:$0xff]
    %v620 = vld [vmem:[#allocation5 + $0xf70] sm:$0xff]
    %v621 = vld [vmem:[#allocation5 + $0xf78] sm:$0xff]
    %v622 = vld [vmem:[#allocation5 + $0xf80] sm:$0xff]
    %v623 = vld [vmem:[#allocation5 + $0xf88] sm:$0xff]
    %v624 = vld [vmem:[#allocation5 + $0xf90] sm:$0xff]
    %v625 = vld [vmem:[#allocation5 + $0xf98] sm:$0xff]
    %v626 = vld [vmem:[#allocation5 + $0xfa0] sm:$0xff]
    %v627 = vld [vmem:[#allocation5 + $0xfa8] sm:$0xff]
    %v628 = vld [vmem:[#allocation5 + $0xfb0] sm:$0xff]
    %v629 = vld [vmem:[#allocation5 + $0xfb8] sm:$0xff]
    %v630 = vld [vmem:[#allocation5 + $0xfc0] sm:$0xff]
    %v631 = vld [vmem:[#allocation5 + $0xfc8] sm:$0xff]
    %v632 = vld [vmem:[#allocation5 + $0xfd0] sm:$0xff]
    %v633 = vld [vmem:[#allocation5 + $0xfd8] sm:$0xff]
    %v634 = vld [vmem:[#allocation5 + $0xfe0] sm:$0xff]
    %v635 = vld [vmem:[#allocation5 + $0xfe8] sm:$0xff]
    %v636 = vld [vmem:[#allocation5 + $0xff0] sm:$0xff]
    %v637 = vld [vmem:[#allocation5 + $0xff8] sm:$0xff]
    %v638 = vld [vmem:[#allocation7] sm:$0xff]
    %v639 = vld [vmem:[#allocation7 + $0x8] sm:$0xff]
    %v642 = vlaneseq
    %v643 = vshrl.u32 %v642, 7
    %v644 = vsub.s32 0, %v643
    %v645 = vrot.slane %v638, %v644
    %v646 = vlaneseq
    %v647 = vshrl.u32 %v646, 7
    %v648 = vsub.s32 1, %v647
    %v649 = vrot.slane %v638, %v648
    %v650 = vlaneseq
    %v651 = vshrl.u32 %v650, 7
    %v652 = vsub.s32 2, %v651
    %v653 = vrot.slane %v638, %v652
    %v654 = vlaneseq
    %v655 = vshrl.u32 %v654, 7
    %v656 = vsub.s32 3, %v655
    %v657 = vrot.slane %v638, %v656
    %v658 = vlaneseq
    %v659 = vshrl.u32 %v658, 7
    %v660 = vsub.s32 4, %v659
    %v661 = vrot.slane %v638, %v660
    %v662 = vlaneseq
    %v663 = vshrl.u32 %v662, 7
    %v664 = vsub.s32 5, %v663
    %v665 = vrot.slane %v638, %v664
    %v666 = vlaneseq
    %v667 = vshrl.u32 %v666, 7
    %v668 = vsub.s32 6, %v667
    %v669 = vrot.slane %v638, %v668
    %v670 = vlaneseq
    %v671 = vshrl.u32 %v670, 7
    %v672 = vsub.s32 7, %v671
    %v673 = vrot.slane %v638, %v672
    %v674 = vlaneseq
    %v675 = vshrl.u32 %v674, 7
    %v676 = vsub.s32 0, %v675
    %v677 = vrot.slane %v639, %v676
    %v678 = vlaneseq
    %v679 = vshrl.u32 %v678, 7
    %v680 = vsub.s32 1, %v679
    %v681 = vrot.slane %v639, %v680
    %v682 = vlaneseq
    %v683 = vshrl.u32 %v682, 7
    %v684 = vsub.s32 2, %v683
    %v685 = vrot.slane %v639, %v684
    %v686 = vlaneseq
    %v687 = vshrl.u32 %v686, 7
    %v688 = vsub.s32 3, %v687
    %v689 = vrot.slane %v639, %v688
    %v690 = vlaneseq
    %v691 = vshrl.u32 %v690, 7
    %v692 = vsub.s32 4, %v691
    %v693 = vrot.slane %v639, %v692
    %v694 = vlaneseq
    %v695 = vshrl.u32 %v694, 7
    %v696 = vsub.s32 5, %v695
    %v697 = vrot.slane %v639, %v696
    %v698 = vlaneseq
    %v699 = vshrl.u32 %v698, 7
    %v700 = vsub.s32 6, %v699
    %v701 = vrot.slane %v639, %v700
    %v702 = vlaneseq
    %v703 = vshrl.u32 %v702, 7
    %v704 = vsub.s32 7, %v703
    %v705 = vrot.slane %v639, %v704
    %v1234 = vunpack.c.l.b16 %v126
    %v1235 = vunpack.c.h.b16 %v126
    %v1236 = vunpack.c.l.b16 %v127
    %v1237 = vunpack.c.h.b16 %v127
    %v1238 = vunpack.c.l.b16 %v128
    %v1239 = vunpack.c.h.b16 %v128
    %v1240 = vunpack.c.l.b16 %v129
    %v1241 = vunpack.c.h.b16 %v129
    %v1242 = vunpack.c.l.b16 %v130
    %v1243 = vunpack.c.h.b16 %v130
    %v1244 = vunpack.c.l.b16 %v131
    %v1245 = vunpack.c.h.b16 %v131
    %v1246 = vunpack.c.l.b16 %v132
    %v1247 = vunpack.c.h.b16 %v132
    %v1248 = vunpack.c.l.b16 %v133
    %v1249 = vunpack.c.h.b16 %v133
    %v1250 = vunpack.c.l.b16 %v134
    %v1251 = vunpack.c.h.b16 %v134
    %v1252 = vunpack.c.l.b16 %v135
    %v1253 = vunpack.c.h.b16 %v135
    %v1254 = vunpack.c.l.b16 %v136
    %v1255 = vunpack.c.h.b16 %v136
    %v1256 = vunpack.c.l.b16 %v137
    %v1257 = vunpack.c.h.b16 %v137
    %v1258 = vunpack.c.l.b16 %v138
    %v1259 = vunpack.c.h.b16 %v138
    %v1260 = vunpack.c.l.b16 %v139
    %v1261 = vunpack.c.h.b16 %v139
    %v1262 = vunpack.c.l.b16 %v140
    %v1263 = vunpack.c.h.b16 %v140
    %v1264 = vunpack.c.l.b16 %v141
    %v1265 = vunpack.c.h.b16 %v141
    %v1266 = vunpack.c.l.b16 %v142
    %v1267 = vunpack.c.h.b16 %v142
    %v1268 = vunpack.c.l.b16 %v143
    %v1269 = vunpack.c.h.b16 %v143
    %v1270 = vunpack.c.l.b16 %v144
    %v1271 = vunpack.c.h.b16 %v144
    %v1272 = vunpack.c.l.b16 %v145
    %v1273 = vunpack.c.h.b16 %v145
    %v1274 = vunpack.c.l.b16 %v146
    %v1275 = vunpack.c.h.b16 %v146
    %v1276 = vunpack.c.l.b16 %v147
    %v1277 = vunpack.c.h.b16 %v147
    %v1278 = vunpack.c.l.b16 %v148
    %v1279 = vunpack.c.h.b16 %v148
    %v1280 = vunpack.c.l.b16 %v149
    %v1281 = vunpack.c.h.b16 %v149
    %v1282 = vunpack.c.l.b16 %v150
    %v1283 = vunpack.c.h.b16 %v150
    %v1284 = vunpack.c.l.b16 %v151
    %v1285 = vunpack.c.h.b16 %v151
    %v1286 = vunpack.c.l.b16 %v152
    %v1287 = vunpack.c.h.b16 %v152
    %v1288 = vunpack.c.l.b16 %v153
    %v1289 = vunpack.c.h.b16 %v153
    %v1290 = vunpack.c.l.b16 %v154
    %v1291 = vunpack.c.h.b16 %v154
    %v1292 = vunpack.c.l.b16 %v155
    %v1293 = vunpack.c.h.b16 %v155
    %v1294 = vunpack.c.l.b16 %v156
    %v1295 = vunpack.c.h.b16 %v156
    %v1296 = vunpack.c.l.b16 %v157
    %v1297 = vunpack.c.h.b16 %v157
    %v1298 = vunpack.c.l.b16 %v158
    %v1299 = vunpack.c.h.b16 %v158
    %v1300 = vunpack.c.l.b16 %v159
    %v1301 = vunpack.c.h.b16 %v159
    %v1302 = vunpack.c.l.b16 %v160
    %v1303 = vunpack.c.h.b16 %v160
    %v1304 = vunpack.c.l.b16 %v161
    %v1305 = vunpack.c.h.b16 %v161
    %v1306 = vunpack.c.l.b16 %v162
    %v1307 = vunpack.c.h.b16 %v162
    %v1308 = vunpack.c.l.b16 %v163
    %v1309 = vunpack.c.h.b16 %v163
    %v1310 = vunpack.c.l.b16 %v164
    %v1311 = vunpack.c.h.b16 %v164
    %v1312 = vunpack.c.l.b16 %v165
    %v1313 = vunpack.c.h.b16 %v165
    %v1314 = vunpack.c.l.b16 %v166
    %v1315 = vunpack.c.h.b16 %v166
    %v1316 = vunpack.c.l.b16 %v167
    %v1317 = vunpack.c.h.b16 %v167
    %v1318 = vunpack.c.l.b16 %v168
    %v1319 = vunpack.c.h.b16 %v168
    %v1320 = vunpack.c.l.b16 %v169
    %v1321 = vunpack.c.h.b16 %v169
    %v1322 = vunpack.c.l.b16 %v170
    %v1323 = vunpack.c.h.b16 %v170
    %v1324 = vunpack.c.l.b16 %v171
    %v1325 = vunpack.c.h.b16 %v171
    %v1326 = vunpack.c.l.b16 %v172
    %v1327 = vunpack.c.h.b16 %v172
    %v1328 = vunpack.c.l.b16 %v173
    %v1329 = vunpack.c.h.b16 %v173
    %v1330 = vunpack.c.l.b16 %v174
    %v1331 = vunpack.c.h.b16 %v174
    %v1332 = vunpack.c.l.b16 %v175
    %v1333 = vunpack.c.h.b16 %v175
    %v1334 = vunpack.c.l.b16 %v176
    %v1335 = vunpack.c.h.b16 %v176
    %v1336 = vunpack.c.l.b16 %v177
    %v1337 = vunpack.c.h.b16 %v177
    %v1338 = vunpack.c.l.b16 %v178
    %v1339 = vunpack.c.h.b16 %v178
    %v1340 = vunpack.c.l.b16 %v179
    %v1341 = vunpack.c.h.b16 %v179
    %v1342 = vunpack.c.l.b16 %v180
    %v1343 = vunpack.c.h.b16 %v180
    %v1344 = vunpack.c.l.b16 %v181
    %v1345 = vunpack.c.h.b16 %v181
    %v1346 = vunpack.c.l.b16 %v182
    %v1347 = vunpack.c.h.b16 %v182
    %v1348 = vunpack.c.l.b16 %v183
    %v1349 = vunpack.c.h.b16 %v183
    %v1350 = vunpack.c.l.b16 %v184
    %v1351 = vunpack.c.h.b16 %v184
    %v1352 = vunpack.c.l.b16 %v185
    %v1353 = vunpack.c.h.b16 %v185
    %v1354 = vunpack.c.l.b16 %v186
    %v1355 = vunpack.c.h.b16 %v186
    %v1356 = vunpack.c.l.b16 %v187
    %v1357 = vunpack.c.h.b16 %v187
    %v1358 = vunpack.c.l.b16 %v188
    %v1359 = vunpack.c.h.b16 %v188
    %v1360 = vunpack.c.l.b16 %v189
    %v1361 = vunpack.c.h.b16 %v189
    %v1362 = vunpack.c.l.b16 %v190
    %v1363 = vunpack.c.h.b16 %v190
    %v1364 = vunpack.c.l.b16 %v191
    %v1365 = vunpack.c.h.b16 %v191
    %v1366 = vunpack.c.l.b16 %v192
    %v1367 = vunpack.c.h.b16 %v192
    %v1368 = vunpack.c.l.b16 %v193
    %v1369 = vunpack.c.h.b16 %v193
    %v1370 = vunpack.c.l.b16 %v194
    %v1371 = vunpack.c.h.b16 %v194
    %v1372 = vunpack.c.l.b16 %v195
    %v1373 = vunpack.c.h.b16 %v195
    %v1374 = vunpack.c.l.b16 %v196
    %v1375 = vunpack.c.h.b16 %v196
    %v1376 = vunpack.c.l.b16 %v197
    %v1377 = vunpack.c.h.b16 %v197
    %v1378 = vunpack.c.l.b16 %v198
    %v1379 = vunpack.c.h.b16 %v198
    %v1380 = vunpack.c.l.b16 %v199
    %v1381 = vunpack.c.h.b16 %v199
    %v1382 = vunpack.c.l.b16 %v200
    %v1383 = vunpack.c.h.b16 %v200
    %v1384 = vunpack.c.l.b16 %v201
    %v1385 = vunpack.c.h.b16 %v201
    %v1386 = vunpack.c.l.b16 %v202
    %v1387 = vunpack.c.h.b16 %v202
    %v1388 = vunpack.c.l.b16 %v203
    %v1389 = vunpack.c.h.b16 %v203
    %v1390 = vunpack.c.l.b16 %v204
    %v1391 = vunpack.c.h.b16 %v204
    %v1392 = vunpack.c.l.b16 %v205
    %v1393 = vunpack.c.h.b16 %v205
    %v1394 = vunpack.c.l.b16 %v206
    %v1395 = vunpack.c.h.b16 %v206
    %v1396 = vunpack.c.l.b16 %v207
    %v1397 = vunpack.c.h.b16 %v207
    %v1398 = vunpack.c.l.b16 %v208
    %v1399 = vunpack.c.h.b16 %v208
    %v1400 = vunpack.c.l.b16 %v209
    %v1401 = vunpack.c.h.b16 %v209
    %v1402 = vunpack.c.l.b16 %v210
    %v1403 = vunpack.c.h.b16 %v210
    %v1404 = vunpack.c.l.b16 %v211
    %v1405 = vunpack.c.h.b16 %v211
    %v1406 = vunpack.c.l.b16 %v212
    %v1407 = vunpack.c.h.b16 %v212
    %v1408 = vunpack.c.l.b16 %v213
    %v1409 = vunpack.c.h.b16 %v213
    %v1410 = vunpack.c.l.b16 %v214
    %v1411 = vunpack.c.h.b16 %v214
    %v1412 = vunpack.c.l.b16 %v215
    %v1413 = vunpack.c.h.b16 %v215
    %v1414 = vunpack.c.l.b16 %v216
    %v1415 = vunpack.c.h.b16 %v216
    %v1416 = vunpack.c.l.b16 %v217
    %v1417 = vunpack.c.h.b16 %v217
    %v1418 = vunpack.c.l.b16 %v218
    %v1419 = vunpack.c.h.b16 %v218
    %v1420 = vunpack.c.l.b16 %v219
    %v1421 = vunpack.c.h.b16 %v219
    %v1422 = vunpack.c.l.b16 %v220
    %v1423 = vunpack.c.h.b16 %v220
    %v1424 = vunpack.c.l.b16 %v221
    %v1425 = vunpack.c.h.b16 %v221
    %v1426 = vunpack.c.l.b16 %v222
    %v1427 = vunpack.c.h.b16 %v222
    %v1428 = vunpack.c.l.b16 %v223
    %v1429 = vunpack.c.h.b16 %v223
    %v1430 = vunpack.c.l.b16 %v224
    %v1431 = vunpack.c.h.b16 %v224
    %v1432 = vunpack.c.l.b16 %v225
    %v1433 = vunpack.c.h.b16 %v225
    %v1434 = vunpack.c.l.b16 %v226
    %v1435 = vunpack.c.h.b16 %v226
    %v1436 = vunpack.c.l.b16 %v227
    %v1437 = vunpack.c.h.b16 %v227
    %v1438 = vunpack.c.l.b16 %v228
    %v1439 = vunpack.c.h.b16 %v228
    %v1440 = vunpack.c.l.b16 %v229
    %v1441 = vunpack.c.h.b16 %v229
    %v1442 = vunpack.c.l.b16 %v230
    %v1443 = vunpack.c.h.b16 %v230
    %v1444 = vunpack.c.l.b16 %v231
    %v1445 = vunpack.c.h.b16 %v231
    %v1446 = vunpack.c.l.b16 %v232
    %v1447 = vunpack.c.h.b16 %v232
    %v1448 = vunpack.c.l.b16 %v233
    %v1449 = vunpack.c.h.b16 %v233
    %v1450 = vunpack.c.l.b16 %v234
    %v1451 = vunpack.c.h.b16 %v234
    %v1452 = vunpack.c.l.b16 %v235
    %v1453 = vunpack.c.h.b16 %v235
    %v1454 = vunpack.c.l.b16 %v236
    %v1455 = vunpack.c.h.b16 %v236
    %v1456 = vunpack.c.l.b16 %v237
    %v1457 = vunpack.c.h.b16 %v237
    %v1458 = vunpack.c.l.b16 %v238
    %v1459 = vunpack.c.h.b16 %v238
    %v1460 = vunpack.c.l.b16 %v239
    %v1461 = vunpack.c.h.b16 %v239
    %v1462 = vunpack.c.l.b16 %v240
    %v1463 = vunpack.c.h.b16 %v240
    %v1464 = vunpack.c.l.b16 %v241
    %v1465 = vunpack.c.h.b16 %v241
    %v1466 = vunpack.c.l.b16 %v242
    %v1467 = vunpack.c.h.b16 %v242
    %v1468 = vunpack.c.l.b16 %v243
    %v1469 = vunpack.c.h.b16 %v243
    %v1470 = vunpack.c.l.b16 %v244
    %v1471 = vunpack.c.h.b16 %v244
    %v1472 = vunpack.c.l.b16 %v245
    %v1473 = vunpack.c.h.b16 %v245
    %v1474 = vunpack.c.l.b16 %v246
    %v1475 = vunpack.c.h.b16 %v246
    %v1476 = vunpack.c.l.b16 %v247
    %v1477 = vunpack.c.h.b16 %v247
    %v1478 = vunpack.c.l.b16 %v248
    %v1479 = vunpack.c.h.b16 %v248
    %v1480 = vunpack.c.l.b16 %v249
    %v1481 = vunpack.c.h.b16 %v249
    %v1482 = vunpack.c.l.b16 %v250
    %v1483 = vunpack.c.h.b16 %v250
    %v1484 = vunpack.c.l.b16 %v251
    %v1485 = vunpack.c.h.b16 %v251
    %v1486 = vunpack.c.l.b16 %v252
    %v1487 = vunpack.c.h.b16 %v252
    %v1488 = vunpack.c.l.b16 %v253
    %v1489 = vunpack.c.h.b16 %v253
    %v1490 = vunpack.c.l.b16 %v254
    %v1491 = vunpack.c.h.b16 %v254
    %v1492 = vunpack.c.l.b16 %v255
    %v1493 = vunpack.c.h.b16 %v255
    %v1494 = vunpack.c.l.b16 %v256
    %v1495 = vunpack.c.h.b16 %v256
    %v1496 = vunpack.c.l.b16 %v257
    %v1497 = vunpack.c.h.b16 %v257
    %v1498 = vunpack.c.l.b16 %v258
    %v1499 = vunpack.c.h.b16 %v258
    %v1500 = vunpack.c.l.b16 %v259
    %v1501 = vunpack.c.h.b16 %v259
    %v1502 = vunpack.c.l.b16 %v260
    %v1503 = vunpack.c.h.b16 %v260
    %v1504 = vunpack.c.l.b16 %v261
    %v1505 = vunpack.c.h.b16 %v261
    %v1506 = vunpack.c.l.b16 %v262
    %v1507 = vunpack.c.h.b16 %v262
    %v1508 = vunpack.c.l.b16 %v263
    %v1509 = vunpack.c.h.b16 %v263
    %v1510 = vunpack.c.l.b16 %v264
    %v1511 = vunpack.c.h.b16 %v264
    %v1512 = vunpack.c.l.b16 %v265
    %v1513 = vunpack.c.h.b16 %v265
    %v1514 = vunpack.c.l.b16 %v266
    %v1515 = vunpack.c.h.b16 %v266
    %v1516 = vunpack.c.l.b16 %v267
    %v1517 = vunpack.c.h.b16 %v267
    %v1518 = vunpack.c.l.b16 %v268
    %v1519 = vunpack.c.h.b16 %v268
    %v1520 = vunpack.c.l.b16 %v269
    %v1521 = vunpack.c.h.b16 %v269
    %v1522 = vunpack.c.l.b16 %v270
    %v1523 = vunpack.c.h.b16 %v270
    %v1524 = vunpack.c.l.b16 %v271
    %v1525 = vunpack.c.h.b16 %v271
    %v1526 = vunpack.c.l.b16 %v272
    %v1527 = vunpack.c.h.b16 %v272
    %v1528 = vunpack.c.l.b16 %v273
    %v1529 = vunpack.c.h.b16 %v273
    %v1530 = vunpack.c.l.b16 %v274
    %v1531 = vunpack.c.h.b16 %v274
    %v1532 = vunpack.c.l.b16 %v275
    %v1533 = vunpack.c.h.b16 %v275
    %v1534 = vunpack.c.l.b16 %v276
    %v1535 = vunpack.c.h.b16 %v276
    %v1536 = vunpack.c.l.b16 %v277
    %v1537 = vunpack.c.h.b16 %v277
    %v1538 = vunpack.c.l.b16 %v278
    %v1539 = vunpack.c.h.b16 %v278
    %v1540 = vunpack.c.l.b16 %v279
    %v1541 = vunpack.c.h.b16 %v279
    %v1542 = vunpack.c.l.b16 %v280
    %v1543 = vunpack.c.h.b16 %v280
    %v1544 = vunpack.c.l.b16 %v281
    %v1545 = vunpack.c.h.b16 %v281
    %v1546 = vunpack.c.l.b16 %v282
    %v1547 = vunpack.c.h.b16 %v282
    %v1548 = vunpack.c.l.b16 %v283
    %v1549 = vunpack.c.h.b16 %v283
    %v1550 = vunpack.c.l.b16 %v284
    %v1551 = vunpack.c.h.b16 %v284
    %v1552 = vunpack.c.l.b16 %v285
    %v1553 = vunpack.c.h.b16 %v285
    %v1554 = vunpack.c.l.b16 %v286
    %v1555 = vunpack.c.h.b16 %v286
    %v1556 = vunpack.c.l.b16 %v287
    %v1557 = vunpack.c.h.b16 %v287
    %v1558 = vunpack.c.l.b16 %v288
    %v1559 = vunpack.c.h.b16 %v288
    %v1560 = vunpack.c.l.b16 %v289
    %v1561 = vunpack.c.h.b16 %v289
    %v1562 = vunpack.c.l.b16 %v290
    %v1563 = vunpack.c.h.b16 %v290
    %v1564 = vunpack.c.l.b16 %v291
    %v1565 = vunpack.c.h.b16 %v291
    %v1566 = vunpack.c.l.b16 %v292
    %v1567 = vunpack.c.h.b16 %v292
    %v1568 = vunpack.c.l.b16 %v293
    %v1569 = vunpack.c.h.b16 %v293
    %v1570 = vunpack.c.l.b16 %v294
    %v1571 = vunpack.c.h.b16 %v294
    %v1572 = vunpack.c.l.b16 %v295
    %v1573 = vunpack.c.h.b16 %v295
    %v1574 = vunpack.c.l.b16 %v296
    %v1575 = vunpack.c.h.b16 %v296
    %v1576 = vunpack.c.l.b16 %v297
    %v1577 = vunpack.c.h.b16 %v297
    %v1578 = vunpack.c.l.b16 %v298
    %v1579 = vunpack.c.h.b16 %v298
    %v1580 = vunpack.c.l.b16 %v299
    %v1581 = vunpack.c.h.b16 %v299
    %v1582 = vunpack.c.l.b16 %v300
    %v1583 = vunpack.c.h.b16 %v300
    %v1584 = vunpack.c.l.b16 %v301
    %v1585 = vunpack.c.h.b16 %v301
    %v1586 = vunpack.c.l.b16 %v302
    %v1587 = vunpack.c.h.b16 %v302
    %v1588 = vunpack.c.l.b16 %v303
    %v1589 = vunpack.c.h.b16 %v303
    %v1590 = vunpack.c.l.b16 %v304
    %v1591 = vunpack.c.h.b16 %v304
    %v1592 = vunpack.c.l.b16 %v305
    %v1593 = vunpack.c.h.b16 %v305
    %v1594 = vunpack.c.l.b16 %v306
    %v1595 = vunpack.c.h.b16 %v306
    %v1596 = vunpack.c.l.b16 %v307
    %v1597 = vunpack.c.h.b16 %v307
    %v1598 = vunpack.c.l.b16 %v308
    %v1599 = vunpack.c.h.b16 %v308
    %v1600 = vunpack.c.l.b16 %v309
    %v1601 = vunpack.c.h.b16 %v309
    %v1602 = vunpack.c.l.b16 %v310
    %v1603 = vunpack.c.h.b16 %v310
    %v1604 = vunpack.c.l.b16 %v311
    %v1605 = vunpack.c.h.b16 %v311
    %v1606 = vunpack.c.l.b16 %v312
    %v1607 = vunpack.c.h.b16 %v312
    %v1608 = vunpack.c.l.b16 %v313
    %v1609 = vunpack.c.h.b16 %v313
    %v1610 = vunpack.c.l.b16 %v314
    %v1611 = vunpack.c.h.b16 %v314
    %v1612 = vunpack.c.l.b16 %v315
    %v1613 = vunpack.c.h.b16 %v315
    %v1614 = vunpack.c.l.b16 %v316
    %v1615 = vunpack.c.h.b16 %v316
    %v1616 = vunpack.c.l.b16 %v317
    %v1617 = vunpack.c.h.b16 %v317
    %v1618 = vunpack.c.l.b16 %v318
    %v1619 = vunpack.c.h.b16 %v318
    %v1620 = vunpack.c.l.b16 %v319
    %v1621 = vunpack.c.h.b16 %v319
    %v1622 = vunpack.c.l.b16 %v320
    %v1623 = vunpack.c.h.b16 %v320
    %v1624 = vunpack.c.l.b16 %v321
    %v1625 = vunpack.c.h.b16 %v321
    %v1626 = vunpack.c.l.b16 %v322
    %v1627 = vunpack.c.h.b16 %v322
    %v1628 = vunpack.c.l.b16 %v323
    %v1629 = vunpack.c.h.b16 %v323
    %v1630 = vunpack.c.l.b16 %v324
    %v1631 = vunpack.c.h.b16 %v324
    %v1632 = vunpack.c.l.b16 %v325
    %v1633 = vunpack.c.h.b16 %v325
    %v1634 = vunpack.c.l.b16 %v326
    %v1635 = vunpack.c.h.b16 %v326
    %v1636 = vunpack.c.l.b16 %v327
    %v1637 = vunpack.c.h.b16 %v327
    %v1638 = vunpack.c.l.b16 %v328
    %v1639 = vunpack.c.h.b16 %v328
    %v1640 = vunpack.c.l.b16 %v329
    %v1641 = vunpack.c.h.b16 %v329
    %v1642 = vunpack.c.l.b16 %v330
    %v1643 = vunpack.c.h.b16 %v330
    %v1644 = vunpack.c.l.b16 %v331
    %v1645 = vunpack.c.h.b16 %v331
    %v1646 = vunpack.c.l.b16 %v332
    %v1647 = vunpack.c.h.b16 %v332
    %v1648 = vunpack.c.l.b16 %v333
    %v1649 = vunpack.c.h.b16 %v333
    %v1650 = vunpack.c.l.b16 %v334
    %v1651 = vunpack.c.h.b16 %v334
    %v1652 = vunpack.c.l.b16 %v335
    %v1653 = vunpack.c.h.b16 %v335
    %v1654 = vunpack.c.l.b16 %v336
    %v1655 = vunpack.c.h.b16 %v336
    %v1656 = vunpack.c.l.b16 %v337
    %v1657 = vunpack.c.h.b16 %v337
    %v1658 = vunpack.c.l.b16 %v338
    %v1659 = vunpack.c.h.b16 %v338
    %v1660 = vunpack.c.l.b16 %v339
    %v1661 = vunpack.c.h.b16 %v339
    %v1662 = vunpack.c.l.b16 %v340
    %v1663 = vunpack.c.h.b16 %v340
    %v1664 = vunpack.c.l.b16 %v341
    %v1665 = vunpack.c.h.b16 %v341
    %v1666 = vunpack.c.l.b16 %v342
    %v1667 = vunpack.c.h.b16 %v342
    %v1668 = vunpack.c.l.b16 %v343
    %v1669 = vunpack.c.h.b16 %v343
    %v1670 = vunpack.c.l.b16 %v344
    %v1671 = vunpack.c.h.b16 %v344
    %v1672 = vunpack.c.l.b16 %v345
    %v1673 = vunpack.c.h.b16 %v345
    %v1674 = vunpack.c.l.b16 %v346
    %v1675 = vunpack.c.h.b16 %v346
    %v1676 = vunpack.c.l.b16 %v347
    %v1677 = vunpack.c.h.b16 %v347
    %v1678 = vunpack.c.l.b16 %v348
    %v1679 = vunpack.c.h.b16 %v348
    %v1680 = vunpack.c.l.b16 %v349
    %v1681 = vunpack.c.h.b16 %v349
    %v1682 = vunpack.c.l.b16 %v350
    %v1683 = vunpack.c.h.b16 %v350
    %v1684 = vunpack.c.l.b16 %v351
    %v1685 = vunpack.c.h.b16 %v351
    %v1686 = vunpack.c.l.b16 %v352
    %v1687 = vunpack.c.h.b16 %v352
    %v1688 = vunpack.c.l.b16 %v353
    %v1689 = vunpack.c.h.b16 %v353
    %v1690 = vunpack.c.l.b16 %v354
    %v1691 = vunpack.c.h.b16 %v354
    %v1692 = vunpack.c.l.b16 %v355
    %v1693 = vunpack.c.h.b16 %v355
    %v1694 = vunpack.c.l.b16 %v356
    %v1695 = vunpack.c.h.b16 %v356
    %v1696 = vunpack.c.l.b16 %v357
    %v1697 = vunpack.c.h.b16 %v357
    %v1698 = vunpack.c.l.b16 %v358
    %v1699 = vunpack.c.h.b16 %v358
    %v1700 = vunpack.c.l.b16 %v359
    %v1701 = vunpack.c.h.b16 %v359
    %v1702 = vunpack.c.l.b16 %v360
    %v1703 = vunpack.c.h.b16 %v360
    %v1704 = vunpack.c.l.b16 %v361
    %v1705 = vunpack.c.h.b16 %v361
    %v1706 = vunpack.c.l.b16 %v362
    %v1707 = vunpack.c.h.b16 %v362
    %v1708 = vunpack.c.l.b16 %v363
    %v1709 = vunpack.c.h.b16 %v363
    %v1710 = vunpack.c.l.b16 %v364
    %v1711 = vunpack.c.h.b16 %v364
    %v1712 = vunpack.c.l.b16 %v365
    %v1713 = vunpack.c.h.b16 %v365
    %v1714 = vunpack.c.l.b16 %v366
    %v1715 = vunpack.c.h.b16 %v366
    %v1716 = vunpack.c.l.b16 %v367
    %v1717 = vunpack.c.h.b16 %v367
    %v1718 = vunpack.c.l.b16 %v368
    %v1719 = vunpack.c.h.b16 %v368
    %v1720 = vunpack.c.l.b16 %v369
    %v1721 = vunpack.c.h.b16 %v369
    %v1722 = vunpack.c.l.b16 %v370
    %v1723 = vunpack.c.h.b16 %v370
    %v1724 = vunpack.c.l.b16 %v371
    %v1725 = vunpack.c.h.b16 %v371
    %v1726 = vunpack.c.l.b16 %v372
    %v1727 = vunpack.c.h.b16 %v372
    %v1728 = vunpack.c.l.b16 %v373
    %v1729 = vunpack.c.h.b16 %v373
    %v1730 = vunpack.c.l.b16 %v374
    %v1731 = vunpack.c.h.b16 %v374
    %v1732 = vunpack.c.l.b16 %v375
    %v1733 = vunpack.c.h.b16 %v375
    %v1734 = vunpack.c.l.b16 %v376
    %v1735 = vunpack.c.h.b16 %v376
    %v1736 = vunpack.c.l.b16 %v377
    %v1737 = vunpack.c.h.b16 %v377
    %v1738 = vunpack.c.l.b16 %v378
    %v1739 = vunpack.c.h.b16 %v378
    %v1740 = vunpack.c.l.b16 %v379
    %v1741 = vunpack.c.h.b16 %v379
    %v1742 = vunpack.c.l.b16 %v380
    %v1743 = vunpack.c.h.b16 %v380
    %v1744 = vunpack.c.l.b16 %v381
    %v1745 = vunpack.c.h.b16 %v381
    %v1746 = vunpack.c.l.b16 %v382
    %v1747 = vunpack.c.h.b16 %v382
    %v1748 = vunpack.c.l.b16 %v383
    %v1749 = vunpack.c.h.b16 %v383
    %v1750 = vunpack.c.l.b16 %v384
    %v1751 = vunpack.c.h.b16 %v384
    %v1752 = vunpack.c.l.b16 %v385
    %v1753 = vunpack.c.h.b16 %v385
    %v1754 = vunpack.c.l.b16 %v386
    %v1755 = vunpack.c.h.b16 %v386
    %v1756 = vunpack.c.l.b16 %v387
    %v1757 = vunpack.c.h.b16 %v387
    %v1758 = vunpack.c.l.b16 %v388
    %v1759 = vunpack.c.h.b16 %v388
    %v1760 = vunpack.c.l.b16 %v389
    %v1761 = vunpack.c.h.b16 %v389
    %v1762 = vunpack.c.l.b16 %v390
    %v1763 = vunpack.c.h.b16 %v390
    %v1764 = vunpack.c.l.b16 %v391
    %v1765 = vunpack.c.h.b16 %v391
    %v1766 = vunpack.c.l.b16 %v392
    %v1767 = vunpack.c.h.b16 %v392
    %v1768 = vunpack.c.l.b16 %v393
    %v1769 = vunpack.c.h.b16 %v393
    %v1770 = vunpack.c.l.b16 %v394
    %v1771 = vunpack.c.h.b16 %v394
    %v1772 = vunpack.c.l.b16 %v395
    %v1773 = vunpack.c.h.b16 %v395
    %v1774 = vunpack.c.l.b16 %v396
    %v1775 = vunpack.c.h.b16 %v396
    %v1776 = vunpack.c.l.b16 %v397
    %v1777 = vunpack.c.h.b16 %v397
    %v1778 = vunpack.c.l.b16 %v398
    %v1779 = vunpack.c.h.b16 %v398
    %v1780 = vunpack.c.l.b16 %v399
    %v1781 = vunpack.c.h.b16 %v399
    %v1782 = vunpack.c.l.b16 %v400
    %v1783 = vunpack.c.h.b16 %v400
    %v1784 = vunpack.c.l.b16 %v401
    %v1785 = vunpack.c.h.b16 %v401
    %v1786 = vunpack.c.l.b16 %v402
    %v1787 = vunpack.c.h.b16 %v402
    %v1788 = vunpack.c.l.b16 %v403
    %v1789 = vunpack.c.h.b16 %v403
    %v1790 = vunpack.c.l.b16 %v404
    %v1791 = vunpack.c.h.b16 %v404
    %v1792 = vunpack.c.l.b16 %v405
    %v1793 = vunpack.c.h.b16 %v405
    %v1794 = vunpack.c.l.b16 %v406
    %v1795 = vunpack.c.h.b16 %v406
    %v1796 = vunpack.c.l.b16 %v407
    %v1797 = vunpack.c.h.b16 %v407
    %v1798 = vunpack.c.l.b16 %v408
    %v1799 = vunpack.c.h.b16 %v408
    %v1800 = vunpack.c.l.b16 %v409
    %v1801 = vunpack.c.h.b16 %v409
    %v1802 = vunpack.c.l.b16 %v410
    %v1803 = vunpack.c.h.b16 %v410
    %v1804 = vunpack.c.l.b16 %v411
    %v1805 = vunpack.c.h.b16 %v411
    %v1806 = vunpack.c.l.b16 %v412
    %v1807 = vunpack.c.h.b16 %v412
    %v1808 = vunpack.c.l.b16 %v413
    %v1809 = vunpack.c.h.b16 %v413
    %v1810 = vunpack.c.l.b16 %v414
    %v1811 = vunpack.c.h.b16 %v414
    %v1812 = vunpack.c.l.b16 %v415
    %v1813 = vunpack.c.h.b16 %v415
    %v1814 = vunpack.c.l.b16 %v416
    %v1815 = vunpack.c.h.b16 %v416
    %v1816 = vunpack.c.l.b16 %v417
    %v1817 = vunpack.c.h.b16 %v417
    %v1818 = vunpack.c.l.b16 %v418
    %v1819 = vunpack.c.h.b16 %v418
    %v1820 = vunpack.c.l.b16 %v419
    %v1821 = vunpack.c.h.b16 %v419
    %v1822 = vunpack.c.l.b16 %v420
    %v1823 = vunpack.c.h.b16 %v420
    %v1824 = vunpack.c.l.b16 %v421
    %v1825 = vunpack.c.h.b16 %v421
    %v1826 = vunpack.c.l.b16 %v422
    %v1827 = vunpack.c.h.b16 %v422
    %v1828 = vunpack.c.l.b16 %v423
    %v1829 = vunpack.c.h.b16 %v423
    %v1830 = vunpack.c.l.b16 %v424
    %v1831 = vunpack.c.h.b16 %v424
    %v1832 = vunpack.c.l.b16 %v425
    %v1833 = vunpack.c.h.b16 %v425
    %v1834 = vunpack.c.l.b16 %v426
    %v1835 = vunpack.c.h.b16 %v426
    %v1836 = vunpack.c.l.b16 %v427
    %v1837 = vunpack.c.h.b16 %v427
    %v1838 = vunpack.c.l.b16 %v428
    %v1839 = vunpack.c.h.b16 %v428
    %v1840 = vunpack.c.l.b16 %v429
    %v1841 = vunpack.c.h.b16 %v429
    %v1842 = vunpack.c.l.b16 %v430
    %v1843 = vunpack.c.h.b16 %v430
    %v1844 = vunpack.c.l.b16 %v431
    %v1845 = vunpack.c.h.b16 %v431
    %v1846 = vunpack.c.l.b16 %v432
    %v1847 = vunpack.c.h.b16 %v432
    %v1848 = vunpack.c.l.b16 %v433
    %v1849 = vunpack.c.h.b16 %v433
    %v1850 = vunpack.c.l.b16 %v434
    %v1851 = vunpack.c.h.b16 %v434
    %v1852 = vunpack.c.l.b16 %v435
    %v1853 = vunpack.c.h.b16 %v435
    %v1854 = vunpack.c.l.b16 %v436
    %v1855 = vunpack.c.h.b16 %v436
    %v1856 = vunpack.c.l.b16 %v437
    %v1857 = vunpack.c.h.b16 %v437
    %v1858 = vunpack.c.l.b16 %v438
    %v1859 = vunpack.c.h.b16 %v438
    %v1860 = vunpack.c.l.b16 %v439
    %v1861 = vunpack.c.h.b16 %v439
    %v1862 = vunpack.c.l.b16 %v440
    %v1863 = vunpack.c.h.b16 %v440
    %v1864 = vunpack.c.l.b16 %v441
    %v1865 = vunpack.c.h.b16 %v441
    %v1866 = vunpack.c.l.b16 %v442
    %v1867 = vunpack.c.h.b16 %v442
    %v1868 = vunpack.c.l.b16 %v443
    %v1869 = vunpack.c.h.b16 %v443
    %v1870 = vunpack.c.l.b16 %v444
    %v1871 = vunpack.c.h.b16 %v444
    %v1872 = vunpack.c.l.b16 %v445
    %v1873 = vunpack.c.h.b16 %v445
    %v1874 = vunpack.c.l.b16 %v446
    %v1875 = vunpack.c.h.b16 %v446
    %v1876 = vunpack.c.l.b16 %v447
    %v1877 = vunpack.c.h.b16 %v447
    %v1878 = vunpack.c.l.b16 %v448
    %v1879 = vunpack.c.h.b16 %v448
    %v1880 = vunpack.c.l.b16 %v449
    %v1881 = vunpack.c.h.b16 %v449
    %v1882 = vunpack.c.l.b16 %v450
    %v1883 = vunpack.c.h.b16 %v450
    %v1884 = vunpack.c.l.b16 %v451
    %v1885 = vunpack.c.h.b16 %v451
    %v1886 = vunpack.c.l.b16 %v452
    %v1887 = vunpack.c.h.b16 %v452
    %v1888 = vunpack.c.l.b16 %v453
    %v1889 = vunpack.c.h.b16 %v453
    %v1890 = vunpack.c.l.b16 %v454
    %v1891 = vunpack.c.h.b16 %v454
    %v1892 = vunpack.c.l.b16 %v455
    %v1893 = vunpack.c.h.b16 %v455
    %v1894 = vunpack.c.l.b16 %v456
    %v1895 = vunpack.c.h.b16 %v456
    %v1896 = vunpack.c.l.b16 %v457
    %v1897 = vunpack.c.h.b16 %v457
    %v1898 = vunpack.c.l.b16 %v458
    %v1899 = vunpack.c.h.b16 %v458
    %v1900 = vunpack.c.l.b16 %v459
    %v1901 = vunpack.c.h.b16 %v459
    %v1902 = vunpack.c.l.b16 %v460
    %v1903 = vunpack.c.h.b16 %v460
    %v1904 = vunpack.c.l.b16 %v461
    %v1905 = vunpack.c.h.b16 %v461
    %v1906 = vunpack.c.l.b16 %v462
    %v1907 = vunpack.c.h.b16 %v462
    %v1908 = vunpack.c.l.b16 %v463
    %v1909 = vunpack.c.h.b16 %v463
    %v1910 = vunpack.c.l.b16 %v464
    %v1911 = vunpack.c.h.b16 %v464
    %v1912 = vunpack.c.l.b16 %v465
    %v1913 = vunpack.c.h.b16 %v465
    %v1914 = vunpack.c.l.b16 %v466
    %v1915 = vunpack.c.h.b16 %v466
    %v1916 = vunpack.c.l.b16 %v467
    %v1917 = vunpack.c.h.b16 %v467
    %v1918 = vunpack.c.l.b16 %v468
    %v1919 = vunpack.c.h.b16 %v468
    %v1920 = vunpack.c.l.b16 %v469
    %v1921 = vunpack.c.h.b16 %v469
    %v1922 = vunpack.c.l.b16 %v470
    %v1923 = vunpack.c.h.b16 %v470
    %v1924 = vunpack.c.l.b16 %v471
    %v1925 = vunpack.c.h.b16 %v471
    %v1926 = vunpack.c.l.b16 %v472
    %v1927 = vunpack.c.h.b16 %v472
    %v1928 = vunpack.c.l.b16 %v473
    %v1929 = vunpack.c.h.b16 %v473
    %v1930 = vunpack.c.l.b16 %v474
    %v1931 = vunpack.c.h.b16 %v474
    %v1932 = vunpack.c.l.b16 %v475
    %v1933 = vunpack.c.h.b16 %v475
    %v1934 = vunpack.c.l.b16 %v476
    %v1935 = vunpack.c.h.b16 %v476
    %v1936 = vunpack.c.l.b16 %v477
    %v1937 = vunpack.c.h.b16 %v477
    %v1938 = vunpack.c.l.b16 %v478
    %v1939 = vunpack.c.h.b16 %v478
    %v1940 = vunpack.c.l.b16 %v479
    %v1941 = vunpack.c.h.b16 %v479
    %v1942 = vunpack.c.l.b16 %v480
    %v1943 = vunpack.c.h.b16 %v480
    %v1944 = vunpack.c.l.b16 %v481
    %v1945 = vunpack.c.h.b16 %v481
    %v1946 = vunpack.c.l.b16 %v482
    %v1947 = vunpack.c.h.b16 %v482
    %v1948 = vunpack.c.l.b16 %v483
    %v1949 = vunpack.c.h.b16 %v483
    %v1950 = vunpack.c.l.b16 %v484
    %v1951 = vunpack.c.h.b16 %v484
    %v1952 = vunpack.c.l.b16 %v485
    %v1953 = vunpack.c.h.b16 %v485
    %v1954 = vunpack.c.l.b16 %v486
    %v1955 = vunpack.c.h.b16 %v486
    %v1956 = vunpack.c.l.b16 %v487
    %v1957 = vunpack.c.h.b16 %v487
    %v1958 = vunpack.c.l.b16 %v488
    %v1959 = vunpack.c.h.b16 %v488
    %v1960 = vunpack.c.l.b16 %v489
    %v1961 = vunpack.c.h.b16 %v489
    %v1962 = vunpack.c.l.b16 %v490
    %v1963 = vunpack.c.h.b16 %v490
    %v1964 = vunpack.c.l.b16 %v491
    %v1965 = vunpack.c.h.b16 %v491
    %v1966 = vunpack.c.l.b16 %v492
    %v1967 = vunpack.c.h.b16 %v492
    %v1968 = vunpack.c.l.b16 %v493
    %v1969 = vunpack.c.h.b16 %v493
    %v1970 = vunpack.c.l.b16 %v494
    %v1971 = vunpack.c.h.b16 %v494
    %v1972 = vunpack.c.l.b16 %v495
    %v1973 = vunpack.c.h.b16 %v495
    %v1974 = vunpack.c.l.b16 %v496
    %v1975 = vunpack.c.h.b16 %v496
    %v1976 = vunpack.c.l.b16 %v497
    %v1977 = vunpack.c.h.b16 %v497
    %v1978 = vunpack.c.l.b16 %v498
    %v1979 = vunpack.c.h.b16 %v498
    %v1980 = vunpack.c.l.b16 %v499
    %v1981 = vunpack.c.h.b16 %v499
    %v1982 = vunpack.c.l.b16 %v500
    %v1983 = vunpack.c.h.b16 %v500
    %v1984 = vunpack.c.l.b16 %v501
    %v1985 = vunpack.c.h.b16 %v501
    %v1986 = vunpack.c.l.b16 %v502
    %v1987 = vunpack.c.h.b16 %v502
    %v1988 = vunpack.c.l.b16 %v503
    %v1989 = vunpack.c.h.b16 %v503
    %v1990 = vunpack.c.l.b16 %v504
    %v1991 = vunpack.c.h.b16 %v504
    %v1992 = vunpack.c.l.b16 %v505
    %v1993 = vunpack.c.h.b16 %v505
    %v1994 = vunpack.c.l.b16 %v506
    %v1995 = vunpack.c.h.b16 %v506
    %v1996 = vunpack.c.l.b16 %v507
    %v1997 = vunpack.c.h.b16 %v507
    %v1998 = vunpack.c.l.b16 %v508
    %v1999 = vunpack.c.h.b16 %v508
    %v2000 = vunpack.c.l.b16 %v509
    %v2001 = vunpack.c.h.b16 %v509
    %v2002 = vunpack.c.l.b16 %v510
    %v2003 = vunpack.c.h.b16 %v510
    %v2004 = vunpack.c.l.b16 %v511
    %v2005 = vunpack.c.h.b16 %v511
    %v2006 = vunpack.c.l.b16 %v512
    %v2007 = vunpack.c.h.b16 %v512
    %v2008 = vunpack.c.l.b16 %v513
    %v2009 = vunpack.c.h.b16 %v513
    %v2010 = vunpack.c.l.b16 %v514
    %v2011 = vunpack.c.h.b16 %v514
    %v2012 = vunpack.c.l.b16 %v515
    %v2013 = vunpack.c.h.b16 %v515
    %v2014 = vunpack.c.l.b16 %v516
    %v2015 = vunpack.c.h.b16 %v516
    %v2016 = vunpack.c.l.b16 %v517
    %v2017 = vunpack.c.h.b16 %v517
    %v2018 = vunpack.c.l.b16 %v518
    %v2019 = vunpack.c.h.b16 %v518
    %v2020 = vunpack.c.l.b16 %v519
    %v2021 = vunpack.c.h.b16 %v519
    %v2022 = vunpack.c.l.b16 %v520
    %v2023 = vunpack.c.h.b16 %v520
    %v2024 = vunpack.c.l.b16 %v521
    %v2025 = vunpack.c.h.b16 %v521
    %v2026 = vunpack.c.l.b16 %v522
    %v2027 = vunpack.c.h.b16 %v522
    %v2028 = vunpack.c.l.b16 %v523
    %v2029 = vunpack.c.h.b16 %v523
    %v2030 = vunpack.c.l.b16 %v524
    %v2031 = vunpack.c.h.b16 %v524
    %v2032 = vunpack.c.l.b16 %v525
    %v2033 = vunpack.c.h.b16 %v525
    %v2034 = vunpack.c.l.b16 %v526
    %v2035 = vunpack.c.h.b16 %v526
    %v2036 = vunpack.c.l.b16 %v527
    %v2037 = vunpack.c.h.b16 %v527
    %v2038 = vunpack.c.l.b16 %v528
    %v2039 = vunpack.c.h.b16 %v528
    %v2040 = vunpack.c.l.b16 %v529
    %v2041 = vunpack.c.h.b16 %v529
    %v2042 = vunpack.c.l.b16 %v530
    %v2043 = vunpack.c.h.b16 %v530
    %v2044 = vunpack.c.l.b16 %v531
    %v2045 = vunpack.c.h.b16 %v531
    %v2046 = vunpack.c.l.b16 %v532
    %v2047 = vunpack.c.h.b16 %v532
    %v2048 = vunpack.c.l.b16 %v533
    %v2049 = vunpack.c.h.b16 %v533
    %v2050 = vunpack.c.l.b16 %v534
    %v2051 = vunpack.c.h.b16 %v534
    %v2052 = vunpack.c.l.b16 %v535
    %v2053 = vunpack.c.h.b16 %v535
    %v2054 = vunpack.c.l.b16 %v536
    %v2055 = vunpack.c.h.b16 %v536
    %v2056 = vunpack.c.l.b16 %v537
    %v2057 = vunpack.c.h.b16 %v537
    %v2058 = vunpack.c.l.b16 %v538
    %v2059 = vunpack.c.h.b16 %v538
    %v2060 = vunpack.c.l.b16 %v539
    %v2061 = vunpack.c.h.b16 %v539
    %v2062 = vunpack.c.l.b16 %v540
    %v2063 = vunpack.c.h.b16 %v540
    %v2064 = vunpack.c.l.b16 %v541
    %v2065 = vunpack.c.h.b16 %v541
    %v2066 = vunpack.c.l.b16 %v542
    %v2067 = vunpack.c.h.b16 %v542
    %v2068 = vunpack.c.l.b16 %v543
    %v2069 = vunpack.c.h.b16 %v543
    %v2070 = vunpack.c.l.b16 %v544
    %v2071 = vunpack.c.h.b16 %v544
    %v2072 = vunpack.c.l.b16 %v545
    %v2073 = vunpack.c.h.b16 %v545
    %v2074 = vunpack.c.l.b16 %v546
    %v2075 = vunpack.c.h.b16 %v546
    %v2076 = vunpack.c.l.b16 %v547
    %v2077 = vunpack.c.h.b16 %v547
    %v2078 = vunpack.c.l.b16 %v548
    %v2079 = vunpack.c.h.b16 %v548
    %v2080 = vunpack.c.l.b16 %v549
    %v2081 = vunpack.c.h.b16 %v549
    %v2082 = vunpack.c.l.b16 %v550
    %v2083 = vunpack.c.h.b16 %v550
    %v2084 = vunpack.c.l.b16 %v551
    %v2085 = vunpack.c.h.b16 %v551
    %v2086 = vunpack.c.l.b16 %v552
    %v2087 = vunpack.c.h.b16 %v552
    %v2088 = vunpack.c.l.b16 %v553
    %v2089 = vunpack.c.h.b16 %v553
    %v2090 = vunpack.c.l.b16 %v554
    %v2091 = vunpack.c.h.b16 %v554
    %v2092 = vunpack.c.l.b16 %v555
    %v2093 = vunpack.c.h.b16 %v555
    %v2094 = vunpack.c.l.b16 %v556
    %v2095 = vunpack.c.h.b16 %v556
    %v2096 = vunpack.c.l.b16 %v557
    %v2097 = vunpack.c.h.b16 %v557
    %v2098 = vunpack.c.l.b16 %v558
    %v2099 = vunpack.c.h.b16 %v558
    %v2100 = vunpack.c.l.b16 %v559
    %v2101 = vunpack.c.h.b16 %v559
    %v2102 = vunpack.c.l.b16 %v560
    %v2103 = vunpack.c.h.b16 %v560
    %v2104 = vunpack.c.l.b16 %v561
    %v2105 = vunpack.c.h.b16 %v561
    %v2106 = vunpack.c.l.b16 %v562
    %v2107 = vunpack.c.h.b16 %v562
    %v2108 = vunpack.c.l.b16 %v563
    %v2109 = vunpack.c.h.b16 %v563
    %v2110 = vunpack.c.l.b16 %v564
    %v2111 = vunpack.c.h.b16 %v564
    %v2112 = vunpack.c.l.b16 %v565
    %v2113 = vunpack.c.h.b16 %v565
    %v2114 = vunpack.c.l.b16 %v566
    %v2115 = vunpack.c.h.b16 %v566
    %v2116 = vunpack.c.l.b16 %v567
    %v2117 = vunpack.c.h.b16 %v567
    %v2118 = vunpack.c.l.b16 %v568
    %v2119 = vunpack.c.h.b16 %v568
    %v2120 = vunpack.c.l.b16 %v569
    %v2121 = vunpack.c.h.b16 %v569
    %v2122 = vunpack.c.l.b16 %v570
    %v2123 = vunpack.c.h.b16 %v570
    %v2124 = vunpack.c.l.b16 %v571
    %v2125 = vunpack.c.h.b16 %v571
    %v2126 = vunpack.c.l.b16 %v572
    %v2127 = vunpack.c.h.b16 %v572
    %v2128 = vunpack.c.l.b16 %v573
    %v2129 = vunpack.c.h.b16 %v573
    %v2130 = vunpack.c.l.b16 %v574
    %v2131 = vunpack.c.h.b16 %v574
    %v2132 = vunpack.c.l.b16 %v575
    %v2133 = vunpack.c.h.b16 %v575
    %v2134 = vunpack.c.l.b16 %v576
    %v2135 = vunpack.c.h.b16 %v576
    %v2136 = vunpack.c.l.b16 %v577
    %v2137 = vunpack.c.h.b16 %v577
    %v2138 = vunpack.c.l.b16 %v578
    %v2139 = vunpack.c.h.b16 %v578
    %v2140 = vunpack.c.l.b16 %v579
    %v2141 = vunpack.c.h.b16 %v579
    %v2142 = vunpack.c.l.b16 %v580
    %v2143 = vunpack.c.h.b16 %v580
    %v2144 = vunpack.c.l.b16 %v581
    %v2145 = vunpack.c.h.b16 %v581
    %v2146 = vunpack.c.l.b16 %v582
    %v2147 = vunpack.c.h.b16 %v582
    %v2148 = vunpack.c.l.b16 %v583
    %v2149 = vunpack.c.h.b16 %v583
    %v2150 = vunpack.c.l.b16 %v584
    %v2151 = vunpack.c.h.b16 %v584
    %v2152 = vunpack.c.l.b16 %v585
    %v2153 = vunpack.c.h.b16 %v585
    %v2154 = vunpack.c.l.b16 %v586
    %v2155 = vunpack.c.h.b16 %v586
    %v2156 = vunpack.c.l.b16 %v587
    %v2157 = vunpack.c.h.b16 %v587
    %v2158 = vunpack.c.l.b16 %v588
    %v2159 = vunpack.c.h.b16 %v588
    %v2160 = vunpack.c.l.b16 %v589
    %v2161 = vunpack.c.h.b16 %v589
    %v2162 = vunpack.c.l.b16 %v590
    %v2163 = vunpack.c.h.b16 %v590
    %v2164 = vunpack.c.l.b16 %v591
    %v2165 = vunpack.c.h.b16 %v591
    %v2166 = vunpack.c.l.b16 %v592
    %v2167 = vunpack.c.h.b16 %v592
    %v2168 = vunpack.c.l.b16 %v593
    %v2169 = vunpack.c.h.b16 %v593
    %v2170 = vunpack.c.l.b16 %v594
    %v2171 = vunpack.c.h.b16 %v594
    %v2172 = vunpack.c.l.b16 %v595
    %v2173 = vunpack.c.h.b16 %v595
    %v2174 = vunpack.c.l.b16 %v596
    %v2175 = vunpack.c.h.b16 %v596
    %v2176 = vunpack.c.l.b16 %v597
    %v2177 = vunpack.c.h.b16 %v597
    %v2178 = vunpack.c.l.b16 %v598
    %v2179 = vunpack.c.h.b16 %v598
    %v2180 = vunpack.c.l.b16 %v599
    %v2181 = vunpack.c.h.b16 %v599
    %v2182 = vunpack.c.l.b16 %v600
    %v2183 = vunpack.c.h.b16 %v600
    %v2184 = vunpack.c.l.b16 %v601
    %v2185 = vunpack.c.h.b16 %v601
    %v2186 = vunpack.c.l.b16 %v602
    %v2187 = vunpack.c.h.b16 %v602
    %v2188 = vunpack.c.l.b16 %v603
    %v2189 = vunpack.c.h.b16 %v603
    %v2190 = vunpack.c.l.b16 %v604
    %v2191 = vunpack.c.h.b16 %v604
    %v2192 = vunpack.c.l.b16 %v605
    %v2193 = vunpack.c.h.b16 %v605
    %v2194 = vunpack.c.l.b16 %v606
    %v2195 = vunpack.c.h.b16 %v606
    %v2196 = vunpack.c.l.b16 %v607
    %v2197 = vunpack.c.h.b16 %v607
    %v2198 = vunpack.c.l.b16 %v608
    %v2199 = vunpack.c.h.b16 %v608
    %v2200 = vunpack.c.l.b16 %v609
    %v2201 = vunpack.c.h.b16 %v609
    %v2202 = vunpack.c.l.b16 %v610
    %v2203 = vunpack.c.h.b16 %v610
    %v2204 = vunpack.c.l.b16 %v611
    %v2205 = vunpack.c.h.b16 %v611
    %v2206 = vunpack.c.l.b16 %v612
    %v2207 = vunpack.c.h.b16 %v612
    %v2208 = vunpack.c.l.b16 %v613
    %v2209 = vunpack.c.h.b16 %v613
    %v2210 = vunpack.c.l.b16 %v614
    %v2211 = vunpack.c.h.b16 %v614
    %v2212 = vunpack.c.l.b16 %v615
    %v2213 = vunpack.c.h.b16 %v615
    %v2214 = vunpack.c.l.b16 %v616
    %v2215 = vunpack.c.h.b16 %v616
    %v2216 = vunpack.c.l.b16 %v617
    %v2217 = vunpack.c.h.b16 %v617
    %v2218 = vunpack.c.l.b16 %v618
    %v2219 = vunpack.c.h.b16 %v618
    %v2220 = vunpack.c.l.b16 %v619
    %v2221 = vunpack.c.h.b16 %v619
    %v2222 = vunpack.c.l.b16 %v620
    %v2223 = vunpack.c.h.b16 %v620
    %v2224 = vunpack.c.l.b16 %v621
    %v2225 = vunpack.c.h.b16 %v621
    %v2226 = vunpack.c.l.b16 %v622
    %v2227 = vunpack.c.h.b16 %v622
    %v2228 = vunpack.c.l.b16 %v623
    %v2229 = vunpack.c.h.b16 %v623
    %v2230 = vunpack.c.l.b16 %v624
    %v2231 = vunpack.c.h.b16 %v624
    %v2232 = vunpack.c.l.b16 %v625
    %v2233 = vunpack.c.h.b16 %v625
    %v2234 = vunpack.c.l.b16 %v626
    %v2235 = vunpack.c.h.b16 %v626
    %v2236 = vunpack.c.l.b16 %v627
    %v2237 = vunpack.c.h.b16 %v627
    %v2238 = vunpack.c.l.b16 %v628
    %v2239 = vunpack.c.h.b16 %v628
    %v2240 = vunpack.c.l.b16 %v629
    %v2241 = vunpack.c.h.b16 %v629
    %v2242 = vunpack.c.l.b16 %v630
    %v2243 = vunpack.c.h.b16 %v630
    %v2244 = vunpack.c.l.b16 %v631
    %v2245 = vunpack.c.h.b16 %v631
    %v2246 = vunpack.c.l.b16 %v632
    %v2247 = vunpack.c.h.b16 %v632
    %v2248 = vunpack.c.l.b16 %v633
    %v2249 = vunpack.c.h.b16 %v633
    %v2250 = vunpack.c.l.b16 %v634
    %v2251 = vunpack.c.h.b16 %v634
    %v2252 = vunpack.c.l.b16 %v635
    %v2253 = vunpack.c.h.b16 %v635
    %v2254 = vunpack.c.l.b16 %v636
    %v2255 = vunpack.c.h.b16 %v636
    %v2256 = vunpack.c.l.b16 %v637
    %v2257 = vunpack.c.h.b16 %v637
    %v2258 = vpack.c.b16 %v1250, %v1234
    %v2259 = vpack.c.b16 %v1251, %v1235
    %v2260 = vpack.c.b16 %v1252, %v1236
    %v2261 = vpack.c.b16 %v1253, %v1237
    %v2262 = vpack.c.b16 %v1254, %v1238
    %v2263 = vpack.c.b16 %v1255, %v1239
    %v2264 = vpack.c.b16 %v1256, %v1240
    %v2265 = vpack.c.b16 %v1257, %v1241
    %v2266 = vpack.c.b16 %v1258, %v1242
    %v2267 = vpack.c.b16 %v1259, %v1243
    %v2268 = vpack.c.b16 %v1260, %v1244
    %v2269 = vpack.c.b16 %v1261, %v1245
    %v2270 = vpack.c.b16 %v1262, %v1246
    %v2271 = vpack.c.b16 %v1263, %v1247
    %v2272 = vpack.c.b16 %v1264, %v1248
    %v2273 = vpack.c.b16 %v1265, %v1249
    %v2274 = vpack.c.b16 %v1282, %v1266
    %v2275 = vpack.c.b16 %v1283, %v1267
    %v2276 = vpack.c.b16 %v1284, %v1268
    %v2277 = vpack.c.b16 %v1285, %v1269
    %v2278 = vpack.c.b16 %v1286, %v1270
    %v2279 = vpack.c.b16 %v1287, %v1271
    %v2280 = vpack.c.b16 %v1288, %v1272
    %v2281 = vpack.c.b16 %v1289, %v1273
    %v2282 = vpack.c.b16 %v1290, %v1274
    %v2283 = vpack.c.b16 %v1291, %v1275
    %v2284 = vpack.c.b16 %v1292, %v1276
    %v2285 = vpack.c.b16 %v1293, %v1277
    %v2286 = vpack.c.b16 %v1294, %v1278
    %v2287 = vpack.c.b16 %v1295, %v1279
    %v2288 = vpack.c.b16 %v1296, %v1280
    %v2289 = vpack.c.b16 %v1297, %v1281
    %v2290 = vpack.c.b16 %v1314, %v1298
    %v2291 = vpack.c.b16 %v1315, %v1299
    %v2292 = vpack.c.b16 %v1316, %v1300
    %v2293 = vpack.c.b16 %v1317, %v1301
    %v2294 = vpack.c.b16 %v1318, %v1302
    %v2295 = vpack.c.b16 %v1319, %v1303
    %v2296 = vpack.c.b16 %v1320, %v1304
    %v2297 = vpack.c.b16 %v1321, %v1305
    %v2298 = vpack.c.b16 %v1322, %v1306
    %v2299 = vpack.c.b16 %v1323, %v1307
    %v2300 = vpack.c.b16 %v1324, %v1308
    %v2301 = vpack.c.b16 %v1325, %v1309
    %v2302 = vpack.c.b16 %v1326, %v1310
    %v2303 = vpack.c.b16 %v1327, %v1311
    %v2304 = vpack.c.b16 %v1328, %v1312
    %v2305 = vpack.c.b16 %v1329, %v1313
    %v2306 = vpack.c.b16 %v1346, %v1330
    %v2307 = vpack.c.b16 %v1347, %v1331
    %v2308 = vpack.c.b16 %v1348, %v1332
    %v2309 = vpack.c.b16 %v1349, %v1333
    %v2310 = vpack.c.b16 %v1350, %v1334
    %v2311 = vpack.c.b16 %v1351, %v1335
    %v2312 = vpack.c.b16 %v1352, %v1336
    %v2313 = vpack.c.b16 %v1353, %v1337
    %v2314 = vpack.c.b16 %v1354, %v1338
    %v2315 = vpack.c.b16 %v1355, %v1339
    %v2316 = vpack.c.b16 %v1356, %v1340
    %v2317 = vpack.c.b16 %v1357, %v1341
    %v2318 = vpack.c.b16 %v1358, %v1342
    %v2319 = vpack.c.b16 %v1359, %v1343
    %v2320 = vpack.c.b16 %v1360, %v1344
    %v2321 = vpack.c.b16 %v1361, %v1345
    %v2322 = vpack.c.b16 %v1378, %v1362
    %v2323 = vpack.c.b16 %v1379, %v1363
    %v2324 = vpack.c.b16 %v1380, %v1364
    %v2325 = vpack.c.b16 %v1381, %v1365
    %v2326 = vpack.c.b16 %v1382, %v1366
    %v2327 = vpack.c.b16 %v1383, %v1367
    %v2328 = vpack.c.b16 %v1384, %v1368
    %v2329 = vpack.c.b16 %v1385, %v1369
    %v2330 = vpack.c.b16 %v1386, %v1370
    %v2331 = vpack.c.b16 %v1387, %v1371
    %v2332 = vpack.c.b16 %v1388, %v1372
    %v2333 = vpack.c.b16 %v1389, %v1373
    %v2334 = vpack.c.b16 %v1390, %v1374
    %v2335 = vpack.c.b16 %v1391, %v1375
    %v2336 = vpack.c.b16 %v1392, %v1376
    %v2337 = vpack.c.b16 %v1393, %v1377
    %v2338 = vpack.c.b16 %v1410, %v1394
    %v2339 = vpack.c.b16 %v1411, %v1395
    %v2340 = vpack.c.b16 %v1412, %v1396
    %v2341 = vpack.c.b16 %v1413, %v1397
    %v2342 = vpack.c.b16 %v1414, %v1398
    %v2343 = vpack.c.b16 %v1415, %v1399
    %v2344 = vpack.c.b16 %v1416, %v1400
    %v2345 = vpack.c.b16 %v1417, %v1401
    %v2346 = vpack.c.b16 %v1418, %v1402
    %v2347 = vpack.c.b16 %v1419, %v1403
    %v2348 = vpack.c.b16 %v1420, %v1404
    %v2349 = vpack.c.b16 %v1421, %v1405
    %v2350 = vpack.c.b16 %v1422, %v1406
    %v2351 = vpack.c.b16 %v1423, %v1407
    %v2352 = vpack.c.b16 %v1424, %v1408
    %v2353 = vpack.c.b16 %v1425, %v1409
    %v2354 = vpack.c.b16 %v1442, %v1426
    %v2355 = vpack.c.b16 %v1443, %v1427
    %v2356 = vpack.c.b16 %v1444, %v1428
    %v2357 = vpack.c.b16 %v1445, %v1429
    %v2358 = vpack.c.b16 %v1446, %v1430
    %v2359 = vpack.c.b16 %v1447, %v1431
    %v2360 = vpack.c.b16 %v1448, %v1432
    %v2361 = vpack.c.b16 %v1449, %v1433
    %v2362 = vpack.c.b16 %v1450, %v1434
    %v2363 = vpack.c.b16 %v1451, %v1435
    %v2364 = vpack.c.b16 %v1452, %v1436
    %v2365 = vpack.c.b16 %v1453, %v1437
    %v2366 = vpack.c.b16 %v1454, %v1438
    %v2367 = vpack.c.b16 %v1455, %v1439
    %v2368 = vpack.c.b16 %v1456, %v1440
    %v2369 = vpack.c.b16 %v1457, %v1441
    %v2370 = vpack.c.b16 %v1474, %v1458
    %v2371 = vpack.c.b16 %v1475, %v1459
    %v2372 = vpack.c.b16 %v1476, %v1460
    %v2373 = vpack.c.b16 %v1477, %v1461
    %v2374 = vpack.c.b16 %v1478, %v1462
    %v2375 = vpack.c.b16 %v1479, %v1463
    %v2376 = vpack.c.b16 %v1480, %v1464
    %v2377 = vpack.c.b16 %v1481, %v1465
    %v2378 = vpack.c.b16 %v1482, %v1466
    %v2379 = vpack.c.b16 %v1483, %v1467
    %v2380 = vpack.c.b16 %v1484, %v1468
    %v2381 = vpack.c.b16 %v1485, %v1469
    %v2382 = vpack.c.b16 %v1486, %v1470
    %v2383 = vpack.c.b16 %v1487, %v1471
    %v2384 = vpack.c.b16 %v1488, %v1472
    %v2385 = vpack.c.b16 %v1489, %v1473
    %v2386 = vpack.c.b16 %v1506, %v1490
    %v2387 = vpack.c.b16 %v1507, %v1491
    %v2388 = vpack.c.b16 %v1508, %v1492
    %v2389 = vpack.c.b16 %v1509, %v1493
    %v2390 = vpack.c.b16 %v1510, %v1494
    %v2391 = vpack.c.b16 %v1511, %v1495
    %v2392 = vpack.c.b16 %v1512, %v1496
    %v2393 = vpack.c.b16 %v1513, %v1497
    %v2394 = vpack.c.b16 %v1514, %v1498
    %v2395 = vpack.c.b16 %v1515, %v1499
    %v2396 = vpack.c.b16 %v1516, %v1500
    %v2397 = vpack.c.b16 %v1517, %v1501
    %v2398 = vpack.c.b16 %v1518, %v1502
    %v2399 = vpack.c.b16 %v1519, %v1503
    %v2400 = vpack.c.b16 %v1520, %v1504
    %v2401 = vpack.c.b16 %v1521, %v1505
    %v2402 = vpack.c.b16 %v1538, %v1522
    %v2403 = vpack.c.b16 %v1539, %v1523
    %v2404 = vpack.c.b16 %v1540, %v1524
    %v2405 = vpack.c.b16 %v1541, %v1525
    %v2406 = vpack.c.b16 %v1542, %v1526
    %v2407 = vpack.c.b16 %v1543, %v1527
    %v2408 = vpack.c.b16 %v1544, %v1528
    %v2409 = vpack.c.b16 %v1545, %v1529
    %v2410 = vpack.c.b16 %v1546, %v1530
    %v2411 = vpack.c.b16 %v1547, %v1531
    %v2412 = vpack.c.b16 %v1548, %v1532
    %v2413 = vpack.c.b16 %v1549, %v1533
    %v2414 = vpack.c.b16 %v1550, %v1534
    %v2415 = vpack.c.b16 %v1551, %v1535
    %v2416 = vpack.c.b16 %v1552, %v1536
    %v2417 = vpack.c.b16 %v1553, %v1537
    %v2418 = vpack.c.b16 %v1570, %v1554
    %v2419 = vpack.c.b16 %v1571, %v1555
    %v2420 = vpack.c.b16 %v1572, %v1556
    %v2421 = vpack.c.b16 %v1573, %v1557
    %v2422 = vpack.c.b16 %v1574, %v1558
    %v2423 = vpack.c.b16 %v1575, %v1559
    %v2424 = vpack.c.b16 %v1576, %v1560
    %v2425 = vpack.c.b16 %v1577, %v1561
    %v2426 = vpack.c.b16 %v1578, %v1562
    %v2427 = vpack.c.b16 %v1579, %v1563
    %v2428 = vpack.c.b16 %v1580, %v1564
    %v2429 = vpack.c.b16 %v1581, %v1565
    %v2430 = vpack.c.b16 %v1582, %v1566
    %v2431 = vpack.c.b16 %v1583, %v1567
    %v2432 = vpack.c.b16 %v1584, %v1568
    %v2433 = vpack.c.b16 %v1585, %v1569
    %v2434 = vpack.c.b16 %v1602, %v1586
    %v2435 = vpack.c.b16 %v1603, %v1587
    %v2436 = vpack.c.b16 %v1604, %v1588
    %v2437 = vpack.c.b16 %v1605, %v1589
    %v2438 = vpack.c.b16 %v1606, %v1590
    %v2439 = vpack.c.b16 %v1607, %v1591
    %v2440 = vpack.c.b16 %v1608, %v1592
    %v2441 = vpack.c.b16 %v1609, %v1593
    %v2442 = vpack.c.b16 %v1610, %v1594
    %v2443 = vpack.c.b16 %v1611, %v1595
    %v2444 = vpack.c.b16 %v1612, %v1596
    %v2445 = vpack.c.b16 %v1613, %v1597
    %v2446 = vpack.c.b16 %v1614, %v1598
    %v2447 = vpack.c.b16 %v1615, %v1599
    %v2448 = vpack.c.b16 %v1616, %v1600
    %v2449 = vpack.c.b16 %v1617, %v1601
    %v2450 = vpack.c.b16 %v1634, %v1618
    %v2451 = vpack.c.b16 %v1635, %v1619
    %v2452 = vpack.c.b16 %v1636, %v1620
    %v2453 = vpack.c.b16 %v1637, %v1621
    %v2454 = vpack.c.b16 %v1638, %v1622
    %v2455 = vpack.c.b16 %v1639, %v1623
    %v2456 = vpack.c.b16 %v1640, %v1624
    %v2457 = vpack.c.b16 %v1641, %v1625
    %v2458 = vpack.c.b16 %v1642, %v1626
    %v2459 = vpack.c.b16 %v1643, %v1627
    %v2460 = vpack.c.b16 %v1644, %v1628
    %v2461 = vpack.c.b16 %v1645, %v1629
    %v2462 = vpack.c.b16 %v1646, %v1630
    %v2463 = vpack.c.b16 %v1647, %v1631
    %v2464 = vpack.c.b16 %v1648, %v1632
    %v2465 = vpack.c.b16 %v1649, %v1633
    %v2466 = vpack.c.b16 %v1666, %v1650
    %v2467 = vpack.c.b16 %v1667, %v1651
    %v2468 = vpack.c.b16 %v1668, %v1652
    %v2469 = vpack.c.b16 %v1669, %v1653
    %v2470 = vpack.c.b16 %v1670, %v1654
    %v2471 = vpack.c.b16 %v1671, %v1655
    %v2472 = vpack.c.b16 %v1672, %v1656
    %v2473 = vpack.c.b16 %v1673, %v1657
    %v2474 = vpack.c.b16 %v1674, %v1658
    %v2475 = vpack.c.b16 %v1675, %v1659
    %v2476 = vpack.c.b16 %v1676, %v1660
    %v2477 = vpack.c.b16 %v1677, %v1661
    %v2478 = vpack.c.b16 %v1678, %v1662
    %v2479 = vpack.c.b16 %v1679, %v1663
    %v2480 = vpack.c.b16 %v1680, %v1664
    %v2481 = vpack.c.b16 %v1681, %v1665
    %v2482 = vpack.c.b16 %v1698, %v1682
    %v2483 = vpack.c.b16 %v1699, %v1683
    %v2484 = vpack.c.b16 %v1700, %v1684
    %v2485 = vpack.c.b16 %v1701, %v1685
    %v2486 = vpack.c.b16 %v1702, %v1686
    %v2487 = vpack.c.b16 %v1703, %v1687
    %v2488 = vpack.c.b16 %v1704, %v1688
    %v2489 = vpack.c.b16 %v1705, %v1689
    %v2490 = vpack.c.b16 %v1706, %v1690
    %v2491 = vpack.c.b16 %v1707, %v1691
    %v2492 = vpack.c.b16 %v1708, %v1692
    %v2493 = vpack.c.b16 %v1709, %v1693
    %v2494 = vpack.c.b16 %v1710, %v1694
    %v2495 = vpack.c.b16 %v1711, %v1695
    %v2496 = vpack.c.b16 %v1712, %v1696
    %v2497 = vpack.c.b16 %v1713, %v1697
    %v2498 = vpack.c.b16 %v1730, %v1714
    %v2499 = vpack.c.b16 %v1731, %v1715
    %v2500 = vpack.c.b16 %v1732, %v1716
    %v2501 = vpack.c.b16 %v1733, %v1717
    %v2502 = vpack.c.b16 %v1734, %v1718
    %v2503 = vpack.c.b16 %v1735, %v1719
    %v2504 = vpack.c.b16 %v1736, %v1720
    %v2505 = vpack.c.b16 %v1737, %v1721
    %v2506 = vpack.c.b16 %v1738, %v1722
    %v2507 = vpack.c.b16 %v1739, %v1723
    %v2508 = vpack.c.b16 %v1740, %v1724
    %v2509 = vpack.c.b16 %v1741, %v1725
    %v2510 = vpack.c.b16 %v1742, %v1726
    %v2511 = vpack.c.b16 %v1743, %v1727
    %v2512 = vpack.c.b16 %v1744, %v1728
    %v2513 = vpack.c.b16 %v1745, %v1729
    %v2514 = vpack.c.b16 %v1762, %v1746
    %v2515 = vpack.c.b16 %v1763, %v1747
    %v2516 = vpack.c.b16 %v1764, %v1748
    %v2517 = vpack.c.b16 %v1765, %v1749
    %v2518 = vpack.c.b16 %v1766, %v1750
    %v2519 = vpack.c.b16 %v1767, %v1751
    %v2520 = vpack.c.b16 %v1768, %v1752
    %v2521 = vpack.c.b16 %v1769, %v1753
    %v2522 = vpack.c.b16 %v1770, %v1754
    %v2523 = vpack.c.b16 %v1771, %v1755
    %v2524 = vpack.c.b16 %v1772, %v1756
    %v2525 = vpack.c.b16 %v1773, %v1757
    %v2526 = vpack.c.b16 %v1774, %v1758
    %v2527 = vpack.c.b16 %v1775, %v1759
    %v2528 = vpack.c.b16 %v1776, %v1760
    %v2529 = vpack.c.b16 %v1777, %v1761
    %v2530 = vpack.c.b16 %v1794, %v1778
    %v2531 = vpack.c.b16 %v1795, %v1779
    %v2532 = vpack.c.b16 %v1796, %v1780
    %v2533 = vpack.c.b16 %v1797, %v1781
    %v2534 = vpack.c.b16 %v1798, %v1782
    %v2535 = vpack.c.b16 %v1799, %v1783
    %v2536 = vpack.c.b16 %v1800, %v1784
    %v2537 = vpack.c.b16 %v1801, %v1785
    %v2538 = vpack.c.b16 %v1802, %v1786
    %v2539 = vpack.c.b16 %v1803, %v1787
    %v2540 = vpack.c.b16 %v1804, %v1788
    %v2541 = vpack.c.b16 %v1805, %v1789
    %v2542 = vpack.c.b16 %v1806, %v1790
    %v2543 = vpack.c.b16 %v1807, %v1791
    %v2544 = vpack.c.b16 %v1808, %v1792
    %v2545 = vpack.c.b16 %v1809, %v1793
    %v2546 = vpack.c.b16 %v1826, %v1810
    %v2547 = vpack.c.b16 %v1827, %v1811
    %v2548 = vpack.c.b16 %v1828, %v1812
    %v2549 = vpack.c.b16 %v1829, %v1813
    %v2550 = vpack.c.b16 %v1830, %v1814
    %v2551 = vpack.c.b16 %v1831, %v1815
    %v2552 = vpack.c.b16 %v1832, %v1816
    %v2553 = vpack.c.b16 %v1833, %v1817
    %v2554 = vpack.c.b16 %v1834, %v1818
    %v2555 = vpack.c.b16 %v1835, %v1819
    %v2556 = vpack.c.b16 %v1836, %v1820
    %v2557 = vpack.c.b16 %v1837, %v1821
    %v2558 = vpack.c.b16 %v1838, %v1822
    %v2559 = vpack.c.b16 %v1839, %v1823
    %v2560 = vpack.c.b16 %v1840, %v1824
    %v2561 = vpack.c.b16 %v1841, %v1825
    %v2562 = vpack.c.b16 %v1858, %v1842
    %v2563 = vpack.c.b16 %v1859, %v1843
    %v2564 = vpack.c.b16 %v1860, %v1844
    %v2565 = vpack.c.b16 %v1861, %v1845
    %v2566 = vpack.c.b16 %v1862, %v1846
    %v2567 = vpack.c.b16 %v1863, %v1847
    %v2568 = vpack.c.b16 %v1864, %v1848
    %v2569 = vpack.c.b16 %v1865, %v1849
    %v2570 = vpack.c.b16 %v1866, %v1850
    %v2571 = vpack.c.b16 %v1867, %v1851
    %v2572 = vpack.c.b16 %v1868, %v1852
    %v2573 = vpack.c.b16 %v1869, %v1853
    %v2574 = vpack.c.b16 %v1870, %v1854
    %v2575 = vpack.c.b16 %v1871, %v1855
    %v2576 = vpack.c.b16 %v1872, %v1856
    %v2577 = vpack.c.b16 %v1873, %v1857
    %v2578 = vpack.c.b16 %v1890, %v1874
    %v2579 = vpack.c.b16 %v1891, %v1875
    %v2580 = vpack.c.b16 %v1892, %v1876
    %v2581 = vpack.c.b16 %v1893, %v1877
    %v2582 = vpack.c.b16 %v1894, %v1878
    %v2583 = vpack.c.b16 %v1895, %v1879
    %v2584 = vpack.c.b16 %v1896, %v1880
    %v2585 = vpack.c.b16 %v1897, %v1881
    %v2586 = vpack.c.b16 %v1898, %v1882
    %v2587 = vpack.c.b16 %v1899, %v1883
    %v2588 = vpack.c.b16 %v1900, %v1884
    %v2589 = vpack.c.b16 %v1901, %v1885
    %v2590 = vpack.c.b16 %v1902, %v1886
    %v2591 = vpack.c.b16 %v1903, %v1887
    %v2592 = vpack.c.b16 %v1904, %v1888
    %v2593 = vpack.c.b16 %v1905, %v1889
    %v2594 = vpack.c.b16 %v1922, %v1906
    %v2595 = vpack.c.b16 %v1923, %v1907
    %v2596 = vpack.c.b16 %v1924, %v1908
    %v2597 = vpack.c.b16 %v1925, %v1909
    %v2598 = vpack.c.b16 %v1926, %v1910
    %v2599 = vpack.c.b16 %v1927, %v1911
    %v2600 = vpack.c.b16 %v1928, %v1912
    %v2601 = vpack.c.b16 %v1929, %v1913
    %v2602 = vpack.c.b16 %v1930, %v1914
    %v2603 = vpack.c.b16 %v1931, %v1915
    %v2604 = vpack.c.b16 %v1932, %v1916
    %v2605 = vpack.c.b16 %v1933, %v1917
    %v2606 = vpack.c.b16 %v1934, %v1918
    %v2607 = vpack.c.b16 %v1935, %v1919
    %v2608 = vpack.c.b16 %v1936, %v1920
    %v2609 = vpack.c.b16 %v1937, %v1921
    %v2610 = vpack.c.b16 %v1954, %v1938
    %v2611 = vpack.c.b16 %v1955, %v1939
    %v2612 = vpack.c.b16 %v1956, %v1940
    %v2613 = vpack.c.b16 %v1957, %v1941
    %v2614 = vpack.c.b16 %v1958, %v1942
    %v2615 = vpack.c.b16 %v1959, %v1943
    %v2616 = vpack.c.b16 %v1960, %v1944
    %v2617 = vpack.c.b16 %v1961, %v1945
    %v2618 = vpack.c.b16 %v1962, %v1946
    %v2619 = vpack.c.b16 %v1963, %v1947
    %v2620 = vpack.c.b16 %v1964, %v1948
    %v2621 = vpack.c.b16 %v1965, %v1949
    %v2622 = vpack.c.b16 %v1966, %v1950
    %v2623 = vpack.c.b16 %v1967, %v1951
    %v2624 = vpack.c.b16 %v1968, %v1952
    %v2625 = vpack.c.b16 %v1969, %v1953
    %v2626 = vpack.c.b16 %v1986, %v1970
    %v2627 = vpack.c.b16 %v1987, %v1971
    %v2628 = vpack.c.b16 %v1988, %v1972
    %v2629 = vpack.c.b16 %v1989, %v1973
    %v2630 = vpack.c.b16 %v1990, %v1974
    %v2631 = vpack.c.b16 %v1991, %v1975
    %v2632 = vpack.c.b16 %v1992, %v1976
    %v2633 = vpack.c.b16 %v1993, %v1977
    %v2634 = vpack.c.b16 %v1994, %v1978
    %v2635 = vpack.c.b16 %v1995, %v1979
    %v2636 = vpack.c.b16 %v1996, %v1980
    %v2637 = vpack.c.b16 %v1997, %v1981
    %v2638 = vpack.c.b16 %v1998, %v1982
    %v2639 = vpack.c.b16 %v1999, %v1983
    %v2640 = vpack.c.b16 %v2000, %v1984
    %v2641 = vpack.c.b16 %v2001, %v1985
    %v2642 = vpack.c.b16 %v2018, %v2002
    %v2643 = vpack.c.b16 %v2019, %v2003
    %v2644 = vpack.c.b16 %v2020, %v2004
    %v2645 = vpack.c.b16 %v2021, %v2005
    %v2646 = vpack.c.b16 %v2022, %v2006
    %v2647 = vpack.c.b16 %v2023, %v2007
    %v2648 = vpack.c.b16 %v2024, %v2008
    %v2649 = vpack.c.b16 %v2025, %v2009
    %v2650 = vpack.c.b16 %v2026, %v2010
    %v2651 = vpack.c.b16 %v2027, %v2011
    %v2652 = vpack.c.b16 %v2028, %v2012
    %v2653 = vpack.c.b16 %v2029, %v2013
    %v2654 = vpack.c.b16 %v2030, %v2014
    %v2655 = vpack.c.b16 %v2031, %v2015
    %v2656 = vpack.c.b16 %v2032, %v2016
    %v2657 = vpack.c.b16 %v2033, %v2017
    %v2658 = vpack.c.b16 %v2050, %v2034
    %v2659 = vpack.c.b16 %v2051, %v2035
    %v2660 = vpack.c.b16 %v2052, %v2036
    %v2661 = vpack.c.b16 %v2053, %v2037
    %v2662 = vpack.c.b16 %v2054, %v2038
    %v2663 = vpack.c.b16 %v2055, %v2039
    %v2664 = vpack.c.b16 %v2056, %v2040
    %v2665 = vpack.c.b16 %v2057, %v2041
    %v2666 = vpack.c.b16 %v2058, %v2042
    %v2667 = vpack.c.b16 %v2059, %v2043
    %v2668 = vpack.c.b16 %v2060, %v2044
    %v2669 = vpack.c.b16 %v2061, %v2045
    %v2670 = vpack.c.b16 %v2062, %v2046
    %v2671 = vpack.c.b16 %v2063, %v2047
    %v2672 = vpack.c.b16 %v2064, %v2048
    %v2673 = vpack.c.b16 %v2065, %v2049
    %v2674 = vpack.c.b16 %v2082, %v2066
    %v2675 = vpack.c.b16 %v2083, %v2067
    %v2676 = vpack.c.b16 %v2084, %v2068
    %v2677 = vpack.c.b16 %v2085, %v2069
    %v2678 = vpack.c.b16 %v2086, %v2070
    %v2679 = vpack.c.b16 %v2087, %v2071
    %v2680 = vpack.c.b16 %v2088, %v2072
    %v2681 = vpack.c.b16 %v2089, %v2073
    %v2682 = vpack.c.b16 %v2090, %v2074
    %v2683 = vpack.c.b16 %v2091, %v2075
    %v2684 = vpack.c.b16 %v2092, %v2076
    %v2685 = vpack.c.b16 %v2093, %v2077
    %v2686 = vpack.c.b16 %v2094, %v2078
    %v2687 = vpack.c.b16 %v2095, %v2079
    %v2688 = vpack.c.b16 %v2096, %v2080
    %v2689 = vpack.c.b16 %v2097, %v2081
    %v2690 = vpack.c.b16 %v2114, %v2098
    %v2691 = vpack.c.b16 %v2115, %v2099
    %v2692 = vpack.c.b16 %v2116, %v2100
    %v2693 = vpack.c.b16 %v2117, %v2101
    %v2694 = vpack.c.b16 %v2118, %v2102
    %v2695 = vpack.c.b16 %v2119, %v2103
    %v2696 = vpack.c.b16 %v2120, %v2104
    %v2697 = vpack.c.b16 %v2121, %v2105
    %v2698 = vpack.c.b16 %v2122, %v2106
    %v2699 = vpack.c.b16 %v2123, %v2107
    %v2700 = vpack.c.b16 %v2124, %v2108
    %v2701 = vpack.c.b16 %v2125, %v2109
    %v2702 = vpack.c.b16 %v2126, %v2110
    %v2703 = vpack.c.b16 %v2127, %v2111
    %v2704 = vpack.c.b16 %v2128, %v2112
    %v2705 = vpack.c.b16 %v2129, %v2113
    %v2706 = vpack.c.b16 %v2146, %v2130
    %v2707 = vpack.c.b16 %v2147, %v2131
    %v2708 = vpack.c.b16 %v2148, %v2132
    %v2709 = vpack.c.b16 %v2149, %v2133
    %v2710 = vpack.c.b16 %v2150, %v2134
    %v2711 = vpack.c.b16 %v2151, %v2135
    %v2712 = vpack.c.b16 %v2152, %v2136
    %v2713 = vpack.c.b16 %v2153, %v2137
    %v2714 = vpack.c.b16 %v2154, %v2138
    %v2715 = vpack.c.b16 %v2155, %v2139
    %v2716 = vpack.c.b16 %v2156, %v2140
    %v2717 = vpack.c.b16 %v2157, %v2141
    %v2718 = vpack.c.b16 %v2158, %v2142
    %v2719 = vpack.c.b16 %v2159, %v2143
    %v2720 = vpack.c.b16 %v2160, %v2144
    %v2721 = vpack.c.b16 %v2161, %v2145
    %v2722 = vpack.c.b16 %v2178, %v2162
    %v2723 = vpack.c.b16 %v2179, %v2163
    %v2724 = vpack.c.b16 %v2180, %v2164
    %v2725 = vpack.c.b16 %v2181, %v2165
    %v2726 = vpack.c.b16 %v2182, %v2166
    %v2727 = vpack.c.b16 %v2183, %v2167
    %v2728 = vpack.c.b16 %v2184, %v2168
    %v2729 = vpack.c.b16 %v2185, %v2169
    %v2730 = vpack.c.b16 %v2186, %v2170
    %v2731 = vpack.c.b16 %v2187, %v2171
    %v2732 = vpack.c.b16 %v2188, %v2172
    %v2733 = vpack.c.b16 %v2189, %v2173
    %v2734 = vpack.c.b16 %v2190, %v2174
    %v2735 = vpack.c.b16 %v2191, %v2175
    %v2736 = vpack.c.b16 %v2192, %v2176
    %v2737 = vpack.c.b16 %v2193, %v2177
    %v2738 = vpack.c.b16 %v2210, %v2194
    %v2739 = vpack.c.b16 %v2211, %v2195
    %v2740 = vpack.c.b16 %v2212, %v2196
    %v2741 = vpack.c.b16 %v2213, %v2197
    %v2742 = vpack.c.b16 %v2214, %v2198
    %v2743 = vpack.c.b16 %v2215, %v2199
    %v2744 = vpack.c.b16 %v2216, %v2200
    %v2745 = vpack.c.b16 %v2217, %v2201
    %v2746 = vpack.c.b16 %v2218, %v2202
    %v2747 = vpack.c.b16 %v2219, %v2203
    %v2748 = vpack.c.b16 %v2220, %v2204
    %v2749 = vpack.c.b16 %v2221, %v2205
    %v2750 = vpack.c.b16 %v2222, %v2206
    %v2751 = vpack.c.b16 %v2223, %v2207
    %v2752 = vpack.c.b16 %v2224, %v2208
    %v2753 = vpack.c.b16 %v2225, %v2209
    %v2754 = vpack.c.b16 %v2242, %v2226
    %v2755 = vpack.c.b16 %v2243, %v2227
    %v2756 = vpack.c.b16 %v2244, %v2228
    %v2757 = vpack.c.b16 %v2245, %v2229
    %v2758 = vpack.c.b16 %v2246, %v2230
    %v2759 = vpack.c.b16 %v2247, %v2231
    %v2760 = vpack.c.b16 %v2248, %v2232
    %v2761 = vpack.c.b16 %v2249, %v2233
    %v2762 = vpack.c.b16 %v2250, %v2234
    %v2763 = vpack.c.b16 %v2251, %v2235
    %v2764 = vpack.c.b16 %v2252, %v2236
    %v2765 = vpack.c.b16 %v2253, %v2237
    %v2766 = vpack.c.b16 %v2254, %v2238
    %v2767 = vpack.c.b16 %v2255, %v2239
    %v2768 = vpack.c.b16 %v2256, %v2240
    %v2769 = vpack.c.b16 %v2257, %v2241
    %3282 = vmatprep.subr.bf16.mxu0 %v2259
    %3283 = vmatpush1.bf16.msra.mxu0 %v2258
    %3284 = vmatprep.subr.bf16.mxu0 %v2275
    %3285 = vmatpush1.bf16.msra.mxu0 %v2274
    %3286 = vmatprep.subr.bf16.mxu0 %v2291
    %3287 = vmatpush1.bf16.msra.mxu0 %v2290
    %3288 = vmatprep.subr.bf16.mxu0 %v2307
    %3289 = vmatpush1.bf16.msra.mxu0 %v2306
    %3290 = vmatprep.subr.bf16.mxu0 %v2323
    %3291 = vmatpush1.bf16.msra.mxu0 %v2322
    %3292 = vmatprep.subr.bf16.mxu0 %v2339
    %3293 = vmatpush1.bf16.msra.mxu0 %v2338
    %3294 = vmatprep.subr.bf16.mxu0 %v2355
    %3295 = vmatpush1.bf16.msra.mxu0 %v2354
    %3296 = vmatprep.subr.bf16.mxu0 %v2371
    %3297 = vmatpush1.bf16.msra.mxu0 %v2370
    %3298 = vmatprep.subr.bf16.mxu0 %v2387
    %3299 = vmatpush1.bf16.msra.mxu0 %v2386
    %3300 = vmatprep.subr.bf16.mxu0 %v2403
    %3301 = vmatpush1.bf16.msra.mxu0 %v2402
    %3302 = vmatprep.subr.bf16.mxu0 %v2419
    %3303 = vmatpush1.bf16.msra.mxu0 %v2418
    %3304 = vmatprep.subr.bf16.mxu0 %v2435
    %3305 = vmatpush1.bf16.msra.mxu0 %v2434
    %3306 = vmatprep.subr.bf16.mxu0 %v2451
    %3307 = vmatpush1.bf16.msra.mxu0 %v2450
    %3308 = vmatprep.subr.bf16.mxu0 %v2467
    %3309 = vmatpush1.bf16.msra.mxu0 %v2466
    %3310 = vmatprep.subr.bf16.mxu0 %v2483
    %3311 = vmatpush1.bf16.msra.mxu0 %v2482
    %3312 = vmatprep.subr.bf16.mxu0 %v2499
    %3313 = vmatpush1.bf16.msra.mxu0 %v2498
    %3314 = vmatprep.mubr.bf16.mxu0 %v123
    %3315 = vmatmul.mubr.bf16.gmra.mrb[0].mxu0 %v122
    %v3316 = vpop.f32.mrb[0].mxu0
    %v3317 = vadd.f32 %v645, %v3316
    %v3318 = vpop.f32.mrb[0].mxu0
    %v3319 = vadd.f32 %v649, %v3318
    %v3320 = vpop.f32.mrb[0].mxu0
    %v3321 = vadd.f32 %v645, %v3320
    %v3322 = vpop.f32.mrb[0].mxu0
    %v3323 = vadd.f32 %v649, %v3322
    %3324 = vdwg.mxu0
    %3325 = vmatprep.subr.bf16.mxu0 %v2515
    %3326 = vmatpush1.bf16.msra.mxu0 %v2514
    %3327 = vmatprep.subr.bf16.mxu0 %v2531
    %3328 = vmatpush1.bf16.msra.mxu0 %v2530
    %3329 = vmatprep.subr.bf16.mxu0 %v2547
    %3330 = vmatpush1.bf16.msra.mxu0 %v2546
    %3331 = vmatprep.subr.bf16.mxu0 %v2563
    %3332 = vmatpush1.bf16.msra.mxu0 %v2562
    %3333 = vmatprep.subr.bf16.mxu0 %v2579
    %3334 = vmatpush1.bf16.msra.mxu0 %v2578
    %3335 = vmatprep.subr.bf16.mxu0 %v2595
    %3336 = vmatpush1.bf16.msra.mxu0 %v2594
    %3337 = vmatprep.subr.bf16.mxu0 %v2611
    %3338 = vmatpush1.bf16.msra.mxu0 %v2610
    %3339 = vmatprep.subr.bf16.mxu0 %v2627
    %3340 = vmatpush1.bf16.msra.mxu0 %v2626
    %3341 = vmatprep.subr.bf16.mxu0 %v2643
    %3342 = vmatpush1.bf16.msra.mxu0 %v2642
    %3343 = vmatprep.subr.bf16.mxu0 %v2659
    %3344 = vmatpush1.bf16.msra.mxu0 %v2658
    %3345 = vmatprep.subr.bf16.mxu0 %v2675
    %3346 = vmatpush1.bf16.msra.mxu0 %v2674
    %3347 = vmatprep.subr.bf16.mxu0 %v2691
    %3348 = vmatpush1.bf16.msra.mxu0 %v2690
    %3349 = vmatprep.subr.bf16.mxu0 %v2707
    %3350 = vmatpush1.bf16.msra.mxu0 %v2706
    %3351 = vmatprep.subr.bf16.mxu0 %v2723
    %3352 = vmatpush1.bf16.msra.mxu0 %v2722
    %3353 = vmatprep.subr.bf16.mxu0 %v2739
    %3354 = vmatpush1.bf16.msra.mxu0 %v2738
    %3355 = vmatprep.subr.bf16.mxu0 %v2755
    %3356 = vmatpush1.bf16.msra.mxu0 %v2754
    %3357 = vmatprep.mubr.bf16.mxu0 %v125
    %3358 = vmatmul.mubr.bf16.gmra.mrb[0].mxu0 %v124
    %v3359 = vpop.f32.mrb[0].mxu0
    %v3360 = vadd.f32 %v3317, %v3359
    %v3361 = vpop.f32.mrb[0].mxu0
    %v3362 = vadd.f32 %v3319, %v3361
    %v3363 = vpop.f32.mrb[0].mxu0
    %v3364 = vadd.f32 %v3321, %v3363
    %v3365 = vpop.f32.mrb[0].mxu0
    %v3366 = vadd.f32 %v3323, %v3365
    %3367 = vdwg.mxu0
    %3368 = vmatprep.subr.bf16.mxu0 %v2261
    %3369 = vmatpush1.bf16.msra.mxu0 %v2260
    %3370 = vmatprep.subr.bf16.mxu0 %v2277
    %3371 = vmatpush1.bf16.msra.mxu0 %v2276
    %3372 = vmatprep.subr.bf16.mxu0 %v2293
    %3373 = vmatpush1.bf16.msra.mxu0 %v2292
    %3374 = vmatprep.subr.bf16.mxu0 %v2309
    %3375 = vmatpush1.bf16.msra.mxu0 %v2308
    %3376 = vmatprep.subr.bf16.mxu0 %v2325
    %3377 = vmatpush1.bf16.msra.mxu0 %v2324
    %3378 = vmatprep.subr.bf16.mxu0 %v2341
    %3379 = vmatpush1.bf16.msra.mxu0 %v2340
    %3380 = vmatprep.subr.bf16.mxu0 %v2357
    %3381 = vmatpush1.bf16.msra.mxu0 %v2356
    %3382 = vmatprep.subr.bf16.mxu0 %v2373
    %3383 = vmatpush1.bf16.msra.mxu0 %v2372
    %3384 = vmatprep.subr.bf16.mxu0 %v2389
    %3385 = vmatpush1.bf16.msra.mxu0 %v2388
    %3386 = vmatprep.subr.bf16.mxu0 %v2405
    %3387 = vmatpush1.bf16.msra.mxu0 %v2404
    %3388 = vmatprep.subr.bf16.mxu0 %v2421
    %3389 = vmatpush1.bf16.msra.mxu0 %v2420
    %3390 = vmatprep.subr.bf16.mxu0 %v2437
    %3391 = vmatpush1.bf16.msra.mxu0 %v2436
    %3392 = vmatprep.subr.bf16.mxu0 %v2453
    %3393 = vmatpush1.bf16.msra.mxu0 %v2452
    %3394 = vmatprep.subr.bf16.mxu0 %v2469
    %3395 = vmatpush1.bf16.msra.mxu0 %v2468
    %3396 = vmatprep.subr.bf16.mxu0 %v2485
    %3397 = vmatpush1.bf16.msra.mxu0 %v2484
    %3398 = vmatprep.subr.bf16.mxu0 %v2501
    %3399 = vmatpush1.bf16.msra.mxu0 %v2500
    %3400 = vmatprep.mubr.bf16.mxu0 %v123
    %3401 = vmatmul.mubr.bf16.gmra.mrb[0].mxu0 %v122
    %v3402 = vpop.f32.mrb[0].mxu0
    %v3403 = vadd.f32 %v653, %v3402
    %v3404 = vpop.f32.mrb[0].mxu0
    %v3405 = vadd.f32 %v657, %v3404
    %v3406 = vpop.f32.mrb[0].mxu0
    %v3407 = vadd.f32 %v653, %v3406
    %v3408 = vpop.f32.mrb[0].mxu0
    %v3409 = vadd.f32 %v657, %v3408
    %3410 = vdwg.mxu0
    %3411 = vmatprep.subr.bf16.mxu0 %v2517
    %3412 = vmatpush1.bf16.msra.mxu0 %v2516
    %3413 = vmatprep.subr.bf16.mxu0 %v2533
    %3414 = vmatpush1.bf16.msra.mxu0 %v2532
    %3415 = vmatprep.subr.bf16.mxu0 %v2549
    %3416 = vmatpush1.bf16.msra.mxu0 %v2548
    %3417 = vmatprep.subr.bf16.mxu0 %v2565
    %3418 = vmatpush1.bf16.msra.mxu0 %v2564
    %3419 = vmatprep.subr.bf16.mxu0 %v2581
    %3420 = vmatpush1.bf16.msra.mxu0 %v2580
    %3421 = vmatprep.subr.bf16.mxu0 %v2597
    %3422 = vmatpush1.bf16.msra.mxu0 %v2596
    %3423 = vmatprep.subr.bf16.mxu0 %v2613
    %3424 = vmatpush1.bf16.msra.mxu0 %v2612
    %3425 = vmatprep.subr.bf16.mxu0 %v2629
    %3426 = vmatpush1.bf16.msra.mxu0 %v2628
    %3427 = vmatprep.subr.bf16.mxu0 %v2645
    %3428 = vmatpush1.bf16.msra.mxu0 %v2644
    %3429 = vmatprep.subr.bf16.mxu0 %v2661
    %3430 = vmatpush1.bf16.msra.mxu0 %v2660
    %3431 = vmatprep.subr.bf16.mxu0 %v2677
    %3432 = vmatpush1.bf16.msra.mxu0 %v2676
    %3433 = vmatprep.subr.bf16.mxu0 %v2693
    %3434 = vmatpush1.bf16.msra.mxu0 %v2692
    %3435 = vmatprep.subr.bf16.mxu0 %v2709
    %3436 = vmatpush1.bf16.msra.mxu0 %v2708
    %3437 = vmatprep.subr.bf16.mxu0 %v2725
    %3438 = vmatpush1.bf16.msra.mxu0 %v2724
    %3439 = vmatprep.subr.bf16.mxu0 %v2741
    %3440 = vmatpush1.bf16.msra.mxu0 %v2740
    %3441 = vmatprep.subr.bf16.mxu0 %v2757
    %3442 = vmatpush1.bf16.msra.mxu0 %v2756
    %3443 = vmatprep.mubr.bf16.mxu0 %v125
    %3444 = vmatmul.mubr.bf16.gmra.mrb[0].mxu0 %v124
    %v3445 = vpop.f32.mrb[0].mxu0
    %v3446 = vadd.f32 %v3403, %v3445
    %v3447 = vpop.f32.mrb[0].mxu0
    %v3448 = vadd.f32 %v3405, %v3447
    %v3449 = vpop.f32.mrb[0].mxu0
    %v3450 = vadd.f32 %v3407, %v3449
    %v3451 = vpop.f32.mrb[0].mxu0
    %v3452 = vadd.f32 %v3409, %v3451
    %3453 = vdwg.mxu0
    %3454 = vmatprep.subr.bf16.mxu0 %v2263
    %3455 = vmatpush1.bf16.msra.mxu0 %v2262
    %3456 = vmatprep.subr.bf16.mxu0 %v2279
    %3457 = vmatpush1.bf16.msra.mxu0 %v2278
    %3458 = vmatprep.subr.bf16.mxu0 %v2295
    %3459 = vmatpush1.bf16.msra.mxu0 %v2294
    %3460 = vmatprep.subr.bf16.mxu0 %v2311
    %3461 = vmatpush1.bf16.msra.mxu0 %v2310
    %3462 = vmatprep.subr.bf16.mxu0 %v2327
    %3463 = vmatpush1.bf16.msra.mxu0 %v2326
    %3464 = vmatprep.subr.bf16.mxu0 %v2343
    %3465 = vmatpush1.bf16.msra.mxu0 %v2342
    %3466 = vmatprep.subr.bf16.mxu0 %v2359
    %3467 = vmatpush1.bf16.msra.mxu0 %v2358
    %3468 = vmatprep.subr.bf16.mxu0 %v2375
    %3469 = vmatpush1.bf16.msra.mxu0 %v2374
    %3470 = vmatprep.subr.bf16.mxu0 %v2391
    %3471 = vmatpush1.bf16.msra.mxu0 %v2390
    %3472 = vmatprep.subr.bf16.mxu0 %v2407
    %3473 = vmatpush1.bf16.msra.mxu0 %v2406
    %3474 = vmatprep.subr.bf16.mxu0 %v2423
    %3475 = vmatpush1.bf16.msra.mxu0 %v2422
    %3476 = vmatprep.subr.bf16.mxu0 %v2439
    %3477 = vmatpush1.bf16.msra.mxu0 %v2438
    %3478 = vmatprep.subr.bf16.mxu0 %v2455
    %3479 = vmatpush1.bf16.msra.mxu0 %v2454
    %3480 = vmatprep.subr.bf16.mxu0 %v2471
    %3481 = vmatpush1.bf16.msra.mxu0 %v2470
    %3482 = vmatprep.subr.bf16.mxu0 %v2487
    %3483 = vmatpush1.bf16.msra.mxu0 %v2486
    %3484 = vmatprep.subr.bf16.mxu0 %v2503
    %3485 = vmatpush1.bf16.msra.mxu0 %v2502
    %3486 = vmatprep.mubr.bf16.mxu0 %v123
    %3487 = vmatmul.mubr.bf16.gmra.mrb[0].mxu0 %v122
    %v3488 = vpop.f32.mrb[0].mxu0
    %v3489 = vadd.f32 %v661, %v3488
    %v3490 = vpop.f32.mrb[0].mxu0
    %v3491 = vadd.f32 %v665, %v3490
    %v3492 = vpop.f32.mrb[0].mxu0
    %v3493 = vadd.f32 %v661, %v3492
    %v3494 = vpop.f32.mrb[0].mxu0
    %v3495 = vadd.f32 %v665, %v3494
    %3496 = vdwg.mxu0
    %3497 = vmatprep.subr.bf16.mxu0 %v2519
    %3498 = vmatpush1.bf16.msra.mxu0 %v2518
    %3499 = vmatprep.subr.bf16.mxu0 %v2535
    %3500 = vmatpush1.bf16.msra.mxu0 %v2534
    %3501 = vmatprep.subr.bf16.mxu0 %v2551
    %3502 = vmatpush1.bf16.msra.mxu0 %v2550
    %3503 = vmatprep.subr.bf16.mxu0 %v2567
    %3504 = vmatpush1.bf16.msra.mxu0 %v2566
    %3505 = vmatprep.subr.bf16.mxu0 %v2583
    %3506 = vmatpush1.bf16.msra.mxu0 %v2582
    %3507 = vmatprep.subr.bf16.mxu0 %v2599
    %3508 = vmatpush1.bf16.msra.mxu0 %v2598
    %3509 = vmatprep.subr.bf16.mxu0 %v2615
    %3510 = vmatpush1.bf16.msra.mxu0 %v2614
    %3511 = vmatprep.subr.bf16.mxu0 %v2631
    %3512 = vmatpush1.bf16.msra.mxu0 %v2630
    %3513 = vmatprep.subr.bf16.mxu0 %v2647
    %3514 = vmatpush1.bf16.msra.mxu0 %v2646
    %3515 = vmatprep.subr.bf16.mxu0 %v2663
    %3516 = vmatpush1.bf16.msra.mxu0 %v2662
    %3517 = vmatprep.subr.bf16.mxu0 %v2679
    %3518 = vmatpush1.bf16.msra.mxu0 %v2678
    %3519 = vmatprep.subr.bf16.mxu0 %v2695
    %3520 = vmatpush1.bf16.msra.mxu0 %v2694
    %3521 = vmatprep.subr.bf16.mxu0 %v2711
    %3522 = vmatpush1.bf16.msra.mxu0 %v2710
    %3523 = vmatprep.subr.bf16.mxu0 %v2727
    %3524 = vmatpush1.bf16.msra.mxu0 %v2726
    %3525 = vmatprep.subr.bf16.mxu0 %v2743
    %3526 = vmatpush1.bf16.msra.mxu0 %v2742
    %3527 = vmatprep.subr.bf16.mxu0 %v2759
    %3528 = vmatpush1.bf16.msra.mxu0 %v2758
    %3529 = vmatprep.mubr.bf16.mxu0 %v125
    %3530 = vmatmul.mubr.bf16.gmra.mrb[0].mxu0 %v124
    %v3531 = vpop.f32.mrb[0].mxu0
    %v3532 = vadd.f32 %v3489, %v3531
    %v3533 = vpop.f32.mrb[0].mxu0
    %v3534 = vadd.f32 %v3491, %v3533
    %v3535 = vpop.f32.mrb[0].mxu0
    %v3536 = vadd.f32 %v3493, %v3535
    %v3537 = vpop.f32.mrb[0].mxu0
    %v3538 = vadd.f32 %v3495, %v3537
    %3539 = vdwg.mxu0
    %3540 = vmatprep.subr.bf16.mxu0 %v2265
    %3541 = vmatpush1.bf16.msra.mxu0 %v2264
    %3542 = vmatprep.subr.bf16.mxu0 %v2281
    %3543 = vmatpush1.bf16.msra.mxu0 %v2280
    %3544 = vmatprep.subr.bf16.mxu0 %v2297
    %3545 = vmatpush1.bf16.msra.mxu0 %v2296
    %3546 = vmatprep.subr.bf16.mxu0 %v2313
    %3547 = vmatpush1.bf16.msra.mxu0 %v2312
    %3548 = vmatprep.subr.bf16.mxu0 %v2329
    %3549 = vmatpush1.bf16.msra.mxu0 %v2328
    %3550 = vmatprep.subr.bf16.mxu0 %v2345
    %3551 = vmatpush1.bf16.msra.mxu0 %v2344
    %3552 = vmatprep.subr.bf16.mxu0 %v2361
    %3553 = vmatpush1.bf16.msra.mxu0 %v2360
    %3554 = vmatprep.subr.bf16.mxu0 %v2377
    %3555 = vmatpush1.bf16.msra.mxu0 %v2376
    %3556 = vmatprep.subr.bf16.mxu0 %v2393
    %3557 = vmatpush1.bf16.msra.mxu0 %v2392
    %3558 = vmatprep.subr.bf16.mxu0 %v2409
    %3559 = vmatpush1.bf16.msra.mxu0 %v2408
    %3560 = vmatprep.subr.bf16.mxu0 %v2425
    %3561 = vmatpush1.bf16.msra.mxu0 %v2424
    %3562 = vmatprep.subr.bf16.mxu0 %v2441
    %3563 = vmatpush1.bf16.msra.mxu0 %v2440
    %3564 = vmatprep.subr.bf16.mxu0 %v2457
    %3565 = vmatpush1.bf16.msra.mxu0 %v2456
    %3566 = vmatprep.subr.bf16.mxu0 %v2473
    %3567 = vmatpush1.bf16.msra.mxu0 %v2472
    %3568 = vmatprep.subr.bf16.mxu0 %v2489
    %3569 = vmatpush1.bf16.msra.mxu0 %v2488
    %3570 = vmatprep.subr.bf16.mxu0 %v2505
    %3571 = vmatpush1.bf16.msra.mxu0 %v2504
    %3572 = vmatprep.mubr.bf16.mxu0 %v123
    %3573 = vmatmul.mubr.bf16.gmra.mrb[0].mxu0 %v122
    %v3574 = vpop.f32.mrb[0].mxu0
    %v3575 = vadd.f32 %v669, %v3574
    %v3576 = vpop.f32.mrb[0].mxu0
    %v3577 = vadd.f32 %v673, %v3576
    %v3578 = vpop.f32.mrb[0].mxu0
    %v3579 = vadd.f32 %v669, %v3578
    %v3580 = vpop.f32.mrb[0].mxu0
    %v3581 = vadd.f32 %v673, %v3580
    %3582 = vdwg.mxu0
    %3583 = vmatprep.subr.bf16.mxu0 %v2521
    %3584 = vmatpush1.bf16.msra.mxu0 %v2520
    %3585 = vmatprep.subr.bf16.mxu0 %v2537
    %3586 = vmatpush1.bf16.msra.mxu0 %v2536
    %3587 = vmatprep.subr.bf16.mxu0 %v2553
    %3588 = vmatpush1.bf16.msra.mxu0 %v2552
    %3589 = vmatprep.subr.bf16.mxu0 %v2569
    %3590 = vmatpush1.bf16.msra.mxu0 %v2568
    %3591 = vmatprep.subr.bf16.mxu0 %v2585
    %3592 = vmatpush1.bf16.msra.mxu0 %v2584
    %3593 = vmatprep.subr.bf16.mxu0 %v2601
    %3594 = vmatpush1.bf16.msra.mxu0 %v2600
    %3595 = vmatprep.subr.bf16.mxu0 %v2617
    %3596 = vmatpush1.bf16.msra.mxu0 %v2616
    %3597 = vmatprep.subr.bf16.mxu0 %v2633
    %3598 = vmatpush1.bf16.msra.mxu0 %v2632
    %3599 = vmatprep.subr.bf16.mxu0 %v2649
    %3600 = vmatpush1.bf16.msra.mxu0 %v2648
    %3601 = vmatprep.subr.bf16.mxu0 %v2665
    %3602 = vmatpush1.bf16.msra.mxu0 %v2664
    %3603 = vmatprep.subr.bf16.mxu0 %v2681
    %3604 = vmatpush1.bf16.msra.mxu0 %v2680
    %3605 = vmatprep.subr.bf16.mxu0 %v2697
    %3606 = vmatpush1.bf16.msra.mxu0 %v2696
    %3607 = vmatprep.subr.bf16.mxu0 %v2713
    %3608 = vmatpush1.bf16.msra.mxu0 %v2712
    %3609 = vmatprep.subr.bf16.mxu0 %v2729
    %3610 = vmatpush1.bf16.msra.mxu0 %v2728
    %3611 = vmatprep.subr.bf16.mxu0 %v2745
    %3612 = vmatpush1.bf16.msra.mxu0 %v2744
    %3613 = vmatprep.subr.bf16.mxu0 %v2761
    %3614 = vmatpush1.bf16.msra.mxu0 %v2760
    %3615 = vmatprep.mubr.bf16.mxu0 %v125
    %3616 = vmatmul.mubr.bf16.gmra.mrb[0].mxu0 %v124
    %v3617 = vpop.f32.mrb[0].mxu0
    %v3618 = vadd.f32 %v3575, %v3617
    %v3619 = vpop.f32.mrb[0].mxu0
    %v3620 = vadd.f32 %v3577, %v3619
    %v3621 = vpop.f32.mrb[0].mxu0
    %v3622 = vadd.f32 %v3579, %v3621
    %v3623 = vpop.f32.mrb[0].mxu0
    %v3624 = vadd.f32 %v3581, %v3623
    %3625 = vdwg.mxu0
    %3626 = vmatprep.subr.bf16.mxu0 %v2267
    %3627 = vmatpush1.bf16.msra.mxu0 %v2266
    %3628 = vmatprep.subr.bf16.mxu0 %v2283
    %3629 = vmatpush1.bf16.msra.mxu0 %v2282
    %3630 = vmatprep.subr.bf16.mxu0 %v2299
    %3631 = vmatpush1.bf16.msra.mxu0 %v2298
    %3632 = vmatprep.subr.bf16.mxu0 %v2315
    %3633 = vmatpush1.bf16.msra.mxu0 %v2314
    %3634 = vmatprep.subr.bf16.mxu0 %v2331
    %3635 = vmatpush1.bf16.msra.mxu0 %v2330
    %3636 = vmatprep.subr.bf16.mxu0 %v2347
    %3637 = vmatpush1.bf16.msra.mxu0 %v2346
    %3638 = vmatprep.subr.bf16.mxu0 %v2363
    %3639 = vmatpush1.bf16.msra.mxu0 %v2362
    %3640 = vmatprep.subr.bf16.mxu0 %v2379
    %3641 = vmatpush1.bf16.msra.mxu0 %v2378
    %3642 = vmatprep.subr.bf16.mxu0 %v2395
    %3643 = vmatpush1.bf16.msra.mxu0 %v2394
    %3644 = vmatprep.subr.bf16.mxu0 %v2411
    %3645 = vmatpush1.bf16.msra.mxu0 %v2410
    %3646 = vmatprep.subr.bf16.mxu0 %v2427
    %3647 = vmatpush1.bf16.msra.mxu0 %v2426
    %3648 = vmatprep.subr.bf16.mxu0 %v2443
    %3649 = vmatpush1.bf16.msra.mxu0 %v2442
    %3650 = vmatprep.subr.bf16.mxu0 %v2459
    %3651 = vmatpush1.bf16.msra.mxu0 %v2458
    %3652 = vmatprep.subr.bf16.mxu0 %v2475
    %3653 = vmatpush1.bf16.msra.mxu0 %v2474
    %3654 = vmatprep.subr.bf16.mxu0 %v2491
    %3655 = vmatpush1.bf16.msra.mxu0 %v2490
    %3656 = vmatprep.subr.bf16.mxu0 %v2507
    %3657 = vmatpush1.bf16.msra.mxu0 %v2506
    %3658 = vmatprep.mubr.bf16.mxu0 %v123
    %3659 = vmatmul.mubr.bf16.gmra.mrb[0].mxu0 %v122
    %v3660 = vpop.f32.mrb[0].mxu0
    %v3661 = vadd.f32 %v677, %v3660
    %v3662 = vpop.f32.mrb[0].mxu0
    %v3663 = vadd.f32 %v681, %v3662
    %v3664 = vpop.f32.mrb[0].mxu0
    %v3665 = vadd.f32 %v677, %v3664
    %v3666 = vpop.f32.mrb[0].mxu0
    %v3667 = vadd.f32 %v681, %v3666
    %3668 = vdwg.mxu0
    %3669 = vmatprep.subr.bf16.mxu0 %v2523
    %3670 = vmatpush1.bf16.msra.mxu0 %v2522
    %3671 = vmatprep.subr.bf16.mxu0 %v2539
    %3672 = vmatpush1.bf16.msra.mxu0 %v2538
    %3673 = vmatprep.subr.bf16.mxu0 %v2555
    %3674 = vmatpush1.bf16.msra.mxu0 %v2554
    %3675 = vmatprep.subr.bf16.mxu0 %v2571
    %3676 = vmatpush1.bf16.msra.mxu0 %v2570
    %3677 = vmatprep.subr.bf16.mxu0 %v2587
    %3678 = vmatpush1.bf16.msra.mxu0 %v2586
    %3679 = vmatprep.subr.bf16.mxu0 %v2603
    %3680 = vmatpush1.bf16.msra.mxu0 %v2602
    %3681 = vmatprep.subr.bf16.mxu0 %v2619
    %3682 = vmatpush1.bf16.msra.mxu0 %v2618
    %3683 = vmatprep.subr.bf16.mxu0 %v2635
    %3684 = vmatpush1.bf16.msra.mxu0 %v2634
    %3685 = vmatprep.subr.bf16.mxu0 %v2651
    %3686 = vmatpush1.bf16.msra.mxu0 %v2650
    %3687 = vmatprep.subr.bf16.mxu0 %v2667
    %3688 = vmatpush1.bf16.msra.mxu0 %v2666
    %3689 = vmatprep.subr.bf16.mxu0 %v2683
    %3690 = vmatpush1.bf16.msra.mxu0 %v2682
    %3691 = vmatprep.subr.bf16.mxu0 %v2699
    %3692 = vmatpush1.bf16.msra.mxu0 %v2698
    %3693 = vmatprep.subr.bf16.mxu0 %v2715
    %3694 = vmatpush1.bf16.msra.mxu0 %v2714
    %3695 = vmatprep.subr.bf16.mxu0 %v2731
    %3696 = vmatpush1.bf16.msra.mxu0 %v2730
    %3697 = vmatprep.subr.bf16.mxu0 %v2747
    %3698 = vmatpush1.bf16.msra.mxu0 %v2746
    %3699 = vmatprep.subr.bf16.mxu0 %v2763
    %3700 = vmatpush1.bf16.msra.mxu0 %v2762
    %3701 = vmatprep.mubr.bf16.mxu0 %v125
    %3702 = vmatmul.mubr.bf16.gmra.mrb[0].mxu0 %v124
    %v3703 = vpop.f32.mrb[0].mxu0
    %v3704 = vadd.f32 %v3661, %v3703
    %v3705 = vpop.f32.mrb[0].mxu0
    %v3706 = vadd.f32 %v3663, %v3705
    %v3707 = vpop.f32.mrb[0].mxu0
    %v3708 = vadd.f32 %v3665, %v3707
    %v3709 = vpop.f32.mrb[0].mxu0
    %v3710 = vadd.f32 %v3667, %v3709
    %3711 = vdwg.mxu0
    %3712 = vmatprep.subr.bf16.mxu0 %v2269
    %3713 = vmatpush1.bf16.msra.mxu0 %v2268
    %3714 = vmatprep.subr.bf16.mxu0 %v2285
    %3715 = vmatpush1.bf16.msra.mxu0 %v2284
    %3716 = vmatprep.subr.bf16.mxu0 %v2301
    %3717 = vmatpush1.bf16.msra.mxu0 %v2300
    %3718 = vmatprep.subr.bf16.mxu0 %v2317
    %3719 = vmatpush1.bf16.msra.mxu0 %v2316
    %3720 = vmatprep.subr.bf16.mxu0 %v2333
    %3721 = vmatpush1.bf16.msra.mxu0 %v2332
    %3722 = vmatprep.subr.bf16.mxu0 %v2349
    %3723 = vmatpush1.bf16.msra.mxu0 %v2348
    %3724 = vmatprep.subr.bf16.mxu0 %v2365
    %3725 = vmatpush1.bf16.msra.mxu0 %v2364
    %3726 = vmatprep.subr.bf16.mxu0 %v2381
    %3727 = vmatpush1.bf16.msra.mxu0 %v2380
    %3728 = vmatprep.subr.bf16.mxu0 %v2397
    %3729 = vmatpush1.bf16.msra.mxu0 %v2396
    %3730 = vmatprep.subr.bf16.mxu0 %v2413
    %3731 = vmatpush1.bf16.msra.mxu0 %v2412
    %3732 = vmatprep.subr.bf16.mxu0 %v2429
    %3733 = vmatpush1.bf16.msra.mxu0 %v2428
    %3734 = vmatprep.subr.bf16.mxu0 %v2445
    %3735 = vmatpush1.bf16.msra.mxu0 %v2444
    %3736 = vmatprep.subr.bf16.mxu0 %v2461
    %3737 = vmatpush1.bf16.msra.mxu0 %v2460
    %3738 = vmatprep.subr.bf16.mxu0 %v2477
    %3739 = vmatpush1.bf16.msra.mxu0 %v2476
    %3740 = vmatprep.subr.bf16.mxu0 %v2493
    %3741 = vmatpush1.bf16.msra.mxu0 %v2492
    %3742 = vmatprep.subr.bf16.mxu0 %v2509
    %3743 = vmatpush1.bf16.msra.mxu0 %v2508
    %3744 = vmatprep.mubr.bf16.mxu0 %v123
    %3745 = vmatmul.mubr.bf16.gmra.mrb[0].mxu0 %v122
    %v3746 = vpop.f32.mrb[0].mxu0
    %v3747 = vadd.f32 %v685, %v3746
    %v3748 = vpop.f32.mrb[0].mxu0
    %v3749 = vadd.f32 %v689, %v3748
    %v3750 = vpop.f32.mrb[0].mxu0
    %v3751 = vadd.f32 %v685, %v3750
    %v3752 = vpop.f32.mrb[0].mxu0
    %v3753 = vadd.f32 %v689, %v3752
    %3754 = vdwg.mxu0
    %3755 = vmatprep.subr.bf16.mxu0 %v2525
    %3756 = vmatpush1.bf16.msra.mxu0 %v2524
    %3757 = vmatprep.subr.bf16.mxu0 %v2541
    %3758 = vmatpush1.bf16.msra.mxu0 %v2540
    %3759 = vmatprep.subr.bf16.mxu0 %v2557
    %3760 = vmatpush1.bf16.msra.mxu0 %v2556
    %3761 = vmatprep.subr.bf16.mxu0 %v2573
    %3762 = vmatpush1.bf16.msra.mxu0 %v2572
    %3763 = vmatprep.subr.bf16.mxu0 %v2589
    %3764 = vmatpush1.bf16.msra.mxu0 %v2588
    %3765 = vmatprep.subr.bf16.mxu0 %v2605
    %3766 = vmatpush1.bf16.msra.mxu0 %v2604
    %3767 = vmatprep.subr.bf16.mxu0 %v2621
    %3768 = vmatpush1.bf16.msra.mxu0 %v2620
    %3769 = vmatprep.subr.bf16.mxu0 %v2637
    %3770 = vmatpush1.bf16.msra.mxu0 %v2636
    %3771 = vmatprep.subr.bf16.mxu0 %v2653
    %3772 = vmatpush1.bf16.msra.mxu0 %v2652
    %3773 = vmatprep.subr.bf16.mxu0 %v2669
    %3774 = vmatpush1.bf16.msra.mxu0 %v2668
    %3775 = vmatprep.subr.bf16.mxu0 %v2685
    %3776 = vmatpush1.bf16.msra.mxu0 %v2684
    %3777 = vmatprep.subr.bf16.mxu0 %v2701
    %3778 = vmatpush1.bf16.msra.mxu0 %v2700
    %3779 = vmatprep.subr.bf16.mxu0 %v2717
    %3780 = vmatpush1.bf16.msra.mxu0 %v2716
    %3781 = vmatprep.subr.bf16.mxu0 %v2733
    %3782 = vmatpush1.bf16.msra.mxu0 %v2732
    %3783 = vmatprep.subr.bf16.mxu0 %v2749
    %3784 = vmatpush1.bf16.msra.mxu0 %v2748
    %3785 = vmatprep.subr.bf16.mxu0 %v2765
    %3786 = vmatpush1.bf16.msra.mxu0 %v2764
    %3787 = vmatprep.mubr.bf16.mxu0 %v125
    %3788 = vmatmul.mubr.bf16.gmra.mrb[0].mxu0 %v124
    %v3789 = vpop.f32.mrb[0].mxu0
    %v3790 = vadd.f32 %v3747, %v3789
    %v3791 = vpop.f32.mrb[0].mxu0
    %v3792 = vadd.f32 %v3749, %v3791
    %v3793 = vpop.f32.mrb[0].mxu0
    %v3794 = vadd.f32 %v3751, %v3793
    %v3795 = vpop.f32.mrb[0].mxu0
    %v3796 = vadd.f32 %v3753, %v3795
    %3797 = vdwg.mxu0
    %3798 = vmatprep.subr.bf16.mxu0 %v2271
    %3799 = vmatpush1.bf16.msra.mxu0 %v2270
    %3800 = vmatprep.subr.bf16.mxu0 %v2287
    %3801 = vmatpush1.bf16.msra.mxu0 %v2286
    %3802 = vmatprep.subr.bf16.mxu0 %v2303
    %3803 = vmatpush1.bf16.msra.mxu0 %v2302
    %3804 = vmatprep.subr.bf16.mxu0 %v2319
    %3805 = vmatpush1.bf16.msra.mxu0 %v2318
    %3806 = vmatprep.subr.bf16.mxu0 %v2335
    %3807 = vmatpush1.bf16.msra.mxu0 %v2334
    %3808 = vmatprep.subr.bf16.mxu0 %v2351
    %3809 = vmatpush1.bf16.msra.mxu0 %v2350
    %3810 = vmatprep.subr.bf16.mxu0 %v2367
    %3811 = vmatpush1.bf16.msra.mxu0 %v2366
    %3812 = vmatprep.subr.bf16.mxu0 %v2383
    %3813 = vmatpush1.bf16.msra.mxu0 %v2382
    %3814 = vmatprep.subr.bf16.mxu0 %v2399
    %3815 = vmatpush1.bf16.msra.mxu0 %v2398
    %3816 = vmatprep.subr.bf16.mxu0 %v2415
    %3817 = vmatpush1.bf16.msra.mxu0 %v2414
    %3818 = vmatprep.subr.bf16.mxu0 %v2431
    %3819 = vmatpush1.bf16.msra.mxu0 %v2430
    %3820 = vmatprep.subr.bf16.mxu0 %v2447
    %3821 = vmatpush1.bf16.msra.mxu0 %v2446
    %3822 = vmatprep.subr.bf16.mxu0 %v2463
    %3823 = vmatpush1.bf16.msra.mxu0 %v2462
    %3824 = vmatprep.subr.bf16.mxu0 %v2479
    %3825 = vmatpush1.bf16.msra.mxu0 %v2478
    %3826 = vmatprep.subr.bf16.mxu0 %v2495
    %3827 = vmatpush1.bf16.msra.mxu0 %v2494
    %3828 = vmatprep.subr.bf16.mxu0 %v2511
    %3829 = vmatpush1.bf16.msra.mxu0 %v2510
    %3830 = vmatprep.mubr.bf16.mxu0 %v123
    %3831 = vmatmul.mubr.bf16.gmra.mrb[0].mxu0 %v122
    %v3832 = vpop.f32.mrb[0].mxu0
    %v3833 = vadd.f32 %v693, %v3832
    %v3834 = vpop.f32.mrb[0].mxu0
    %v3835 = vadd.f32 %v697, %v3834
    %v3836 = vpop.f32.mrb[0].mxu0
    %v3837 = vadd.f32 %v693, %v3836
    %v3838 = vpop.f32.mrb[0].mxu0
    %v3839 = vadd.f32 %v697, %v3838
    %3840 = vdwg.mxu0
    %3841 = vmatprep.subr.bf16.mxu0 %v2527
    %3842 = vmatpush1.bf16.msra.mxu0 %v2526
    %3843 = vmatprep.subr.bf16.mxu0 %v2543
    %3844 = vmatpush1.bf16.msra.mxu0 %v2542
    %3845 = vmatprep.subr.bf16.mxu0 %v2559
    %3846 = vmatpush1.bf16.msra.mxu0 %v2558
    %3847 = vmatprep.subr.bf16.mxu0 %v2575
    %3848 = vmatpush1.bf16.msra.mxu0 %v2574
    %3849 = vmatprep.subr.bf16.mxu0 %v2591
    %3850 = vmatpush1.bf16.msra.mxu0 %v2590
    %3851 = vmatprep.subr.bf16.mxu0 %v2607
    %3852 = vmatpush1.bf16.msra.mxu0 %v2606
    %3853 = vmatprep.subr.bf16.mxu0 %v2623
    %3854 = vmatpush1.bf16.msra.mxu0 %v2622
    %3855 = vmatprep.subr.bf16.mxu0 %v2639
    %3856 = vmatpush1.bf16.msra.mxu0 %v2638
    %3857 = vmatprep.subr.bf16.mxu0 %v2655
    %3858 = vmatpush1.bf16.msra.mxu0 %v2654
    %3859 = vmatprep.subr.bf16.mxu0 %v2671
    %3860 = vmatpush1.bf16.msra.mxu0 %v2670
    %3861 = vmatprep.subr.bf16.mxu0 %v2687
    %3862 = vmatpush1.bf16.msra.mxu0 %v2686
    %3863 = vmatprep.subr.bf16.mxu0 %v2703
    %3864 = vmatpush1.bf16.msra.mxu0 %v2702
    %3865 = vmatprep.subr.bf16.mxu0 %v2719
    %3866 = vmatpush1.bf16.msra.mxu0 %v2718
    %3867 = vmatprep.subr.bf16.mxu0 %v2735
    %3868 = vmatpush1.bf16.msra.mxu0 %v2734
    %3869 = vmatprep.subr.bf16.mxu0 %v2751
    %3870 = vmatpush1.bf16.msra.mxu0 %v2750
    %3871 = vmatprep.subr.bf16.mxu0 %v2767
    %3872 = vmatpush1.bf16.msra.mxu0 %v2766
    %3873 = vmatprep.mubr.bf16.mxu0 %v125
    %3874 = vmatmul.mubr.bf16.gmra.mrb[0].mxu0 %v124
    %v3875 = vpop.f32.mrb[0].mxu0
    %v3876 = vadd.f32 %v3833, %v3875
    %v3877 = vpop.f32.mrb[0].mxu0
    %v3878 = vadd.f32 %v3835, %v3877
    %v3879 = vpop.f32.mrb[0].mxu0
    %v3880 = vadd.f32 %v3837, %v3879
    %v3881 = vpop.f32.mrb[0].mxu0
    %v3882 = vadd.f32 %v3839, %v3881
    %3883 = vdwg.mxu0
    %3884 = vmatprep.subr.bf16.mxu0 %v2273
    %3885 = vmatpush1.bf16.msra.mxu0 %v2272
    %3886 = vmatprep.subr.bf16.mxu0 %v2289
    %3887 = vmatpush1.bf16.msra.mxu0 %v2288
    %3888 = vmatprep.subr.bf16.mxu0 %v2305
    %3889 = vmatpush1.bf16.msra.mxu0 %v2304
    %3890 = vmatprep.subr.bf16.mxu0 %v2321
    %3891 = vmatpush1.bf16.msra.mxu0 %v2320
    %3892 = vmatprep.subr.bf16.mxu0 %v2337
    %3893 = vmatpush1.bf16.msra.mxu0 %v2336
    %3894 = vmatprep.subr.bf16.mxu0 %v2353
    %3895 = vmatpush1.bf16.msra.mxu0 %v2352
    %3896 = vmatprep.subr.bf16.mxu0 %v2369
    %3897 = vmatpush1.bf16.msra.mxu0 %v2368
    %3898 = vmatprep.subr.bf16.mxu0 %v2385
    %3899 = vmatpush1.bf16.msra.mxu0 %v2384
    %3900 = vmatprep.subr.bf16.mxu0 %v2401
    %3901 = vmatpush1.bf16.msra.mxu0 %v2400
    %3902 = vmatprep.subr.bf16.mxu0 %v2417
    %3903 = vmatpush1.bf16.msra.mxu0 %v2416
    %3904 = vmatprep.subr.bf16.mxu0 %v2433
    %3905 = vmatpush1.bf16.msra.mxu0 %v2432
    %3906 = vmatprep.subr.bf16.mxu0 %v2449
    %3907 = vmatpush1.bf16.msra.mxu0 %v2448
    %3908 = vmatprep.subr.bf16.mxu0 %v2465
    %3909 = vmatpush1.bf16.msra.mxu0 %v2464
    %3910 = vmatprep.subr.bf16.mxu0 %v2481
    %3911 = vmatpush1.bf16.msra.mxu0 %v2480
    %3912 = vmatprep.subr.bf16.mxu0 %v2497
    %3913 = vmatpush1.bf16.msra.mxu0 %v2496
    %3914 = vmatprep.subr.bf16.mxu0 %v2513
    %3915 = vmatpush1.bf16.msra.mxu0 %v2512
    %3916 = vmatprep.mubr.bf16.mxu0 %v123
    %3917 = vmatmul.mubr.bf16.gmra.mrb[0].mxu0 %v122
    %v3918 = vpop.f32.mrb[0].mxu0
    %v3919 = vadd.f32 %v701, %v3918
    %v3920 = vpop.f32.mrb[0].mxu0
    %v3921 = vadd.f32 %v705, %v3920
    %v3922 = vpop.f32.mrb[0].mxu0
    %v3923 = vadd.f32 %v701, %v3922
    %v3924 = vpop.f32.mrb[0].mxu0
    %v3925 = vadd.f32 %v705, %v3924
    %3926 = vdwg.mxu0
    %3927 = vmatprep.subr.bf16.mxu0 %v2529
    %3928 = vmatpush1.bf16.msra.mxu0 %v2528
    %3929 = vmatprep.subr.bf16.mxu0 %v2545
    %3930 = vmatpush1.bf16.msra.mxu0 %v2544
    %3931 = vmatprep.subr.bf16.mxu0 %v2561
    %3932 = vmatpush1.bf16.msra.mxu0 %v2560
    %3933 = vmatprep.subr.bf16.mxu0 %v2577
    %3934 = vmatpush1.bf16.msra.mxu0 %v2576
    %3935 = vmatprep.subr.bf16.mxu0 %v2593
    %3936 = vmatpush1.bf16.msra.mxu0 %v2592
    %3937 = vmatprep.subr.bf16.mxu0 %v2609
    %3938 = vmatpush1.bf16.msra.mxu0 %v2608
    %3939 = vmatprep.subr.bf16.mxu0 %v2625
    %3940 = vmatpush1.bf16.msra.mxu0 %v2624
    %3941 = vmatprep.subr.bf16.mxu0 %v2641
    %3942 = vmatpush1.bf16.msra.mxu0 %v2640
    %3943 = vmatprep.subr.bf16.mxu0 %v2657
    %3944 = vmatpush1.bf16.msra.mxu0 %v2656
    %3945 = vmatprep.subr.bf16.mxu0 %v2673
    %3946 = vmatpush1.bf16.msra.mxu0 %v2672
    %3947 = vmatprep.subr.bf16.mxu0 %v2689
    %3948 = vmatpush1.bf16.msra.mxu0 %v2688
    %3949 = vmatprep.subr.bf16.mxu0 %v2705
    %3950 = vmatpush1.bf16.msra.mxu0 %v2704
    %3951 = vmatprep.subr.bf16.mxu0 %v2721
    %3952 = vmatpush1.bf16.msra.mxu0 %v2720
    %3953 = vmatprep.subr.bf16.mxu0 %v2737
    %3954 = vmatpush1.bf16.msra.mxu0 %v2736
    %3955 = vmatprep.subr.bf16.mxu0 %v2753
    %3956 = vmatpush1.bf16.msra.mxu0 %v2752
    %3957 = vmatprep.subr.bf16.mxu0 %v2769
    %3958 = vmatpush1.bf16.msra.mxu0 %v2768
    %3959 = vmatprep.mubr.bf16.mxu0 %v125
    %3960 = vmatmul.mubr.bf16.gmra.mrb[0].mxu0 %v124
    %v3961 = vpop.f32.mrb[0].mxu0
    %v3962 = vadd.f32 %v3919, %v3961
    %v3963 = vpop.f32.mrb[0].mxu0
    %v3964 = vadd.f32 %v3921, %v3963
    %v3965 = vpop.f32.mrb[0].mxu0
    %v3966 = vadd.f32 %v3923, %v3965
    %v3967 = vpop.f32.mrb[0].mxu0
    %v3968 = vadd.f32 %v3925, %v3967
    %3969 = vdwg.mxu0
    %v3970 = vmax.f32 %v3360, 0.0
    %v3971 = vmax.f32 %v3362, 0.0
    %v3972 = vmax.f32 %v3446, 0.0
    %v3973 = vmax.f32 %v3448, 0.0
    %v3974 = vmax.f32 %v3532, 0.0
    %v3975 = vmax.f32 %v3534, 0.0
    %v3976 = vmax.f32 %v3618, 0.0
    %v3977 = vmax.f32 %v3620, 0.0
    %v3978 = vmax.f32 %v3704, 0.0
    %v3979 = vmax.f32 %v3706, 0.0
    %v3980 = vmax.f32 %v3790, 0.0
    %v3981 = vmax.f32 %v3792, 0.0
    %v3982 = vmax.f32 %v3876, 0.0
    %v3983 = vmax.f32 %v3878, 0.0
    %v3984 = vmax.f32 %v3962, 0.0
    %v3985 = vmax.f32 %v3964, 0.0
    %v3986 = vmax.f32 %v3364, 0.0
    %v3987 = vmax.f32 %v3366, 0.0
    %v3988 = vmax.f32 %v3450, 0.0
    %v3989 = vmax.f32 %v3452, 0.0
    %v3990 = vmax.f32 %v3536, 0.0
    %v3991 = vmax.f32 %v3538, 0.0
    %v3992 = vmax.f32 %v3622, 0.0
    %v3993 = vmax.f32 %v3624, 0.0
    %v3994 = vmax.f32 %v3708, 0.0
    %v3995 = vmax.f32 %v3710, 0.0
    %v3996 = vmax.f32 %v3794, 0.0
    %v3997 = vmax.f32 %v3796, 0.0
    %v3998 = vmax.f32 %v3880, 0.0
    %v3999 = vmax.f32 %v3882, 0.0
    %v4000 = vmax.f32 %v3966, 0.0
    %v4001 = vmax.f32 %v3968, 0.0
    %v4002 = vpack.c.bf16 %v3986, %v3970
    %v4003 = vpack.c.bf16 %v3987, %v3971
    %v4004 = vpack.c.bf16 %v3988, %v3972
    %v4005 = vpack.c.bf16 %v3989, %v3973
    %v4006 = vpack.c.bf16 %v3990, %v3974
    %v4007 = vpack.c.bf16 %v3991, %v3975
    %v4008 = vpack.c.bf16 %v3992, %v3976
    %v4009 = vpack.c.bf16 %v3993, %v3977
    %v4010 = vpack.c.bf16 %v3994, %v3978
    %v4011 = vpack.c.bf16 %v3995, %v3979
    %v4012 = vpack.c.bf16 %v3996, %v3980
    %v4013 = vpack.c.bf16 %v3997, %v3981
    %v4014 = vpack.c.bf16 %v3998, %v3982
    %v4015 = vpack.c.bf16 %v3999, %v3983
    %v4016 = vpack.c.bf16 %v4000, %v3984
    %v4017 = vpack.c.bf16 %v4001, %v3985
    %v4018 = vld [vmem:[#allocation8] sm:$0xff]
    %v4019 = vld [vmem:[#allocation8 + $0x8] sm:$0xff]
    %v4020 = vld [vmem:[#allocation8 + $0x10] sm:$0xff]
    %v4021 = vld [vmem:[#allocation8 + $0x18] sm:$0xff]
    %v4022 = vld [vmem:[#allocation8 + $0x20] sm:$0xff]
    %v4023 = vld [vmem:[#allocation8 + $0x28] sm:$0xff]
    %v4024 = vld [vmem:[#allocation8 + $0x30] sm:$0xff]
    %v4025 = vld [vmem:[#allocation8 + $0x38] sm:$0xff]
    %v4026 = vld [vmem:[#allocation8 + $0x40] sm:$0xff]
    %v4027 = vld [vmem:[#allocation8 + $0x48] sm:$0xff]
    %v4028 = vld [vmem:[#allocation8 + $0x50] sm:$0xff]
    %v4029 = vld [vmem:[#allocation8 + $0x58] sm:$0xff]
    %v4030 = vld [vmem:[#allocation8 + $0x60] sm:$0xff]
    %v4031 = vld [vmem:[#allocation8 + $0x68] sm:$0xff]
    %v4032 = vld [vmem:[#allocation8 + $0x70] sm:$0xff]
    %v4033 = vld [vmem:[#allocation8 + $0x78] sm:$0xff]
    %v4034 = vld [vmem:[#allocation8 + $0x80] sm:$0xff]
    %v4035 = vld [vmem:[#allocation8 + $0x88] sm:$0xff]
    %v4036 = vld [vmem:[#allocation8 + $0x90] sm:$0xff]
    %v4037 = vld [vmem:[#allocation8 + $0x98] sm:$0xff]
    %v4038 = vld [vmem:[#allocation8 + $0xa0] sm:$0xff]
    %v4039 = vld [vmem:[#allocation8 + $0xa8] sm:$0xff]
    %v4040 = vld [vmem:[#allocation8 + $0xb0] sm:$0xff]
    %v4041 = vld [vmem:[#allocation8 + $0xb8] sm:$0xff]
    %v4042 = vld [vmem:[#allocation8 + $0xc0] sm:$0xff]
    %v4043 = vld [vmem:[#allocation8 + $0xc8] sm:$0xff]
    %v4044 = vld [vmem:[#allocation8 + $0xd0] sm:$0xff]
    %v4045 = vld [vmem:[#allocation8 + $0xd8] sm:$0xff]
    %v4046 = vld [vmem:[#allocation8 + $0xe0] sm:$0xff]
    %v4047 = vld [vmem:[#allocation8 + $0xe8] sm:$0xff]
    %v4048 = vld [vmem:[#allocation8 + $0xf0] sm:$0xff]
    %v4049 = vld [vmem:[#allocation8 + $0xf8] sm:$0xff]
    %v4050 = vld [vmem:[#allocation8 + $0x100] sm:$0xff]
    %v4051 = vld [vmem:[#allocation8 + $0x108] sm:$0xff]
    %v4052 = vld [vmem:[#allocation8 + $0x110] sm:$0xff]
    %v4053 = vld [vmem:[#allocation8 + $0x118] sm:$0xff]
    %v4054 = vld [vmem:[#allocation8 + $0x120] sm:$0xff]
    %v4055 = vld [vmem:[#allocation8 + $0x128] sm:$0xff]
    %v4056 = vld [vmem:[#allocation8 + $0x130] sm:$0xff]
    %v4057 = vld [vmem:[#allocation8 + $0x138] sm:$0xff]
    %v4058 = vld [vmem:[#allocation8 + $0x140] sm:$0xff]
    %v4059 = vld [vmem:[#allocation8 + $0x148] sm:$0xff]
    %v4060 = vld [vmem:[#allocation8 + $0x150] sm:$0xff]
    %v4061 = vld [vmem:[#allocation8 + $0x158] sm:$0xff]
    %v4062 = vld [vmem:[#allocation8 + $0x160] sm:$0xff]
    %v4063 = vld [vmem:[#allocation8 + $0x168] sm:$0xff]
    %v4064 = vld [vmem:[#allocation8 + $0x170] sm:$0xff]
    %v4065 = vld [vmem:[#allocation8 + $0x178] sm:$0xff]
    %v4066 = vld [vmem:[#allocation8 + $0x180] sm:$0xff]
    %v4067 = vld [vmem:[#allocation8 + $0x188] sm:$0xff]
    %v4068 = vld [vmem:[#allocation8 + $0x190] sm:$0xff]
    %v4069 = vld [vmem:[#allocation8 + $0x198] sm:$0xff]
    %v4070 = vld [vmem:[#allocation8 + $0x1a0] sm:$0xff]
    %v4071 = vld [vmem:[#allocation8 + $0x1a8] sm:$0xff]
    %v4072 = vld [vmem:[#allocation8 + $0x1b0] sm:$0xff]
    %v4073 = vld [vmem:[#allocation8 + $0x1b8] sm:$0xff]
    %v4074 = vld [vmem:[#allocation8 + $0x1c0] sm:$0xff]
    %v4075 = vld [vmem:[#allocation8 + $0x1c8] sm:$0xff]
    %v4076 = vld [vmem:[#allocation8 + $0x1d0] sm:$0xff]
    %v4077 = vld [vmem:[#allocation8 + $0x1d8] sm:$0xff]
    %v4078 = vld [vmem:[#allocation8 + $0x1e0] sm:$0xff]
    %v4079 = vld [vmem:[#allocation8 + $0x1e8] sm:$0xff]
    %v4080 = vld [vmem:[#allocation8 + $0x1f0] sm:$0xff]
    %v4081 = vld [vmem:[#allocation8 + $0x1f8] sm:$0xff]
    %v4082 = vld [vmem:[#allocation8 + $0x200] sm:$0xff]
    %v4083 = vld [vmem:[#allocation8 + $0x208] sm:$0xff]
    %v4084 = vld [vmem:[#allocation8 + $0x210] sm:$0xff]
    %v4085 = vld [vmem:[#allocation8 + $0x218] sm:$0xff]
    %v4086 = vld [vmem:[#allocation8 + $0x220] sm:$0xff]
    %v4087 = vld [vmem:[#allocation8 + $0x228] sm:$0xff]
    %v4088 = vld [vmem:[#allocation8 + $0x230] sm:$0xff]
    %v4089 = vld [vmem:[#allocation8 + $0x238] sm:$0xff]
    %v4090 = vld [vmem:[#allocation8 + $0x240] sm:$0xff]
    %v4091 = vld [vmem:[#allocation8 + $0x248] sm:$0xff]
    %v4092 = vld [vmem:[#allocation8 + $0x250] sm:$0xff]
    %v4093 = vld [vmem:[#allocation8 + $0x258] sm:$0xff]
    %v4094 = vld [vmem:[#allocation8 + $0x260] sm:$0xff]
    %v4095 = vld [vmem:[#allocation8 + $0x268] sm:$0xff]
    %v4096 = vld [vmem:[#allocation8 + $0x270] sm:$0xff]
    %v4097 = vld [vmem:[#allocation8 + $0x278] sm:$0xff]
    %v4098 = vld [vmem:[#allocation8 + $0x280] sm:$0xff]
    %v4099 = vld [vmem:[#allocation8 + $0x288] sm:$0xff]
    %v4100 = vld [vmem:[#allocation8 + $0x290] sm:$0xff]
    %v4101 = vld [vmem:[#allocation8 + $0x298] sm:$0xff]
    %v4102 = vld [vmem:[#allocation8 + $0x2a0] sm:$0xff]
    %v4103 = vld [vmem:[#allocation8 + $0x2a8] sm:$0xff]
    %v4104 = vld [vmem:[#allocation8 + $0x2b0] sm:$0xff]
    %v4105 = vld [vmem:[#allocation8 + $0x2b8] sm:$0xff]
    %v4106 = vld [vmem:[#allocation8 + $0x2c0] sm:$0xff]
    %v4107 = vld [vmem:[#allocation8 + $0x2c8] sm:$0xff]
    %v4108 = vld [vmem:[#allocation8 + $0x2d0] sm:$0xff]
    %v4109 = vld [vmem:[#allocation8 + $0x2d8] sm:$0xff]
    %v4110 = vld [vmem:[#allocation8 + $0x2e0] sm:$0xff]
    %v4111 = vld [vmem:[#allocation8 + $0x2e8] sm:$0xff]
    %v4112 = vld [vmem:[#allocation8 + $0x2f0] sm:$0xff]
    %v4113 = vld [vmem:[#allocation8 + $0x2f8] sm:$0xff]
    %v4114 = vld [vmem:[#allocation8 + $0x300] sm:$0xff]
    %v4115 = vld [vmem:[#allocation8 + $0x308] sm:$0xff]
    %v4116 = vld [vmem:[#allocation8 + $0x310] sm:$0xff]
    %v4117 = vld [vmem:[#allocation8 + $0x318] sm:$0xff]
    %v4118 = vld [vmem:[#allocation8 + $0x320] sm:$0xff]
    %v4119 = vld [vmem:[#allocation8 + $0x328] sm:$0xff]
    %v4120 = vld [vmem:[#allocation8 + $0x330] sm:$0xff]
    %v4121 = vld [vmem:[#allocation8 + $0x338] sm:$0xff]
    %v4122 = vld [vmem:[#allocation8 + $0x340] sm:$0xff]
    %v4123 = vld [vmem:[#allocation8 + $0x348] sm:$0xff]
    %v4124 = vld [vmem:[#allocation8 + $0x350] sm:$0xff]
    %v4125 = vld [vmem:[#allocation8 + $0x358] sm:$0xff]
    %v4126 = vld [vmem:[#allocation8 + $0x360] sm:$0xff]
    %v4127 = vld [vmem:[#allocation8 + $0x368] sm:$0xff]
    %v4128 = vld [vmem:[#allocation8 + $0x370] sm:$0xff]
    %v4129 = vld [vmem:[#allocation8 + $0x378] sm:$0xff]
    %v4130 = vld [vmem:[#allocation8 + $0x380] sm:$0xff]
    %v4131 = vld [vmem:[#allocation8 + $0x388] sm:$0xff]
    %v4132 = vld [vmem:[#allocation8 + $0x390] sm:$0xff]
    %v4133 = vld [vmem:[#allocation8 + $0x398] sm:$0xff]
    %v4134 = vld [vmem:[#allocation8 + $0x3a0] sm:$0xff]
    %v4135 = vld [vmem:[#allocation8 + $0x3a8] sm:$0xff]
    %v4136 = vld [vmem:[#allocation8 + $0x3b0] sm:$0xff]
    %v4137 = vld [vmem:[#allocation8 + $0x3b8] sm:$0xff]
    %v4138 = vld [vmem:[#allocation8 + $0x3c0] sm:$0xff]
    %v4139 = vld [vmem:[#allocation8 + $0x3c8] sm:$0xff]
    %v4140 = vld [vmem:[#allocation8 + $0x3d0] sm:$0xff]
    %v4141 = vld [vmem:[#allocation8 + $0x3d8] sm:$0xff]
    %v4142 = vld [vmem:[#allocation8 + $0x3e0] sm:$0xff]
    %v4143 = vld [vmem:[#allocation8 + $0x3e8] sm:$0xff]
    %v4144 = vld [vmem:[#allocation8 + $0x3f0] sm:$0xff]
    %v4145 = vld [vmem:[#allocation8 + $0x3f8] sm:$0xff]
    %v4146 = vld [vmem:[#allocation8 + $0x400] sm:$0xff]
    %v4147 = vld [vmem:[#allocation8 + $0x408] sm:$0xff]
    %v4148 = vld [vmem:[#allocation8 + $0x410] sm:$0xff]
    %v4149 = vld [vmem:[#allocation8 + $0x418] sm:$0xff]
    %v4150 = vld [vmem:[#allocation8 + $0x420] sm:$0xff]
    %v4151 = vld [vmem:[#allocation8 + $0x428] sm:$0xff]
    %v4152 = vld [vmem:[#allocation8 + $0x430] sm:$0xff]
    %v4153 = vld [vmem:[#allocation8 + $0x438] sm:$0xff]
    %v4154 = vld [vmem:[#allocation8 + $0x440] sm:$0xff]
    %v4155 = vld [vmem:[#allocation8 + $0x448] sm:$0xff]
    %v4156 = vld [vmem:[#allocation8 + $0x450] sm:$0xff]
    %v4157 = vld [vmem:[#allocation8 + $0x458] sm:$0xff]
    %v4158 = vld [vmem:[#allocation8 + $0x460] sm:$0xff]
    %v4159 = vld [vmem:[#allocation8 + $0x468] sm:$0xff]
    %v4160 = vld [vmem:[#allocation8 + $0x470] sm:$0xff]
    %v4161 = vld [vmem:[#allocation8 + $0x478] sm:$0xff]
    %v4162 = vld [vmem:[#allocation8 + $0x480] sm:$0xff]
    %v4163 = vld [vmem:[#allocation8 + $0x488] sm:$0xff]
    %v4164 = vld [vmem:[#allocation8 + $0x490] sm:$0xff]
    %v4165 = vld [vmem:[#allocation8 + $0x498] sm:$0xff]
    %v4166 = vld [vmem:[#allocation8 + $0x4a0] sm:$0xff]
    %v4167 = vld [vmem:[#allocation8 + $0x4a8] sm:$0xff]
    %v4168 = vld [vmem:[#allocation8 + $0x4b0] sm:$0xff]
    %v4169 = vld [vmem:[#allocation8 + $0x4b8] sm:$0xff]
    %v4170 = vld [vmem:[#allocation8 + $0x4c0] sm:$0xff]
    %v4171 = vld [vmem:[#allocation8 + $0x4c8] sm:$0xff]
    %v4172 = vld [vmem:[#allocation8 + $0x4d0] sm:$0xff]
    %v4173 = vld [vmem:[#allocation8 + $0x4d8] sm:$0xff]
    %v4174 = vld [vmem:[#allocation8 + $0x4e0] sm:$0xff]
    %v4175 = vld [vmem:[#allocation8 + $0x4e8] sm:$0xff]
    %v4176 = vld [vmem:[#allocation8 + $0x4f0] sm:$0xff]
    %v4177 = vld [vmem:[#allocation8 + $0x4f8] sm:$0xff]
    %v4178 = vld [vmem:[#allocation8 + $0x500] sm:$0xff]
    %v4179 = vld [vmem:[#allocation8 + $0x508] sm:$0xff]
    %v4180 = vld [vmem:[#allocation8 + $0x510] sm:$0xff]
    %v4181 = vld [vmem:[#allocation8 + $0x518] sm:$0xff]
    %v4182 = vld [vmem:[#allocation8 + $0x520] sm:$0xff]
    %v4183 = vld [vmem:[#allocation8 + $0x528] sm:$0xff]
    %v4184 = vld [vmem:[#allocation8 + $0x530] sm:$0xff]
    %v4185 = vld [vmem:[#allocation8 + $0x538] sm:$0xff]
    %v4186 = vld [vmem:[#allocation8 + $0x540] sm:$0xff]
    %v4187 = vld [vmem:[#allocation8 + $0x548] sm:$0xff]
    %v4188 = vld [vmem:[#allocation8 + $0x550] sm:$0xff]
    %v4189 = vld [vmem:[#allocation8 + $0x558] sm:$0xff]
    %v4190 = vld [vmem:[#allocation8 + $0x560] sm:$0xff]
    %v4191 = vld [vmem:[#allocation8 + $0x568] sm:$0xff]
    %v4192 = vld [vmem:[#allocation8 + $0x570] sm:$0xff]
    %v4193 = vld [vmem:[#allocation8 + $0x578] sm:$0xff]
    %v4194 = vld [vmem:[#allocation8 + $0x580] sm:$0xff]
    %v4195 = vld [vmem:[#allocation8 + $0x588] sm:$0xff]
    %v4196 = vld [vmem:[#allocation8 + $0x590] sm:$0xff]
    %v4197 = vld [vmem:[#allocation8 + $0x598] sm:$0xff]
    %v4198 = vld [vmem:[#allocation8 + $0x5a0] sm:$0xff]
    %v4199 = vld [vmem:[#allocation8 + $0x5a8] sm:$0xff]
    %v4200 = vld [vmem:[#allocation8 + $0x5b0] sm:$0xff]
    %v4201 = vld [vmem:[#allocation8 + $0x5b8] sm:$0xff]
    %v4202 = vld [vmem:[#allocation8 + $0x5c0] sm:$0xff]
    %v4203 = vld [vmem:[#allocation8 + $0x5c8] sm:$0xff]
    %v4204 = vld [vmem:[#allocation8 + $0x5d0] sm:$0xff]
    %v4205 = vld [vmem:[#allocation8 + $0x5d8] sm:$0xff]
    %v4206 = vld [vmem:[#allocation8 + $0x5e0] sm:$0xff]
    %v4207 = vld [vmem:[#allocation8 + $0x5e8] sm:$0xff]
    %v4208 = vld [vmem:[#allocation8 + $0x5f0] sm:$0xff]
    %v4209 = vld [vmem:[#allocation8 + $0x5f8] sm:$0xff]
    %v4210 = vld [vmem:[#allocation8 + $0x600] sm:$0xff]
    %v4211 = vld [vmem:[#allocation8 + $0x608] sm:$0xff]
    %v4212 = vld [vmem:[#allocation8 + $0x610] sm:$0xff]
    %v4213 = vld [vmem:[#allocation8 + $0x618] sm:$0xff]
    %v4214 = vld [vmem:[#allocation8 + $0x620] sm:$0xff]
    %v4215 = vld [vmem:[#allocation8 + $0x628] sm:$0xff]
    %v4216 = vld [vmem:[#allocation8 + $0x630] sm:$0xff]
    %v4217 = vld [vmem:[#allocation8 + $0x638] sm:$0xff]
    %v4218 = vld [vmem:[#allocation8 + $0x640] sm:$0xff]
    %v4219 = vld [vmem:[#allocation8 + $0x648] sm:$0xff]
    %v4220 = vld [vmem:[#allocation8 + $0x650] sm:$0xff]
    %v4221 = vld [vmem:[#allocation8 + $0x658] sm:$0xff]
    %v4222 = vld [vmem:[#allocation8 + $0x660] sm:$0xff]
    %v4223 = vld [vmem:[#allocation8 + $0x668] sm:$0xff]
    %v4224 = vld [vmem:[#allocation8 + $0x670] sm:$0xff]
    %v4225 = vld [vmem:[#allocation8 + $0x678] sm:$0xff]
    %v4226 = vld [vmem:[#allocation8 + $0x680] sm:$0xff]
    %v4227 = vld [vmem:[#allocation8 + $0x688] sm:$0xff]
    %v4228 = vld [vmem:[#allocation8 + $0x690] sm:$0xff]
    %v4229 = vld [vmem:[#allocation8 + $0x698] sm:$0xff]
    %v4230 = vld [vmem:[#allocation8 + $0x6a0] sm:$0xff]
    %v4231 = vld [vmem:[#allocation8 + $0x6a8] sm:$0xff]
    %v4232 = vld [vmem:[#allocation8 + $0x6b0] sm:$0xff]
    %v4233 = vld [vmem:[#allocation8 + $0x6b8] sm:$0xff]
    %v4234 = vld [vmem:[#allocation8 + $0x6c0] sm:$0xff]
    %v4235 = vld [vmem:[#allocation8 + $0x6c8] sm:$0xff]
    %v4236 = vld [vmem:[#allocation8 + $0x6d0] sm:$0xff]
    %v4237 = vld [vmem:[#allocation8 + $0x6d8] sm:$0xff]
    %v4238 = vld [vmem:[#allocation8 + $0x6e0] sm:$0xff]
    %v4239 = vld [vmem:[#allocation8 + $0x6e8] sm:$0xff]
    %v4240 = vld [vmem:[#allocation8 + $0x6f0] sm:$0xff]
    %v4241 = vld [vmem:[#allocation8 + $0x6f8] sm:$0xff]
    %v4242 = vld [vmem:[#allocation8 + $0x700] sm:$0xff]
    %v4243 = vld [vmem:[#allocation8 + $0x708] sm:$0xff]
    %v4244 = vld [vmem:[#allocation8 + $0x710] sm:$0xff]
    %v4245 = vld [vmem:[#allocation8 + $0x718] sm:$0xff]
    %v4246 = vld [vmem:[#allocation8 + $0x720] sm:$0xff]
    %v4247 = vld [vmem:[#allocation8 + $0x728] sm:$0xff]
    %v4248 = vld [vmem:[#allocation8 + $0x730] sm:$0xff]
    %v4249 = vld [vmem:[#allocation8 + $0x738] sm:$0xff]
    %v4250 = vld [vmem:[#allocation8 + $0x740] sm:$0xff]
    %v4251 = vld [vmem:[#allocation8 + $0x748] sm:$0xff]
    %v4252 = vld [vmem:[#allocation8 + $0x750] sm:$0xff]
    %v4253 = vld [vmem:[#allocation8 + $0x758] sm:$0xff]
    %v4254 = vld [vmem:[#allocation8 + $0x760] sm:$0xff]
    %v4255 = vld [vmem:[#allocation8 + $0x768] sm:$0xff]
    %v4256 = vld [vmem:[#allocation8 + $0x770] sm:$0xff]
    %v4257 = vld [vmem:[#allocation8 + $0x778] sm:$0xff]
    %v4258 = vld [vmem:[#allocation8 + $0x780] sm:$0xff]
    %v4259 = vld [vmem:[#allocation8 + $0x788] sm:$0xff]
    %v4260 = vld [vmem:[#allocation8 + $0x790] sm:$0xff]
    %v4261 = vld [vmem:[#allocation8 + $0x798] sm:$0xff]
    %v4262 = vld [vmem:[#allocation8 + $0x7a0] sm:$0xff]
    %v4263 = vld [vmem:[#allocation8 + $0x7a8] sm:$0xff]
    %v4264 = vld [vmem:[#allocation8 + $0x7b0] sm:$0xff]
    %v4265 = vld [vmem:[#allocation8 + $0x7b8] sm:$0xff]
    %v4266 = vld [vmem:[#allocation8 + $0x7c0] sm:$0xff]
    %v4267 = vld [vmem:[#allocation8 + $0x7c8] sm:$0xff]
    %v4268 = vld [vmem:[#allocation8 + $0x7d0] sm:$0xff]
    %v4269 = vld [vmem:[#allocation8 + $0x7d8] sm:$0xff]
    %v4270 = vld [vmem:[#allocation8 + $0x7e0] sm:$0xff]
    %v4271 = vld [vmem:[#allocation8 + $0x7e8] sm:$0xff]
    %v4272 = vld [vmem:[#allocation8 + $0x7f0] sm:$0xff]
    %v4273 = vld [vmem:[#allocation8 + $0x7f8] sm:$0xff]
    %v4274 = vld [vmem:[#allocation8 + $0x800] sm:$0xff]
    %v4275 = vld [vmem:[#allocation8 + $0x808] sm:$0xff]
    %v4276 = vld [vmem:[#allocation8 + $0x810] sm:$0xff]
    %v4277 = vld [vmem:[#allocation8 + $0x818] sm:$0xff]
    %v4278 = vld [vmem:[#allocation8 + $0x820] sm:$0xff]
    %v4279 = vld [vmem:[#allocation8 + $0x828] sm:$0xff]
    %v4280 = vld [vmem:[#allocation8 + $0x830] sm:$0xff]
    %v4281 = vld [vmem:[#allocation8 + $0x838] sm:$0xff]
    %v4282 = vld [vmem:[#allocation8 + $0x840] sm:$0xff]
    %v4283 = vld [vmem:[#allocation8 + $0x848] sm:$0xff]
    %v4284 = vld [vmem:[#allocation8 + $0x850] sm:$0xff]
    %v4285 = vld [vmem:[#allocation8 + $0x858] sm:$0xff]
    %v4286 = vld [vmem:[#allocation8 + $0x860] sm:$0xff]
    %v4287 = vld [vmem:[#allocation8 + $0x868] sm:$0xff]
    %v4288 = vld [vmem:[#allocation8 + $0x870] sm:$0xff]
    %v4289 = vld [vmem:[#allocation8 + $0x878] sm:$0xff]
    %v4290 = vld [vmem:[#allocation8 + $0x880] sm:$0xff]
    %v4291 = vld [vmem:[#allocation8 + $0x888] sm:$0xff]
    %v4292 = vld [vmem:[#allocation8 + $0x890] sm:$0xff]
    %v4293 = vld [vmem:[#allocation8 + $0x898] sm:$0xff]
    %v4294 = vld [vmem:[#allocation8 + $0x8a0] sm:$0xff]
    %v4295 = vld [vmem:[#allocation8 + $0x8a8] sm:$0xff]
    %v4296 = vld [vmem:[#allocation8 + $0x8b0] sm:$0xff]
    %v4297 = vld [vmem:[#allocation8 + $0x8b8] sm:$0xff]
    %v4298 = vld [vmem:[#allocation8 + $0x8c0] sm:$0xff]
    %v4299 = vld [vmem:[#allocation8 + $0x8c8] sm:$0xff]
    %v4300 = vld [vmem:[#allocation8 + $0x8d0] sm:$0xff]
    %v4301 = vld [vmem:[#allocation8 + $0x8d8] sm:$0xff]
    %v4302 = vld [vmem:[#allocation8 + $0x8e0] sm:$0xff]
    %v4303 = vld [vmem:[#allocation8 + $0x8e8] sm:$0xff]
    %v4304 = vld [vmem:[#allocation8 + $0x8f0] sm:$0xff]
    %v4305 = vld [vmem:[#allocation8 + $0x8f8] sm:$0xff]
    %v4306 = vld [vmem:[#allocation8 + $0x900] sm:$0xff]
    %v4307 = vld [vmem:[#allocation8 + $0x908] sm:$0xff]
    %v4308 = vld [vmem:[#allocation8 + $0x910] sm:$0xff]
    %v4309 = vld [vmem:[#allocation8 + $0x918] sm:$0xff]
    %v4310 = vld [vmem:[#allocation8 + $0x920] sm:$0xff]
    %v4311 = vld [vmem:[#allocation8 + $0x928] sm:$0xff]
    %v4312 = vld [vmem:[#allocation8 + $0x930] sm:$0xff]
    %v4313 = vld [vmem:[#allocation8 + $0x938] sm:$0xff]
    %v4314 = vld [vmem:[#allocation8 + $0x940] sm:$0xff]
    %v4315 = vld [vmem:[#allocation8 + $0x948] sm:$0xff]
    %v4316 = vld [vmem:[#allocation8 + $0x950] sm:$0xff]
    %v4317 = vld [vmem:[#allocation8 + $0x958] sm:$0xff]
    %v4318 = vld [vmem:[#allocation8 + $0x960] sm:$0xff]
    %v4319 = vld [vmem:[#allocation8 + $0x968] sm:$0xff]
    %v4320 = vld [vmem:[#allocation8 + $0x970] sm:$0xff]
    %v4321 = vld [vmem:[#allocation8 + $0x978] sm:$0xff]
    %v4322 = vld [vmem:[#allocation8 + $0x980] sm:$0xff]
    %v4323 = vld [vmem:[#allocation8 + $0x988] sm:$0xff]
    %v4324 = vld [vmem:[#allocation8 + $0x990] sm:$0xff]
    %v4325 = vld [vmem:[#allocation8 + $0x998] sm:$0xff]
    %v4326 = vld [vmem:[#allocation8 + $0x9a0] sm:$0xff]
    %v4327 = vld [vmem:[#allocation8 + $0x9a8] sm:$0xff]
    %v4328 = vld [vmem:[#allocation8 + $0x9b0] sm:$0xff]
    %v4329 = vld [vmem:[#allocation8 + $0x9b8] sm:$0xff]
    %v4330 = vld [vmem:[#allocation8 + $0x9c0] sm:$0xff]
    %v4331 = vld [vmem:[#allocation8 + $0x9c8] sm:$0xff]
    %v4332 = vld [vmem:[#allocation8 + $0x9d0] sm:$0xff]
    %v4333 = vld [vmem:[#allocation8 + $0x9d8] sm:$0xff]
    %v4334 = vld [vmem:[#allocation8 + $0x9e0] sm:$0xff]
    %v4335 = vld [vmem:[#allocation8 + $0x9e8] sm:$0xff]
    %v4336 = vld [vmem:[#allocation8 + $0x9f0] sm:$0xff]
    %v4337 = vld [vmem:[#allocation8 + $0x9f8] sm:$0xff]
    %v4338 = vld [vmem:[#allocation8 + $0xa00] sm:$0xff]
    %v4339 = vld [vmem:[#allocation8 + $0xa08] sm:$0xff]
    %v4340 = vld [vmem:[#allocation8 + $0xa10] sm:$0xff]
    %v4341 = vld [vmem:[#allocation8 + $0xa18] sm:$0xff]
    %v4342 = vld [vmem:[#allocation8 + $0xa20] sm:$0xff]
    %v4343 = vld [vmem:[#allocation8 + $0xa28] sm:$0xff]
    %v4344 = vld [vmem:[#allocation8 + $0xa30] sm:$0xff]
    %v4345 = vld [vmem:[#allocation8 + $0xa38] sm:$0xff]
    %v4346 = vld [vmem:[#allocation8 + $0xa40] sm:$0xff]
    %v4347 = vld [vmem:[#allocation8 + $0xa48] sm:$0xff]
    %v4348 = vld [vmem:[#allocation8 + $0xa50] sm:$0xff]
    %v4349 = vld [vmem:[#allocation8 + $0xa58] sm:$0xff]
    %v4350 = vld [vmem:[#allocation8 + $0xa60] sm:$0xff]
    %v4351 = vld [vmem:[#allocation8 + $0xa68] sm:$0xff]
    %v4352 = vld [vmem:[#allocation8 + $0xa70] sm:$0xff]
    %v4353 = vld [vmem:[#allocation8 + $0xa78] sm:$0xff]
    %v4354 = vld [vmem:[#allocation8 + $0xa80] sm:$0xff]
    %v4355 = vld [vmem:[#allocation8 + $0xa88] sm:$0xff]
    %v4356 = vld [vmem:[#allocation8 + $0xa90] sm:$0xff]
    %v4357 = vld [vmem:[#allocation8 + $0xa98] sm:$0xff]
    %v4358 = vld [vmem:[#allocation8 + $0xaa0] sm:$0xff]
    %v4359 = vld [vmem:[#allocation8 + $0xaa8] sm:$0xff]
    %v4360 = vld [vmem:[#allocation8 + $0xab0] sm:$0xff]
    %v4361 = vld [vmem:[#allocation8 + $0xab8] sm:$0xff]
    %v4362 = vld [vmem:[#allocation8 + $0xac0] sm:$0xff]
    %v4363 = vld [vmem:[#allocation8 + $0xac8] sm:$0xff]
    %v4364 = vld [vmem:[#allocation8 + $0xad0] sm:$0xff]
    %v4365 = vld [vmem:[#allocation8 + $0xad8] sm:$0xff]
    %v4366 = vld [vmem:[#allocation8 + $0xae0] sm:$0xff]
    %v4367 = vld [vmem:[#allocation8 + $0xae8] sm:$0xff]
    %v4368 = vld [vmem:[#allocation8 + $0xaf0] sm:$0xff]
    %v4369 = vld [vmem:[#allocation8 + $0xaf8] sm:$0xff]
    %v4370 = vld [vmem:[#allocation8 + $0xb00] sm:$0xff]
    %v4371 = vld [vmem:[#allocation8 + $0xb08] sm:$0xff]
    %v4372 = vld [vmem:[#allocation8 + $0xb10] sm:$0xff]
    %v4373 = vld [vmem:[#allocation8 + $0xb18] sm:$0xff]
    %v4374 = vld [vmem:[#allocation8 + $0xb20] sm:$0xff]
    %v4375 = vld [vmem:[#allocation8 + $0xb28] sm:$0xff]
    %v4376 = vld [vmem:[#allocation8 + $0xb30] sm:$0xff]
    %v4377 = vld [vmem:[#allocation8 + $0xb38] sm:$0xff]
    %v4378 = vld [vmem:[#allocation8 + $0xb40] sm:$0xff]
    %v4379 = vld [vmem:[#allocation8 + $0xb48] sm:$0xff]
    %v4380 = vld [vmem:[#allocation8 + $0xb50] sm:$0xff]
    %v4381 = vld [vmem:[#allocation8 + $0xb58] sm:$0xff]
    %v4382 = vld [vmem:[#allocation8 + $0xb60] sm:$0xff]
    %v4383 = vld [vmem:[#allocation8 + $0xb68] sm:$0xff]
    %v4384 = vld [vmem:[#allocation8 + $0xb70] sm:$0xff]
    %v4385 = vld [vmem:[#allocation8 + $0xb78] sm:$0xff]
    %v4386 = vld [vmem:[#allocation8 + $0xb80] sm:$0xff]
    %v4387 = vld [vmem:[#allocation8 + $0xb88] sm:$0xff]
    %v4388 = vld [vmem:[#allocation8 + $0xb90] sm:$0xff]
    %v4389 = vld [vmem:[#allocation8 + $0xb98] sm:$0xff]
    %v4390 = vld [vmem:[#allocation8 + $0xba0] sm:$0xff]
    %v4391 = vld [vmem:[#allocation8 + $0xba8] sm:$0xff]
    %v4392 = vld [vmem:[#allocation8 + $0xbb0] sm:$0xff]
    %v4393 = vld [vmem:[#allocation8 + $0xbb8] sm:$0xff]
    %v4394 = vld [vmem:[#allocation8 + $0xbc0] sm:$0xff]
    %v4395 = vld [vmem:[#allocation8 + $0xbc8] sm:$0xff]
    %v4396 = vld [vmem:[#allocation8 + $0xbd0] sm:$0xff]
    %v4397 = vld [vmem:[#allocation8 + $0xbd8] sm:$0xff]
    %v4398 = vld [vmem:[#allocation8 + $0xbe0] sm:$0xff]
    %v4399 = vld [vmem:[#allocation8 + $0xbe8] sm:$0xff]
    %v4400 = vld [vmem:[#allocation8 + $0xbf0] sm:$0xff]
    %v4401 = vld [vmem:[#allocation8 + $0xbf8] sm:$0xff]
    %v4402 = vld [vmem:[#allocation8 + $0xc00] sm:$0xff]
    %v4403 = vld [vmem:[#allocation8 + $0xc08] sm:$0xff]
    %v4404 = vld [vmem:[#allocation8 + $0xc10] sm:$0xff]
    %v4405 = vld [vmem:[#allocation8 + $0xc18] sm:$0xff]
    %v4406 = vld [vmem:[#allocation8 + $0xc20] sm:$0xff]
    %v4407 = vld [vmem:[#allocation8 + $0xc28] sm:$0xff]
    %v4408 = vld [vmem:[#allocation8 + $0xc30] sm:$0xff]
    %v4409 = vld [vmem:[#allocation8 + $0xc38] sm:$0xff]
    %v4410 = vld [vmem:[#allocation8 + $0xc40] sm:$0xff]
    %v4411 = vld [vmem:[#allocation8 + $0xc48] sm:$0xff]
    %v4412 = vld [vmem:[#allocation8 + $0xc50] sm:$0xff]
    %v4413 = vld [vmem:[#allocation8 + $0xc58] sm:$0xff]
    %v4414 = vld [vmem:[#allocation8 + $0xc60] sm:$0xff]
    %v4415 = vld [vmem:[#allocation8 + $0xc68] sm:$0xff]
    %v4416 = vld [vmem:[#allocation8 + $0xc70] sm:$0xff]
    %v4417 = vld [vmem:[#allocation8 + $0xc78] sm:$0xff]
    %v4418 = vld [vmem:[#allocation8 + $0xc80] sm:$0xff]
    %v4419 = vld [vmem:[#allocation8 + $0xc88] sm:$0xff]
    %v4420 = vld [vmem:[#allocation8 + $0xc90] sm:$0xff]
    %v4421 = vld [vmem:[#allocation8 + $0xc98] sm:$0xff]
    %v4422 = vld [vmem:[#allocation8 + $0xca0] sm:$0xff]
    %v4423 = vld [vmem:[#allocation8 + $0xca8] sm:$0xff]
    %v4424 = vld [vmem:[#allocation8 + $0xcb0] sm:$0xff]
    %v4425 = vld [vmem:[#allocation8 + $0xcb8] sm:$0xff]
    %v4426 = vld [vmem:[#allocation8 + $0xcc0] sm:$0xff]
    %v4427 = vld [vmem:[#allocation8 + $0xcc8] sm:$0xff]
    %v4428 = vld [vmem:[#allocation8 + $0xcd0] sm:$0xff]
    %v4429 = vld [vmem:[#allocation8 + $0xcd8] sm:$0xff]
    %v4430 = vld [vmem:[#allocation8 + $0xce0] sm:$0xff]
    %v4431 = vld [vmem:[#allocation8 + $0xce8] sm:$0xff]
    %v4432 = vld [vmem:[#allocation8 + $0xcf0] sm:$0xff]
    %v4433 = vld [vmem:[#allocation8 + $0xcf8] sm:$0xff]
    %v4434 = vld [vmem:[#allocation8 + $0xd00] sm:$0xff]
    %v4435 = vld [vmem:[#allocation8 + $0xd08] sm:$0xff]
    %v4436 = vld [vmem:[#allocation8 + $0xd10] sm:$0xff]
    %v4437 = vld [vmem:[#allocation8 + $0xd18] sm:$0xff]
    %v4438 = vld [vmem:[#allocation8 + $0xd20] sm:$0xff]
    %v4439 = vld [vmem:[#allocation8 + $0xd28] sm:$0xff]
    %v4440 = vld [vmem:[#allocation8 + $0xd30] sm:$0xff]
    %v4441 = vld [vmem:[#allocation8 + $0xd38] sm:$0xff]
    %v4442 = vld [vmem:[#allocation8 + $0xd40] sm:$0xff]
    %v4443 = vld [vmem:[#allocation8 + $0xd48] sm:$0xff]
    %v4444 = vld [vmem:[#allocation8 + $0xd50] sm:$0xff]
    %v4445 = vld [vmem:[#allocation8 + $0xd58] sm:$0xff]
    %v4446 = vld [vmem:[#allocation8 + $0xd60] sm:$0xff]
    %v4447 = vld [vmem:[#allocation8 + $0xd68] sm:$0xff]
    %v4448 = vld [vmem:[#allocation8 + $0xd70] sm:$0xff]
    %v4449 = vld [vmem:[#allocation8 + $0xd78] sm:$0xff]
    %v4450 = vld [vmem:[#allocation8 + $0xd80] sm:$0xff]
    %v4451 = vld [vmem:[#allocation8 + $0xd88] sm:$0xff]
    %v4452 = vld [vmem:[#allocation8 + $0xd90] sm:$0xff]
    %v4453 = vld [vmem:[#allocation8 + $0xd98] sm:$0xff]
    %v4454 = vld [vmem:[#allocation8 + $0xda0] sm:$0xff]
    %v4455 = vld [vmem:[#allocation8 + $0xda8] sm:$0xff]
    %v4456 = vld [vmem:[#allocation8 + $0xdb0] sm:$0xff]
    %v4457 = vld [vmem:[#allocation8 + $0xdb8] sm:$0xff]
    %v4458 = vld [vmem:[#allocation8 + $0xdc0] sm:$0xff]
    %v4459 = vld [vmem:[#allocation8 + $0xdc8] sm:$0xff]
    %v4460 = vld [vmem:[#allocation8 + $0xdd0] sm:$0xff]
    %v4461 = vld [vmem:[#allocation8 + $0xdd8] sm:$0xff]
    %v4462 = vld [vmem:[#allocation8 + $0xde0] sm:$0xff]
    %v4463 = vld [vmem:[#allocation8 + $0xde8] sm:$0xff]
    %v4464 = vld [vmem:[#allocation8 + $0xdf0] sm:$0xff]
    %v4465 = vld [vmem:[#allocation8 + $0xdf8] sm:$0xff]
    %v4466 = vld [vmem:[#allocation8 + $0xe00] sm:$0xff]
    %v4467 = vld [vmem:[#allocation8 + $0xe08] sm:$0xff]
    %v4468 = vld [vmem:[#allocation8 + $0xe10] sm:$0xff]
    %v4469 = vld [vmem:[#allocation8 + $0xe18] sm:$0xff]
    %v4470 = vld [vmem:[#allocation8 + $0xe20] sm:$0xff]
    %v4471 = vld [vmem:[#allocation8 + $0xe28] sm:$0xff]
    %v4472 = vld [vmem:[#allocation8 + $0xe30] sm:$0xff]
    %v4473 = vld [vmem:[#allocation8 + $0xe38] sm:$0xff]
    %v4474 = vld [vmem:[#allocation8 + $0xe40] sm:$0xff]
    %v4475 = vld [vmem:[#allocation8 + $0xe48] sm:$0xff]
    %v4476 = vld [vmem:[#allocation8 + $0xe50] sm:$0xff]
    %v4477 = vld [vmem:[#allocation8 + $0xe58] sm:$0xff]
    %v4478 = vld [vmem:[#allocation8 + $0xe60] sm:$0xff]
    %v4479 = vld [vmem:[#allocation8 + $0xe68] sm:$0xff]
    %v4480 = vld [vmem:[#allocation8 + $0xe70] sm:$0xff]
    %v4481 = vld [vmem:[#allocation8 + $0xe78] sm:$0xff]
    %v4482 = vld [vmem:[#allocation8 + $0xe80] sm:$0xff]
    %v4483 = vld [vmem:[#allocation8 + $0xe88] sm:$0xff]
    %v4484 = vld [vmem:[#allocation8 + $0xe90] sm:$0xff]
    %v4485 = vld [vmem:[#allocation8 + $0xe98] sm:$0xff]
    %v4486 = vld [vmem:[#allocation8 + $0xea0] sm:$0xff]
    %v4487 = vld [vmem:[#allocation8 + $0xea8] sm:$0xff]
    %v4488 = vld [vmem:[#allocation8 + $0xeb0] sm:$0xff]
    %v4489 = vld [vmem:[#allocation8 + $0xeb8] sm:$0xff]
    %v4490 = vld [vmem:[#allocation8 + $0xec0] sm:$0xff]
    %v4491 = vld [vmem:[#allocation8 + $0xec8] sm:$0xff]
    %v4492 = vld [vmem:[#allocation8 + $0xed0] sm:$0xff]
    %v4493 = vld [vmem:[#allocation8 + $0xed8] sm:$0xff]
    %v4494 = vld [vmem:[#allocation8 + $0xee0] sm:$0xff]
    %v4495 = vld [vmem:[#allocation8 + $0xee8] sm:$0xff]
    %v4496 = vld [vmem:[#allocation8 + $0xef0] sm:$0xff]
    %v4497 = vld [vmem:[#allocation8 + $0xef8] sm:$0xff]
    %v4498 = vld [vmem:[#allocation8 + $0xf00] sm:$0xff]
    %v4499 = vld [vmem:[#allocation8 + $0xf08] sm:$0xff]
    %v4500 = vld [vmem:[#allocation8 + $0xf10] sm:$0xff]
    %v4501 = vld [vmem:[#allocation8 + $0xf18] sm:$0xff]
    %v4502 = vld [vmem:[#allocation8 + $0xf20] sm:$0xff]
    %v4503 = vld [vmem:[#allocation8 + $0xf28] sm:$0xff]
    %v4504 = vld [vmem:[#allocation8 + $0xf30] sm:$0xff]
    %v4505 = vld [vmem:[#allocation8 + $0xf38] sm:$0xff]
    %v4506 = vld [vmem:[#allocation8 + $0xf40] sm:$0xff]
    %v4507 = vld [vmem:[#allocation8 + $0xf48] sm:$0xff]
    %v4508 = vld [vmem:[#allocation8 + $0xf50] sm:$0xff]
    %v4509 = vld [vmem:[#allocation8 + $0xf58] sm:$0xff]
    %v4510 = vld [vmem:[#allocation8 + $0xf60] sm:$0xff]
    %v4511 = vld [vmem:[#allocation8 + $0xf68] sm:$0xff]
    %v4512 = vld [vmem:[#allocation8 + $0xf70] sm:$0xff]
    %v4513 = vld [vmem:[#allocation8 + $0xf78] sm:$0xff]
    %v4514 = vld [vmem:[#allocation8 + $0xf80] sm:$0xff]
    %v4515 = vld [vmem:[#allocation8 + $0xf88] sm:$0xff]
    %v4516 = vld [vmem:[#allocation8 + $0xf90] sm:$0xff]
    %v4517 = vld [vmem:[#allocation8 + $0xf98] sm:$0xff]
    %v4518 = vld [vmem:[#allocation8 + $0xfa0] sm:$0xff]
    %v4519 = vld [vmem:[#allocation8 + $0xfa8] sm:$0xff]
    %v4520 = vld [vmem:[#allocation8 + $0xfb0] sm:$0xff]
    %v4521 = vld [vmem:[#allocation8 + $0xfb8] sm:$0xff]
    %v4522 = vld [vmem:[#allocation8 + $0xfc0] sm:$0xff]
    %v4523 = vld [vmem:[#allocation8 + $0xfc8] sm:$0xff]
    %v4524 = vld [vmem:[#allocation8 + $0xfd0] sm:$0xff]
    %v4525 = vld [vmem:[#allocation8 + $0xfd8] sm:$0xff]
    %v4526 = vld [vmem:[#allocation8 + $0xfe0] sm:$0xff]
    %v4527 = vld [vmem:[#allocation8 + $0xfe8] sm:$0xff]
    %v4528 = vld [vmem:[#allocation8 + $0xff0] sm:$0xff]
    %v4529 = vld [vmem:[#allocation8 + $0xff8] sm:$0xff]
    %v4530 = vld [vmem:[#allocation10] sm:$0xf]
    %v4532 = vlaneseq
    %v4533 = vshrl.u32 %v4532, 7
    %v4534 = vsub.s32 0, %v4533
    %v4535 = vrot.slane %v4530, %v4534
    %v4536 = vlaneseq
    %v4537 = vshrl.u32 %v4536, 7
    %v4538 = vsub.s32 1, %v4537
    %v4539 = vrot.slane %v4530, %v4538
    %v4540 = vlaneseq
    %v4541 = vshrl.u32 %v4540, 7
    %v4542 = vsub.s32 2, %v4541
    %v4543 = vrot.slane %v4530, %v4542
    %v4544 = vlaneseq
    %v4545 = vshrl.u32 %v4544, 7
    %v4546 = vsub.s32 3, %v4545
    %v4547 = vrot.slane %v4530, %v4546
    %v5064 = vunpack.c.l.b16 %v4018
    %v5065 = vunpack.c.h.b16 %v4018
    %v5066 = vunpack.c.l.b16 %v4019
    %v5067 = vunpack.c.h.b16 %v4019
    %v5068 = vunpack.c.l.b16 %v4020
    %v5069 = vunpack.c.h.b16 %v4020
    %v5070 = vunpack.c.l.b16 %v4021
    %v5071 = vunpack.c.h.b16 %v4021
    %v5072 = vunpack.c.l.b16 %v4022
    %v5073 = vunpack.c.h.b16 %v4022
    %v5074 = vunpack.c.l.b16 %v4023
    %v5075 = vunpack.c.h.b16 %v4023
    %v5076 = vunpack.c.l.b16 %v4024
    %v5077 = vunpack.c.h.b16 %v4024
    %v5078 = vunpack.c.l.b16 %v4025
    %v5079 = vunpack.c.h.b16 %v4025
    %v5080 = vunpack.c.l.b16 %v4026
    %v5081 = vunpack.c.h.b16 %v4026
    %v5082 = vunpack.c.l.b16 %v4027
    %v5083 = vunpack.c.h.b16 %v4027
    %v5084 = vunpack.c.l.b16 %v4028
    %v5085 = vunpack.c.h.b16 %v4028
    %v5086 = vunpack.c.l.b16 %v4029
    %v5087 = vunpack.c.h.b16 %v4029
    %v5088 = vunpack.c.l.b16 %v4030
    %v5089 = vunpack.c.h.b16 %v4030
    %v5090 = vunpack.c.l.b16 %v4031
    %v5091 = vunpack.c.h.b16 %v4031
    %v5092 = vunpack.c.l.b16 %v4032
    %v5093 = vunpack.c.h.b16 %v4032
    %v5094 = vunpack.c.l.b16 %v4033
    %v5095 = vunpack.c.h.b16 %v4033
    %v5096 = vunpack.c.l.b16 %v4034
    %v5097 = vunpack.c.h.b16 %v4034
    %v5098 = vunpack.c.l.b16 %v4035
    %v5099 = vunpack.c.h.b16 %v4035
    %v5100 = vunpack.c.l.b16 %v4036
    %v5101 = vunpack.c.h.b16 %v4036
    %v5102 = vunpack.c.l.b16 %v4037
    %v5103 = vunpack.c.h.b16 %v4037
    %v5104 = vunpack.c.l.b16 %v4038
    %v5105 = vunpack.c.h.b16 %v4038
    %v5106 = vunpack.c.l.b16 %v4039
    %v5107 = vunpack.c.h.b16 %v4039
    %v5108 = vunpack.c.l.b16 %v4040
    %v5109 = vunpack.c.h.b16 %v4040
    %v5110 = vunpack.c.l.b16 %v4041
    %v5111 = vunpack.c.h.b16 %v4041
    %v5112 = vunpack.c.l.b16 %v4042
    %v5113 = vunpack.c.h.b16 %v4042
    %v5114 = vunpack.c.l.b16 %v4043
    %v5115 = vunpack.c.h.b16 %v4043
    %v5116 = vunpack.c.l.b16 %v4044
    %v5117 = vunpack.c.h.b16 %v4044
    %v5118 = vunpack.c.l.b16 %v4045
    %v5119 = vunpack.c.h.b16 %v4045
    %v5120 = vunpack.c.l.b16 %v4046
    %v5121 = vunpack.c.h.b16 %v4046
    %v5122 = vunpack.c.l.b16 %v4047
    %v5123 = vunpack.c.h.b16 %v4047
    %v5124 = vunpack.c.l.b16 %v4048
    %v5125 = vunpack.c.h.b16 %v4048
    %v5126 = vunpack.c.l.b16 %v4049
    %v5127 = vunpack.c.h.b16 %v4049
    %v5128 = vunpack.c.l.b16 %v4050
    %v5129 = vunpack.c.h.b16 %v4050
    %v5130 = vunpack.c.l.b16 %v4051
    %v5131 = vunpack.c.h.b16 %v4051
    %v5132 = vunpack.c.l.b16 %v4052
    %v5133 = vunpack.c.h.b16 %v4052
    %v5134 = vunpack.c.l.b16 %v4053
    %v5135 = vunpack.c.h.b16 %v4053
    %v5136 = vunpack.c.l.b16 %v4054
    %v5137 = vunpack.c.h.b16 %v4054
    %v5138 = vunpack.c.l.b16 %v4055
    %v5139 = vunpack.c.h.b16 %v4055
    %v5140 = vunpack.c.l.b16 %v4056
    %v5141 = vunpack.c.h.b16 %v4056
    %v5142 = vunpack.c.l.b16 %v4057
    %v5143 = vunpack.c.h.b16 %v4057
    %v5144 = vunpack.c.l.b16 %v4058
    %v5145 = vunpack.c.h.b16 %v4058
    %v5146 = vunpack.c.l.b16 %v4059
    %v5147 = vunpack.c.h.b16 %v4059
    %v5148 = vunpack.c.l.b16 %v4060
    %v5149 = vunpack.c.h.b16 %v4060
    %v5150 = vunpack.c.l.b16 %v4061
    %v5151 = vunpack.c.h.b16 %v4061
    %v5152 = vunpack.c.l.b16 %v4062
    %v5153 = vunpack.c.h.b16 %v4062
    %v5154 = vunpack.c.l.b16 %v4063
    %v5155 = vunpack.c.h.b16 %v4063
    %v5156 = vunpack.c.l.b16 %v4064
    %v5157 = vunpack.c.h.b16 %v4064
    %v5158 = vunpack.c.l.b16 %v4065
    %v5159 = vunpack.c.h.b16 %v4065
    %v5160 = vunpack.c.l.b16 %v4066
    %v5161 = vunpack.c.h.b16 %v4066
    %v5162 = vunpack.c.l.b16 %v4067
    %v5163 = vunpack.c.h.b16 %v4067
    %v5164 = vunpack.c.l.b16 %v4068
    %v5165 = vunpack.c.h.b16 %v4068
    %v5166 = vunpack.c.l.b16 %v4069
    %v5167 = vunpack.c.h.b16 %v4069
    %v5168 = vunpack.c.l.b16 %v4070
    %v5169 = vunpack.c.h.b16 %v4070
    %v5170 = vunpack.c.l.b16 %v4071
    %v5171 = vunpack.c.h.b16 %v4071
    %v5172 = vunpack.c.l.b16 %v4072
    %v5173 = vunpack.c.h.b16 %v4072
    %v5174 = vunpack.c.l.b16 %v4073
    %v5175 = vunpack.c.h.b16 %v4073
    %v5176 = vunpack.c.l.b16 %v4074
    %v5177 = vunpack.c.h.b16 %v4074
    %v5178 = vunpack.c.l.b16 %v4075
    %v5179 = vunpack.c.h.b16 %v4075
    %v5180 = vunpack.c.l.b16 %v4076
    %v5181 = vunpack.c.h.b16 %v4076
    %v5182 = vunpack.c.l.b16 %v4077
    %v5183 = vunpack.c.h.b16 %v4077
    %v5184 = vunpack.c.l.b16 %v4078
    %v5185 = vunpack.c.h.b16 %v4078
    %v5186 = vunpack.c.l.b16 %v4079
    %v5187 = vunpack.c.h.b16 %v4079
    %v5188 = vunpack.c.l.b16 %v4080
    %v5189 = vunpack.c.h.b16 %v4080
    %v5190 = vunpack.c.l.b16 %v4081
    %v5191 = vunpack.c.h.b16 %v4081
    %v5192 = vunpack.c.l.b16 %v4082
    %v5193 = vunpack.c.h.b16 %v4082
    %v5194 = vunpack.c.l.b16 %v4083
    %v5195 = vunpack.c.h.b16 %v4083
    %v5196 = vunpack.c.l.b16 %v4084
    %v5197 = vunpack.c.h.b16 %v4084
    %v5198 = vunpack.c.l.b16 %v4085
    %v5199 = vunpack.c.h.b16 %v4085
    %v5200 = vunpack.c.l.b16 %v4086
    %v5201 = vunpack.c.h.b16 %v4086
    %v5202 = vunpack.c.l.b16 %v4087
    %v5203 = vunpack.c.h.b16 %v4087
    %v5204 = vunpack.c.l.b16 %v4088
    %v5205 = vunpack.c.h.b16 %v4088
    %v5206 = vunpack.c.l.b16 %v4089
    %v5207 = vunpack.c.h.b16 %v4089
    %v5208 = vunpack.c.l.b16 %v4090
    %v5209 = vunpack.c.h.b16 %v4090
    %v5210 = vunpack.c.l.b16 %v4091
    %v5211 = vunpack.c.h.b16 %v4091
    %v5212 = vunpack.c.l.b16 %v4092
    %v5213 = vunpack.c.h.b16 %v4092
    %v5214 = vunpack.c.l.b16 %v4093
    %v5215 = vunpack.c.h.b16 %v4093
    %v5216 = vunpack.c.l.b16 %v4094
    %v5217 = vunpack.c.h.b16 %v4094
    %v5218 = vunpack.c.l.b16 %v4095
    %v5219 = vunpack.c.h.b16 %v4095
    %v5220 = vunpack.c.l.b16 %v4096
    %v5221 = vunpack.c.h.b16 %v4096
    %v5222 = vunpack.c.l.b16 %v4097
    %v5223 = vunpack.c.h.b16 %v4097
    %v5224 = vunpack.c.l.b16 %v4098
    %v5225 = vunpack.c.h.b16 %v4098
    %v5226 = vunpack.c.l.b16 %v4099
    %v5227 = vunpack.c.h.b16 %v4099
    %v5228 = vunpack.c.l.b16 %v4100
    %v5229 = vunpack.c.h.b16 %v4100
    %v5230 = vunpack.c.l.b16 %v4101
    %v5231 = vunpack.c.h.b16 %v4101
    %v5232 = vunpack.c.l.b16 %v4102
    %v5233 = vunpack.c.h.b16 %v4102
    %v5234 = vunpack.c.l.b16 %v4103
    %v5235 = vunpack.c.h.b16 %v4103
    %v5236 = vunpack.c.l.b16 %v4104
    %v5237 = vunpack.c.h.b16 %v4104
    %v5238 = vunpack.c.l.b16 %v4105
    %v5239 = vunpack.c.h.b16 %v4105
    %v5240 = vunpack.c.l.b16 %v4106
    %v5241 = vunpack.c.h.b16 %v4106
    %v5242 = vunpack.c.l.b16 %v4107
    %v5243 = vunpack.c.h.b16 %v4107
    %v5244 = vunpack.c.l.b16 %v4108
    %v5245 = vunpack.c.h.b16 %v4108
    %v5246 = vunpack.c.l.b16 %v4109
    %v5247 = vunpack.c.h.b16 %v4109
    %v5248 = vunpack.c.l.b16 %v4110
    %v5249 = vunpack.c.h.b16 %v4110
    %v5250 = vunpack.c.l.b16 %v4111
    %v5251 = vunpack.c.h.b16 %v4111
    %v5252 = vunpack.c.l.b16 %v4112
    %v5253 = vunpack.c.h.b16 %v4112
    %v5254 = vunpack.c.l.b16 %v4113
    %v5255 = vunpack.c.h.b16 %v4113
    %v5256 = vunpack.c.l.b16 %v4114
    %v5257 = vunpack.c.h.b16 %v4114
    %v5258 = vunpack.c.l.b16 %v4115
    %v5259 = vunpack.c.h.b16 %v4115
    %v5260 = vunpack.c.l.b16 %v4116
    %v5261 = vunpack.c.h.b16 %v4116
    %v5262 = vunpack.c.l.b16 %v4117
    %v5263 = vunpack.c.h.b16 %v4117
    %v5264 = vunpack.c.l.b16 %v4118
    %v5265 = vunpack.c.h.b16 %v4118
    %v5266 = vunpack.c.l.b16 %v4119
    %v5267 = vunpack.c.h.b16 %v4119
    %v5268 = vunpack.c.l.b16 %v4120
    %v5269 = vunpack.c.h.b16 %v4120
    %v5270 = vunpack.c.l.b16 %v4121
    %v5271 = vunpack.c.h.b16 %v4121
    %v5272 = vunpack.c.l.b16 %v4122
    %v5273 = vunpack.c.h.b16 %v4122
    %v5274 = vunpack.c.l.b16 %v4123
    %v5275 = vunpack.c.h.b16 %v4123
    %v5276 = vunpack.c.l.b16 %v4124
    %v5277 = vunpack.c.h.b16 %v4124
    %v5278 = vunpack.c.l.b16 %v4125
    %v5279 = vunpack.c.h.b16 %v4125
    %v5280 = vunpack.c.l.b16 %v4126
    %v5281 = vunpack.c.h.b16 %v4126
    %v5282 = vunpack.c.l.b16 %v4127
    %v5283 = vunpack.c.h.b16 %v4127
    %v5284 = vunpack.c.l.b16 %v4128
    %v5285 = vunpack.c.h.b16 %v4128
    %v5286 = vunpack.c.l.b16 %v4129
    %v5287 = vunpack.c.h.b16 %v4129
    %v5288 = vunpack.c.l.b16 %v4130
    %v5289 = vunpack.c.h.b16 %v4130
    %v5290 = vunpack.c.l.b16 %v4131
    %v5291 = vunpack.c.h.b16 %v4131
    %v5292 = vunpack.c.l.b16 %v4132
    %v5293 = vunpack.c.h.b16 %v4132
    %v5294 = vunpack.c.l.b16 %v4133
    %v5295 = vunpack.c.h.b16 %v4133
    %v5296 = vunpack.c.l.b16 %v4134
    %v5297 = vunpack.c.h.b16 %v4134
    %v5298 = vunpack.c.l.b16 %v4135
    %v5299 = vunpack.c.h.b16 %v4135
    %v5300 = vunpack.c.l.b16 %v4136
    %v5301 = vunpack.c.h.b16 %v4136
    %v5302 = vunpack.c.l.b16 %v4137
    %v5303 = vunpack.c.h.b16 %v4137
    %v5304 = vunpack.c.l.b16 %v4138
    %v5305 = vunpack.c.h.b16 %v4138
    %v5306 = vunpack.c.l.b16 %v4139
    %v5307 = vunpack.c.h.b16 %v4139
    %v5308 = vunpack.c.l.b16 %v4140
    %v5309 = vunpack.c.h.b16 %v4140
    %v5310 = vunpack.c.l.b16 %v4141
    %v5311 = vunpack.c.h.b16 %v4141
    %v5312 = vunpack.c.l.b16 %v4142
    %v5313 = vunpack.c.h.b16 %v4142
    %v5314 = vunpack.c.l.b16 %v4143
    %v5315 = vunpack.c.h.b16 %v4143
    %v5316 = vunpack.c.l.b16 %v4144
    %v5317 = vunpack.c.h.b16 %v4144
    %v5318 = vunpack.c.l.b16 %v4145
    %v5319 = vunpack.c.h.b16 %v4145
    %v5320 = vunpack.c.l.b16 %v4146
    %v5321 = vunpack.c.h.b16 %v4146
    %v5322 = vunpack.c.l.b16 %v4147
    %v5323 = vunpack.c.h.b16 %v4147
    %v5324 = vunpack.c.l.b16 %v4148
    %v5325 = vunpack.c.h.b16 %v4148
    %v5326 = vunpack.c.l.b16 %v4149
    %v5327 = vunpack.c.h.b16 %v4149
    %v5328 = vunpack.c.l.b16 %v4150
    %v5329 = vunpack.c.h.b16 %v4150
    %v5330 = vunpack.c.l.b16 %v4151
    %v5331 = vunpack.c.h.b16 %v4151
    %v5332 = vunpack.c.l.b16 %v4152
    %v5333 = vunpack.c.h.b16 %v4152
    %v5334 = vunpack.c.l.b16 %v4153
    %v5335 = vunpack.c.h.b16 %v4153
    %v5336 = vunpack.c.l.b16 %v4154
    %v5337 = vunpack.c.h.b16 %v4154
    %v5338 = vunpack.c.l.b16 %v4155
    %v5339 = vunpack.c.h.b16 %v4155
    %v5340 = vunpack.c.l.b16 %v4156
    %v5341 = vunpack.c.h.b16 %v4156
    %v5342 = vunpack.c.l.b16 %v4157
    %v5343 = vunpack.c.h.b16 %v4157
    %v5344 = vunpack.c.l.b16 %v4158
    %v5345 = vunpack.c.h.b16 %v4158
    %v5346 = vunpack.c.l.b16 %v4159
    %v5347 = vunpack.c.h.b16 %v4159
    %v5348 = vunpack.c.l.b16 %v4160
    %v5349 = vunpack.c.h.b16 %v4160
    %v5350 = vunpack.c.l.b16 %v4161
    %v5351 = vunpack.c.h.b16 %v4161
    %v5352 = vunpack.c.l.b16 %v4162
    %v5353 = vunpack.c.h.b16 %v4162
    %v5354 = vunpack.c.l.b16 %v4163
    %v5355 = vunpack.c.h.b16 %v4163
    %v5356 = vunpack.c.l.b16 %v4164
    %v5357 = vunpack.c.h.b16 %v4164
    %v5358 = vunpack.c.l.b16 %v4165
    %v5359 = vunpack.c.h.b16 %v4165
    %v5360 = vunpack.c.l.b16 %v4166
    %v5361 = vunpack.c.h.b16 %v4166
    %v5362 = vunpack.c.l.b16 %v4167
    %v5363 = vunpack.c.h.b16 %v4167
    %v5364 = vunpack.c.l.b16 %v4168
    %v5365 = vunpack.c.h.b16 %v4168
    %v5366 = vunpack.c.l.b16 %v4169
    %v5367 = vunpack.c.h.b16 %v4169
    %v5368 = vunpack.c.l.b16 %v4170
    %v5369 = vunpack.c.h.b16 %v4170
    %v5370 = vunpack.c.l.b16 %v4171
    %v5371 = vunpack.c.h.b16 %v4171
    %v5372 = vunpack.c.l.b16 %v4172
    %v5373 = vunpack.c.h.b16 %v4172
    %v5374 = vunpack.c.l.b16 %v4173
    %v5375 = vunpack.c.h.b16 %v4173
    %v5376 = vunpack.c.l.b16 %v4174
    %v5377 = vunpack.c.h.b16 %v4174
    %v5378 = vunpack.c.l.b16 %v4175
    %v5379 = vunpack.c.h.b16 %v4175
    %v5380 = vunpack.c.l.b16 %v4176
    %v5381 = vunpack.c.h.b16 %v4176
    %v5382 = vunpack.c.l.b16 %v4177
    %v5383 = vunpack.c.h.b16 %v4177
    %v5384 = vunpack.c.l.b16 %v4178
    %v5385 = vunpack.c.h.b16 %v4178
    %v5386 = vunpack.c.l.b16 %v4179
    %v5387 = vunpack.c.h.b16 %v4179
    %v5388 = vunpack.c.l.b16 %v4180
    %v5389 = vunpack.c.h.b16 %v4180
    %v5390 = vunpack.c.l.b16 %v4181
    %v5391 = vunpack.c.h.b16 %v4181
    %v5392 = vunpack.c.l.b16 %v4182
    %v5393 = vunpack.c.h.b16 %v4182
    %v5394 = vunpack.c.l.b16 %v4183
    %v5395 = vunpack.c.h.b16 %v4183
    %v5396 = vunpack.c.l.b16 %v4184
    %v5397 = vunpack.c.h.b16 %v4184
    %v5398 = vunpack.c.l.b16 %v4185
    %v5399 = vunpack.c.h.b16 %v4185
    %v5400 = vunpack.c.l.b16 %v4186
    %v5401 = vunpack.c.h.b16 %v4186
    %v5402 = vunpack.c.l.b16 %v4187
    %v5403 = vunpack.c.h.b16 %v4187
    %v5404 = vunpack.c.l.b16 %v4188
    %v5405 = vunpack.c.h.b16 %v4188
    %v5406 = vunpack.c.l.b16 %v4189
    %v5407 = vunpack.c.h.b16 %v4189
    %v5408 = vunpack.c.l.b16 %v4190
    %v5409 = vunpack.c.h.b16 %v4190
    %v5410 = vunpack.c.l.b16 %v4191
    %v5411 = vunpack.c.h.b16 %v4191
    %v5412 = vunpack.c.l.b16 %v4192
    %v5413 = vunpack.c.h.b16 %v4192
    %v5414 = vunpack.c.l.b16 %v4193
    %v5415 = vunpack.c.h.b16 %v4193
    %v5416 = vunpack.c.l.b16 %v4194
    %v5417 = vunpack.c.h.b16 %v4194
    %v5418 = vunpack.c.l.b16 %v4195
    %v5419 = vunpack.c.h.b16 %v4195
    %v5420 = vunpack.c.l.b16 %v4196
    %v5421 = vunpack.c.h.b16 %v4196
    %v5422 = vunpack.c.l.b16 %v4197
    %v5423 = vunpack.c.h.b16 %v4197
    %v5424 = vunpack.c.l.b16 %v4198
    %v5425 = vunpack.c.h.b16 %v4198
    %v5426 = vunpack.c.l.b16 %v4199
    %v5427 = vunpack.c.h.b16 %v4199
    %v5428 = vunpack.c.l.b16 %v4200
    %v5429 = vunpack.c.h.b16 %v4200
    %v5430 = vunpack.c.l.b16 %v4201
    %v5431 = vunpack.c.h.b16 %v4201
    %v5432 = vunpack.c.l.b16 %v4202
    %v5433 = vunpack.c.h.b16 %v4202
    %v5434 = vunpack.c.l.b16 %v4203
    %v5435 = vunpack.c.h.b16 %v4203
    %v5436 = vunpack.c.l.b16 %v4204
    %v5437 = vunpack.c.h.b16 %v4204
    %v5438 = vunpack.c.l.b16 %v4205
    %v5439 = vunpack.c.h.b16 %v4205
    %v5440 = vunpack.c.l.b16 %v4206
    %v5441 = vunpack.c.h.b16 %v4206
    %v5442 = vunpack.c.l.b16 %v4207
    %v5443 = vunpack.c.h.b16 %v4207
    %v5444 = vunpack.c.l.b16 %v4208
    %v5445 = vunpack.c.h.b16 %v4208
    %v5446 = vunpack.c.l.b16 %v4209
    %v5447 = vunpack.c.h.b16 %v4209
    %v5448 = vunpack.c.l.b16 %v4210
    %v5449 = vunpack.c.h.b16 %v4210
    %v5450 = vunpack.c.l.b16 %v4211
    %v5451 = vunpack.c.h.b16 %v4211
    %v5452 = vunpack.c.l.b16 %v4212
    %v5453 = vunpack.c.h.b16 %v4212
    %v5454 = vunpack.c.l.b16 %v4213
    %v5455 = vunpack.c.h.b16 %v4213
    %v5456 = vunpack.c.l.b16 %v4214
    %v5457 = vunpack.c.h.b16 %v4214
    %v5458 = vunpack.c.l.b16 %v4215
    %v5459 = vunpack.c.h.b16 %v4215
    %v5460 = vunpack.c.l.b16 %v4216
    %v5461 = vunpack.c.h.b16 %v4216
    %v5462 = vunpack.c.l.b16 %v4217
    %v5463 = vunpack.c.h.b16 %v4217
    %v5464 = vunpack.c.l.b16 %v4218
    %v5465 = vunpack.c.h.b16 %v4218
    %v5466 = vunpack.c.l.b16 %v4219
    %v5467 = vunpack.c.h.b16 %v4219
    %v5468 = vunpack.c.l.b16 %v4220
    %v5469 = vunpack.c.h.b16 %v4220
    %v5470 = vunpack.c.l.b16 %v4221
    %v5471 = vunpack.c.h.b16 %v4221
    %v5472 = vunpack.c.l.b16 %v4222
    %v5473 = vunpack.c.h.b16 %v4222
    %v5474 = vunpack.c.l.b16 %v4223
    %v5475 = vunpack.c.h.b16 %v4223
    %v5476 = vunpack.c.l.b16 %v4224
    %v5477 = vunpack.c.h.b16 %v4224
    %v5478 = vunpack.c.l.b16 %v4225
    %v5479 = vunpack.c.h.b16 %v4225
    %v5480 = vunpack.c.l.b16 %v4226
    %v5481 = vunpack.c.h.b16 %v4226
    %v5482 = vunpack.c.l.b16 %v4227
    %v5483 = vunpack.c.h.b16 %v4227
    %v5484 = vunpack.c.l.b16 %v4228
    %v5485 = vunpack.c.h.b16 %v4228
    %v5486 = vunpack.c.l.b16 %v4229
    %v5487 = vunpack.c.h.b16 %v4229
    %v5488 = vunpack.c.l.b16 %v4230
    %v5489 = vunpack.c.h.b16 %v4230
    %v5490 = vunpack.c.l.b16 %v4231
    %v5491 = vunpack.c.h.b16 %v4231
    %v5492 = vunpack.c.l.b16 %v4232
    %v5493 = vunpack.c.h.b16 %v4232
    %v5494 = vunpack.c.l.b16 %v4233
    %v5495 = vunpack.c.h.b16 %v4233
    %v5496 = vunpack.c.l.b16 %v4234
    %v5497 = vunpack.c.h.b16 %v4234
    %v5498 = vunpack.c.l.b16 %v4235
    %v5499 = vunpack.c.h.b16 %v4235
    %v5500 = vunpack.c.l.b16 %v4236
    %v5501 = vunpack.c.h.b16 %v4236
    %v5502 = vunpack.c.l.b16 %v4237
    %v5503 = vunpack.c.h.b16 %v4237
    %v5504 = vunpack.c.l.b16 %v4238
    %v5505 = vunpack.c.h.b16 %v4238
    %v5506 = vunpack.c.l.b16 %v4239
    %v5507 = vunpack.c.h.b16 %v4239
    %v5508 = vunpack.c.l.b16 %v4240
    %v5509 = vunpack.c.h.b16 %v4240
    %v5510 = vunpack.c.l.b16 %v4241
    %v5511 = vunpack.c.h.b16 %v4241
    %v5512 = vunpack.c.l.b16 %v4242
    %v5513 = vunpack.c.h.b16 %v4242
    %v5514 = vunpack.c.l.b16 %v4243
    %v5515 = vunpack.c.h.b16 %v4243
    %v5516 = vunpack.c.l.b16 %v4244
    %v5517 = vunpack.c.h.b16 %v4244
    %v5518 = vunpack.c.l.b16 %v4245
    %v5519 = vunpack.c.h.b16 %v4245
    %v5520 = vunpack.c.l.b16 %v4246
    %v5521 = vunpack.c.h.b16 %v4246
    %v5522 = vunpack.c.l.b16 %v4247
    %v5523 = vunpack.c.h.b16 %v4247
    %v5524 = vunpack.c.l.b16 %v4248
    %v5525 = vunpack.c.h.b16 %v4248
    %v5526 = vunpack.c.l.b16 %v4249
    %v5527 = vunpack.c.h.b16 %v4249
    %v5528 = vunpack.c.l.b16 %v4250
    %v5529 = vunpack.c.h.b16 %v4250
    %v5530 = vunpack.c.l.b16 %v4251
    %v5531 = vunpack.c.h.b16 %v4251
    %v5532 = vunpack.c.l.b16 %v4252
    %v5533 = vunpack.c.h.b16 %v4252
    %v5534 = vunpack.c.l.b16 %v4253
    %v5535 = vunpack.c.h.b16 %v4253
    %v5536 = vunpack.c.l.b16 %v4254
    %v5537 = vunpack.c.h.b16 %v4254
    %v5538 = vunpack.c.l.b16 %v4255
    %v5539 = vunpack.c.h.b16 %v4255
    %v5540 = vunpack.c.l.b16 %v4256
    %v5541 = vunpack.c.h.b16 %v4256
    %v5542 = vunpack.c.l.b16 %v4257
    %v5543 = vunpack.c.h.b16 %v4257
    %v5544 = vunpack.c.l.b16 %v4258
    %v5545 = vunpack.c.h.b16 %v4258
    %v5546 = vunpack.c.l.b16 %v4259
    %v5547 = vunpack.c.h.b16 %v4259
    %v5548 = vunpack.c.l.b16 %v4260
    %v5549 = vunpack.c.h.b16 %v4260
    %v5550 = vunpack.c.l.b16 %v4261
    %v5551 = vunpack.c.h.b16 %v4261
    %v5552 = vunpack.c.l.b16 %v4262
    %v5553 = vunpack.c.h.b16 %v4262
    %v5554 = vunpack.c.l.b16 %v4263
    %v5555 = vunpack.c.h.b16 %v4263
    %v5556 = vunpack.c.l.b16 %v4264
    %v5557 = vunpack.c.h.b16 %v4264
    %v5558 = vunpack.c.l.b16 %v4265
    %v5559 = vunpack.c.h.b16 %v4265
    %v5560 = vunpack.c.l.b16 %v4266
    %v5561 = vunpack.c.h.b16 %v4266
    %v5562 = vunpack.c.l.b16 %v4267
    %v5563 = vunpack.c.h.b16 %v4267
    %v5564 = vunpack.c.l.b16 %v4268
    %v5565 = vunpack.c.h.b16 %v4268
    %v5566 = vunpack.c.l.b16 %v4269
    %v5567 = vunpack.c.h.b16 %v4269
    %v5568 = vunpack.c.l.b16 %v4270
    %v5569 = vunpack.c.h.b16 %v4270
    %v5570 = vunpack.c.l.b16 %v4271
    %v5571 = vunpack.c.h.b16 %v4271
    %v5572 = vunpack.c.l.b16 %v4272
    %v5573 = vunpack.c.h.b16 %v4272
    %v5574 = vunpack.c.l.b16 %v4273
    %v5575 = vunpack.c.h.b16 %v4273
    %v5576 = vunpack.c.l.b16 %v4274
    %v5577 = vunpack.c.h.b16 %v4274
    %v5578 = vunpack.c.l.b16 %v4275
    %v5579 = vunpack.c.h.b16 %v4275
    %v5580 = vunpack.c.l.b16 %v4276
    %v5581 = vunpack.c.h.b16 %v4276
    %v5582 = vunpack.c.l.b16 %v4277
    %v5583 = vunpack.c.h.b16 %v4277
    %v5584 = vunpack.c.l.b16 %v4278
    %v5585 = vunpack.c.h.b16 %v4278
    %v5586 = vunpack.c.l.b16 %v4279
    %v5587 = vunpack.c.h.b16 %v4279
    %v5588 = vunpack.c.l.b16 %v4280
    %v5589 = vunpack.c.h.b16 %v4280
    %v5590 = vunpack.c.l.b16 %v4281
    %v5591 = vunpack.c.h.b16 %v4281
    %v5592 = vunpack.c.l.b16 %v4282
    %v5593 = vunpack.c.h.b16 %v4282
    %v5594 = vunpack.c.l.b16 %v4283
    %v5595 = vunpack.c.h.b16 %v4283
    %v5596 = vunpack.c.l.b16 %v4284
    %v5597 = vunpack.c.h.b16 %v4284
    %v5598 = vunpack.c.l.b16 %v4285
    %v5599 = vunpack.c.h.b16 %v4285
    %v5600 = vunpack.c.l.b16 %v4286
    %v5601 = vunpack.c.h.b16 %v4286
    %v5602 = vunpack.c.l.b16 %v4287
    %v5603 = vunpack.c.h.b16 %v4287
    %v5604 = vunpack.c.l.b16 %v4288
    %v5605 = vunpack.c.h.b16 %v4288
    %v5606 = vunpack.c.l.b16 %v4289
    %v5607 = vunpack.c.h.b16 %v4289
    %v5608 = vunpack.c.l.b16 %v4290
    %v5609 = vunpack.c.h.b16 %v4290
    %v5610 = vunpack.c.l.b16 %v4291
    %v5611 = vunpack.c.h.b16 %v4291
    %v5612 = vunpack.c.l.b16 %v4292
    %v5613 = vunpack.c.h.b16 %v4292
    %v5614 = vunpack.c.l.b16 %v4293
    %v5615 = vunpack.c.h.b16 %v4293
    %v5616 = vunpack.c.l.b16 %v4294
    %v5617 = vunpack.c.h.b16 %v4294
    %v5618 = vunpack.c.l.b16 %v4295
    %v5619 = vunpack.c.h.b16 %v4295
    %v5620 = vunpack.c.l.b16 %v4296
    %v5621 = vunpack.c.h.b16 %v4296
    %v5622 = vunpack.c.l.b16 %v4297
    %v5623 = vunpack.c.h.b16 %v4297
    %v5624 = vunpack.c.l.b16 %v4298
    %v5625 = vunpack.c.h.b16 %v4298
    %v5626 = vunpack.c.l.b16 %v4299
    %v5627 = vunpack.c.h.b16 %v4299
    %v5628 = vunpack.c.l.b16 %v4300
    %v5629 = vunpack.c.h.b16 %v4300
    %v5630 = vunpack.c.l.b16 %v4301
    %v5631 = vunpack.c.h.b16 %v4301
    %v5632 = vunpack.c.l.b16 %v4302
    %v5633 = vunpack.c.h.b16 %v4302
    %v5634 = vunpack.c.l.b16 %v4303
    %v5635 = vunpack.c.h.b16 %v4303
    %v5636 = vunpack.c.l.b16 %v4304
    %v5637 = vunpack.c.h.b16 %v4304
    %v5638 = vunpack.c.l.b16 %v4305
    %v5639 = vunpack.c.h.b16 %v4305
    %v5640 = vunpack.c.l.b16 %v4306
    %v5641 = vunpack.c.h.b16 %v4306
    %v5642 = vunpack.c.l.b16 %v4307
    %v5643 = vunpack.c.h.b16 %v4307
    %v5644 = vunpack.c.l.b16 %v4308
    %v5645 = vunpack.c.h.b16 %v4308
    %v5646 = vunpack.c.l.b16 %v4309
    %v5647 = vunpack.c.h.b16 %v4309
    %v5648 = vunpack.c.l.b16 %v4310
    %v5649 = vunpack.c.h.b16 %v4310
    %v5650 = vunpack.c.l.b16 %v4311
    %v5651 = vunpack.c.h.b16 %v4311
    %v5652 = vunpack.c.l.b16 %v4312
    %v5653 = vunpack.c.h.b16 %v4312
    %v5654 = vunpack.c.l.b16 %v4313
    %v5655 = vunpack.c.h.b16 %v4313
    %v5656 = vunpack.c.l.b16 %v4314
    %v5657 = vunpack.c.h.b16 %v4314
    %v5658 = vunpack.c.l.b16 %v4315
    %v5659 = vunpack.c.h.b16 %v4315
    %v5660 = vunpack.c.l.b16 %v4316
    %v5661 = vunpack.c.h.b16 %v4316
    %v5662 = vunpack.c.l.b16 %v4317
    %v5663 = vunpack.c.h.b16 %v4317
    %v5664 = vunpack.c.l.b16 %v4318
    %v5665 = vunpack.c.h.b16 %v4318
    %v5666 = vunpack.c.l.b16 %v4319
    %v5667 = vunpack.c.h.b16 %v4319
    %v5668 = vunpack.c.l.b16 %v4320
    %v5669 = vunpack.c.h.b16 %v4320
    %v5670 = vunpack.c.l.b16 %v4321
    %v5671 = vunpack.c.h.b16 %v4321
    %v5672 = vunpack.c.l.b16 %v4322
    %v5673 = vunpack.c.h.b16 %v4322
    %v5674 = vunpack.c.l.b16 %v4323
    %v5675 = vunpack.c.h.b16 %v4323
    %v5676 = vunpack.c.l.b16 %v4324
    %v5677 = vunpack.c.h.b16 %v4324
    %v5678 = vunpack.c.l.b16 %v4325
    %v5679 = vunpack.c.h.b16 %v4325
    %v5680 = vunpack.c.l.b16 %v4326
    %v5681 = vunpack.c.h.b16 %v4326
    %v5682 = vunpack.c.l.b16 %v4327
    %v5683 = vunpack.c.h.b16 %v4327
    %v5684 = vunpack.c.l.b16 %v4328
    %v5685 = vunpack.c.h.b16 %v4328
    %v5686 = vunpack.c.l.b16 %v4329
    %v5687 = vunpack.c.h.b16 %v4329
    %v5688 = vunpack.c.l.b16 %v4330
    %v5689 = vunpack.c.h.b16 %v4330
    %v5690 = vunpack.c.l.b16 %v4331
    %v5691 = vunpack.c.h.b16 %v4331
    %v5692 = vunpack.c.l.b16 %v4332
    %v5693 = vunpack.c.h.b16 %v4332
    %v5694 = vunpack.c.l.b16 %v4333
    %v5695 = vunpack.c.h.b16 %v4333
    %v5696 = vunpack.c.l.b16 %v4334
    %v5697 = vunpack.c.h.b16 %v4334
    %v5698 = vunpack.c.l.b16 %v4335
    %v5699 = vunpack.c.h.b16 %v4335
    %v5700 = vunpack.c.l.b16 %v4336
    %v5701 = vunpack.c.h.b16 %v4336
    %v5702 = vunpack.c.l.b16 %v4337
    %v5703 = vunpack.c.h.b16 %v4337
    %v5704 = vunpack.c.l.b16 %v4338
    %v5705 = vunpack.c.h.b16 %v4338
    %v5706 = vunpack.c.l.b16 %v4339
    %v5707 = vunpack.c.h.b16 %v4339
    %v5708 = vunpack.c.l.b16 %v4340
    %v5709 = vunpack.c.h.b16 %v4340
    %v5710 = vunpack.c.l.b16 %v4341
    %v5711 = vunpack.c.h.b16 %v4341
    %v5712 = vunpack.c.l.b16 %v4342
    %v5713 = vunpack.c.h.b16 %v4342
    %v5714 = vunpack.c.l.b16 %v4343
    %v5715 = vunpack.c.h.b16 %v4343
    %v5716 = vunpack.c.l.b16 %v4344
    %v5717 = vunpack.c.h.b16 %v4344
    %v5718 = vunpack.c.l.b16 %v4345
    %v5719 = vunpack.c.h.b16 %v4345
    %v5720 = vunpack.c.l.b16 %v4346
    %v5721 = vunpack.c.h.b16 %v4346
    %v5722 = vunpack.c.l.b16 %v4347
    %v5723 = vunpack.c.h.b16 %v4347
    %v5724 = vunpack.c.l.b16 %v4348
    %v5725 = vunpack.c.h.b16 %v4348
    %v5726 = vunpack.c.l.b16 %v4349
    %v5727 = vunpack.c.h.b16 %v4349
    %v5728 = vunpack.c.l.b16 %v4350
    %v5729 = vunpack.c.h.b16 %v4350
    %v5730 = vunpack.c.l.b16 %v4351
    %v5731 = vunpack.c.h.b16 %v4351
    %v5732 = vunpack.c.l.b16 %v4352
    %v5733 = vunpack.c.h.b16 %v4352
    %v5734 = vunpack.c.l.b16 %v4353
    %v5735 = vunpack.c.h.b16 %v4353
    %v5736 = vunpack.c.l.b16 %v4354
    %v5737 = vunpack.c.h.b16 %v4354
    %v5738 = vunpack.c.l.b16 %v4355
    %v5739 = vunpack.c.h.b16 %v4355
    %v5740 = vunpack.c.l.b16 %v4356
    %v5741 = vunpack.c.h.b16 %v4356
    %v5742 = vunpack.c.l.b16 %v4357
    %v5743 = vunpack.c.h.b16 %v4357
    %v5744 = vunpack.c.l.b16 %v4358
    %v5745 = vunpack.c.h.b16 %v4358
    %v5746 = vunpack.c.l.b16 %v4359
    %v5747 = vunpack.c.h.b16 %v4359
    %v5748 = vunpack.c.l.b16 %v4360
    %v5749 = vunpack.c.h.b16 %v4360
    %v5750 = vunpack.c.l.b16 %v4361
    %v5751 = vunpack.c.h.b16 %v4361
    %v5752 = vunpack.c.l.b16 %v4362
    %v5753 = vunpack.c.h.b16 %v4362
    %v5754 = vunpack.c.l.b16 %v4363
    %v5755 = vunpack.c.h.b16 %v4363
    %v5756 = vunpack.c.l.b16 %v4364
    %v5757 = vunpack.c.h.b16 %v4364
    %v5758 = vunpack.c.l.b16 %v4365
    %v5759 = vunpack.c.h.b16 %v4365
    %v5760 = vunpack.c.l.b16 %v4366
    %v5761 = vunpack.c.h.b16 %v4366
    %v5762 = vunpack.c.l.b16 %v4367
    %v5763 = vunpack.c.h.b16 %v4367
    %v5764 = vunpack.c.l.b16 %v4368
    %v5765 = vunpack.c.h.b16 %v4368
    %v5766 = vunpack.c.l.b16 %v4369
    %v5767 = vunpack.c.h.b16 %v4369
    %v5768 = vunpack.c.l.b16 %v4370
    %v5769 = vunpack.c.h.b16 %v4370
    %v5770 = vunpack.c.l.b16 %v4371
    %v5771 = vunpack.c.h.b16 %v4371
    %v5772 = vunpack.c.l.b16 %v4372
    %v5773 = vunpack.c.h.b16 %v4372
    %v5774 = vunpack.c.l.b16 %v4373
    %v5775 = vunpack.c.h.b16 %v4373
    %v5776 = vunpack.c.l.b16 %v4374
    %v5777 = vunpack.c.h.b16 %v4374
    %v5778 = vunpack.c.l.b16 %v4375
    %v5779 = vunpack.c.h.b16 %v4375
    %v5780 = vunpack.c.l.b16 %v4376
    %v5781 = vunpack.c.h.b16 %v4376
    %v5782 = vunpack.c.l.b16 %v4377
    %v5783 = vunpack.c.h.b16 %v4377
    %v5784 = vunpack.c.l.b16 %v4378
    %v5785 = vunpack.c.h.b16 %v4378
    %v5786 = vunpack.c.l.b16 %v4379
    %v5787 = vunpack.c.h.b16 %v4379
    %v5788 = vunpack.c.l.b16 %v4380
    %v5789 = vunpack.c.h.b16 %v4380
    %v5790 = vunpack.c.l.b16 %v4381
    %v5791 = vunpack.c.h.b16 %v4381
    %v5792 = vunpack.c.l.b16 %v4382
    %v5793 = vunpack.c.h.b16 %v4382
    %v5794 = vunpack.c.l.b16 %v4383
    %v5795 = vunpack.c.h.b16 %v4383
    %v5796 = vunpack.c.l.b16 %v4384
    %v5797 = vunpack.c.h.b16 %v4384
    %v5798 = vunpack.c.l.b16 %v4385
    %v5799 = vunpack.c.h.b16 %v4385
    %v5800 = vunpack.c.l.b16 %v4386
    %v5801 = vunpack.c.h.b16 %v4386
    %v5802 = vunpack.c.l.b16 %v4387
    %v5803 = vunpack.c.h.b16 %v4387
    %v5804 = vunpack.c.l.b16 %v4388
    %v5805 = vunpack.c.h.b16 %v4388
    %v5806 = vunpack.c.l.b16 %v4389
    %v5807 = vunpack.c.h.b16 %v4389
    %v5808 = vunpack.c.l.b16 %v4390
    %v5809 = vunpack.c.h.b16 %v4390
    %v5810 = vunpack.c.l.b16 %v4391
    %v5811 = vunpack.c.h.b16 %v4391
    %v5812 = vunpack.c.l.b16 %v4392
    %v5813 = vunpack.c.h.b16 %v4392
    %v5814 = vunpack.c.l.b16 %v4393
    %v5815 = vunpack.c.h.b16 %v4393
    %v5816 = vunpack.c.l.b16 %v4394
    %v5817 = vunpack.c.h.b16 %v4394
    %v5818 = vunpack.c.l.b16 %v4395
    %v5819 = vunpack.c.h.b16 %v4395
    %v5820 = vunpack.c.l.b16 %v4396
    %v5821 = vunpack.c.h.b16 %v4396
    %v5822 = vunpack.c.l.b16 %v4397
    %v5823 = vunpack.c.h.b16 %v4397
    %v5824 = vunpack.c.l.b16 %v4398
    %v5825 = vunpack.c.h.b16 %v4398
    %v5826 = vunpack.c.l.b16 %v4399
    %v5827 = vunpack.c.h.b16 %v4399
    %v5828 = vunpack.c.l.b16 %v4400
    %v5829 = vunpack.c.h.b16 %v4400
    %v5830 = vunpack.c.l.b16 %v4401
    %v5831 = vunpack.c.h.b16 %v4401
    %v5832 = vunpack.c.l.b16 %v4402
    %v5833 = vunpack.c.h.b16 %v4402
    %v5834 = vunpack.c.l.b16 %v4403
    %v5835 = vunpack.c.h.b16 %v4403
    %v5836 = vunpack.c.l.b16 %v4404
    %v5837 = vunpack.c.h.b16 %v4404
    %v5838 = vunpack.c.l.b16 %v4405
    %v5839 = vunpack.c.h.b16 %v4405
    %v5840 = vunpack.c.l.b16 %v4406
    %v5841 = vunpack.c.h.b16 %v4406
    %v5842 = vunpack.c.l.b16 %v4407
    %v5843 = vunpack.c.h.b16 %v4407
    %v5844 = vunpack.c.l.b16 %v4408
    %v5845 = vunpack.c.h.b16 %v4408
    %v5846 = vunpack.c.l.b16 %v4409
    %v5847 = vunpack.c.h.b16 %v4409
    %v5848 = vunpack.c.l.b16 %v4410
    %v5849 = vunpack.c.h.b16 %v4410
    %v5850 = vunpack.c.l.b16 %v4411
    %v5851 = vunpack.c.h.b16 %v4411
    %v5852 = vunpack.c.l.b16 %v4412
    %v5853 = vunpack.c.h.b16 %v4412
    %v5854 = vunpack.c.l.b16 %v4413
    %v5855 = vunpack.c.h.b16 %v4413
    %v5856 = vunpack.c.l.b16 %v4414
    %v5857 = vunpack.c.h.b16 %v4414
    %v5858 = vunpack.c.l.b16 %v4415
    %v5859 = vunpack.c.h.b16 %v4415
    %v5860 = vunpack.c.l.b16 %v4416
    %v5861 = vunpack.c.h.b16 %v4416
    %v5862 = vunpack.c.l.b16 %v4417
    %v5863 = vunpack.c.h.b16 %v4417
    %v5864 = vunpack.c.l.b16 %v4418
    %v5865 = vunpack.c.h.b16 %v4418
    %v5866 = vunpack.c.l.b16 %v4419
    %v5867 = vunpack.c.h.b16 %v4419
    %v5868 = vunpack.c.l.b16 %v4420
    %v5869 = vunpack.c.h.b16 %v4420
    %v5870 = vunpack.c.l.b16 %v4421
    %v5871 = vunpack.c.h.b16 %v4421
    %v5872 = vunpack.c.l.b16 %v4422
    %v5873 = vunpack.c.h.b16 %v4422
    %v5874 = vunpack.c.l.b16 %v4423
    %v5875 = vunpack.c.h.b16 %v4423
    %v5876 = vunpack.c.l.b16 %v4424
    %v5877 = vunpack.c.h.b16 %v4424
    %v5878 = vunpack.c.l.b16 %v4425
    %v5879 = vunpack.c.h.b16 %v4425
    %v5880 = vunpack.c.l.b16 %v4426
    %v5881 = vunpack.c.h.b16 %v4426
    %v5882 = vunpack.c.l.b16 %v4427
    %v5883 = vunpack.c.h.b16 %v4427
    %v5884 = vunpack.c.l.b16 %v4428
    %v5885 = vunpack.c.h.b16 %v4428
    %v5886 = vunpack.c.l.b16 %v4429
    %v5887 = vunpack.c.h.b16 %v4429
    %v5888 = vunpack.c.l.b16 %v4430
    %v5889 = vunpack.c.h.b16 %v4430
    %v5890 = vunpack.c.l.b16 %v4431
    %v5891 = vunpack.c.h.b16 %v4431
    %v5892 = vunpack.c.l.b16 %v4432
    %v5893 = vunpack.c.h.b16 %v4432
    %v5894 = vunpack.c.l.b16 %v4433
    %v5895 = vunpack.c.h.b16 %v4433
    %v5896 = vunpack.c.l.b16 %v4434
    %v5897 = vunpack.c.h.b16 %v4434
    %v5898 = vunpack.c.l.b16 %v4435
    %v5899 = vunpack.c.h.b16 %v4435
    %v5900 = vunpack.c.l.b16 %v4436
    %v5901 = vunpack.c.h.b16 %v4436
    %v5902 = vunpack.c.l.b16 %v4437
    %v5903 = vunpack.c.h.b16 %v4437
    %v5904 = vunpack.c.l.b16 %v4438
    %v5905 = vunpack.c.h.b16 %v4438
    %v5906 = vunpack.c.l.b16 %v4439
    %v5907 = vunpack.c.h.b16 %v4439
    %v5908 = vunpack.c.l.b16 %v4440
    %v5909 = vunpack.c.h.b16 %v4440
    %v5910 = vunpack.c.l.b16 %v4441
    %v5911 = vunpack.c.h.b16 %v4441
    %v5912 = vunpack.c.l.b16 %v4442
    %v5913 = vunpack.c.h.b16 %v4442
    %v5914 = vunpack.c.l.b16 %v4443
    %v5915 = vunpack.c.h.b16 %v4443
    %v5916 = vunpack.c.l.b16 %v4444
    %v5917 = vunpack.c.h.b16 %v4444
    %v5918 = vunpack.c.l.b16 %v4445
    %v5919 = vunpack.c.h.b16 %v4445
    %v5920 = vunpack.c.l.b16 %v4446
    %v5921 = vunpack.c.h.b16 %v4446
    %v5922 = vunpack.c.l.b16 %v4447
    %v5923 = vunpack.c.h.b16 %v4447
    %v5924 = vunpack.c.l.b16 %v4448
    %v5925 = vunpack.c.h.b16 %v4448
    %v5926 = vunpack.c.l.b16 %v4449
    %v5927 = vunpack.c.h.b16 %v4449
    %v5928 = vunpack.c.l.b16 %v4450
    %v5929 = vunpack.c.h.b16 %v4450
    %v5930 = vunpack.c.l.b16 %v4451
    %v5931 = vunpack.c.h.b16 %v4451
    %v5932 = vunpack.c.l.b16 %v4452
    %v5933 = vunpack.c.h.b16 %v4452
    %v5934 = vunpack.c.l.b16 %v4453
    %v5935 = vunpack.c.h.b16 %v4453
    %v5936 = vunpack.c.l.b16 %v4454
    %v5937 = vunpack.c.h.b16 %v4454
    %v5938 = vunpack.c.l.b16 %v4455
    %v5939 = vunpack.c.h.b16 %v4455
    %v5940 = vunpack.c.l.b16 %v4456
    %v5941 = vunpack.c.h.b16 %v4456
    %v5942 = vunpack.c.l.b16 %v4457
    %v5943 = vunpack.c.h.b16 %v4457
    %v5944 = vunpack.c.l.b16 %v4458
    %v5945 = vunpack.c.h.b16 %v4458
    %v5946 = vunpack.c.l.b16 %v4459
    %v5947 = vunpack.c.h.b16 %v4459
    %v5948 = vunpack.c.l.b16 %v4460
    %v5949 = vunpack.c.h.b16 %v4460
    %v5950 = vunpack.c.l.b16 %v4461
    %v5951 = vunpack.c.h.b16 %v4461
    %v5952 = vunpack.c.l.b16 %v4462
    %v5953 = vunpack.c.h.b16 %v4462
    %v5954 = vunpack.c.l.b16 %v4463
    %v5955 = vunpack.c.h.b16 %v4463
    %v5956 = vunpack.c.l.b16 %v4464
    %v5957 = vunpack.c.h.b16 %v4464
    %v5958 = vunpack.c.l.b16 %v4465
    %v5959 = vunpack.c.h.b16 %v4465
    %v5960 = vunpack.c.l.b16 %v4466
    %v5961 = vunpack.c.h.b16 %v4466
    %v5962 = vunpack.c.l.b16 %v4467
    %v5963 = vunpack.c.h.b16 %v4467
    %v5964 = vunpack.c.l.b16 %v4468
    %v5965 = vunpack.c.h.b16 %v4468
    %v5966 = vunpack.c.l.b16 %v4469
    %v5967 = vunpack.c.h.b16 %v4469
    %v5968 = vunpack.c.l.b16 %v4470
    %v5969 = vunpack.c.h.b16 %v4470
    %v5970 = vunpack.c.l.b16 %v4471
    %v5971 = vunpack.c.h.b16 %v4471
    %v5972 = vunpack.c.l.b16 %v4472
    %v5973 = vunpack.c.h.b16 %v4472
    %v5974 = vunpack.c.l.b16 %v4473
    %v5975 = vunpack.c.h.b16 %v4473
    %v5976 = vunpack.c.l.b16 %v4474
    %v5977 = vunpack.c.h.b16 %v4474
    %v5978 = vunpack.c.l.b16 %v4475
    %v5979 = vunpack.c.h.b16 %v4475
    %v5980 = vunpack.c.l.b16 %v4476
    %v5981 = vunpack.c.h.b16 %v4476
    %v5982 = vunpack.c.l.b16 %v4477
    %v5983 = vunpack.c.h.b16 %v4477
    %v5984 = vunpack.c.l.b16 %v4478
    %v5985 = vunpack.c.h.b16 %v4478
    %v5986 = vunpack.c.l.b16 %v4479
    %v5987 = vunpack.c.h.b16 %v4479
    %v5988 = vunpack.c.l.b16 %v4480
    %v5989 = vunpack.c.h.b16 %v4480
    %v5990 = vunpack.c.l.b16 %v4481
    %v5991 = vunpack.c.h.b16 %v4481
    %v5992 = vunpack.c.l.b16 %v4482
    %v5993 = vunpack.c.h.b16 %v4482
    %v5994 = vunpack.c.l.b16 %v4483
    %v5995 = vunpack.c.h.b16 %v4483
    %v5996 = vunpack.c.l.b16 %v4484
    %v5997 = vunpack.c.h.b16 %v4484
    %v5998 = vunpack.c.l.b16 %v4485
    %v5999 = vunpack.c.h.b16 %v4485
    %v6000 = vunpack.c.l.b16 %v4486
    %v6001 = vunpack.c.h.b16 %v4486
    %v6002 = vunpack.c.l.b16 %v4487
    %v6003 = vunpack.c.h.b16 %v4487
    %v6004 = vunpack.c.l.b16 %v4488
    %v6005 = vunpack.c.h.b16 %v4488
    %v6006 = vunpack.c.l.b16 %v4489
    %v6007 = vunpack.c.h.b16 %v4489
    %v6008 = vunpack.c.l.b16 %v4490
    %v6009 = vunpack.c.h.b16 %v4490
    %v6010 = vunpack.c.l.b16 %v4491
    %v6011 = vunpack.c.h.b16 %v4491
    %v6012 = vunpack.c.l.b16 %v4492
    %v6013 = vunpack.c.h.b16 %v4492
    %v6014 = vunpack.c.l.b16 %v4493
    %v6015 = vunpack.c.h.b16 %v4493
    %v6016 = vunpack.c.l.b16 %v4494
    %v6017 = vunpack.c.h.b16 %v4494
    %v6018 = vunpack.c.l.b16 %v4495
    %v6019 = vunpack.c.h.b16 %v4495
    %v6020 = vunpack.c.l.b16 %v4496
    %v6021 = vunpack.c.h.b16 %v4496
    %v6022 = vunpack.c.l.b16 %v4497
    %v6023 = vunpack.c.h.b16 %v4497
    %v6024 = vunpack.c.l.b16 %v4498
    %v6025 = vunpack.c.h.b16 %v4498
    %v6026 = vunpack.c.l.b16 %v4499
    %v6027 = vunpack.c.h.b16 %v4499
    %v6028 = vunpack.c.l.b16 %v4500
    %v6029 = vunpack.c.h.b16 %v4500
    %v6030 = vunpack.c.l.b16 %v4501
    %v6031 = vunpack.c.h.b16 %v4501
    %v6032 = vunpack.c.l.b16 %v4502
    %v6033 = vunpack.c.h.b16 %v4502
    %v6034 = vunpack.c.l.b16 %v4503
    %v6035 = vunpack.c.h.b16 %v4503
    %v6036 = vunpack.c.l.b16 %v4504
    %v6037 = vunpack.c.h.b16 %v4504
    %v6038 = vunpack.c.l.b16 %v4505
    %v6039 = vunpack.c.h.b16 %v4505
    %v6040 = vunpack.c.l.b16 %v4506
    %v6041 = vunpack.c.h.b16 %v4506
    %v6042 = vunpack.c.l.b16 %v4507
    %v6043 = vunpack.c.h.b16 %v4507
    %v6044 = vunpack.c.l.b16 %v4508
    %v6045 = vunpack.c.h.b16 %v4508
    %v6046 = vunpack.c.l.b16 %v4509
    %v6047 = vunpack.c.h.b16 %v4509
    %v6048 = vunpack.c.l.b16 %v4510
    %v6049 = vunpack.c.h.b16 %v4510
    %v6050 = vunpack.c.l.b16 %v4511
    %v6051 = vunpack.c.h.b16 %v4511
    %v6052 = vunpack.c.l.b16 %v4512
    %v6053 = vunpack.c.h.b16 %v4512
    %v6054 = vunpack.c.l.b16 %v4513
    %v6055 = vunpack.c.h.b16 %v4513
    %v6056 = vunpack.c.l.b16 %v4514
    %v6057 = vunpack.c.h.b16 %v4514
    %v6058 = vunpack.c.l.b16 %v4515
    %v6059 = vunpack.c.h.b16 %v4515
    %v6060 = vunpack.c.l.b16 %v4516
    %v6061 = vunpack.c.h.b16 %v4516
    %v6062 = vunpack.c.l.b16 %v4517
    %v6063 = vunpack.c.h.b16 %v4517
    %v6064 = vunpack.c.l.b16 %v4518
    %v6065 = vunpack.c.h.b16 %v4518
    %v6066 = vunpack.c.l.b16 %v4519
    %v6067 = vunpack.c.h.b16 %v4519
    %v6068 = vunpack.c.l.b16 %v4520
    %v6069 = vunpack.c.h.b16 %v4520
    %v6070 = vunpack.c.l.b16 %v4521
    %v6071 = vunpack.c.h.b16 %v4521
    %v6072 = vunpack.c.l.b16 %v4522
    %v6073 = vunpack.c.h.b16 %v4522
    %v6074 = vunpack.c.l.b16 %v4523
    %v6075 = vunpack.c.h.b16 %v4523
    %v6076 = vunpack.c.l.b16 %v4524
    %v6077 = vunpack.c.h.b16 %v4524
    %v6078 = vunpack.c.l.b16 %v4525
    %v6079 = vunpack.c.h.b16 %v4525
    %v6080 = vunpack.c.l.b16 %v4526
    %v6081 = vunpack.c.h.b16 %v4526
    %v6082 = vunpack.c.l.b16 %v4527
    %v6083 = vunpack.c.h.b16 %v4527
    %v6084 = vunpack.c.l.b16 %v4528
    %v6085 = vunpack.c.h.b16 %v4528
    %v6086 = vunpack.c.l.b16 %v4529
    %v6087 = vunpack.c.h.b16 %v4529
    %v6088 = vpack.c.b16 %v5068, %v5064
    %v6089 = vpack.c.b16 %v5069, %v5065
    %v6090 = vpack.c.b16 %v5070, %v5066
    %v6091 = vpack.c.b16 %v5071, %v5067
    %v6092 = vpack.c.b16 %v5076, %v5072
    %v6093 = vpack.c.b16 %v5077, %v5073
    %v6094 = vpack.c.b16 %v5078, %v5074
    %v6095 = vpack.c.b16 %v5079, %v5075
    %v6096 = vpack.c.b16 %v5084, %v5080
    %v6097 = vpack.c.b16 %v5085, %v5081
    %v6098 = vpack.c.b16 %v5086, %v5082
    %v6099 = vpack.c.b16 %v5087, %v5083
    %v6100 = vpack.c.b16 %v5092, %v5088
    %v6101 = vpack.c.b16 %v5093, %v5089
    %v6102 = vpack.c.b16 %v5094, %v5090
    %v6103 = vpack.c.b16 %v5095, %v5091
    %v6104 = vpack.c.b16 %v5100, %v5096
    %v6105 = vpack.c.b16 %v5101, %v5097
    %v6106 = vpack.c.b16 %v5102, %v5098
    %v6107 = vpack.c.b16 %v5103, %v5099
    %v6108 = vpack.c.b16 %v5108, %v5104
    %v6109 = vpack.c.b16 %v5109, %v5105
    %v6110 = vpack.c.b16 %v5110, %v5106
    %v6111 = vpack.c.b16 %v5111, %v5107
    %v6112 = vpack.c.b16 %v5116, %v5112
    %v6113 = vpack.c.b16 %v5117, %v5113
    %v6114 = vpack.c.b16 %v5118, %v5114
    %v6115 = vpack.c.b16 %v5119, %v5115
    %v6116 = vpack.c.b16 %v5124, %v5120
    %v6117 = vpack.c.b16 %v5125, %v5121
    %v6118 = vpack.c.b16 %v5126, %v5122
    %v6119 = vpack.c.b16 %v5127, %v5123
    %v6120 = vpack.c.b16 %v5132, %v5128
    %v6121 = vpack.c.b16 %v5133, %v5129
    %v6122 = vpack.c.b16 %v5134, %v5130
    %v6123 = vpack.c.b16 %v5135, %v5131
    %v6124 = vpack.c.b16 %v5140, %v5136
    %v6125 = vpack.c.b16 %v5141, %v5137
    %v6126 = vpack.c.b16 %v5142, %v5138
    %v6127 = vpack.c.b16 %v5143, %v5139
    %v6128 = vpack.c.b16 %v5148, %v5144
    %v6129 = vpack.c.b16 %v5149, %v5145
    %v6130 = vpack.c.b16 %v5150, %v5146
    %v6131 = vpack.c.b16 %v5151, %v5147
    %v6132 = vpack.c.b16 %v5156, %v5152
    %v6133 = vpack.c.b16 %v5157, %v5153
    %v6134 = vpack.c.b16 %v5158, %v5154
    %v6135 = vpack.c.b16 %v5159, %v5155
    %v6136 = vpack.c.b16 %v5164, %v5160
    %v6137 = vpack.c.b16 %v5165, %v5161
    %v6138 = vpack.c.b16 %v5166, %v5162
    %v6139 = vpack.c.b16 %v5167, %v5163
    %v6140 = vpack.c.b16 %v5172, %v5168
    %v6141 = vpack.c.b16 %v5173, %v5169
    %v6142 = vpack.c.b16 %v5174, %v5170
    %v6143 = vpack.c.b16 %v5175, %v5171
    %v6144 = vpack.c.b16 %v5180, %v5176
    %v6145 = vpack.c.b16 %v5181, %v5177
    %v6146 = vpack.c.b16 %v5182, %v5178
    %v6147 = vpack.c.b16 %v5183, %v5179
    %v6148 = vpack.c.b16 %v5188, %v5184
    %v6149 = vpack.c.b16 %v5189, %v5185
    %v6150 = vpack.c.b16 %v5190, %v5186
    %v6151 = vpack.c.b16 %v5191, %v5187
    %v6152 = vpack.c.b16 %v5196, %v5192
    %v6153 = vpack.c.b16 %v5197, %v5193
    %v6154 = vpack.c.b16 %v5198, %v5194
    %v6155 = vpack.c.b16 %v5199, %v5195
    %v6156 = vpack.c.b16 %v5204, %v5200
    %v6157 = vpack.c.b16 %v5205, %v5201
    %v6158 = vpack.c.b16 %v5206, %v5202
    %v6159 = vpack.c.b16 %v5207, %v5203
    %v6160 = vpack.c.b16 %v5212, %v5208
    %v6161 = vpack.c.b16 %v5213, %v5209
    %v6162 = vpack.c.b16 %v5214, %v5210
    %v6163 = vpack.c.b16 %v5215, %v5211
    %v6164 = vpack.c.b16 %v5220, %v5216
    %v6165 = vpack.c.b16 %v5221, %v5217
    %v6166 = vpack.c.b16 %v5222, %v5218
    %v6167 = vpack.c.b16 %v5223, %v5219
    %v6168 = vpack.c.b16 %v5228, %v5224
    %v6169 = vpack.c.b16 %v5229, %v5225
    %v6170 = vpack.c.b16 %v5230, %v5226
    %v6171 = vpack.c.b16 %v5231, %v5227
    %v6172 = vpack.c.b16 %v5236, %v5232
    %v6173 = vpack.c.b16 %v5237, %v5233
    %v6174 = vpack.c.b16 %v5238, %v5234
    %v6175 = vpack.c.b16 %v5239, %v5235
    %v6176 = vpack.c.b16 %v5244, %v5240
    %v6177 = vpack.c.b16 %v5245, %v5241
    %v6178 = vpack.c.b16 %v5246, %v5242
    %v6179 = vpack.c.b16 %v5247, %v5243
    %v6180 = vpack.c.b16 %v5252, %v5248
    %v6181 = vpack.c.b16 %v5253, %v5249
    %v6182 = vpack.c.b16 %v5254, %v5250
    %v6183 = vpack.c.b16 %v5255, %v5251
    %v6184 = vpack.c.b16 %v5260, %v5256
    %v6185 = vpack.c.b16 %v5261, %v5257
    %v6186 = vpack.c.b16 %v5262, %v5258
    %v6187 = vpack.c.b16 %v5263, %v5259
    %v6188 = vpack.c.b16 %v5268, %v5264
    %v6189 = vpack.c.b16 %v5269, %v5265
    %v6190 = vpack.c.b16 %v5270, %v5266
    %v6191 = vpack.c.b16 %v5271, %v5267
    %v6192 = vpack.c.b16 %v5276, %v5272
    %v6193 = vpack.c.b16 %v5277, %v5273
    %v6194 = vpack.c.b16 %v5278, %v5274
    %v6195 = vpack.c.b16 %v5279, %v5275
    %v6196 = vpack.c.b16 %v5284, %v5280
    %v6197 = vpack.c.b16 %v5285, %v5281
    %v6198 = vpack.c.b16 %v5286, %v5282
    %v6199 = vpack.c.b16 %v5287, %v5283
    %v6200 = vpack.c.b16 %v5292, %v5288
    %v6201 = vpack.c.b16 %v5293, %v5289
    %v6202 = vpack.c.b16 %v5294, %v5290
    %v6203 = vpack.c.b16 %v5295, %v5291
    %v6204 = vpack.c.b16 %v5300, %v5296
    %v6205 = vpack.c.b16 %v5301, %v5297
    %v6206 = vpack.c.b16 %v5302, %v5298
    %v6207 = vpack.c.b16 %v5303, %v5299
    %v6208 = vpack.c.b16 %v5308, %v5304
    %v6209 = vpack.c.b16 %v5309, %v5305
    %v6210 = vpack.c.b16 %v5310, %v5306
    %v6211 = vpack.c.b16 %v5311, %v5307
    %v6212 = vpack.c.b16 %v5316, %v5312
    %v6213 = vpack.c.b16 %v5317, %v5313
    %v6214 = vpack.c.b16 %v5318, %v5314
    %v6215 = vpack.c.b16 %v5319, %v5315
    %v6216 = vpack.c.b16 %v5324, %v5320
    %v6217 = vpack.c.b16 %v5325, %v5321
    %v6218 = vpack.c.b16 %v5326, %v5322
    %v6219 = vpack.c.b16 %v5327, %v5323
    %v6220 = vpack.c.b16 %v5332, %v5328
    %v6221 = vpack.c.b16 %v5333, %v5329
    %v6222 = vpack.c.b16 %v5334, %v5330
    %v6223 = vpack.c.b16 %v5335, %v5331
    %v6224 = vpack.c.b16 %v5340, %v5336
    %v6225 = vpack.c.b16 %v5341, %v5337
    %v6226 = vpack.c.b16 %v5342, %v5338
    %v6227 = vpack.c.b16 %v5343, %v5339
    %v6228 = vpack.c.b16 %v5348, %v5344
    %v6229 = vpack.c.b16 %v5349, %v5345
    %v6230 = vpack.c.b16 %v5350, %v5346
    %v6231 = vpack.c.b16 %v5351, %v5347
    %v6232 = vpack.c.b16 %v5356, %v5352
    %v6233 = vpack.c.b16 %v5357, %v5353
    %v6234 = vpack.c.b16 %v5358, %v5354
    %v6235 = vpack.c.b16 %v5359, %v5355
    %v6236 = vpack.c.b16 %v5364, %v5360
    %v6237 = vpack.c.b16 %v5365, %v5361
    %v6238 = vpack.c.b16 %v5366, %v5362
    %v6239 = vpack.c.b16 %v5367, %v5363
    %v6240 = vpack.c.b16 %v5372, %v5368
    %v6241 = vpack.c.b16 %v5373, %v5369
    %v6242 = vpack.c.b16 %v5374, %v5370
    %v6243 = vpack.c.b16 %v5375, %v5371
    %v6244 = vpack.c.b16 %v5380, %v5376
    %v6245 = vpack.c.b16 %v5381, %v5377
    %v6246 = vpack.c.b16 %v5382, %v5378
    %v6247 = vpack.c.b16 %v5383, %v5379
    %v6248 = vpack.c.b16 %v5388, %v5384
    %v6249 = vpack.c.b16 %v5389, %v5385
    %v6250 = vpack.c.b16 %v5390, %v5386
    %v6251 = vpack.c.b16 %v5391, %v5387
    %v6252 = vpack.c.b16 %v5396, %v5392
    %v6253 = vpack.c.b16 %v5397, %v5393
    %v6254 = vpack.c.b16 %v5398, %v5394
    %v6255 = vpack.c.b16 %v5399, %v5395
    %v6256 = vpack.c.b16 %v5404, %v5400
    %v6257 = vpack.c.b16 %v5405, %v5401
    %v6258 = vpack.c.b16 %v5406, %v5402
    %v6259 = vpack.c.b16 %v5407, %v5403
    %v6260 = vpack.c.b16 %v5412, %v5408
    %v6261 = vpack.c.b16 %v5413, %v5409
    %v6262 = vpack.c.b16 %v5414, %v5410
    %v6263 = vpack.c.b16 %v5415, %v5411
    %v6264 = vpack.c.b16 %v5420, %v5416
    %v6265 = vpack.c.b16 %v5421, %v5417
    %v6266 = vpack.c.b16 %v5422, %v5418
    %v6267 = vpack.c.b16 %v5423, %v5419
    %v6268 = vpack.c.b16 %v5428, %v5424
    %v6269 = vpack.c.b16 %v5429, %v5425
    %v6270 = vpack.c.b16 %v5430, %v5426
    %v6271 = vpack.c.b16 %v5431, %v5427
    %v6272 = vpack.c.b16 %v5436, %v5432
    %v6273 = vpack.c.b16 %v5437, %v5433
    %v6274 = vpack.c.b16 %v5438, %v5434
    %v6275 = vpack.c.b16 %v5439, %v5435
    %v6276 = vpack.c.b16 %v5444, %v5440
    %v6277 = vpack.c.b16 %v5445, %v5441
    %v6278 = vpack.c.b16 %v5446, %v5442
    %v6279 = vpack.c.b16 %v5447, %v5443
    %v6280 = vpack.c.b16 %v5452, %v5448
    %v6281 = vpack.c.b16 %v5453, %v5449
    %v6282 = vpack.c.b16 %v5454, %v5450
    %v6283 = vpack.c.b16 %v5455, %v5451
    %v6284 = vpack.c.b16 %v5460, %v5456
    %v6285 = vpack.c.b16 %v5461, %v5457
    %v6286 = vpack.c.b16 %v5462, %v5458
    %v6287 = vpack.c.b16 %v5463, %v5459
    %v6288 = vpack.c.b16 %v5468, %v5464
    %v6289 = vpack.c.b16 %v5469, %v5465
    %v6290 = vpack.c.b16 %v5470, %v5466
    %v6291 = vpack.c.b16 %v5471, %v5467
    %v6292 = vpack.c.b16 %v5476, %v5472
    %v6293 = vpack.c.b16 %v5477, %v5473
    %v6294 = vpack.c.b16 %v5478, %v5474
    %v6295 = vpack.c.b16 %v5479, %v5475
    %v6296 = vpack.c.b16 %v5484, %v5480
    %v6297 = vpack.c.b16 %v5485, %v5481
    %v6298 = vpack.c.b16 %v5486, %v5482
    %v6299 = vpack.c.b16 %v5487, %v5483
    %v6300 = vpack.c.b16 %v5492, %v5488
    %v6301 = vpack.c.b16 %v5493, %v5489
    %v6302 = vpack.c.b16 %v5494, %v5490
    %v6303 = vpack.c.b16 %v5495, %v5491
    %v6304 = vpack.c.b16 %v5500, %v5496
    %v6305 = vpack.c.b16 %v5501, %v5497
    %v6306 = vpack.c.b16 %v5502, %v5498
    %v6307 = vpack.c.b16 %v5503, %v5499
    %v6308 = vpack.c.b16 %v5508, %v5504
    %v6309 = vpack.c.b16 %v5509, %v5505
    %v6310 = vpack.c.b16 %v5510, %v5506
    %v6311 = vpack.c.b16 %v5511, %v5507
    %v6312 = vpack.c.b16 %v5516, %v5512
    %v6313 = vpack.c.b16 %v5517, %v5513
    %v6314 = vpack.c.b16 %v5518, %v5514
    %v6315 = vpack.c.b16 %v5519, %v5515
    %v6316 = vpack.c.b16 %v5524, %v5520
    %v6317 = vpack.c.b16 %v5525, %v5521
    %v6318 = vpack.c.b16 %v5526, %v5522
    %v6319 = vpack.c.b16 %v5527, %v5523
    %v6320 = vpack.c.b16 %v5532, %v5528
    %v6321 = vpack.c.b16 %v5533, %v5529
    %v6322 = vpack.c.b16 %v5534, %v5530
    %v6323 = vpack.c.b16 %v5535, %v5531
    %v6324 = vpack.c.b16 %v5540, %v5536
    %v6325 = vpack.c.b16 %v5541, %v5537
    %v6326 = vpack.c.b16 %v5542, %v5538
    %v6327 = vpack.c.b16 %v5543, %v5539
    %v6328 = vpack.c.b16 %v5548, %v5544
    %v6329 = vpack.c.b16 %v5549, %v5545
    %v6330 = vpack.c.b16 %v5550, %v5546
    %v6331 = vpack.c.b16 %v5551, %v5547
    %v6332 = vpack.c.b16 %v5556, %v5552
    %v6333 = vpack.c.b16 %v5557, %v5553
    %v6334 = vpack.c.b16 %v5558, %v5554
    %v6335 = vpack.c.b16 %v5559, %v5555
    %v6336 = vpack.c.b16 %v5564, %v5560
    %v6337 = vpack.c.b16 %v5565, %v5561
    %v6338 = vpack.c.b16 %v5566, %v5562
    %v6339 = vpack.c.b16 %v5567, %v5563
    %v6340 = vpack.c.b16 %v5572, %v5568
    %v6341 = vpack.c.b16 %v5573, %v5569
    %v6342 = vpack.c.b16 %v5574, %v5570
    %v6343 = vpack.c.b16 %v5575, %v5571
    %v6344 = vpack.c.b16 %v5580, %v5576
    %v6345 = vpack.c.b16 %v5581, %v5577
    %v6346 = vpack.c.b16 %v5582, %v5578
    %v6347 = vpack.c.b16 %v5583, %v5579
    %v6348 = vpack.c.b16 %v5588, %v5584
    %v6349 = vpack.c.b16 %v5589, %v5585
    %v6350 = vpack.c.b16 %v5590, %v5586
    %v6351 = vpack.c.b16 %v5591, %v5587
    %v6352 = vpack.c.b16 %v5596, %v5592
    %v6353 = vpack.c.b16 %v5597, %v5593
    %v6354 = vpack.c.b16 %v5598, %v5594
    %v6355 = vpack.c.b16 %v5599, %v5595
    %v6356 = vpack.c.b16 %v5604, %v5600
    %v6357 = vpack.c.b16 %v5605, %v5601
    %v6358 = vpack.c.b16 %v5606, %v5602
    %v6359 = vpack.c.b16 %v5607, %v5603
    %v6360 = vpack.c.b16 %v5612, %v5608
    %v6361 = vpack.c.b16 %v5613, %v5609
    %v6362 = vpack.c.b16 %v5614, %v5610
    %v6363 = vpack.c.b16 %v5615, %v5611
    %v6364 = vpack.c.b16 %v5620, %v5616
    %v6365 = vpack.c.b16 %v5621, %v5617
    %v6366 = vpack.c.b16 %v5622, %v5618
    %v6367 = vpack.c.b16 %v5623, %v5619
    %v6368 = vpack.c.b16 %v5628, %v5624
    %v6369 = vpack.c.b16 %v5629, %v5625
    %v6370 = vpack.c.b16 %v5630, %v5626
    %v6371 = vpack.c.b16 %v5631, %v5627
    %v6372 = vpack.c.b16 %v5636, %v5632
    %v6373 = vpack.c.b16 %v5637, %v5633
    %v6374 = vpack.c.b16 %v5638, %v5634
    %v6375 = vpack.c.b16 %v5639, %v5635
    %v6376 = vpack.c.b16 %v5644, %v5640
    %v6377 = vpack.c.b16 %v5645, %v5641
    %v6378 = vpack.c.b16 %v5646, %v5642
    %v6379 = vpack.c.b16 %v5647, %v5643
    %v6380 = vpack.c.b16 %v5652, %v5648
    %v6381 = vpack.c.b16 %v5653, %v5649
    %v6382 = vpack.c.b16 %v5654, %v5650
    %v6383 = vpack.c.b16 %v5655, %v5651
    %v6384 = vpack.c.b16 %v5660, %v5656
    %v6385 = vpack.c.b16 %v5661, %v5657
    %v6386 = vpack.c.b16 %v5662, %v5658
    %v6387 = vpack.c.b16 %v5663, %v5659
    %v6388 = vpack.c.b16 %v5668, %v5664
    %v6389 = vpack.c.b16 %v5669, %v5665
    %v6390 = vpack.c.b16 %v5670, %v5666
    %v6391 = vpack.c.b16 %v5671, %v5667
    %v6392 = vpack.c.b16 %v5676, %v5672
    %v6393 = vpack.c.b16 %v5677, %v5673
    %v6394 = vpack.c.b16 %v5678, %v5674
    %v6395 = vpack.c.b16 %v5679, %v5675
    %v6396 = vpack.c.b16 %v5684, %v5680
    %v6397 = vpack.c.b16 %v5685, %v5681
    %v6398 = vpack.c.b16 %v5686, %v5682
    %v6399 = vpack.c.b16 %v5687, %v5683
    %v6400 = vpack.c.b16 %v5692, %v5688
    %v6401 = vpack.c.b16 %v5693, %v5689
    %v6402 = vpack.c.b16 %v5694, %v5690
    %v6403 = vpack.c.b16 %v5695, %v5691
    %v6404 = vpack.c.b16 %v5700, %v5696
    %v6405 = vpack.c.b16 %v5701, %v5697
    %v6406 = vpack.c.b16 %v5702, %v5698
    %v6407 = vpack.c.b16 %v5703, %v5699
    %v6408 = vpack.c.b16 %v5708, %v5704
    %v6409 = vpack.c.b16 %v5709, %v5705
    %v6410 = vpack.c.b16 %v5710, %v5706
    %v6411 = vpack.c.b16 %v5711, %v5707
    %v6412 = vpack.c.b16 %v5716, %v5712
    %v6413 = vpack.c.b16 %v5717, %v5713
    %v6414 = vpack.c.b16 %v5718, %v5714
    %v6415 = vpack.c.b16 %v5719, %v5715
    %v6416 = vpack.c.b16 %v5724, %v5720
    %v6417 = vpack.c.b16 %v5725, %v5721
    %v6418 = vpack.c.b16 %v5726, %v5722
    %v6419 = vpack.c.b16 %v5727, %v5723
    %v6420 = vpack.c.b16 %v5732, %v5728
    %v6421 = vpack.c.b16 %v5733, %v5729
    %v6422 = vpack.c.b16 %v5734, %v5730
    %v6423 = vpack.c.b16 %v5735, %v5731
    %v6424 = vpack.c.b16 %v5740, %v5736
    %v6425 = vpack.c.b16 %v5741, %v5737
    %v6426 = vpack.c.b16 %v5742, %v5738
    %v6427 = vpack.c.b16 %v5743, %v5739
    %v6428 = vpack.c.b16 %v5748, %v5744
    %v6429 = vpack.c.b16 %v5749, %v5745
    %v6430 = vpack.c.b16 %v5750, %v5746
    %v6431 = vpack.c.b16 %v5751, %v5747
    %v6432 = vpack.c.b16 %v5756, %v5752
    %v6433 = vpack.c.b16 %v5757, %v5753
    %v6434 = vpack.c.b16 %v5758, %v5754
    %v6435 = vpack.c.b16 %v5759, %v5755
    %v6436 = vpack.c.b16 %v5764, %v5760
    %v6437 = vpack.c.b16 %v5765, %v5761
    %v6438 = vpack.c.b16 %v5766, %v5762
    %v6439 = vpack.c.b16 %v5767, %v5763
    %v6440 = vpack.c.b16 %v5772, %v5768
    %v6441 = vpack.c.b16 %v5773, %v5769
    %v6442 = vpack.c.b16 %v5774, %v5770
    %v6443 = vpack.c.b16 %v5775, %v5771
    %v6444 = vpack.c.b16 %v5780, %v5776
    %v6445 = vpack.c.b16 %v5781, %v5777
    %v6446 = vpack.c.b16 %v5782, %v5778
    %v6447 = vpack.c.b16 %v5783, %v5779
    %v6448 = vpack.c.b16 %v5788, %v5784
    %v6449 = vpack.c.b16 %v5789, %v5785
    %v6450 = vpack.c.b16 %v5790, %v5786
    %v6451 = vpack.c.b16 %v5791, %v5787
    %v6452 = vpack.c.b16 %v5796, %v5792
    %v6453 = vpack.c.b16 %v5797, %v5793
    %v6454 = vpack.c.b16 %v5798, %v5794
    %v6455 = vpack.c.b16 %v5799, %v5795
    %v6456 = vpack.c.b16 %v5804, %v5800
    %v6457 = vpack.c.b16 %v5805, %v5801
    %v6458 = vpack.c.b16 %v5806, %v5802
    %v6459 = vpack.c.b16 %v5807, %v5803
    %v6460 = vpack.c.b16 %v5812, %v5808
    %v6461 = vpack.c.b16 %v5813, %v5809
    %v6462 = vpack.c.b16 %v5814, %v5810
    %v6463 = vpack.c.b16 %v5815, %v5811
    %v6464 = vpack.c.b16 %v5820, %v5816
    %v6465 = vpack.c.b16 %v5821, %v5817
    %v6466 = vpack.c.b16 %v5822, %v5818
    %v6467 = vpack.c.b16 %v5823, %v5819
    %v6468 = vpack.c.b16 %v5828, %v5824
    %v6469 = vpack.c.b16 %v5829, %v5825
    %v6470 = vpack.c.b16 %v5830, %v5826
    %v6471 = vpack.c.b16 %v5831, %v5827
    %v6472 = vpack.c.b16 %v5836, %v5832
    %v6473 = vpack.c.b16 %v5837, %v5833
    %v6474 = vpack.c.b16 %v5838, %v5834
    %v6475 = vpack.c.b16 %v5839, %v5835
    %v6476 = vpack.c.b16 %v5844, %v5840
    %v6477 = vpack.c.b16 %v5845, %v5841
    %v6478 = vpack.c.b16 %v5846, %v5842
    %v6479 = vpack.c.b16 %v5847, %v5843
    %v6480 = vpack.c.b16 %v5852, %v5848
    %v6481 = vpack.c.b16 %v5853, %v5849
    %v6482 = vpack.c.b16 %v5854, %v5850
    %v6483 = vpack.c.b16 %v5855, %v5851
    %v6484 = vpack.c.b16 %v5860, %v5856
    %v6485 = vpack.c.b16 %v5861, %v5857
    %v6486 = vpack.c.b16 %v5862, %v5858
    %v6487 = vpack.c.b16 %v5863, %v5859
    %v6488 = vpack.c.b16 %v5868, %v5864
    %v6489 = vpack.c.b16 %v5869, %v5865
    %v6490 = vpack.c.b16 %v5870, %v5866
    %v6491 = vpack.c.b16 %v5871, %v5867
    %v6492 = vpack.c.b16 %v5876, %v5872
    %v6493 = vpack.c.b16 %v5877, %v5873
    %v6494 = vpack.c.b16 %v5878, %v5874
    %v6495 = vpack.c.b16 %v5879, %v5875
    %v6496 = vpack.c.b16 %v5884, %v5880
    %v6497 = vpack.c.b16 %v5885, %v5881
    %v6498 = vpack.c.b16 %v5886, %v5882
    %v6499 = vpack.c.b16 %v5887, %v5883
    %v6500 = vpack.c.b16 %v5892, %v5888
    %v6501 = vpack.c.b16 %v5893, %v5889
    %v6502 = vpack.c.b16 %v5894, %v5890
    %v6503 = vpack.c.b16 %v5895, %v5891
    %v6504 = vpack.c.b16 %v5900, %v5896
    %v6505 = vpack.c.b16 %v5901, %v5897
    %v6506 = vpack.c.b16 %v5902, %v5898
    %v6507 = vpack.c.b16 %v5903, %v5899
    %v6508 = vpack.c.b16 %v5908, %v5904
    %v6509 = vpack.c.b16 %v5909, %v5905
    %v6510 = vpack.c.b16 %v5910, %v5906
    %v6511 = vpack.c.b16 %v5911, %v5907
    %v6512 = vpack.c.b16 %v5916, %v5912
    %v6513 = vpack.c.b16 %v5917, %v5913
    %v6514 = vpack.c.b16 %v5918, %v5914
    %v6515 = vpack.c.b16 %v5919, %v5915
    %v6516 = vpack.c.b16 %v5924, %v5920
    %v6517 = vpack.c.b16 %v5925, %v5921
    %v6518 = vpack.c.b16 %v5926, %v5922
    %v6519 = vpack.c.b16 %v5927, %v5923
    %v6520 = vpack.c.b16 %v5932, %v5928
    %v6521 = vpack.c.b16 %v5933, %v5929
    %v6522 = vpack.c.b16 %v5934, %v5930
    %v6523 = vpack.c.b16 %v5935, %v5931
    %v6524 = vpack.c.b16 %v5940, %v5936
    %v6525 = vpack.c.b16 %v5941, %v5937
    %v6526 = vpack.c.b16 %v5942, %v5938
    %v6527 = vpack.c.b16 %v5943, %v5939
    %v6528 = vpack.c.b16 %v5948, %v5944
    %v6529 = vpack.c.b16 %v5949, %v5945
    %v6530 = vpack.c.b16 %v5950, %v5946
    %v6531 = vpack.c.b16 %v5951, %v5947
    %v6532 = vpack.c.b16 %v5956, %v5952
    %v6533 = vpack.c.b16 %v5957, %v5953
    %v6534 = vpack.c.b16 %v5958, %v5954
    %v6535 = vpack.c.b16 %v5959, %v5955
    %v6536 = vpack.c.b16 %v5964, %v5960
    %v6537 = vpack.c.b16 %v5965, %v5961
    %v6538 = vpack.c.b16 %v5966, %v5962
    %v6539 = vpack.c.b16 %v5967, %v5963
    %v6540 = vpack.c.b16 %v5972, %v5968
    %v6541 = vpack.c.b16 %v5973, %v5969
    %v6542 = vpack.c.b16 %v5974, %v5970
    %v6543 = vpack.c.b16 %v5975, %v5971
    %v6544 = vpack.c.b16 %v5980, %v5976
    %v6545 = vpack.c.b16 %v5981, %v5977
    %v6546 = vpack.c.b16 %v5982, %v5978
    %v6547 = vpack.c.b16 %v5983, %v5979
    %v6548 = vpack.c.b16 %v5988, %v5984
    %v6549 = vpack.c.b16 %v5989, %v5985
    %v6550 = vpack.c.b16 %v5990, %v5986
    %v6551 = vpack.c.b16 %v5991, %v5987
    %v6552 = vpack.c.b16 %v5996, %v5992
    %v6553 = vpack.c.b16 %v5997, %v5993
    %v6554 = vpack.c.b16 %v5998, %v5994
    %v6555 = vpack.c.b16 %v5999, %v5995
    %v6556 = vpack.c.b16 %v6004, %v6000
    %v6557 = vpack.c.b16 %v6005, %v6001
    %v6558 = vpack.c.b16 %v6006, %v6002
    %v6559 = vpack.c.b16 %v6007, %v6003
    %v6560 = vpack.c.b16 %v6012, %v6008
    %v6561 = vpack.c.b16 %v6013, %v6009
    %v6562 = vpack.c.b16 %v6014, %v6010
    %v6563 = vpack.c.b16 %v6015, %v6011
    %v6564 = vpack.c.b16 %v6020, %v6016
    %v6565 = vpack.c.b16 %v6021, %v6017
    %v6566 = vpack.c.b16 %v6022, %v6018
    %v6567 = vpack.c.b16 %v6023, %v6019
    %v6568 = vpack.c.b16 %v6028, %v6024
    %v6569 = vpack.c.b16 %v6029, %v6025
    %v6570 = vpack.c.b16 %v6030, %v6026
    %v6571 = vpack.c.b16 %v6031, %v6027
    %v6572 = vpack.c.b16 %v6036, %v6032
    %v6573 = vpack.c.b16 %v6037, %v6033
    %v6574 = vpack.c.b16 %v6038, %v6034
    %v6575 = vpack.c.b16 %v6039, %v6035
    %v6576 = vpack.c.b16 %v6044, %v6040
    %v6577 = vpack.c.b16 %v6045, %v6041
    %v6578 = vpack.c.b16 %v6046, %v6042
    %v6579 = vpack.c.b16 %v6047, %v6043
    %v6580 = vpack.c.b16 %v6052, %v6048
    %v6581 = vpack.c.b16 %v6053, %v6049
    %v6582 = vpack.c.b16 %v6054, %v6050
    %v6583 = vpack.c.b16 %v6055, %v6051
    %v6584 = vpack.c.b16 %v6060, %v6056
    %v6585 = vpack.c.b16 %v6061, %v6057
    %v6586 = vpack.c.b16 %v6062, %v6058
    %v6587 = vpack.c.b16 %v6063, %v6059
    %v6588 = vpack.c.b16 %v6068, %v6064
    %v6589 = vpack.c.b16 %v6069, %v6065
    %v6590 = vpack.c.b16 %v6070, %v6066
    %v6591 = vpack.c.b16 %v6071, %v6067
    %v6592 = vpack.c.b16 %v6076, %v6072
    %v6593 = vpack.c.b16 %v6077, %v6073
    %v6594 = vpack.c.b16 %v6078, %v6074
    %v6595 = vpack.c.b16 %v6079, %v6075
    %v6596 = vpack.c.b16 %v6084, %v6080
    %v6597 = vpack.c.b16 %v6085, %v6081
    %v6598 = vpack.c.b16 %v6086, %v6082
    %v6599 = vpack.c.b16 %v6087, %v6083
    %7112 = vmatprep.subr.bf16.mxu0 %v6089
    %7113 = vmatpush1.bf16.msra.mxu0 %v6088
    %7114 = vmatprep.subr.bf16.mxu0 %v6093
    %7115 = vmatpush1.bf16.msra.mxu0 %v6092
    %7116 = vmatprep.subr.bf16.mxu0 %v6097
    %7117 = vmatpush1.bf16.msra.mxu0 %v6096
    %7118 = vmatprep.subr.bf16.mxu0 %v6101
    %7119 = vmatpush1.bf16.msra.mxu0 %v6100
    %7120 = vmatprep.subr.bf16.mxu0 %v6105
    %7121 = vmatpush1.bf16.msra.mxu0 %v6104
    %7122 = vmatprep.subr.bf16.mxu0 %v6109
    %7123 = vmatpush1.bf16.msra.mxu0 %v6108
    %7124 = vmatprep.subr.bf16.mxu0 %v6113
    %7125 = vmatpush1.bf16.msra.mxu0 %v6112
    %7126 = vmatprep.subr.bf16.mxu0 %v6117
    %7127 = vmatpush1.bf16.msra.mxu0 %v6116
    %7128 = vmatprep.subr.bf16.mxu0 %v6121
    %7129 = vmatpush1.bf16.msra.mxu0 %v6120
    %7130 = vmatprep.subr.bf16.mxu0 %v6125
    %7131 = vmatpush1.bf16.msra.mxu0 %v6124
    %7132 = vmatprep.subr.bf16.mxu0 %v6129
    %7133 = vmatpush1.bf16.msra.mxu0 %v6128
    %7134 = vmatprep.subr.bf16.mxu0 %v6133
    %7135 = vmatpush1.bf16.msra.mxu0 %v6132
    %7136 = vmatprep.subr.bf16.mxu0 %v6137
    %7137 = vmatpush1.bf16.msra.mxu0 %v6136
    %7138 = vmatprep.subr.bf16.mxu0 %v6141
    %7139 = vmatpush1.bf16.msra.mxu0 %v6140
    %7140 = vmatprep.subr.bf16.mxu0 %v6145
    %7141 = vmatpush1.bf16.msra.mxu0 %v6144
    %7142 = vmatprep.subr.bf16.mxu0 %v6149
    %7143 = vmatpush1.bf16.msra.mxu0 %v6148
    %7144 = vmatprep.mubr.bf16.mxu0 %v4003
    %7145 = vmatmul.mubr.bf16.gmra.mrb[0].mxu0 %v4002
    %v7146 = vpop.f32.mrb[0].mxu0
    %v7147 = vadd.f32 %v4535, %v7146
    %v7148 = vpop.f32.mrb[0].mxu0
    %v7149 = vadd.f32 %v4539, %v7148
    %v7150 = vpop.f32.mrb[0].mxu0
    %v7151 = vadd.f32 %v4535, %v7150
    %v7152 = vpop.f32.mrb[0].mxu0
    %v7153 = vadd.f32 %v4539, %v7152
    %7154 = vdwg.mxu0
    %7155 = vmatprep.subr.bf16.mxu0 %v6153
    %7156 = vmatpush1.bf16.msra.mxu0 %v6152
    %7157 = vmatprep.subr.bf16.mxu0 %v6157
    %7158 = vmatpush1.bf16.msra.mxu0 %v6156
    %7159 = vmatprep.subr.bf16.mxu0 %v6161
    %7160 = vmatpush1.bf16.msra.mxu0 %v6160
    %7161 = vmatprep.subr.bf16.mxu0 %v6165
    %7162 = vmatpush1.bf16.msra.mxu0 %v6164
    %7163 = vmatprep.subr.bf16.mxu0 %v6169
    %7164 = vmatpush1.bf16.msra.mxu0 %v6168
    %7165 = vmatprep.subr.bf16.mxu0 %v6173
    %7166 = vmatpush1.bf16.msra.mxu0 %v6172
    %7167 = vmatprep.subr.bf16.mxu0 %v6177
    %7168 = vmatpush1.bf16.msra.mxu0 %v6176
    %7169 = vmatprep.subr.bf16.mxu0 %v6181
    %7170 = vmatpush1.bf16.msra.mxu0 %v6180
    %7171 = vmatprep.subr.bf16.mxu0 %v6185
    %7172 = vmatpush1.bf16.msra.mxu0 %v6184
    %7173 = vmatprep.subr.bf16.mxu0 %v6189
    %7174 = vmatpush1.bf16.msra.mxu0 %v6188
    %7175 = vmatprep.subr.bf16.mxu0 %v6193
    %7176 = vmatpush1.bf16.msra.mxu0 %v6192
    %7177 = vmatprep.subr.bf16.mxu0 %v6197
    %7178 = vmatpush1.bf16.msra.mxu0 %v6196
    %7179 = vmatprep.subr.bf16.mxu0 %v6201
    %7180 = vmatpush1.bf16.msra.mxu0 %v6200
    %7181 = vmatprep.subr.bf16.mxu0 %v6205
    %7182 = vmatpush1.bf16.msra.mxu0 %v6204
    %7183 = vmatprep.subr.bf16.mxu0 %v6209
    %7184 = vmatpush1.bf16.msra.mxu0 %v6208
    %7185 = vmatprep.subr.bf16.mxu0 %v6213
    %7186 = vmatpush1.bf16.msra.mxu0 %v6212
    %7187 = vmatprep.mubr.bf16.mxu0 %v4005
    %7188 = vmatmul.mubr.bf16.gmra.mrb[0].mxu0 %v4004
    %v7189 = vpop.f32.mrb[0].mxu0
    %v7190 = vadd.f32 %v7147, %v7189
    %v7191 = vpop.f32.mrb[0].mxu0
    %v7192 = vadd.f32 %v7149, %v7191
    %v7193 = vpop.f32.mrb[0].mxu0
    %v7194 = vadd.f32 %v7151, %v7193
    %v7195 = vpop.f32.mrb[0].mxu0
    %v7196 = vadd.f32 %v7153, %v7195
    %7197 = vdwg.mxu0
    %7198 = vmatprep.subr.bf16.mxu0 %v6217
    %7199 = vmatpush1.bf16.msra.mxu0 %v6216
    %7200 = vmatprep.subr.bf16.mxu0 %v6221
    %7201 = vmatpush1.bf16.msra.mxu0 %v6220
    %7202 = vmatprep.subr.bf16.mxu0 %v6225
    %7203 = vmatpush1.bf16.msra.mxu0 %v6224
    %7204 = vmatprep.subr.bf16.mxu0 %v6229
    %7205 = vmatpush1.bf16.msra.mxu0 %v6228
    %7206 = vmatprep.subr.bf16.mxu0 %v6233
    %7207 = vmatpush1.bf16.msra.mxu0 %v6232
    %7208 = vmatprep.subr.bf16.mxu0 %v6237
    %7209 = vmatpush1.bf16.msra.mxu0 %v6236
    %7210 = vmatprep.subr.bf16.mxu0 %v6241
    %7211 = vmatpush1.bf16.msra.mxu0 %v6240
    %7212 = vmatprep.subr.bf16.mxu0 %v6245
    %7213 = vmatpush1.bf16.msra.mxu0 %v6244
    %7214 = vmatprep.subr.bf16.mxu0 %v6249
    %7215 = vmatpush1.bf16.msra.mxu0 %v6248
    %7216 = vmatprep.subr.bf16.mxu0 %v6253
    %7217 = vmatpush1.bf16.msra.mxu0 %v6252
    %7218 = vmatprep.subr.bf16.mxu0 %v6257
    %7219 = vmatpush1.bf16.msra.mxu0 %v6256
    %7220 = vmatprep.subr.bf16.mxu0 %v6261
    %7221 = vmatpush1.bf16.msra.mxu0 %v6260
    %7222 = vmatprep.subr.bf16.mxu0 %v6265
    %7223 = vmatpush1.bf16.msra.mxu0 %v6264
    %7224 = vmatprep.subr.bf16.mxu0 %v6269
    %7225 = vmatpush1.bf16.msra.mxu0 %v6268
    %7226 = vmatprep.subr.bf16.mxu0 %v6273
    %7227 = vmatpush1.bf16.msra.mxu0 %v6272
    %7228 = vmatprep.subr.bf16.mxu0 %v6277
    %7229 = vmatpush1.bf16.msra.mxu0 %v6276
    %7230 = vmatprep.mubr.bf16.mxu0 %v4007
    %7231 = vmatmul.mubr.bf16.gmra.mrb[0].mxu0 %v4006
    %v7232 = vpop.f32.mrb[0].mxu0
    %v7233 = vadd.f32 %v7190, %v7232
    %v7234 = vpop.f32.mrb[0].mxu0
    %v7235 = vadd.f32 %v7192, %v7234
    %v7236 = vpop.f32.mrb[0].mxu0
    %v7237 = vadd.f32 %v7194, %v7236
    %v7238 = vpop.f32.mrb[0].mxu0
    %v7239 = vadd.f32 %v7196, %v7238
    %7240 = vdwg.mxu0
    %7241 = vmatprep.subr.bf16.mxu0 %v6281
    %7242 = vmatpush1.bf16.msra.mxu0 %v6280
    %7243 = vmatprep.subr.bf16.mxu0 %v6285
    %7244 = vmatpush1.bf16.msra.mxu0 %v6284
    %7245 = vmatprep.subr.bf16.mxu0 %v6289
    %7246 = vmatpush1.bf16.msra.mxu0 %v6288
    %7247 = vmatprep.subr.bf16.mxu0 %v6293
    %7248 = vmatpush1.bf16.msra.mxu0 %v6292
    %7249 = vmatprep.subr.bf16.mxu0 %v6297
    %7250 = vmatpush1.bf16.msra.mxu0 %v6296
    %7251 = vmatprep.subr.bf16.mxu0 %v6301
    %7252 = vmatpush1.bf16.msra.mxu0 %v6300
    %7253 = vmatprep.subr.bf16.mxu0 %v6305
    %7254 = vmatpush1.bf16.msra.mxu0 %v6304
    %7255 = vmatprep.subr.bf16.mxu0 %v6309
    %7256 = vmatpush1.bf16.msra.mxu0 %v6308
    %7257 = vmatprep.subr.bf16.mxu0 %v6313
    %7258 = vmatpush1.bf16.msra.mxu0 %v6312
    %7259 = vmatprep.subr.bf16.mxu0 %v6317
    %7260 = vmatpush1.bf16.msra.mxu0 %v6316
    %7261 = vmatprep.subr.bf16.mxu0 %v6321
    %7262 = vmatpush1.bf16.msra.mxu0 %v6320
    %7263 = vmatprep.subr.bf16.mxu0 %v6325
    %7264 = vmatpush1.bf16.msra.mxu0 %v6324
    %7265 = vmatprep.subr.bf16.mxu0 %v6329
    %7266 = vmatpush1.bf16.msra.mxu0 %v6328
    %7267 = vmatprep.subr.bf16.mxu0 %v6333
    %7268 = vmatpush1.bf16.msra.mxu0 %v6332
    %7269 = vmatprep.subr.bf16.mxu0 %v6337
    %7270 = vmatpush1.bf16.msra.mxu0 %v6336
    %7271 = vmatprep.subr.bf16.mxu0 %v6341
    %7272 = vmatpush1.bf16.msra.mxu0 %v6340
    %7273 = vmatprep.mubr.bf16.mxu0 %v4009
    %7274 = vmatmul.mubr.bf16.gmra.mrb[0].mxu0 %v4008
    %v7275 = vpop.f32.mrb[0].mxu0
    %v7276 = vadd.f32 %v7233, %v7275
    %v7277 = vpop.f32.mrb[0].mxu0
    %v7278 = vadd.f32 %v7235, %v7277
    %v7279 = vpop.f32.mrb[0].mxu0
    %v7280 = vadd.f32 %v7237, %v7279
    %v7281 = vpop.f32.mrb[0].mxu0
    %v7282 = vadd.f32 %v7239, %v7281
    %7283 = vdwg.mxu0
    %7284 = vmatprep.subr.bf16.mxu0 %v6345
    %7285 = vmatpush1.bf16.msra.mxu0 %v6344
    %7286 = vmatprep.subr.bf16.mxu0 %v6349
    %7287 = vmatpush1.bf16.msra.mxu0 %v6348
    %7288 = vmatprep.subr.bf16.mxu0 %v6353
    %7289 = vmatpush1.bf16.msra.mxu0 %v6352
    %7290 = vmatprep.subr.bf16.mxu0 %v6357
    %7291 = vmatpush1.bf16.msra.mxu0 %v6356
    %7292 = vmatprep.subr.bf16.mxu0 %v6361
    %7293 = vmatpush1.bf16.msra.mxu0 %v6360
    %7294 = vmatprep.subr.bf16.mxu0 %v6365
    %7295 = vmatpush1.bf16.msra.mxu0 %v6364
    %7296 = vmatprep.subr.bf16.mxu0 %v6369
    %7297 = vmatpush1.bf16.msra.mxu0 %v6368
    %7298 = vmatprep.subr.bf16.mxu0 %v6373
    %7299 = vmatpush1.bf16.msra.mxu0 %v6372
    %7300 = vmatprep.subr.bf16.mxu0 %v6377
    %7301 = vmatpush1.bf16.msra.mxu0 %v6376
    %7302 = vmatprep.subr.bf16.mxu0 %v6381
    %7303 = vmatpush1.bf16.msra.mxu0 %v6380
    %7304 = vmatprep.subr.bf16.mxu0 %v6385
    %7305 = vmatpush1.bf16.msra.mxu0 %v6384
    %7306 = vmatprep.subr.bf16.mxu0 %v6389
    %7307 = vmatpush1.bf16.msra.mxu0 %v6388
    %7308 = vmatprep.subr.bf16.mxu0 %v6393
    %7309 = vmatpush1.bf16.msra.mxu0 %v6392
    %7310 = vmatprep.subr.bf16.mxu0 %v6397
    %7311 = vmatpush1.bf16.msra.mxu0 %v6396
    %7312 = vmatprep.subr.bf16.mxu0 %v6401
    %7313 = vmatpush1.bf16.msra.mxu0 %v6400
    %7314 = vmatprep.subr.bf16.mxu0 %v6405
    %7315 = vmatpush1.bf16.msra.mxu0 %v6404
    %7316 = vmatprep.mubr.bf16.mxu0 %v4011
    %7317 = vmatmul.mubr.bf16.gmra.mrb[0].mxu0 %v4010
    %v7318 = vpop.f32.mrb[0].mxu0
    %v7319 = vadd.f32 %v7276, %v7318
    %v7320 = vpop.f32.mrb[0].mxu0
    %v7321 = vadd.f32 %v7278, %v7320
    %v7322 = vpop.f32.mrb[0].mxu0
    %v7323 = vadd.f32 %v7280, %v7322
    %v7324 = vpop.f32.mrb[0].mxu0
    %v7325 = vadd.f32 %v7282, %v7324
    %7326 = vdwg.mxu0
    %7327 = vmatprep.subr.bf16.mxu0 %v6409
    %7328 = vmatpush1.bf16.msra.mxu0 %v6408
    %7329 = vmatprep.subr.bf16.mxu0 %v6413
    %7330 = vmatpush1.bf16.msra.mxu0 %v6412
    %7331 = vmatprep.subr.bf16.mxu0 %v6417
    %7332 = vmatpush1.bf16.msra.mxu0 %v6416
    %7333 = vmatprep.subr.bf16.mxu0 %v6421
    %7334 = vmatpush1.bf16.msra.mxu0 %v6420
    %7335 = vmatprep.subr.bf16.mxu0 %v6425
    %7336 = vmatpush1.bf16.msra.mxu0 %v6424
    %7337 = vmatprep.subr.bf16.mxu0 %v6429
    %7338 = vmatpush1.bf16.msra.mxu0 %v6428
    %7339 = vmatprep.subr.bf16.mxu0 %v6433
    %7340 = vmatpush1.bf16.msra.mxu0 %v6432
    %7341 = vmatprep.subr.bf16.mxu0 %v6437
    %7342 = vmatpush1.bf16.msra.mxu0 %v6436
    %7343 = vmatprep.subr.bf16.mxu0 %v6441
    %7344 = vmatpush1.bf16.msra.mxu0 %v6440
    %7345 = vmatprep.subr.bf16.mxu0 %v6445
    %7346 = vmatpush1.bf16.msra.mxu0 %v6444
    %7347 = vmatprep.subr.bf16.mxu0 %v6449
    %7348 = vmatpush1.bf16.msra.mxu0 %v6448
    %7349 = vmatprep.subr.bf16.mxu0 %v6453
    %7350 = vmatpush1.bf16.msra.mxu0 %v6452
    %7351 = vmatprep.subr.bf16.mxu0 %v6457
    %7352 = vmatpush1.bf16.msra.mxu0 %v6456
    %7353 = vmatprep.subr.bf16.mxu0 %v6461
    %7354 = vmatpush1.bf16.msra.mxu0 %v6460
    %7355 = vmatprep.subr.bf16.mxu0 %v6465
    %7356 = vmatpush1.bf16.msra.mxu0 %v6464
    %7357 = vmatprep.subr.bf16.mxu0 %v6469
    %7358 = vmatpush1.bf16.msra.mxu0 %v6468
    %7359 = vmatprep.mubr.bf16.mxu0 %v4013
    %7360 = vmatmul.mubr.bf16.gmra.mrb[0].mxu0 %v4012
    %v7361 = vpop.f32.mrb[0].mxu0
    %v7362 = vadd.f32 %v7319, %v7361
    %v7363 = vpop.f32.mrb[0].mxu0
    %v7364 = vadd.f32 %v7321, %v7363
    %v7365 = vpop.f32.mrb[0].mxu0
    %v7366 = vadd.f32 %v7323, %v7365
    %v7367 = vpop.f32.mrb[0].mxu0
    %v7368 = vadd.f32 %v7325, %v7367
    %7369 = vdwg.mxu0
    %7370 = vmatprep.subr.bf16.mxu0 %v6473
    %7371 = vmatpush1.bf16.msra.mxu0 %v6472
    %7372 = vmatprep.subr.bf16.mxu0 %v6477
    %7373 = vmatpush1.bf16.msra.mxu0 %v6476
    %7374 = vmatprep.subr.bf16.mxu0 %v6481
    %7375 = vmatpush1.bf16.msra.mxu0 %v6480
    %7376 = vmatprep.subr.bf16.mxu0 %v6485
    %7377 = vmatpush1.bf16.msra.mxu0 %v6484
    %7378 = vmatprep.subr.bf16.mxu0 %v6489
    %7379 = vmatpush1.bf16.msra.mxu0 %v6488
    %7380 = vmatprep.subr.bf16.mxu0 %v6493
    %7381 = vmatpush1.bf16.msra.mxu0 %v6492
    %7382 = vmatprep.subr.bf16.mxu0 %v6497
    %7383 = vmatpush1.bf16.msra.mxu0 %v6496
    %7384 = vmatprep.subr.bf16.mxu0 %v6501
    %7385 = vmatpush1.bf16.msra.mxu0 %v6500
    %7386 = vmatprep.subr.bf16.mxu0 %v6505
    %7387 = vmatpush1.bf16.msra.mxu0 %v6504
    %7388 = vmatprep.subr.bf16.mxu0 %v6509
    %7389 = vmatpush1.bf16.msra.mxu0 %v6508
    %7390 = vmatprep.subr.bf16.mxu0 %v6513
    %7391 = vmatpush1.bf16.msra.mxu0 %v6512
    %7392 = vmatprep.subr.bf16.mxu0 %v6517
    %7393 = vmatpush1.bf16.msra.mxu0 %v6516
    %7394 = vmatprep.subr.bf16.mxu0 %v6521
    %7395 = vmatpush1.bf16.msra.mxu0 %v6520
    %7396 = vmatprep.subr.bf16.mxu0 %v6525
    %7397 = vmatpush1.bf16.msra.mxu0 %v6524
    %7398 = vmatprep.subr.bf16.mxu0 %v6529
    %7399 = vmatpush1.bf16.msra.mxu0 %v6528
    %7400 = vmatprep.subr.bf16.mxu0 %v6533
    %7401 = vmatpush1.bf16.msra.mxu0 %v6532
    %7402 = vmatprep.mubr.bf16.mxu0 %v4015
    %7403 = vmatmul.mubr.bf16.gmra.mrb[0].mxu0 %v4014
    %v7404 = vpop.f32.mrb[0].mxu0
    %v7405 = vadd.f32 %v7362, %v7404
    %v7406 = vpop.f32.mrb[0].mxu0
    %v7407 = vadd.f32 %v7364, %v7406
    %v7408 = vpop.f32.mrb[0].mxu0
    %v7409 = vadd.f32 %v7366, %v7408
    %v7410 = vpop.f32.mrb[0].mxu0
    %v7411 = vadd.f32 %v7368, %v7410
    %7412 = vdwg.mxu0
    %7413 = vmatprep.subr.bf16.mxu0 %v6537
    %7414 = vmatpush1.bf16.msra.mxu0 %v6536
    %7415 = vmatprep.subr.bf16.mxu0 %v6541
    %7416 = vmatpush1.bf16.msra.mxu0 %v6540
    %7417 = vmatprep.subr.bf16.mxu0 %v6545
    %7418 = vmatpush1.bf16.msra.mxu0 %v6544
    %7419 = vmatprep.subr.bf16.mxu0 %v6549
    %7420 = vmatpush1.bf16.msra.mxu0 %v6548
    %7421 = vmatprep.subr.bf16.mxu0 %v6553
    %7422 = vmatpush1.bf16.msra.mxu0 %v6552
    %7423 = vmatprep.subr.bf16.mxu0 %v6557
    %7424 = vmatpush1.bf16.msra.mxu0 %v6556
    %7425 = vmatprep.subr.bf16.mxu0 %v6561
    %7426 = vmatpush1.bf16.msra.mxu0 %v6560
    %7427 = vmatprep.subr.bf16.mxu0 %v6565
    %7428 = vmatpush1.bf16.msra.mxu0 %v6564
    %7429 = vmatprep.subr.bf16.mxu0 %v6569
    %7430 = vmatpush1.bf16.msra.mxu0 %v6568
    %7431 = vmatprep.subr.bf16.mxu0 %v6573
    %7432 = vmatpush1.bf16.msra.mxu0 %v6572
    %7433 = vmatprep.subr.bf16.mxu0 %v6577
    %7434 = vmatpush1.bf16.msra.mxu0 %v6576
    %7435 = vmatprep.subr.bf16.mxu0 %v6581
    %7436 = vmatpush1.bf16.msra.mxu0 %v6580
    %7437 = vmatprep.subr.bf16.mxu0 %v6585
    %7438 = vmatpush1.bf16.msra.mxu0 %v6584
    %7439 = vmatprep.subr.bf16.mxu0 %v6589
    %7440 = vmatpush1.bf16.msra.mxu0 %v6588
    %7441 = vmatprep.subr.bf16.mxu0 %v6593
    %7442 = vmatpush1.bf16.msra.mxu0 %v6592
    %7443 = vmatprep.subr.bf16.mxu0 %v6597
    %7444 = vmatpush1.bf16.msra.mxu0 %v6596
    %7445 = vmatprep.mubr.bf16.mxu0 %v4017
    %7446 = vmatmul.mubr.bf16.gmra.mrb[0].mxu0 %v4016
    %v7447 = vpop.f32.mrb[0].mxu0
    %v7448 = vadd.f32 %v7405, %v7447
    %v7449 = vpop.f32.mrb[0].mxu0
    %v7450 = vadd.f32 %v7407, %v7449
    %v7451 = vpop.f32.mrb[0].mxu0
    %v7452 = vadd.f32 %v7409, %v7451
    %v7453 = vpop.f32.mrb[0].mxu0
    %v7454 = vadd.f32 %v7411, %v7453
    %7455 = vdwg.mxu0
    %7456 = vmatprep.subr.bf16.mxu0 %v6091
    %7457 = vmatpush1.bf16.msra.mxu0 %v6090
    %7458 = vmatprep.subr.bf16.mxu0 %v6095
    %7459 = vmatpush1.bf16.msra.mxu0 %v6094
    %7460 = vmatprep.subr.bf16.mxu0 %v6099
    %7461 = vmatpush1.bf16.msra.mxu0 %v6098
    %7462 = vmatprep.subr.bf16.mxu0 %v6103
    %7463 = vmatpush1.bf16.msra.mxu0 %v6102
    %7464 = vmatprep.subr.bf16.mxu0 %v6107
    %7465 = vmatpush1.bf16.msra.mxu0 %v6106
    %7466 = vmatprep.subr.bf16.mxu0 %v6111
    %7467 = vmatpush1.bf16.msra.mxu0 %v6110
    %7468 = vmatprep.subr.bf16.mxu0 %v6115
    %7469 = vmatpush1.bf16.msra.mxu0 %v6114
    %7470 = vmatprep.subr.bf16.mxu0 %v6119
    %7471 = vmatpush1.bf16.msra.mxu0 %v6118
    %7472 = vmatprep.subr.bf16.mxu0 %v6123
    %7473 = vmatpush1.bf16.msra.mxu0 %v6122
    %7474 = vmatprep.subr.bf16.mxu0 %v6127
    %7475 = vmatpush1.bf16.msra.mxu0 %v6126
    %7476 = vmatprep.subr.bf16.mxu0 %v6131
    %7477 = vmatpush1.bf16.msra.mxu0 %v6130
    %7478 = vmatprep.subr.bf16.mxu0 %v6135
    %7479 = vmatpush1.bf16.msra.mxu0 %v6134
    %7480 = vmatprep.subr.bf16.mxu0 %v6139
    %7481 = vmatpush1.bf16.msra.mxu0 %v6138
    %7482 = vmatprep.subr.bf16.mxu0 %v6143
    %7483 = vmatpush1.bf16.msra.mxu0 %v6142
    %7484 = vmatprep.subr.bf16.mxu0 %v6147
    %7485 = vmatpush1.bf16.msra.mxu0 %v6146
    %7486 = vmatprep.subr.bf16.mxu0 %v6151
    %7487 = vmatpush1.bf16.msra.mxu0 %v6150
    %7488 = vmatprep.mubr.bf16.mxu0 %v4003
    %7489 = vmatmul.mubr.bf16.gmra.mrb[0].mxu0 %v4002
    %v7490 = vpop.f32.mrb[0].mxu0
    %v7491 = vadd.f32 %v4543, %v7490
    %v7492 = vpop.f32.mrb[0].mxu0
    %v7493 = vadd.f32 %v4547, %v7492
    %v7494 = vpop.f32.mrb[0].mxu0
    %v7495 = vadd.f32 %v4543, %v7494
    %v7496 = vpop.f32.mrb[0].mxu0
    %v7497 = vadd.f32 %v4547, %v7496
    %7498 = vdwg.mxu0
    %7499 = vmatprep.subr.bf16.mxu0 %v6155
    %7500 = vmatpush1.bf16.msra.mxu0 %v6154
    %7501 = vmatprep.subr.bf16.mxu0 %v6159
    %7502 = vmatpush1.bf16.msra.mxu0 %v6158
    %7503 = vmatprep.subr.bf16.mxu0 %v6163
    %7504 = vmatpush1.bf16.msra.mxu0 %v6162
    %7505 = vmatprep.subr.bf16.mxu0 %v6167
    %7506 = vmatpush1.bf16.msra.mxu0 %v6166
    %7507 = vmatprep.subr.bf16.mxu0 %v6171
    %7508 = vmatpush1.bf16.msra.mxu0 %v6170
    %7509 = vmatprep.subr.bf16.mxu0 %v6175
    %7510 = vmatpush1.bf16.msra.mxu0 %v6174
    %7511 = vmatprep.subr.bf16.mxu0 %v6179
    %7512 = vmatpush1.bf16.msra.mxu0 %v6178
    %7513 = vmatprep.subr.bf16.mxu0 %v6183
    %7514 = vmatpush1.bf16.msra.mxu0 %v6182
    %7515 = vmatprep.subr.bf16.mxu0 %v6187
    %7516 = vmatpush1.bf16.msra.mxu0 %v6186
    %7517 = vmatprep.subr.bf16.mxu0 %v6191
    %7518 = vmatpush1.bf16.msra.mxu0 %v6190
    %7519 = vmatprep.subr.bf16.mxu0 %v6195
    %7520 = vmatpush1.bf16.msra.mxu0 %v6194
    %7521 = vmatprep.subr.bf16.mxu0 %v6199
    %7522 = vmatpush1.bf16.msra.mxu0 %v6198
    %7523 = vmatprep.subr.bf16.mxu0 %v6203
    %7524 = vmatpush1.bf16.msra.mxu0 %v6202
    %7525 = vmatprep.subr.bf16.mxu0 %v6207
    %7526 = vmatpush1.bf16.msra.mxu0 %v6206
    %7527 = vmatprep.subr.bf16.mxu0 %v6211
    %7528 = vmatpush1.bf16.msra.mxu0 %v6210
    %7529 = vmatprep.subr.bf16.mxu0 %v6215
    %7530 = vmatpush1.bf16.msra.mxu0 %v6214
    %7531 = vmatprep.mubr.bf16.mxu0 %v4005
    %7532 = vmatmul.mubr.bf16.gmra.mrb[0].mxu0 %v4004
    %v7533 = vpop.f32.mrb[0].mxu0
    %v7534 = vadd.f32 %v7491, %v7533
    %v7535 = vpop.f32.mrb[0].mxu0
    %v7536 = vadd.f32 %v7493, %v7535
    %v7537 = vpop.f32.mrb[0].mxu0
    %v7538 = vadd.f32 %v7495, %v7537
    %v7539 = vpop.f32.mrb[0].mxu0
    %v7540 = vadd.f32 %v7497, %v7539
    %7541 = vdwg.mxu0
    %7542 = vmatprep.subr.bf16.mxu0 %v6219
    %7543 = vmatpush1.bf16.msra.mxu0 %v6218
    %7544 = vmatprep.subr.bf16.mxu0 %v6223
    %7545 = vmatpush1.bf16.msra.mxu0 %v6222
    %7546 = vmatprep.subr.bf16.mxu0 %v6227
    %7547 = vmatpush1.bf16.msra.mxu0 %v6226
    %7548 = vmatprep.subr.bf16.mxu0 %v6231
    %7549 = vmatpush1.bf16.msra.mxu0 %v6230
    %7550 = vmatprep.subr.bf16.mxu0 %v6235
    %7551 = vmatpush1.bf16.msra.mxu0 %v6234
    %7552 = vmatprep.subr.bf16.mxu0 %v6239
    %7553 = vmatpush1.bf16.msra.mxu0 %v6238
    %7554 = vmatprep.subr.bf16.mxu0 %v6243
    %7555 = vmatpush1.bf16.msra.mxu0 %v6242
    %7556 = vmatprep.subr.bf16.mxu0 %v6247
    %7557 = vmatpush1.bf16.msra.mxu0 %v6246
    %7558 = vmatprep.subr.bf16.mxu0 %v6251
    %7559 = vmatpush1.bf16.msra.mxu0 %v6250
    %7560 = vmatprep.subr.bf16.mxu0 %v6255
    %7561 = vmatpush1.bf16.msra.mxu0 %v6254
    %7562 = vmatprep.subr.bf16.mxu0 %v6259
    %7563 = vmatpush1.bf16.msra.mxu0 %v6258
    %7564 = vmatprep.subr.bf16.mxu0 %v6263
    %7565 = vmatpush1.bf16.msra.mxu0 %v6262
    %7566 = vmatprep.subr.bf16.mxu0 %v6267
    %7567 = vmatpush1.bf16.msra.mxu0 %v6266
    %7568 = vmatprep.subr.bf16.mxu0 %v6271
    %7569 = vmatpush1.bf16.msra.mxu0 %v6270
    %7570 = vmatprep.subr.bf16.mxu0 %v6275
    %7571 = vmatpush1.bf16.msra.mxu0 %v6274
    %7572 = vmatprep.subr.bf16.mxu0 %v6279
    %7573 = vmatpush1.bf16.msra.mxu0 %v6278
    %7574 = vmatprep.mubr.bf16.mxu0 %v4007
    %7575 = vmatmul.mubr.bf16.gmra.mrb[0].mxu0 %v4006
    %v7576 = vpop.f32.mrb[0].mxu0
    %v7577 = vadd.f32 %v7534, %v7576
    %v7578 = vpop.f32.mrb[0].mxu0
    %v7579 = vadd.f32 %v7536, %v7578
    %v7580 = vpop.f32.mrb[0].mxu0
    %v7581 = vadd.f32 %v7538, %v7580
    %v7582 = vpop.f32.mrb[0].mxu0
    %v7583 = vadd.f32 %v7540, %v7582
    %7584 = vdwg.mxu0
    %7585 = vmatprep.subr.bf16.mxu0 %v6283
    %7586 = vmatpush1.bf16.msra.mxu0 %v6282
    %7587 = vmatprep.subr.bf16.mxu0 %v6287
    %7588 = vmatpush1.bf16.msra.mxu0 %v6286
    %7589 = vmatprep.subr.bf16.mxu0 %v6291
    %7590 = vmatpush1.bf16.msra.mxu0 %v6290
    %7591 = vmatprep.subr.bf16.mxu0 %v6295
    %7592 = vmatpush1.bf16.msra.mxu0 %v6294
    %7593 = vmatprep.subr.bf16.mxu0 %v6299
    %7594 = vmatpush1.bf16.msra.mxu0 %v6298
    %7595 = vmatprep.subr.bf16.mxu0 %v6303
    %7596 = vmatpush1.bf16.msra.mxu0 %v6302
    %7597 = vmatprep.subr.bf16.mxu0 %v6307
    %7598 = vmatpush1.bf16.msra.mxu0 %v6306
    %7599 = vmatprep.subr.bf16.mxu0 %v6311
    %7600 = vmatpush1.bf16.msra.mxu0 %v6310
    %7601 = vmatprep.subr.bf16.mxu0 %v6315
    %7602 = vmatpush1.bf16.msra.mxu0 %v6314
    %7603 = vmatprep.subr.bf16.mxu0 %v6319
    %7604 = vmatpush1.bf16.msra.mxu0 %v6318
    %7605 = vmatprep.subr.bf16.mxu0 %v6323
    %7606 = vmatpush1.bf16.msra.mxu0 %v6322
    %7607 = vmatprep.subr.bf16.mxu0 %v6327
    %7608 = vmatpush1.bf16.msra.mxu0 %v6326
    %7609 = vmatprep.subr.bf16.mxu0 %v6331
    %7610 = vmatpush1.bf16.msra.mxu0 %v6330
    %7611 = vmatprep.subr.bf16.mxu0 %v6335
    %7612 = vmatpush1.bf16.msra.mxu0 %v6334
    %7613 = vmatprep.subr.bf16.mxu0 %v6339
    %7614 = vmatpush1.bf16.msra.mxu0 %v6338
    %7615 = vmatprep.subr.bf16.mxu0 %v6343
    %7616 = vmatpush1.bf16.msra.mxu0 %v6342
    %7617 = vmatprep.mubr.bf16.mxu0 %v4009
    %7618 = vmatmul.mubr.bf16.gmra.mrb[0].mxu0 %v4008
    %v7619 = vpop.f32.mrb[0].mxu0
    %v7620 = vadd.f32 %v7577, %v7619
    %v7621 = vpop.f32.mrb[0].mxu0
    %v7622 = vadd.f32 %v7579, %v7621
    %v7623 = vpop.f32.mrb[0].mxu0
    %v7624 = vadd.f32 %v7581, %v7623
    %v7625 = vpop.f32.mrb[0].mxu0
    %v7626 = vadd.f32 %v7583, %v7625
    %7627 = vdwg.mxu0
    %7628 = vmatprep.subr.bf16.mxu0 %v6347
    %7629 = vmatpush1.bf16.msra.mxu0 %v6346
    %7630 = vmatprep.subr.bf16.mxu0 %v6351
    %7631 = vmatpush1.bf16.msra.mxu0 %v6350
    %7632 = vmatprep.subr.bf16.mxu0 %v6355
    %7633 = vmatpush1.bf16.msra.mxu0 %v6354
    %7634 = vmatprep.subr.bf16.mxu0 %v6359
    %7635 = vmatpush1.bf16.msra.mxu0 %v6358
    %7636 = vmatprep.subr.bf16.mxu0 %v6363
    %7637 = vmatpush1.bf16.msra.mxu0 %v6362
    %7638 = vmatprep.subr.bf16.mxu0 %v6367
    %7639 = vmatpush1.bf16.msra.mxu0 %v6366
    %7640 = vmatprep.subr.bf16.mxu0 %v6371
    %7641 = vmatpush1.bf16.msra.mxu0 %v6370
    %7642 = vmatprep.subr.bf16.mxu0 %v6375
    %7643 = vmatpush1.bf16.msra.mxu0 %v6374
    %7644 = vmatprep.subr.bf16.mxu0 %v6379
    %7645 = vmatpush1.bf16.msra.mxu0 %v6378
    %7646 = vmatprep.subr.bf16.mxu0 %v6383
    %7647 = vmatpush1.bf16.msra.mxu0 %v6382
    %7648 = vmatprep.subr.bf16.mxu0 %v6387
    %7649 = vmatpush1.bf16.msra.mxu0 %v6386
    %7650 = vmatprep.subr.bf16.mxu0 %v6391
    %7651 = vmatpush1.bf16.msra.mxu0 %v6390
    %7652 = vmatprep.subr.bf16.mxu0 %v6395
    %7653 = vmatpush1.bf16.msra.mxu0 %v6394
    %7654 = vmatprep.subr.bf16.mxu0 %v6399
    %7655 = vmatpush1.bf16.msra.mxu0 %v6398
    %7656 = vmatprep.subr.bf16.mxu0 %v6403
    %7657 = vmatpush1.bf16.msra.mxu0 %v6402
    %7658 = vmatprep.subr.bf16.mxu0 %v6407
    %7659 = vmatpush1.bf16.msra.mxu0 %v6406
    %7660 = vmatprep.mubr.bf16.mxu0 %v4011
    %7661 = vmatmul.mubr.bf16.gmra.mrb[0].mxu0 %v4010
    %v7662 = vpop.f32.mrb[0].mxu0
    %v7663 = vadd.f32 %v7620, %v7662
    %v7664 = vpop.f32.mrb[0].mxu0
    %v7665 = vadd.f32 %v7622, %v7664
    %v7666 = vpop.f32.mrb[0].mxu0
    %v7667 = vadd.f32 %v7624, %v7666
    %v7668 = vpop.f32.mrb[0].mxu0
    %v7669 = vadd.f32 %v7626, %v7668
    %7670 = vdwg.mxu0
    %7671 = vmatprep.subr.bf16.mxu0 %v6411
    %7672 = vmatpush1.bf16.msra.mxu0 %v6410
    %7673 = vmatprep.subr.bf16.mxu0 %v6415
    %7674 = vmatpush1.bf16.msra.mxu0 %v6414
    %7675 = vmatprep.subr.bf16.mxu0 %v6419
    %7676 = vmatpush1.bf16.msra.mxu0 %v6418
    %7677 = vmatprep.subr.bf16.mxu0 %v6423
    %7678 = vmatpush1.bf16.msra.mxu0 %v6422
    %7679 = vmatprep.subr.bf16.mxu0 %v6427
    %7680 = vmatpush1.bf16.msra.mxu0 %v6426
    %7681 = vmatprep.subr.bf16.mxu0 %v6431
    %7682 = vmatpush1.bf16.msra.mxu0 %v6430
    %7683 = vmatprep.subr.bf16.mxu0 %v6435
    %7684 = vmatpush1.bf16.msra.mxu0 %v6434
    %7685 = vmatprep.subr.bf16.mxu0 %v6439
    %7686 = vmatpush1.bf16.msra.mxu0 %v6438
    %7687 = vmatprep.subr.bf16.mxu0 %v6443
    %7688 = vmatpush1.bf16.msra.mxu0 %v6442
    %7689 = vmatprep.subr.bf16.mxu0 %v6447
    %7690 = vmatpush1.bf16.msra.mxu0 %v6446
    %7691 = vmatprep.subr.bf16.mxu0 %v6451
    %7692 = vmatpush1.bf16.msra.mxu0 %v6450
    %7693 = vmatprep.subr.bf16.mxu0 %v6455
    %7694 = vmatpush1.bf16.msra.mxu0 %v6454
    %7695 = vmatprep.subr.bf16.mxu0 %v6459
    %7696 = vmatpush1.bf16.msra.mxu0 %v6458
    %7697 = vmatprep.subr.bf16.mxu0 %v6463
    %7698 = vmatpush1.bf16.msra.mxu0 %v6462
    %7699 = vmatprep.subr.bf16.mxu0 %v6467
    %7700 = vmatpush1.bf16.msra.mxu0 %v6466
    %7701 = vmatprep.subr.bf16.mxu0 %v6471
    %7702 = vmatpush1.bf16.msra.mxu0 %v6470
    %7703 = vmatprep.mubr.bf16.mxu0 %v4013
    %7704 = vmatmul.mubr.bf16.gmra.mrb[0].mxu0 %v4012
    %v7705 = vpop.f32.mrb[0].mxu0
    %v7706 = vadd.f32 %v7663, %v7705
    %v7707 = vpop.f32.mrb[0].mxu0
    %v7708 = vadd.f32 %v7665, %v7707
    %v7709 = vpop.f32.mrb[0].mxu0
    %v7710 = vadd.f32 %v7667, %v7709
    %v7711 = vpop.f32.mrb[0].mxu0
    %v7712 = vadd.f32 %v7669, %v7711
    %7713 = vdwg.mxu0
    %7714 = vmatprep.subr.bf16.mxu0 %v6475
    %7715 = vmatpush1.bf16.msra.mxu0 %v6474
    %7716 = vmatprep.subr.bf16.mxu0 %v6479
    %7717 = vmatpush1.bf16.msra.mxu0 %v6478
    %7718 = vmatprep.subr.bf16.mxu0 %v6483
    %7719 = vmatpush1.bf16.msra.mxu0 %v6482
    %7720 = vmatprep.subr.bf16.mxu0 %v6487
    %7721 = vmatpush1.bf16.msra.mxu0 %v6486
    %7722 = vmatprep.subr.bf16.mxu0 %v6491
    %7723 = vmatpush1.bf16.msra.mxu0 %v6490
    %7724 = vmatprep.subr.bf16.mxu0 %v6495
    %7725 = vmatpush1.bf16.msra.mxu0 %v6494
    %7726 = vmatprep.subr.bf16.mxu0 %v6499
    %7727 = vmatpush1.bf16.msra.mxu0 %v6498
    %7728 = vmatprep.subr.bf16.mxu0 %v6503
    %7729 = vmatpush1.bf16.msra.mxu0 %v6502
    %7730 = vmatprep.subr.bf16.mxu0 %v6507
    %7731 = vmatpush1.bf16.msra.mxu0 %v6506
    %7732 = vmatprep.subr.bf16.mxu0 %v6511
    %7733 = vmatpush1.bf16.msra.mxu0 %v6510
    %7734 = vmatprep.subr.bf16.mxu0 %v6515
    %7735 = vmatpush1.bf16.msra.mxu0 %v6514
    %7736 = vmatprep.subr.bf16.mxu0 %v6519
    %7737 = vmatpush1.bf16.msra.mxu0 %v6518
    %7738 = vmatprep.subr.bf16.mxu0 %v6523
    %7739 = vmatpush1.bf16.msra.mxu0 %v6522
    %7740 = vmatprep.subr.bf16.mxu0 %v6527
    %7741 = vmatpush1.bf16.msra.mxu0 %v6526
    %7742 = vmatprep.subr.bf16.mxu0 %v6531
    %7743 = vmatpush1.bf16.msra.mxu0 %v6530
    %7744 = vmatprep.subr.bf16.mxu0 %v6535
    %7745 = vmatpush1.bf16.msra.mxu0 %v6534
    %7746 = vmatprep.mubr.bf16.mxu0 %v4015
    %7747 = vmatmul.mubr.bf16.gmra.mrb[0].mxu0 %v4014
    %v7748 = vpop.f32.mrb[0].mxu0
    %v7749 = vadd.f32 %v7706, %v7748
    %v7750 = vpop.f32.mrb[0].mxu0
    %v7751 = vadd.f32 %v7708, %v7750
    %v7752 = vpop.f32.mrb[0].mxu0
    %v7753 = vadd.f32 %v7710, %v7752
    %v7754 = vpop.f32.mrb[0].mxu0
    %v7755 = vadd.f32 %v7712, %v7754
    %7756 = vdwg.mxu0
    %7757 = vmatprep.subr.bf16.mxu0 %v6539
    %7758 = vmatpush1.bf16.msra.mxu0 %v6538
    %7759 = vmatprep.subr.bf16.mxu0 %v6543
    %7760 = vmatpush1.bf16.msra.mxu0 %v6542
    %7761 = vmatprep.subr.bf16.mxu0 %v6547
    %7762 = vmatpush1.bf16.msra.mxu0 %v6546
    %7763 = vmatprep.subr.bf16.mxu0 %v6551
    %7764 = vmatpush1.bf16.msra.mxu0 %v6550
    %7765 = vmatprep.subr.bf16.mxu0 %v6555
    %7766 = vmatpush1.bf16.msra.mxu0 %v6554
    %7767 = vmatprep.subr.bf16.mxu0 %v6559
    %7768 = vmatpush1.bf16.msra.mxu0 %v6558
    %7769 = vmatprep.subr.bf16.mxu0 %v6563
    %7770 = vmatpush1.bf16.msra.mxu0 %v6562
    %7771 = vmatprep.subr.bf16.mxu0 %v6567
    %7772 = vmatpush1.bf16.msra.mxu0 %v6566
    %7773 = vmatprep.subr.bf16.mxu0 %v6571
    %7774 = vmatpush1.bf16.msra.mxu0 %v6570
    %7775 = vmatprep.subr.bf16.mxu0 %v6575
    %7776 = vmatpush1.bf16.msra.mxu0 %v6574
    %7777 = vmatprep.subr.bf16.mxu0 %v6579
    %7778 = vmatpush1.bf16.msra.mxu0 %v6578
    %7779 = vmatprep.subr.bf16.mxu0 %v6583
    %7780 = vmatpush1.bf16.msra.mxu0 %v6582
    %7781 = vmatprep.subr.bf16.mxu0 %v6587
    %7782 = vmatpush1.bf16.msra.mxu0 %v6586
    %7783 = vmatprep.subr.bf16.mxu0 %v6591
    %7784 = vmatpush1.bf16.msra.mxu0 %v6590
    %7785 = vmatprep.subr.bf16.mxu0 %v6595
    %7786 = vmatpush1.bf16.msra.mxu0 %v6594
    %7787 = vmatprep.subr.bf16.mxu0 %v6599
    %7788 = vmatpush1.bf16.msra.mxu0 %v6598
    %7789 = vmatprep.mubr.bf16.mxu0 %v4017
    %7790 = vmatmul.mubr.bf16.gmra.mrb[0].mxu0 %v4016
    %v7791 = vpop.f32.mrb[0].mxu0
    %v7792 = vadd.f32 %v7749, %v7791
    %v7793 = vpop.f32.mrb[0].mxu0
    %v7794 = vadd.f32 %v7751, %v7793
    %v7795 = vpop.f32.mrb[0].mxu0
    %v7796 = vadd.f32 %v7753, %v7795
    %v7797 = vpop.f32.mrb[0].mxu0
    %v7798 = vadd.f32 %v7755, %v7797
    %7799 = vdwg.mxu0
    %v7800 = vadd.f32 %v7448, %v114
    %v7801 = vadd.f32 %v7450, %v115
    %v7802 = vadd.f32 %v7792, %v116
    %v7803 = vadd.f32 %v7794, %v117
    %v7804 = vadd.f32 %v7452, %v118
    %v7805 = vadd.f32 %v7454, %v119
    %v7806 = vadd.f32 %v7796, %v120
    %v7807 = vadd.f32 %v7798, %v121
    %v7808 = vadd.f32 %v7800, %v7801
    %v7809 = vadd.f32 %v7808, %v7802
    %v7810 = vadd.f32 %v7809, %v7803
    %7811 = vadd.xlane.f32.xlu0 %v7810
    %v7812 = vpop.xlane.xlu0 %7811
    %v7813 = vadd.f32 %v7804, %v7805
    %v7814 = vadd.f32 %v7813, %v7806
    %v7815 = vadd.f32 %v7814, %v7807
    %7816 = vadd.xlane.f32.xlu0 %v7815
    %v7817 = vpop.xlane.xlu0 %7816
    %v7818 = vrcp.pop 512.0
    %v7819 = vmul.f32 %v7812, %v7818
    %v7820 = vmul.f32 %v7817, %v7818
    %v7821 = vsub.f32 %v7800, %v7819
    %v7822 = vsub.f32 %v7801, %v7819
    %v7823 = vsub.f32 %v7802, %v7819
    %v7824 = vsub.f32 %v7803, %v7819
    %v7825 = vsub.f32 %v7804, %v7820
    %v7826 = vsub.f32 %v7805, %v7820
    %v7827 = vsub.f32 %v7806, %v7820
    %v7828 = vsub.f32 %v7807, %v7820
    %v7829 = vmul.f32 %v7821, %v7821
    %v7830 = vmul.f32 %v7822, %v7822
    %v7831 = vmul.f32 %v7823, %v7823
    %v7832 = vmul.f32 %v7824, %v7824
    %v7833 = vmul.f32 %v7825, %v7825
    %v7834 = vmul.f32 %v7826, %v7826
    %v7835 = vmul.f32 %v7827, %v7827
    %v7836 = vmul.f32 %v7828, %v7828
    %v7837 = vadd.f32 %v7829, %v7830
    %v7838 = vadd.f32 %v7837, %v7831
    %v7839 = vadd.f32 %v7838, %v7832
    %7840 = vadd.xlane.f32.xlu0 %v7839
    %v7841 = vpop.xlane.xlu0 %7840
    %v7842 = vadd.f32 %v7833, %v7834
    %v7843 = vadd.f32 %v7842, %v7835
    %v7844 = vadd.f32 %v7843, %v7836
    %7845 = vadd.xlane.f32.xlu0 %v7844
    %v7846 = vpop.xlane.xlu0 %7845
    %v7847 = vmul.f32 %v7841, %v7818
    %v7848 = vmul.f32 %v7846, %v7818
    %v7849 = vadd.f32 %v7847, 1e-05
    %v7850 = vadd.f32 %v7848, 1e-05
    %v7851 = vrsqrt.pop %v7849
    %v7852 = vrsqrt.pop %v7850
    %v7853 = vmul.f32 %v7821, %v7851
    %v7854 = vmul.f32 %v7822, %v7851
    %v7855 = vmul.f32 %v7823, %v7851
    %v7856 = vmul.f32 %v7824, %v7851
    %v7857 = vmul.f32 %v7825, %v7852
    %v7858 = vmul.f32 %v7826, %v7852
    %v7859 = vmul.f32 %v7827, %v7852
    %v7860 = vmul.f32 %v7828, %v7852
    %v7861 = vld [vmem:[#allocation11] sm:$0xf]
    %v7863 = vlaneseq
    %v7864 = vshrl.u32 %v7863, 7
    %v7865 = vsub.s32 0, %v7864
    %v7866 = vrot.slane %v7861, %v7865
    %v7867 = vlaneseq
    %v7868 = vshrl.u32 %v7867, 7
    %v7869 = vsub.s32 1, %v7868
    %v7870 = vrot.slane %v7861, %v7869
    %v7871 = vlaneseq
    %v7872 = vshrl.u32 %v7871, 7
    %v7873 = vsub.s32 2, %v7872
    %v7874 = vrot.slane %v7861, %v7873
    %v7875 = vlaneseq
    %v7876 = vshrl.u32 %v7875, 7
    %v7877 = vsub.s32 3, %v7876
    %v7878 = vrot.slane %v7861, %v7877
    %v7883 = vmul.f32 %v7853, %v7866
    %v7884 = vmul.f32 %v7854, %v7870
    %v7885 = vmul.f32 %v7855, %v7874
    %v7886 = vmul.f32 %v7856, %v7878
    %v7887 = vmul.f32 %v7857, %v7866
    %v7888 = vmul.f32 %v7858, %v7870
    %v7889 = vmul.f32 %v7859, %v7874
    %v7890 = vmul.f32 %v7860, %v7878
    %v7891 = vld [vmem:[#allocation13] sm:$0xf]
    %v7893 = vlaneseq
    %v7894 = vshrl.u32 %v7893, 7
    %v7895 = vsub.s32 0, %v7894
    %v7896 = vrot.slane %v7891, %v7895
    %v7897 = vlaneseq
    %v7898 = vshrl.u32 %v7897, 7
    %v7899 = vsub.s32 1, %v7898
    %v7900 = vrot.slane %v7891, %v7899
    %v7901 = vlaneseq
    %v7902 = vshrl.u32 %v7901, 7
    %v7903 = vsub.s32 2, %v7902
    %v7904 = vrot.slane %v7891, %v7903
    %v7905 = vlaneseq
    %v7906 = vshrl.u32 %v7905, 7
    %v7907 = vsub.s32 3, %v7906
    %v7908 = vrot.slane %v7891, %v7907
    %v7913 = vadd.f32 %v7883, %v7896
    %v7914 = vadd.f32 %v7884, %v7900
    %v7915 = vadd.f32 %v7885, %v7904
    %v7916 = vadd.f32 %v7886, %v7908
    %v7917 = vadd.f32 %v7887, %v7896
    %v7918 = vadd.f32 %v7888, %v7900
    %v7919 = vadd.f32 %v7889, %v7904
    %v7920 = vadd.f32 %v7890, %v7908
    %7921 = vst [vmem:[#allocation14] sm:$0xff] %v7913
    %7922 = vst [vmem:[#allocation14 + $0x8] sm:$0xff] %v7914
    %7923 = vst [vmem:[#allocation14 + $0x10] sm:$0xff] %v7915
    %7924 = vst [vmem:[#allocation14 + $0x18] sm:$0xff] %v7916
    %7925 = vst [vmem:[#allocation14 + $0x20] sm:$0xff] %v7917
    %7926 = vst [vmem:[#allocation14 + $0x28] sm:$0xff] %v7918
    %7927 = vst [vmem:[#allocation14 + $0x30] sm:$0xff] %v7919
    %7928 = vst [vmem:[#allocation14 + $0x38] sm:$0xff] %v7920
    // Predicated region
    $region58: #{tpu_custom_call.1} parent=1 // pred_check
      _
    $region59: #{tpu_custom_call.1} parent=1 // pred_check_branch
      %7930 = sbr.rel (0) target = $region61
    $region60: #{tpu_custom_call.1} parent=1 // pred_region
      %s7932 = ssub.s32 1024, 1024
      %7933 = vsyncadd [#allocation4], %s7932
      %s7934 = sshll.u32 [#allocation14], 4
      %s7935 = int_to_ptr.vmem [resolvable:$true] %s7934
      %7940 = dma.vmem_to_hbm [thread:$0]  %s7935, 1024, %s7, [#allocation4], 512, 512, 32
    $region61: #{tpu_custom_call.1} parent=1 // pred_fallthru
      _
    // Predicated region
    $region62: #{tpu_custom_call.1} parent=1 // pred_check
      _
    $region63: #{tpu_custom_call.1} parent=1 // pred_check_branch
      %7942 = sbr.rel (0) target = $region65
    $region64: #{tpu_custom_call.1} parent=1 // pred_region
      %7943 = dma.done [#allocation4], 1024
    $region65: #{tpu_custom_call.1} parent=1 // pred_fallthru
      _
    %7944 = vsyncpa [#allocation3], 1
    %7945 = vsyncpa [#allocation6], 1
    %7946 = vsyncpa [#allocation9], 1
    %7947 = vsyncpa [#allocation12], 1
    %7948 = vsyncpa [#allocation4], 1

</llo_original>
